<compile_context>
chip_gen: v7x
topology: tpu7x:2x2x1
jax: 0.10.0
libtpu: 0.0.40
codegen_flags: <defaults>
</compile_context>

<pallas_src>
import functools

import jax
import jax.numpy as jnp
from jax.experimental import pallas as pl
from jax.experimental.pallas import tpu as pltpu

EPS = 1e-5

# Fixed ConvNet geometry (28x28x1 input, as implied by fc = Linear(7*7*32, .)).
H1, W1, C1 = 28, 28, 16          # conv1 output spatial / channels
HP1 = H1 + 4                     # rows per image in the layer-1 slab (padded h)
PW1 = W1 // 2                    # 14 pooled columns after layer 1
H2, W2, C2 = 14, 14, 32          # conv2 output spatial / channels
PW2 = W2 // 2                    # 7 pooled columns after layer 2
PH2 = H2 // 2                    # 7 pooled rows after layer 2
BLK2 = 40                        # rows per image in the (stride-2 h) layer-2 slab
L1 = PW1 * C1                    # 224 lanes: layer-1 (w, c) groups == conv2 input lanes
L2 = PW2 * C2                    # 224 lanes: layer-2 (w, c) groups
NCLS_PAD = 128                   # lane-dense FC output width


# ----------------------------- the fused Pallas kernel -----------------------------

def _convnet_kernel(n_batch,
                    x1_ref, w1e_ref, w1o_ref, g1_ref, be1_ref, b1_ref, m1_ref,
                    s1_ref, s1t_ref,
                    w2e_ref, w2o_ref, g2_ref, be2_ref, b2_ref, m2_ref,
                    s2_ref, s2t_ref,
                    fcw_ref, fcb_ref,
                    out_ref, x2_ref):
    rows1 = n_batch * HP1            # rows in the layer-1 conv output slab
    rows2 = n_batch * BLK2           # rows in the layer-2 conv output slab

    def conv_bn_relu_wpool(tap_fn, we_ref, wo_ref, bias_ref, g_ref, be_ref,
                           mask_ref, s_ref, st_ref, count):
        # conv as 5 row-tap matmuls against block-Toeplitz weights; even/odd output
        # columns are produced separately so the pool's w-direction max is elementwise.
        ye = bias_ref[...]
        yo = bias_ref[...]
        for kh in range(5):
            tap = tap_fn(kh)
            ye = ye + jnp.dot(tap, we_ref[kh], preferred_element_type=jnp.float32)
            yo = yo + jnp.dot(tap, wo_ref[kh], preferred_element_type=jnp.float32)
        # BatchNorm2d (training-mode batch stats, biased variance) over valid rows only.
        # Lanes are (w, c): per-channel stats = masked sublane sum, then fold the w
        # groups with the (L, C) selector matrix S; broadcast back with S^T.
        msk = mask_ref[...]                                        # (rows, 1)
        lane_sum = jnp.sum((ye + yo) * msk, axis=0, keepdims=True)
        lane_sq = jnp.sum((ye * ye + yo * yo) * msk, axis=0, keepdims=True)
        ch_sum = jnp.dot(lane_sum, s_ref[...], preferred_element_type=jnp.float32)
        ch_sq = jnp.dot(lane_sq, s_ref[...], preferred_element_type=jnp.float32)
        mean = ch_sum / count
        var = jnp.maximum(ch_sq / count - mean * mean, 0.0)
        rstd = jax.lax.rsqrt(var + EPS)                            # EUP
        mean_l = jnp.dot(mean, st_ref[...], preferred_element_type=jnp.float32)
        rstd_l = jnp.dot(rstd, st_ref[...], preferred_element_type=jnp.float32)
        scale = rstd_l * g_ref[...]
        shift = be_ref[...] - mean_l * scale
        ae = jnp.maximum(ye * scale + shift, 0.0)                  # ReLU
        ao = jnp.maximum(yo * scale + shift, 0.0)
        return jnp.maximum(ae, ao)                                 # 2x2 pool, w direction

    # ---- layer 1: conv(1->16) + BN + ReLU + 2x2 max-pool -----------------------------
    z1 = conv_bn_relu_wpool(lambda kh: x1_ref[kh:kh + rows1, :],
                            w1e_ref, w1o_ref, b1_ref, g1_ref, be1_ref,
                            m1_ref, s1_ref, s1t_ref, float(n_batch * H1 * W1))
    z1m = jnp.maximum(z1[0:rows1 - 1, :], z1[1:rows1, :])          # 2x2 pool, h direction

    # ---- scatter pooled layer-1 output into the zero-padded layer-2 slab (VMEM) ------
    # layer-2 slab rows: n*BLK2 + 4 + 2*h2p (h2p = padded conv2 row); data starts at +8.
    x2_ref[...] = jnp.zeros(x2_ref.shape, x2_ref.dtype)
    for n in range(n_batch):
        x2_ref[n * BLK2 + 8:n * BLK2 + 8 + H1, :] = z1m[n * HP1:n * HP1 + H1, :]

    # ---- layer 2: conv(16->32) + BN + ReLU + 2x2 max-pool ----------------------------
    z2 = conv_bn_relu_wpool(lambda kh: x2_ref[2 * kh:2 * kh + rows2, :],
                            w2e_ref, w2o_ref, b2_ref, g2_ref, be2_ref,
                            m2_ref, s2_ref, s2t_ref, float(n_batch * H2 * W2))
    z2m = jnp.maximum(z2[0:rows2 - 2, :], z2[2:rows2, :])          # h direction (rows 2 apart)

    # ---- fully connected (classes padded to a lane-dense 128) ------------------------
    for n in range(n_batch):
        acc = fcb_ref[...]                                         # (1, 128)
        for ho in range(PH2):
            r = n * BLK2 + 4 + 4 * ho                              # pooled row ho of image n
            feat = z2m[r:r + 1, :]                                 # (1, 224) = (w, c) features
            acc = acc + jnp.dot(feat, fcw_ref[ho * L2:(ho + 1) * L2, :],
                                preferred_element_type=jnp.float32)
        out_ref[n:n + 1, :] = acc


# ----------------------------- one-time weight repacking -----------------------------

def _conv_toeplitz(w_oihw, w_in, w_out, parity):
    """(5, w_in*Cin, w_out*Cout) block-Toeplitz matrices: a 5x5 'same' conv becomes 5
    row-tap matmuls of the (rows, w_in*Cin) activation slab. Output columns are the
    spatial positions w = 2*wo + parity (even/odd split -> pool w-max is elementwise)."""
    cout, cin = w_oihw.shape[0], w_oihw.shape[1]
    wt = jnp.transpose(w_oihw, (2, 3, 1, 0))                 # (kh, kw, cin, cout)
    wi = jnp.arange(w_in)[:, None]                            # input column (unpadded)
    wo = jnp.arange(w_out)[None, :]                           # output column group
    kw = wi - 2 * wo - parity + 2                             # kernel tap hit by (wi, wo)
    valid = ((kw >= 0) & (kw < 5)).astype(w_oihw.dtype)
    t = jnp.take(wt, jnp.clip(kw, 0, 4), axis=1)              # (5, w_in, w_out, cin, cout)
    t = t * valid[None, :, :, None, None]
    t = jnp.transpose(t, (0, 1, 3, 2, 4))                     # (5, w_in, cin, w_out, cout)
    return t.reshape(5, w_in * cin, w_out * cout)


def pack_params(params):
    """One-time repack of PyTorch-layout parameters into the kernel's layouts."""
    ncls = params['fcw'].shape[0]
    p = {
        'w1e': _conv_toeplitz(params['w1'], W1, PW1, 0),      # (5, 28, 224)
        'w1o': _conv_toeplitz(params['w1'], W1, PW1, 1),
        'w2e': _conv_toeplitz(params['w2'], W2, PW2, 0),      # (5, 224, 224)
        'w2o': _conv_toeplitz(params['w2'], W2, PW2, 1),
        'b1': jnp.tile(params['b1'], PW1)[None, :],           # (1, 224) tiled over w
        'g1': jnp.tile(params['g1'], PW1)[None, :],
        'be1': jnp.tile(params['be1'], PW1)[None, :],
        'b2': jnp.tile(params['b2'], PW2)[None, :],
        'g2': jnp.tile(params['g2'], PW2)[None, :],
        'be2': jnp.tile(params['be2'], PW2)[None, :],
        's1': jnp.tile(jnp.eye(C1, dtype=jnp.float32), (PW1, 1)),   # (224, 16)
        's2': jnp.tile(jnp.eye(C2, dtype=jnp.float32), (PW2, 1)),   # (224, 32)
    }
    p['s1t'] = p['s1'].T
    p['s2t'] = p['s2'].T
    # PyTorch flattens NCHW (feature = c*49 + h*7 + w); the kernel produces (h, w, c).
    # Fold that permutation into the FC weight and pad classes to 128 lanes.
    fcw_k = params['fcw'].reshape(ncls, C2, PH2, PW2).transpose(2, 3, 1, 0)
    fcw_k = fcw_k.reshape(PH2 * PW2 * C2, ncls)
    p['fcw'] = jnp.pad(fcw_k, ((0, 0), (0, NCLS_PAD - ncls)))
    p['fcb'] = jnp.pad(params['fcb'], (0, NCLS_PAD - ncls))[None, :]
    return p, ncls


# ----------------------------- forward wrapper -----------------------------

def convnet_forward(x_nchw, packed, num_classes):
    n = x_nchw.shape[0]
    x = x_nchw[:, 0, :, :].astype(jnp.float32)                       # (N, 28, 28), Cin=1
    # layer-1 slab: rows = (image, padded h), lanes = w; +8 zero rows for tap overrun.
    x1 = jnp.pad(x, ((0, 0), (2, 2), (0, 0))).reshape(n * HP1, W1)
    x1 = jnp.pad(x1, ((0, 8), (0, 0)))                               # (N*32+8, 28)

    # Validity masks for the BN batch statistics (exclude padded / garbage rows).
    r1 = jnp.arange(n * HP1)
    m1 = ((r1 % HP1) < H1).astype(jnp.float32)[:, None]              # (N*32, 1)
    r2 = jnp.arange(n * BLK2) % BLK2
    m2 = ((r2 >= 4) & (r2 < 4 + 2 * H2) & (r2 % 2 == 0)).astype(jnp.float32)[:, None]

    args = (x1, packed['w1e'], packed['w1o'], packed['g1'], packed['be1'],
            packed['b1'], m1, packed['s1'], packed['s1t'],
            packed['w2e'], packed['w2o'], packed['g2'], packed['be2'],
            packed['b2'], m2, packed['s2'], packed['s2t'],
            packed['fcw'], packed['fcb'])

    out = pl.pallas_call(
        functools.partial(_convnet_kernel, n),
        out_shape=jax.ShapeDtypeStruct((n, NCLS_PAD), jnp.float32),
        in_specs=[pl.BlockSpec(memory_space=pltpu.MemorySpace.VMEM) for _ in args],
        out_specs=pl.BlockSpec(memory_space=pltpu.MemorySpace.VMEM),
        scratch_shapes=[pltpu.VMEM((n * BLK2 + 8, L1), jnp.float32)],  # padded conv2 input
    )(*args)
    return out[:, :num_classes]


# ----------------------------- pure-JAX reference (for checking) -----------------------------

def reference_forward(x_nchw, params):
    def conv(x, w, b):
        y = jax.lax.conv_general_dilated(
            x, w, (1, 1), ((2, 2), (2, 2)),
            dimension_numbers=('NCHW', 'OIHW', 'NCHW'))
        return y + b[None, :, None, None]

    def bn(x, g, be):
        mean = jnp.mean(x, axis=(0, 2, 3), keepdims=True)
        var = jnp.mean((x - mean) ** 2, axis=(0, 2, 3), keepdims=True)
        return (g[None, :, None, None] * (x - mean) / jnp.sqrt(var + EPS)
                + be[None, :, None, None])

    def pool(x):
        n, c, h, w = x.shape
        return x.reshape(n, c, h // 2, 2, w // 2, 2).max(axis=(3, 5))

    y = pool(jnp.maximum(bn(conv(x_nchw, params['w1'], params['b1']),
                            params['g1'], params['be1']), 0.0))
    y = pool(jnp.maximum(bn(conv(y, params['w2'], params['b2']),
                            params['g2'], params['be2']), 0.0))
    flat = y.reshape(y.shape[0], -1)
    return flat @ params['fcw'].T + params['fcb']


# ----------------------------- main -----------------------------

if __name__ == "__main__":
    # TODO(synk): the DDP / torch.distributed training wrapper has no single-kernel
    # equivalent; only the ConvNet forward pass is implemented here.
    key = jax.random.PRNGKey(0)
    ks = jax.random.split(key, 11)
    num_classes = 10
    params = {
        'w1': 0.1 * jax.random.normal(ks[0], (16, 1, 5, 5), jnp.float32),
        'b1': 0.1 * jax.random.normal(ks[1], (16,), jnp.float32),
        'g1': 1.0 + 0.1 * jax.random.normal(ks[2], (16,), jnp.float32),
        'be1': 0.1 * jax.random.normal(ks[3], (16,), jnp.float32),
        'w2': 0.1 * jax.random.normal(ks[4], (32, 16, 5, 5), jnp.float32),
        'b2': 0.1 * jax.random.normal(ks[5], (32,), jnp.float32),
        'g2': 1.0 + 0.1 * jax.random.normal(ks[6], (32,), jnp.float32),
        'be2': 0.1 * jax.random.normal(ks[7], (32,), jnp.float32),
        'fcw': 0.05 * jax.random.normal(ks[8], (num_classes, 7 * 7 * 32), jnp.float32),
        'fcb': 0.05 * jax.random.normal(ks[9], (num_classes,), jnp.float32),
    }
    # Spatial size must be 28x28 (MNIST) so the fc sees 7*7*32 features; batch=2.
    x = jax.random.normal(ks[10], (2, 1, 28, 28), jnp.float32)

    packed, ncls = pack_params(params)            # one-time weight repack (no per-call transposes)
    out = jax.block_until_ready(convnet_forward(x, packed, ncls))
    ref = jax.block_until_ready(reference_forward(x, params))

    assert out.shape == (2, num_classes), out.shape
    if not bool(jnp.allclose(out, ref, rtol=1e-2, atol=1e-2)):
        raise AssertionError(
            f"Pallas/ref mismatch, max|diff|={float(jnp.max(jnp.abs(out - ref)))}")
    print("KERNEL_OK")
</pallas_src>

<mosaic_0001>
module attributes {stable_mosaic.version = 11 : i64} {
  func.func @_convnet_kernel(%arg0: memref<72x28xf32, #tpu.memory_space<vmem>>, %arg1: memref<5x28x224xf32, #tpu.memory_space<vmem>>, %arg2: memref<5x28x224xf32, #tpu.memory_space<vmem>>, %arg3: memref<1x224xf32, #tpu.memory_space<vmem>>, %arg4: memref<1x224xf32, #tpu.memory_space<vmem>>, %arg5: memref<1x224xf32, #tpu.memory_space<vmem>>, %arg6: memref<64x1xf32, #tpu.memory_space<vmem>>, %arg7: memref<224x16xf32, #tpu.memory_space<vmem>>, %arg8: memref<16x224xf32, #tpu.memory_space<vmem>>, %arg9: memref<5x224x224xf32, #tpu.memory_space<vmem>>, %arg10: memref<5x224x224xf32, #tpu.memory_space<vmem>>, %arg11: memref<1x224xf32, #tpu.memory_space<vmem>>, %arg12: memref<1x224xf32, #tpu.memory_space<vmem>>, %arg13: memref<1x224xf32, #tpu.memory_space<vmem>>, %arg14: memref<80x1xf32, #tpu.memory_space<vmem>>, %arg15: memref<224x32xf32, #tpu.memory_space<vmem>>, %arg16: memref<32x224xf32, #tpu.memory_space<vmem>>, %arg17: memref<1568x128xf32, #tpu.memory_space<vmem>>, %arg18: memref<1x128xf32, #tpu.memory_space<vmem>>, %arg19: memref<2x128xf32, #tpu.memory_space<vmem>>, %arg20: memref<88x224xf32, #tpu.memory_space<vmem>>) attributes {dimension_semantics = [], scalar_prefetch = 0 : i64, scratch_operands = 1 : i64, tpu.core_type = #tpu.core_type<tc>} {
    %c0 = arith.constant 0 : index
    %c0_0 = arith.constant 0 : index
    %0 = vector.load %arg5[%c0, %c0_0] : memref<1x224xf32, #tpu.memory_space<vmem>>, vector<1x224xf32>
    %c0_1 = arith.constant 0 : index
    %c0_2 = arith.constant 0 : index
    %1 = vector.load %arg5[%c0_1, %c0_2] : memref<1x224xf32, #tpu.memory_space<vmem>>, vector<1x224xf32>
    %c0_3 = arith.constant 0 : index
    %c0_4 = arith.constant 0 : index
    %2 = vector.load %arg0[%c0_3, %c0_4] : memref<72x28xf32, #tpu.memory_space<vmem>>, vector<64x28xf32>
    %c0_5 = arith.constant 0 : index
    %c0_6 = arith.constant 0 : index
    %c0_7 = arith.constant 0 : index
    %3 = vector.load %arg1[%c0_5, %c0_6, %c0_7] : memref<5x28x224xf32, #tpu.memory_space<vmem>>, vector<1x28x224xf32>
    %4 = vector.shape_cast %3 : vector<1x28x224xf32> to vector<28x224xf32>
    %cst = arith.constant dense<0.000000e+00> : vector<64x224xf32>
    %5 = tpu.matmul %2, %4, %cst {dimension_numbers = #tpu.dot_dimension_numbers<[1], [0], [0], [1], [0, 0, 1, 1], [], []>} : vector<64x28xf32>, vector<28x224xf32>, vector<64x224xf32> -> vector<64x224xf32>
    %6 = vector.broadcast %0 : vector<1x224xf32> to vector<64x224xf32>
    %7 = arith.addf %6, %5 : vector<64x224xf32>
    %c0_8 = arith.constant 0 : index
    %c0_9 = arith.constant 0 : index
    %c0_10 = arith.constant 0 : index
    %8 = vector.load %arg2[%c0_8, %c0_9, %c0_10] : memref<5x28x224xf32, #tpu.memory_space<vmem>>, vector<1x28x224xf32>
    %9 = vector.shape_cast %8 : vector<1x28x224xf32> to vector<28x224xf32>
    %cst_11 = arith.constant dense<0.000000e+00> : vector<64x224xf32>
    %10 = tpu.matmul %2, %9, %cst_11 {dimension_numbers = #tpu.dot_dimension_numbers<[1], [0], [0], [1], [0, 0, 1, 1], [], []>} : vector<64x28xf32>, vector<28x224xf32>, vector<64x224xf32> -> vector<64x224xf32>
    %11 = vector.broadcast %1 : vector<1x224xf32> to vector<64x224xf32>
    %12 = arith.addf %11, %10 : vector<64x224xf32>
    %c1 = arith.constant 1 : index
    %c0_12 = arith.constant 0 : index
    %13 = vector.load %arg0[%c1, %c0_12] : memref<72x28xf32, #tpu.memory_space<vmem>>, vector<64x28xf32>
    %c1_13 = arith.constant 1 : index
    %c0_14 = arith.constant 0 : index
    %c0_15 = arith.constant 0 : index
    %14 = vector.load %arg1[%c1_13, %c0_14, %c0_15] : memref<5x28x224xf32, #tpu.memory_space<vmem>>, vector<1x28x224xf32>
    %15 = vector.shape_cast %14 : vector<1x28x224xf32> to vector<28x224xf32>
    %cst_16 = arith.constant dense<0.000000e+00> : vector<64x224xf32>
    %16 = tpu.matmul %13, %15, %cst_16 {dimension_numbers = #tpu.dot_dimension_numbers<[1], [0], [0], [1], [0, 0, 1, 1], [], []>} : vector<64x28xf32>, vector<28x224xf32>, vector<64x224xf32> -> vector<64x224xf32>
    %17 = arith.addf %7, %16 : vector<64x224xf32>
    %c1_17 = arith.constant 1 : index
    %c0_18 = arith.constant 0 : index
    %c0_19 = arith.constant 0 : index
    %18 = vector.load %arg2[%c1_17, %c0_18, %c0_19] : memref<5x28x224xf32, #tpu.memory_space<vmem>>, vector<1x28x224xf32>
    %19 = vector.shape_cast %18 : vector<1x28x224xf32> to vector<28x224xf32>
    %cst_20 = arith.constant dense<0.000000e+00> : vector<64x224xf32>
    %20 = tpu.matmul %13, %19, %cst_20 {dimension_numbers = #tpu.dot_dimension_numbers<[1], [0], [0], [1], [0, 0, 1, 1], [], []>} : vector<64x28xf32>, vector<28x224xf32>, vector<64x224xf32> -> vector<64x224xf32>
    %21 = arith.addf %12, %20 : vector<64x224xf32>
    %c2 = arith.constant 2 : index
    %c0_21 = arith.constant 0 : index
    %22 = vector.load %arg0[%c2, %c0_21] : memref<72x28xf32, #tpu.memory_space<vmem>>, vector<64x28xf32>
    %c2_22 = arith.constant 2 : index
    %c0_23 = arith.constant 0 : index
    %c0_24 = arith.constant 0 : index
    %23 = vector.load %arg1[%c2_22, %c0_23, %c0_24] : memref<5x28x224xf32, #tpu.memory_space<vmem>>, vector<1x28x224xf32>
    %24 = vector.shape_cast %23 : vector<1x28x224xf32> to vector<28x224xf32>
    %cst_25 = arith.constant dense<0.000000e+00> : vector<64x224xf32>
    %25 = tpu.matmul %22, %24, %cst_25 {dimension_numbers = #tpu.dot_dimension_numbers<[1], [0], [0], [1], [0, 0, 1, 1], [], []>} : vector<64x28xf32>, vector<28x224xf32>, vector<64x224xf32> -> vector<64x224xf32>
    %26 = arith.addf %17, %25 : vector<64x224xf32>
    %c2_26 = arith.constant 2 : index
    %c0_27 = arith.constant 0 : index
    %c0_28 = arith.constant 0 : index
    %27 = vector.load %arg2[%c2_26, %c0_27, %c0_28] : memref<5x28x224xf32, #tpu.memory_space<vmem>>, vector<1x28x224xf32>
    %28 = vector.shape_cast %27 : vector<1x28x224xf32> to vector<28x224xf32>
    %cst_29 = arith.constant dense<0.000000e+00> : vector<64x224xf32>
    %29 = tpu.matmul %22, %28, %cst_29 {dimension_numbers = #tpu.dot_dimension_numbers<[1], [0], [0], [1], [0, 0, 1, 1], [], []>} : vector<64x28xf32>, vector<28x224xf32>, vector<64x224xf32> -> vector<64x224xf32>
    %30 = arith.addf %21, %29 : vector<64x224xf32>
    %c3 = arith.constant 3 : index
    %c0_30 = arith.constant 0 : index
    %31 = vector.load %arg0[%c3, %c0_30] : memref<72x28xf32, #tpu.memory_space<vmem>>, vector<64x28xf32>
    %c3_31 = arith.constant 3 : index
    %c0_32 = arith.constant 0 : index
    %c0_33 = arith.constant 0 : index
    %32 = vector.load %arg1[%c3_31, %c0_32, %c0_33] : memref<5x28x224xf32, #tpu.memory_space<vmem>>, vector<1x28x224xf32>
    %33 = vector.shape_cast %32 : vector<1x28x224xf32> to vector<28x224xf32>
    %cst_34 = arith.constant dense<0.000000e+00> : vector<64x224xf32>
    %34 = tpu.matmul %31, %33, %cst_34 {dimension_numbers = #tpu.dot_dimension_numbers<[1], [0], [0], [1], [0, 0, 1, 1], [], []>} : vector<64x28xf32>, vector<28x224xf32>, vector<64x224xf32> -> vector<64x224xf32>
    %35 = arith.addf %26, %34 : vector<64x224xf32>
    %c3_35 = arith.constant 3 : index
    %c0_36 = arith.constant 0 : index
    %c0_37 = arith.constant 0 : index
    %36 = vector.load %arg2[%c3_35, %c0_36, %c0_37] : memref<5x28x224xf32, #tpu.memory_space<vmem>>, vector<1x28x224xf32>
    %37 = vector.shape_cast %36 : vector<1x28x224xf32> to vector<28x224xf32>
    %cst_38 = arith.constant dense<0.000000e+00> : vector<64x224xf32>
    %38 = tpu.matmul %31, %37, %cst_38 {dimension_numbers = #tpu.dot_dimension_numbers<[1], [0], [0], [1], [0, 0, 1, 1], [], []>} : vector<64x28xf32>, vector<28x224xf32>, vector<64x224xf32> -> vector<64x224xf32>
    %39 = arith.addf %30, %38 : vector<64x224xf32>
    %c4 = arith.constant 4 : index
    %c0_39 = arith.constant 0 : index
    %40 = vector.load %arg0[%c4, %c0_39] : memref<72x28xf32, #tpu.memory_space<vmem>>, vector<64x28xf32>
    %c4_40 = arith.constant 4 : index
    %c0_41 = arith.constant 0 : index
    %c0_42 = arith.constant 0 : index
    %41 = vector.load %arg1[%c4_40, %c0_41, %c0_42] : memref<5x28x224xf32, #tpu.memory_space<vmem>>, vector<1x28x224xf32>
    %42 = vector.shape_cast %41 : vector<1x28x224xf32> to vector<28x224xf32>
    %cst_43 = arith.constant dense<0.000000e+00> : vector<64x224xf32>
    %43 = tpu.matmul %40, %42, %cst_43 {dimension_numbers = #tpu.dot_dimension_numbers<[1], [0], [0], [1], [0, 0, 1, 1], [], []>} : vector<64x28xf32>, vector<28x224xf32>, vector<64x224xf32> -> vector<64x224xf32>
    %44 = arith.addf %35, %43 : vector<64x224xf32>
    %c4_44 = arith.constant 4 : index
    %c0_45 = arith.constant 0 : index
    %c0_46 = arith.constant 0 : index
    %45 = vector.load %arg2[%c4_44, %c0_45, %c0_46] : memref<5x28x224xf32, #tpu.memory_space<vmem>>, vector<1x28x224xf32>
    %46 = vector.shape_cast %45 : vector<1x28x224xf32> to vector<28x224xf32>
    %cst_47 = arith.constant dense<0.000000e+00> : vector<64x224xf32>
    %47 = tpu.matmul %40, %46, %cst_47 {dimension_numbers = #tpu.dot_dimension_numbers<[1], [0], [0], [1], [0, 0, 1, 1], [], []>} : vector<64x28xf32>, vector<28x224xf32>, vector<64x224xf32> -> vector<64x224xf32>
    %48 = arith.addf %39, %47 : vector<64x224xf32>
    %c0_48 = arith.constant 0 : index
    %c0_49 = arith.constant 0 : index
    %49 = vector.load %arg6[%c0_48, %c0_49] : memref<64x1xf32, #tpu.memory_space<vmem>>, vector<64x1xf32>
    %50 = arith.addf %44, %48 : vector<64x224xf32>
    %51 = vector.broadcast %49 : vector<64x1xf32> to vector<64x224xf32>
    %52 = arith.mulf %50, %51 : vector<64x224xf32>
    %cst_50 = arith.constant dense<0.000000e+00> : vector<224xf32>
    %53 = vector.multi_reduction <add>, %52, %cst_50 [0] : vector<64x224xf32> to vector<224xf32>
    %54 = vector.shape_cast %53 : vector<224xf32> to vector<1x224xf32>
    %55 = arith.mulf %44, %44 : vector<64x224xf32>
    %56 = arith.mulf %48, %48 : vector<64x224xf32>
    %57 = arith.addf %55, %56 : vector<64x224xf32>
    %58 = vector.broadcast %49 : vector<64x1xf32> to vector<64x224xf32>
    %59 = arith.mulf %57, %58 : vector<64x224xf32>
    %cst_51 = arith.constant dense<0.000000e+00> : vector<224xf32>
    %60 = vector.multi_reduction <add>, %59, %cst_51 [0] : vector<64x224xf32> to vector<224xf32>
    %61 = vector.shape_cast %60 : vector<224xf32> to vector<1x224xf32>
    %c0_52 = arith.constant 0 : index
    %c0_53 = arith.constant 0 : index
    %62 = vector.load %arg7[%c0_52, %c0_53] : memref<224x16xf32, #tpu.memory_space<vmem>>, vector<224x16xf32>
    %cst_54 = arith.constant dense<0.000000e+00> : vector<1x16xf32>
    %63 = tpu.matmul %54, %62, %cst_54 {dimension_numbers = #tpu.dot_dimension_numbers<[1], [0], [0], [1], [0, 0, 1, 1], [], []>} : vector<1x224xf32>, vector<224x16xf32>, vector<1x16xf32> -> vector<1x16xf32>
    %c0_55 = arith.constant 0 : index
    %c0_56 = arith.constant 0 : index
    %64 = vector.load %arg7[%c0_55, %c0_56] : memref<224x16xf32, #tpu.memory_space<vmem>>, vector<224x16xf32>
    %cst_57 = arith.constant dense<0.000000e+00> : vector<1x16xf32>
    %65 = tpu.matmul %61, %64, %cst_57 {dimension_numbers = #tpu.dot_dimension_numbers<[1], [0], [0], [1], [0, 0, 1, 1], [], []>} : vector<1x224xf32>, vector<224x16xf32>, vector<1x16xf32> -> vector<1x16xf32>
    %cst_58 = arith.constant 1.568000e+03 : f32
    %66 = vector.broadcast %cst_58 : f32 to vector<1x16xf32>
    %67 = arith.divf %63, %66 : vector<1x16xf32>
    %cst_59 = arith.constant 1.568000e+03 : f32
    %68 = vector.broadcast %cst_59 : f32 to vector<1x16xf32>
    %69 = arith.divf %65, %68 : vector<1x16xf32>
    %70 = arith.mulf %67, %67 : vector<1x16xf32>
    %71 = arith.subf %69, %70 : vector<1x16xf32>
    %cst_60 = arith.constant 0.000000e+00 : f32
    %72 = vector.broadcast %cst_60 : f32 to vector<1x16xf32>
    %73 = arith.maximumf %71, %72 : vector<1x16xf32>
    %cst_61 = arith.constant 9.99999974E-6 : f32
    %74 = vector.broadcast %cst_61 : f32 to vector<1x16xf32>
    %75 = arith.addf %73, %74 : vector<1x16xf32>
    %76 = math.rsqrt %75 : vector<1x16xf32>
    %c0_62 = arith.constant 0 : index
    %c0_63 = arith.constant 0 : index
    %77 = vector.load %arg8[%c0_62, %c0_63] : memref<16x224xf32, #tpu.memory_space<vmem>>, vector<16x224xf32>
    %cst_64 = arith.constant dense<0.000000e+00> : vector<1x224xf32>
    %78 = tpu.matmul %67, %77, %cst_64 {dimension_numbers = #tpu.dot_dimension_numbers<[1], [0], [0], [1], [0, 0, 1, 1], [], []>} : vector<1x16xf32>, vector<16x224xf32>, vector<1x224xf32> -> vector<1x224xf32>
    %c0_65 = arith.constant 0 : index
    %c0_66 = arith.constant 0 : index
    %79 = vector.load %arg8[%c0_65, %c0_66] : memref<16x224xf32, #tpu.memory_space<vmem>>, vector<16x224xf32>
    %cst_67 = arith.constant dense<0.000000e+00> : vector<1x224xf32>
    %80 = tpu.matmul %76, %79, %cst_67 {dimension_numbers = #tpu.dot_dimension_numbers<[1], [0], [0], [1], [0, 0, 1, 1], [], []>} : vector<1x16xf32>, vector<16x224xf32>, vector<1x224xf32> -> vector<1x224xf32>
    %c0_68 = arith.constant 0 : index
    %c0_69 = arith.constant 0 : index
    %81 = vector.load %arg3[%c0_68, %c0_69] : memref<1x224xf32, #tpu.memory_space<vmem>>, vector<1x224xf32>
    %82 = arith.mulf %80, %81 : vector<1x224xf32>
    %c0_70 = arith.constant 0 : index
    %c0_71 = arith.constant 0 : index
    %83 = vector.load %arg4[%c0_70, %c0_71] : memref<1x224xf32, #tpu.memory_space<vmem>>, vector<1x224xf32>
    %84 = arith.mulf %78, %82 : vector<1x224xf32>
    %85 = arith.subf %83, %84 : vector<1x224xf32>
    %86 = vector.broadcast %82 : vector<1x224xf32> to vector<64x224xf32>
    %87 = arith.mulf %44, %86 : vector<64x224xf32>
    %88 = vector.broadcast %85 : vector<1x224xf32> to vector<64x224xf32>
    %89 = arith.addf %87, %88 : vector<64x224xf32>
    %cst_72 = arith.constant 0.000000e+00 : f32
    %90 = vector.broadcast %cst_72 : f32 to vector<64x224xf32>
    %91 = arith.maximumf %89, %90 : vector<64x224xf32>
    %92 = vector.broadcast %82 : vector<1x224xf32> to vector<64x224xf32>
    %93 = arith.mulf %48, %92 : vector<64x224xf32>
    %94 = vector.broadcast %85 : vector<1x224xf32> to vector<64x224xf32>
    %95 = arith.addf %93, %94 : vector<64x224xf32>
    %cst_73 = arith.constant 0.000000e+00 : f32
    %96 = vector.broadcast %cst_73 : f32 to vector<64x224xf32>
    %97 = arith.maximumf %95, %96 : vector<64x224xf32>
    %98 = arith.maximumf %91, %97 : vector<64x224xf32>
    %99 = vector.extract_strided_slice %98 {offsets = [0, 0], sizes = [63, 224], strides = [1, 1]} : vector<64x224xf32> to vector<63x224xf32>
    %100 = vector.extract_strided_slice %98 {offsets = [1, 0], sizes = [63, 224], strides = [1, 1]} : vector<64x224xf32> to vector<63x224xf32>
    %101 = arith.maximumf %99, %100 : vector<63x224xf32>
    %cst_74 = arith.constant 0.000000e+00 : f32
    %102 = vector.broadcast %cst_74 : f32 to vector<88x224xf32>
    %c0_75 = arith.constant 0 : index
    %c0_76 = arith.constant 0 : index
    %103 = vector.load %arg20[%c0_75, %c0_76] : memref<88x224xf32, #tpu.memory_space<vmem>>, vector<88x224xf32>
    tpu.vector_store %arg20[%c0_75, %c0_76], %102 {strides = array<i32>} : memref<88x224xf32, #tpu.memory_space<vmem>>, vector<88x224xf32>,
    %104 = vector.extract_strided_slice %101 {offsets = [0, 0], sizes = [28, 224], strides = [1, 1]} : vector<63x224xf32> to vector<28x224xf32>
    %c8 = arith.constant 8 : index
    %c0_77 = arith.constant 0 : index
    %105 = vector.load %arg20[%c8, %c0_77] : memref<88x224xf32, #tpu.memory_space<vmem>>, vector<28x224xf32>
    tpu.vector_store %arg20[%c8, %c0_77], %104 {strides = array<i32>} : memref<88x224xf32, #tpu.memory_space<vmem>>, vector<28x224xf32>,
    %106 = vector.extract_strided_slice %101 {offsets = [32, 0], sizes = [28, 224], strides = [1, 1]} : vector<63x224xf32> to vector<28x224xf32>
    %c48 = arith.constant 48 : index
    %c0_78 = arith.constant 0 : index
    %107 = vector.load %arg20[%c48, %c0_78] : memref<88x224xf32, #tpu.memory_space<vmem>>, vector<28x224xf32>
    tpu.vector_store %arg20[%c48, %c0_78], %106 {strides = array<i32>} : memref<88x224xf32, #tpu.memory_space<vmem>>, vector<28x224xf32>,
    %c0_79 = arith.constant 0 : index
    %c0_80 = arith.constant 0 : index
    %108 = vector.load %arg13[%c0_79, %c0_80] : memref<1x224xf32, #tpu.memory_space<vmem>>, vector<1x224xf32>
    %c0_81 = arith.constant 0 : index
    %c0_82 = arith.constant 0 : index
    %109 = vector.load %arg13[%c0_81, %c0_82] : memref<1x224xf32, #tpu.memory_space<vmem>>, vector<1x224xf32>
    %c0_83 = arith.constant 0 : index
    %c0_84 = arith.constant 0 : index
    %110 = vector.load %arg20[%c0_83, %c0_84] : memref<88x224xf32, #tpu.memory_space<vmem>>, vector<80x224xf32>
    %c0_85 = arith.constant 0 : index
    %c0_86 = arith.constant 0 : index
    %c0_87 = arith.constant 0 : index
    %111 = vector.load %arg9[%c0_85, %c0_86, %c0_87] : memref<5x224x224xf32, #tpu.memory_space<vmem>>, vector<1x224x224xf32>
    %112 = vector.shape_cast %111 : vector<1x224x224xf32> to vector<224x224xf32>
    %cst_88 = arith.constant dense<0.000000e+00> : vector<80x224xf32>
    %113 = tpu.matmul %110, %112, %cst_88 {dimension_numbers = #tpu.dot_dimension_numbers<[1], [0], [0], [1], [0, 0, 1, 1], [], []>} : vector<80x224xf32>, vector<224x224xf32>, vector<80x224xf32> -> vector<80x224xf32>
    %114 = vector.broadcast %108 : vector<1x224xf32> to vector<80x224xf32>
    %115 = arith.addf %114, %113 : vector<80x224xf32>
    %c0_89 = arith.constant 0 : index
    %c0_90 = arith.constant 0 : index
    %c0_91 = arith.constant 0 : index
    %116 = vector.load %arg10[%c0_89, %c0_90, %c0_91] : memref<5x224x224xf32, #tpu.memory_space<vmem>>, vector<1x224x224xf32>
    %117 = vector.shape_cast %116 : vector<1x224x224xf32> to vector<224x224xf32>
    %cst_92 = arith.constant dense<0.000000e+00> : vector<80x224xf32>
    %118 = tpu.matmul %110, %117, %cst_92 {dimension_numbers = #tpu.dot_dimension_numbers<[1], [0], [0], [1], [0, 0, 1, 1], [], []>} : vector<80x224xf32>, vector<224x224xf32>, vector<80x224xf32> -> vector<80x224xf32>
    %119 = vector.broadcast %109 : vector<1x224xf32> to vector<80x224xf32>
    %120 = arith.addf %119, %118 : vector<80x224xf32>
    %c2_93 = arith.constant 2 : index
    %c0_94 = arith.constant 0 : index
    %121 = vector.load %arg20[%c2_93, %c0_94] : memref<88x224xf32, #tpu.memory_space<vmem>>, vector<80x224xf32>
    %c1_95 = arith.constant 1 : index
    %c0_96 = arith.constant 0 : index
    %c0_97 = arith.constant 0 : index
    %122 = vector.load %arg9[%c1_95, %c0_96, %c0_97] : memref<5x224x224xf32, #tpu.memory_space<vmem>>, vector<1x224x224xf32>
    %123 = vector.shape_cast %122 : vector<1x224x224xf32> to vector<224x224xf32>
    %cst_98 = arith.constant dense<0.000000e+00> : vector<80x224xf32>
    %124 = tpu.matmul %121, %123, %cst_98 {dimension_numbers = #tpu.dot_dimension_numbers<[1], [0], [0], [1], [0, 0, 1, 1], [], []>} : vector<80x224xf32>, vector<224x224xf32>, vector<80x224xf32> -> vector<80x224xf32>
    %125 = arith.addf %115, %124 : vector<80x224xf32>
    %c1_99 = arith.constant 1 : index
    %c0_100 = arith.constant 0 : index
    %c0_101 = arith.constant 0 : index
    %126 = vector.load %arg10[%c1_99, %c0_100, %c0_101] : memref<5x224x224xf32, #tpu.memory_space<vmem>>, vector<1x224x224xf32>
    %127 = vector.shape_cast %126 : vector<1x224x224xf32> to vector<224x224xf32>
    %cst_102 = arith.constant dense<0.000000e+00> : vector<80x224xf32>
    %128 = tpu.matmul %121, %127, %cst_102 {dimension_numbers = #tpu.dot_dimension_numbers<[1], [0], [0], [1], [0, 0, 1, 1], [], []>} : vector<80x224xf32>, vector<224x224xf32>, vector<80x224xf32> -> vector<80x224xf32>
    %129 = arith.addf %120, %128 : vector<80x224xf32>
    %c4_103 = arith.constant 4 : index
    %c0_104 = arith.constant 0 : index
    %130 = vector.load %arg20[%c4_103, %c0_104] : memref<88x224xf32, #tpu.memory_space<vmem>>, vector<80x224xf32>
    %c2_105 = arith.constant 2 : index
    %c0_106 = arith.constant 0 : index
    %c0_107 = arith.constant 0 : index
    %131 = vector.load %arg9[%c2_105, %c0_106, %c0_107] : memref<5x224x224xf32, #tpu.memory_space<vmem>>, vector<1x224x224xf32>
    %132 = vector.shape_cast %131 : vector<1x224x224xf32> to vector<224x224xf32>
    %cst_108 = arith.constant dense<0.000000e+00> : vector<80x224xf32>
    %133 = tpu.matmul %130, %132, %cst_108 {dimension_numbers = #tpu.dot_dimension_numbers<[1], [0], [0], [1], [0, 0, 1, 1], [], []>} : vector<80x224xf32>, vector<224x224xf32>, vector<80x224xf32> -> vector<80x224xf32>
    %134 = arith.addf %125, %133 : vector<80x224xf32>
    %c2_109 = arith.constant 2 : index
    %c0_110 = arith.constant 0 : index
    %c0_111 = arith.constant 0 : index
    %135 = vector.load %arg10[%c2_109, %c0_110, %c0_111] : memref<5x224x224xf32, #tpu.memory_space<vmem>>, vector<1x224x224xf32>
    %136 = vector.shape_cast %135 : vector<1x224x224xf32> to vector<224x224xf32>
    %cst_112 = arith.constant dense<0.000000e+00> : vector<80x224xf32>
    %137 = tpu.matmul %130, %136, %cst_112 {dimension_numbers = #tpu.dot_dimension_numbers<[1], [0], [0], [1], [0, 0, 1, 1], [], []>} : vector<80x224xf32>, vector<224x224xf32>, vector<80x224xf32> -> vector<80x224xf32>
    %138 = arith.addf %129, %137 : vector<80x224xf32>
    %c6 = arith.constant 6 : index
    %c0_113 = arith.constant 0 : index
    %139 = vector.load %arg20[%c6, %c0_113] : memref<88x224xf32, #tpu.memory_space<vmem>>, vector<80x224xf32>
    %c3_114 = arith.constant 3 : index
    %c0_115 = arith.constant 0 : index
    %c0_116 = arith.constant 0 : index
    %140 = vector.load %arg9[%c3_114, %c0_115, %c0_116] : memref<5x224x224xf32, #tpu.memory_space<vmem>>, vector<1x224x224xf32>
    %141 = vector.shape_cast %140 : vector<1x224x224xf32> to vector<224x224xf32>
    %cst_117 = arith.constant dense<0.000000e+00> : vector<80x224xf32>
    %142 = tpu.matmul %139, %141, %cst_117 {dimension_numbers = #tpu.dot_dimension_numbers<[1], [0], [0], [1], [0, 0, 1, 1], [], []>} : vector<80x224xf32>, vector<224x224xf32>, vector<80x224xf32> -> vector<80x224xf32>
    %143 = arith.addf %134, %142 : vector<80x224xf32>
    %c3_118 = arith.constant 3 : index
    %c0_119 = arith.constant 0 : index
    %c0_120 = arith.constant 0 : index
    %144 = vector.load %arg10[%c3_118, %c0_119, %c0_120] : memref<5x224x224xf32, #tpu.memory_space<vmem>>, vector<1x224x224xf32>
    %145 = vector.shape_cast %144 : vector<1x224x224xf32> to vector<224x224xf32>
    %cst_121 = arith.constant dense<0.000000e+00> : vector<80x224xf32>
    %146 = tpu.matmul %139, %145, %cst_121 {dimension_numbers = #tpu.dot_dimension_numbers<[1], [0], [0], [1], [0, 0, 1, 1], [], []>} : vector<80x224xf32>, vector<224x224xf32>, vector<80x224xf32> -> vector<80x224xf32>
    %147 = arith.addf %138, %146 : vector<80x224xf32>
    %c8_122 = arith.constant 8 : index
    %c0_123 = arith.constant 0 : index
    %148 = vector.load %arg20[%c8_122, %c0_123] : memref<88x224xf32, #tpu.memory_space<vmem>>, vector<80x224xf32>
    %c4_124 = arith.constant 4 : index
    %c0_125 = arith.constant 0 : index
    %c0_126 = arith.constant 0 : index
    %149 = vector.load %arg9[%c4_124, %c0_125, %c0_126] : memref<5x224x224xf32, #tpu.memory_space<vmem>>, vector<1x224x224xf32>
    %150 = vector.shape_cast %149 : vector<1x224x224xf32> to vector<224x224xf32>
    %cst_127 = arith.constant dense<0.000000e+00> : vector<80x224xf32>
    %151 = tpu.matmul %148, %150, %cst_127 {dimension_numbers = #tpu.dot_dimension_numbers<[1], [0], [0], [1], [0, 0, 1, 1], [], []>} : vector<80x224xf32>, vector<224x224xf32>, vector<80x224xf32> -> vector<80x224xf32>
    %152 = arith.addf %143, %151 : vector<80x224xf32>
    %c4_128 = arith.constant 4 : index
    %c0_129 = arith.constant 0 : index
    %c0_130 = arith.constant 0 : index
    %153 = vector.load %arg10[%c4_128, %c0_129, %c0_130] : memref<5x224x224xf32, #tpu.memory_space<vmem>>, vector<1x224x224xf32>
    %154 = vector.shape_cast %153 : vector<1x224x224xf32> to vector<224x224xf32>
    %cst_131 = arith.constant dense<0.000000e+00> : vector<80x224xf32>
    %155 = tpu.matmul %148, %154, %cst_131 {dimension_numbers = #tpu.dot_dimension_numbers<[1], [0], [0], [1], [0, 0, 1, 1], [], []>} : vector<80x224xf32>, vector<224x224xf32>, vector<80x224xf32> -> vector<80x224xf32>
    %156 = arith.addf %147, %155 : vector<80x224xf32>
    %c0_132 = arith.constant 0 : index
    %c0_133 = arith.constant 0 : index
    %157 = vector.load %arg14[%c0_132, %c0_133] : memref<80x1xf32, #tpu.memory_space<vmem>>, vector<80x1xf32>
    %158 = arith.addf %152, %156 : vector<80x224xf32>
    %159 = vector.broadcast %157 : vector<80x1xf32> to vector<80x224xf32>
    %160 = arith.mulf %158, %159 : vector<80x224xf32>
    %cst_134 = arith.constant dense<0.000000e+00> : vector<224xf32>
    %161 = vector.multi_reduction <add>, %160, %cst_134 [0] : vector<80x224xf32> to vector<224xf32>
    %162 = vector.shape_cast %161 : vector<224xf32> to vector<1x224xf32>
    %163 = arith.mulf %152, %152 : vector<80x224xf32>
    %164 = arith.mulf %156, %156 : vector<80x224xf32>
    %165 = arith.addf %163, %164 : vector<80x224xf32>
    %166 = vector.broadcast %157 : vector<80x1xf32> to vector<80x224xf32>
    %167 = arith.mulf %165, %166 : vector<80x224xf32>
    %cst_135 = arith.constant dense<0.000000e+00> : vector<224xf32>
    %168 = vector.multi_reduction <add>, %167, %cst_135 [0] : vector<80x224xf32> to vector<224xf32>
    %169 = vector.shape_cast %168 : vector<224xf32> to vector<1x224xf32>
    %c0_136 = arith.constant 0 : index
    %c0_137 = arith.constant 0 : index
    %170 = vector.load %arg15[%c0_136, %c0_137] : memref<224x32xf32, #tpu.memory_space<vmem>>, vector<224x32xf32>
    %cst_138 = arith.constant dense<0.000000e+00> : vector<1x32xf32>
    %171 = tpu.matmul %162, %170, %cst_138 {dimension_numbers = #tpu.dot_dimension_numbers<[1], [0], [0], [1], [0, 0, 1, 1], [], []>} : vector<1x224xf32>, vector<224x32xf32>, vector<1x32xf32> -> vector<1x32xf32>
    %c0_139 = arith.constant 0 : index
    %c0_140 = arith.constant 0 : index
    %172 = vector.load %arg15[%c0_139, %c0_140] : memref<224x32xf32, #tpu.memory_space<vmem>>, vector<224x32xf32>
    %cst_141 = arith.constant dense<0.000000e+00> : vector<1x32xf32>
    %173 = tpu.matmul %169, %172, %cst_141 {dimension_numbers = #tpu.dot_dimension_numbers<[1], [0], [0], [1], [0, 0, 1, 1], [], []>} : vector<1x224xf32>, vector<224x32xf32>, vector<1x32xf32> -> vector<1x32xf32>
    %cst_142 = arith.constant 3.920000e+02 : f32
    %174 = vector.broadcast %cst_142 : f32 to vector<1x32xf32>
    %175 = arith.divf %171, %174 : vector<1x32xf32>
    %cst_143 = arith.constant 3.920000e+02 : f32
    %176 = vector.broadcast %cst_143 : f32 to vector<1x32xf32>
    %177 = arith.divf %173, %176 : vector<1x32xf32>
    %178 = arith.mulf %175, %175 : vector<1x32xf32>
    %179 = arith.subf %177, %178 : vector<1x32xf32>
    %cst_144 = arith.constant 0.000000e+00 : f32
    %180 = vector.broadcast %cst_144 : f32 to vector<1x32xf32>
    %181 = arith.maximumf %179, %180 : vector<1x32xf32>
    %cst_145 = arith.constant 9.99999974E-6 : f32
    %182 = vector.broadcast %cst_145 : f32 to vector<1x32xf32>
    %183 = arith.addf %181, %182 : vector<1x32xf32>
    %184 = math.rsqrt %183 : vector<1x32xf32>
    %c0_146 = arith.constant 0 : index
    %c0_147 = arith.constant 0 : index
    %185 = vector.load %arg16[%c0_146, %c0_147] : memref<32x224xf32, #tpu.memory_space<vmem>>, vector<32x224xf32>
    %cst_148 = arith.constant dense<0.000000e+00> : vector<1x224xf32>
    %186 = tpu.matmul %175, %185, %cst_148 {dimension_numbers = #tpu.dot_dimension_numbers<[1], [0], [0], [1], [0, 0, 1, 1], [], []>} : vector<1x32xf32>, vector<32x224xf32>, vector<1x224xf32> -> vector<1x224xf32>
    %c0_149 = arith.constant 0 : index
    %c0_150 = arith.constant 0 : index
    %187 = vector.load %arg16[%c0_149, %c0_150] : memref<32x224xf32, #tpu.memory_space<vmem>>, vector<32x224xf32>
    %cst_151 = arith.constant dense<0.000000e+00> : vector<1x224xf32>
    %188 = tpu.matmul %184, %187, %cst_151 {dimension_numbers = #tpu.dot_dimension_numbers<[1], [0], [0], [1], [0, 0, 1, 1], [], []>} : vector<1x32xf32>, vector<32x224xf32>, vector<1x224xf32> -> vector<1x224xf32>
    %c0_152 = arith.constant 0 : index
    %c0_153 = arith.constant 0 : index
    %189 = vector.load %arg11[%c0_152, %c0_153] : memref<1x224xf32, #tpu.memory_space<vmem>>, vector<1x224xf32>
    %190 = arith.mulf %188, %189 : vector<1x224xf32>
    %c0_154 = arith.constant 0 : index
    %c0_155 = arith.constant 0 : index
    %191 = vector.load %arg12[%c0_154, %c0_155] : memref<1x224xf32, #tpu.memory_space<vmem>>, vector<1x224xf32>
    %192 = arith.mulf %186, %190 : vector<1x224xf32>
    %193 = arith.subf %191, %192 : vector<1x224xf32>
    %194 = vector.broadcast %190 : vector<1x224xf32> to vector<80x224xf32>
    %195 = arith.mulf %152, %194 : vector<80x224xf32>
    %196 = vector.broadcast %193 : vector<1x224xf32> to vector<80x224xf32>
    %197 = arith.addf %195, %196 : vector<80x224xf32>
    %cst_156 = arith.constant 0.000000e+00 : f32
    %198 = vector.broadcast %cst_156 : f32 to vector<80x224xf32>
    %199 = arith.maximumf %197, %198 : vector<80x224xf32>
    %200 = vector.broadcast %190 : vector<1x224xf32> to vector<80x224xf32>
    %201 = arith.mulf %156, %200 : vector<80x224xf32>
    %202 = vector.broadcast %193 : vector<1x224xf32> to vector<80x224xf32>
    %203 = arith.addf %201, %202 : vector<80x224xf32>
    %cst_157 = arith.constant 0.000000e+00 : f32
    %204 = vector.broadcast %cst_157 : f32 to vector<80x224xf32>
    %205 = arith.maximumf %203, %204 : vector<80x224xf32>
    %206 = arith.maximumf %199, %205 : vector<80x224xf32>
    %207 = vector.extract_strided_slice %206 {offsets = [0, 0], sizes = [78, 224], strides = [1, 1]} : vector<80x224xf32> to vector<78x224xf32>
    %208 = vector.extract_strided_slice %206 {offsets = [2, 0], sizes = [78, 224], strides = [1, 1]} : vector<80x224xf32> to vector<78x224xf32>
    %209 = arith.maximumf %207, %208 : vector<78x224xf32>
    %c0_158 = arith.constant 0 : index
    %c0_159 = arith.constant 0 : index
    %210 = vector.load %arg18[%c0_158, %c0_159] : memref<1x128xf32, #tpu.memory_space<vmem>>, vector<1x128xf32>
    %211 = vector.extract_strided_slice %209 {offsets = [4, 0], sizes = [1, 224], strides = [1, 1]} : vector<78x224xf32> to vector<1x224xf32>
    %c0_160 = arith.constant 0 : index
    %c0_161 = arith.constant 0 : index
    %212 = vector.load %arg17[%c0_160, %c0_161] : memref<1568x128xf32, #tpu.memory_space<vmem>>, vector<224x128xf32>
    %cst_162 = arith.constant dense<0.000000e+00> : vector<1x128xf32>
    %213 = tpu.matmul %211, %212, %cst_162 {dimension_numbers = #tpu.dot_dimension_numbers<[1], [0], [0], [1], [0, 0, 1, 1], [], []>} : vector<1x224xf32>, vector<224x128xf32>, vector<1x128xf32> -> vector<1x128xf32>
    %214 = arith.addf %210, %213 : vector<1x128xf32>
    %215 = vector.extract_strided_slice %209 {offsets = [8, 0], sizes = [1, 224], strides = [1, 1]} : vector<78x224xf32> to vector<1x224xf32>
    %c224 = arith.constant 224 : index
    %c0_163 = arith.constant 0 : index
    %216 = vector.load %arg17[%c224, %c0_163] : memref<1568x128xf32, #tpu.memory_space<vmem>>, vector<224x128xf32>
    %cst_164 = arith.constant dense<0.000000e+00> : vector<1x128xf32>
    %217 = tpu.matmul %215, %216, %cst_164 {dimension_numbers = #tpu.dot_dimension_numbers<[1], [0], [0], [1], [0, 0, 1, 1], [], []>} : vector<1x224xf32>, vector<224x128xf32>, vector<1x128xf32> -> vector<1x128xf32>
    %218 = arith.addf %214, %217 : vector<1x128xf32>
    %219 = vector.extract_strided_slice %209 {offsets = [12, 0], sizes = [1, 224], strides = [1, 1]} : vector<78x224xf32> to vector<1x224xf32>
    %c448 = arith.constant 448 : index
    %c0_165 = arith.constant 0 : index
    %220 = vector.load %arg17[%c448, %c0_165] : memref<1568x128xf32, #tpu.memory_space<vmem>>, vector<224x128xf32>
    %cst_166 = arith.constant dense<0.000000e+00> : vector<1x128xf32>
    %221 = tpu.matmul %219, %220, %cst_166 {dimension_numbers = #tpu.dot_dimension_numbers<[1], [0], [0], [1], [0, 0, 1, 1], [], []>} : vector<1x224xf32>, vector<224x128xf32>, vector<1x128xf32> -> vector<1x128xf32>
    %222 = arith.addf %218, %221 : vector<1x128xf32>
    %223 = vector.extract_strided_slice %209 {offsets = [16, 0], sizes = [1, 224], strides = [1, 1]} : vector<78x224xf32> to vector<1x224xf32>
    %c672 = arith.constant 672 : index
    %c0_167 = arith.constant 0 : index
    %224 = vector.load %arg17[%c672, %c0_167] : memref<1568x128xf32, #tpu.memory_space<vmem>>, vector<224x128xf32>
    %cst_168 = arith.constant dense<0.000000e+00> : vector<1x128xf32>
    %225 = tpu.matmul %223, %224, %cst_168 {dimension_numbers = #tpu.dot_dimension_numbers<[1], [0], [0], [1], [0, 0, 1, 1], [], []>} : vector<1x224xf32>, vector<224x128xf32>, vector<1x128xf32> -> vector<1x128xf32>
    %226 = arith.addf %222, %225 : vector<1x128xf32>
    %227 = vector.extract_strided_slice %209 {offsets = [20, 0], sizes = [1, 224], strides = [1, 1]} : vector<78x224xf32> to vector<1x224xf32>
    %c896 = arith.constant 896 : index
    %c0_169 = arith.constant 0 : index
    %228 = vector.load %arg17[%c896, %c0_169] : memref<1568x128xf32, #tpu.memory_space<vmem>>, vector<224x128xf32>
    %cst_170 = arith.constant dense<0.000000e+00> : vector<1x128xf32>
    %229 = tpu.matmul %227, %228, %cst_170 {dimension_numbers = #tpu.dot_dimension_numbers<[1], [0], [0], [1], [0, 0, 1, 1], [], []>} : vector<1x224xf32>, vector<224x128xf32>, vector<1x128xf32> -> vector<1x128xf32>
    %230 = arith.addf %226, %229 : vector<1x128xf32>
    %231 = vector.extract_strided_slice %209 {offsets = [24, 0], sizes = [1, 224], strides = [1, 1]} : vector<78x224xf32> to vector<1x224xf32>
    %c1120 = arith.constant 1120 : index
    %c0_171 = arith.constant 0 : index
    %232 = vector.load %arg17[%c1120, %c0_171] : memref<1568x128xf32, #tpu.memory_space<vmem>>, vector<224x128xf32>
    %cst_172 = arith.constant dense<0.000000e+00> : vector<1x128xf32>
    %233 = tpu.matmul %231, %232, %cst_172 {dimension_numbers = #tpu.dot_dimension_numbers<[1], [0], [0], [1], [0, 0, 1, 1], [], []>} : vector<1x224xf32>, vector<224x128xf32>, vector<1x128xf32> -> vector<1x128xf32>
    %234 = arith.addf %230, %233 : vector<1x128xf32>
    %235 = vector.extract_strided_slice %209 {offsets = [28, 0], sizes = [1, 224], strides = [1, 1]} : vector<78x224xf32> to vector<1x224xf32>
    %c1344 = arith.constant 1344 : index
    %c0_173 = arith.constant 0 : index
    %236 = vector.load %arg17[%c1344, %c0_173] : memref<1568x128xf32, #tpu.memory_space<vmem>>, vector<224x128xf32>
    %cst_174 = arith.constant dense<0.000000e+00> : vector<1x128xf32>
    %237 = tpu.matmul %235, %236, %cst_174 {dimension_numbers = #tpu.dot_dimension_numbers<[1], [0], [0], [1], [0, 0, 1, 1], [], []>} : vector<1x224xf32>, vector<224x128xf32>, vector<1x128xf32> -> vector<1x128xf32>
    %238 = arith.addf %234, %237 : vector<1x128xf32>
    %c0_175 = arith.constant 0 : index
    %c0_176 = arith.constant 0 : index
    %239 = vector.load %arg19[%c0_175, %c0_176] : memref<2x128xf32, #tpu.memory_space<vmem>>, vector<1x128xf32>
    tpu.vector_store %arg19[%c0_175, %c0_176], %238 {strides = array<i32>} : memref<2x128xf32, #tpu.memory_space<vmem>>, vector<1x128xf32>,
    %c0_177 = arith.constant 0 : index
    %c0_178 = arith.constant 0 : index
    %240 = vector.load %arg18[%c0_177, %c0_178] : memref<1x128xf32, #tpu.memory_space<vmem>>, vector<1x128xf32>
    %241 = vector.extract_strided_slice %209 {offsets = [44, 0], sizes = [1, 224], strides = [1, 1]} : vector<78x224xf32> to vector<1x224xf32>
    %c0_179 = arith.constant 0 : index
    %c0_180 = arith.constant 0 : index
    %242 = vector.load %arg17[%c0_179, %c0_180] : memref<1568x128xf32, #tpu.memory_space<vmem>>, vector<224x128xf32>
    %cst_181 = arith.constant dense<0.000000e+00> : vector<1x128xf32>
    %243 = tpu.matmul %241, %242, %cst_181 {dimension_numbers = #tpu.dot_dimension_numbers<[1], [0], [0], [1], [0, 0, 1, 1], [], []>} : vector<1x224xf32>, vector<224x128xf32>, vector<1x128xf32> -> vector<1x128xf32>
    %244 = arith.addf %240, %243 : vector<1x128xf32>
    %245 = vector.extract_strided_slice %209 {offsets = [48, 0], sizes = [1, 224], strides = [1, 1]} : vector<78x224xf32> to vector<1x224xf32>
    %c224_182 = arith.constant 224 : index
    %c0_183 = arith.constant 0 : index
    %246 = vector.load %arg17[%c224_182, %c0_183] : memref<1568x128xf32, #tpu.memory_space<vmem>>, vector<224x128xf32>
    %cst_184 = arith.constant dense<0.000000e+00> : vector<1x128xf32>
    %247 = tpu.matmul %245, %246, %cst_184 {dimension_numbers = #tpu.dot_dimension_numbers<[1], [0], [0], [1], [0, 0, 1, 1], [], []>} : vector<1x224xf32>, vector<224x128xf32>, vector<1x128xf32> -> vector<1x128xf32>
    %248 = arith.addf %244, %247 : vector<1x128xf32>
    %249 = vector.extract_strided_slice %209 {offsets = [52, 0], sizes = [1, 224], strides = [1, 1]} : vector<78x224xf32> to vector<1x224xf32>
    %c448_185 = arith.constant 448 : index
    %c0_186 = arith.constant 0 : index
    %250 = vector.load %arg17[%c448_185, %c0_186] : memref<1568x128xf32, #tpu.memory_space<vmem>>, vector<224x128xf32>
    %cst_187 = arith.constant dense<0.000000e+00> : vector<1x128xf32>
    %251 = tpu.matmul %249, %250, %cst_187 {dimension_numbers = #tpu.dot_dimension_numbers<[1], [0], [0], [1], [0, 0, 1, 1], [], []>} : vector<1x224xf32>, vector<224x128xf32>, vector<1x128xf32> -> vector<1x128xf32>
    %252 = arith.addf %248, %251 : vector<1x128xf32>
    %253 = vector.extract_strided_slice %209 {offsets = [56, 0], sizes = [1, 224], strides = [1, 1]} : vector<78x224xf32> to vector<1x224xf32>
    %c672_188 = arith.constant 672 : index
    %c0_189 = arith.constant 0 : index
    %254 = vector.load %arg17[%c672_188, %c0_189] : memref<1568x128xf32, #tpu.memory_space<vmem>>, vector<224x128xf32>
    %cst_190 = arith.constant dense<0.000000e+00> : vector<1x128xf32>
    %255 = tpu.matmul %253, %254, %cst_190 {dimension_numbers = #tpu.dot_dimension_numbers<[1], [0], [0], [1], [0, 0, 1, 1], [], []>} : vector<1x224xf32>, vector<224x128xf32>, vector<1x128xf32> -> vector<1x128xf32>
    %256 = arith.addf %252, %255 : vector<1x128xf32>
    %257 = vector.extract_strided_slice %209 {offsets = [60, 0], sizes = [1, 224], strides = [1, 1]} : vector<78x224xf32> to vector<1x224xf32>
    %c896_191 = arith.constant 896 : index
    %c0_192 = arith.constant 0 : index
    %258 = vector.load %arg17[%c896_191, %c0_192] : memref<1568x128xf32, #tpu.memory_space<vmem>>, vector<224x128xf32>
    %cst_193 = arith.constant dense<0.000000e+00> : vector<1x128xf32>
    %259 = tpu.matmul %257, %258, %cst_193 {dimension_numbers = #tpu.dot_dimension_numbers<[1], [0], [0], [1], [0, 0, 1, 1], [], []>} : vector<1x224xf32>, vector<224x128xf32>, vector<1x128xf32> -> vector<1x128xf32>
    %260 = arith.addf %256, %259 : vector<1x128xf32>
    %261 = vector.extract_strided_slice %209 {offsets = [64, 0], sizes = [1, 224], strides = [1, 1]} : vector<78x224xf32> to vector<1x224xf32>
    %c1120_194 = arith.constant 1120 : index
    %c0_195 = arith.constant 0 : index
    %262 = vector.load %arg17[%c1120_194, %c0_195] : memref<1568x128xf32, #tpu.memory_space<vmem>>, vector<224x128xf32>
    %cst_196 = arith.constant dense<0.000000e+00> : vector<1x128xf32>
    %263 = tpu.matmul %261, %262, %cst_196 {dimension_numbers = #tpu.dot_dimension_numbers<[1], [0], [0], [1], [0, 0, 1, 1], [], []>} : vector<1x224xf32>, vector<224x128xf32>, vector<1x128xf32> -> vector<1x128xf32>
    %264 = arith.addf %260, %263 : vector<1x128xf32>
    %265 = vector.extract_strided_slice %209 {offsets = [68, 0], sizes = [1, 224], strides = [1, 1]} : vector<78x224xf32> to vector<1x224xf32>
    %c1344_197 = arith.constant 1344 : index
    %c0_198 = arith.constant 0 : index
    %266 = vector.load %arg17[%c1344_197, %c0_198] : memref<1568x128xf32, #tpu.memory_space<vmem>>, vector<224x128xf32>
    %cst_199 = arith.constant dense<0.000000e+00> : vector<1x128xf32>
    %267 = tpu.matmul %265, %266, %cst_199 {dimension_numbers = #tpu.dot_dimension_numbers<[1], [0], [0], [1], [0, 0, 1, 1], [], []>} : vector<1x224xf32>, vector<224x128xf32>, vector<1x128xf32> -> vector<1x128xf32>
    %268 = arith.addf %264, %267 : vector<1x128xf32>
    %c1_200 = arith.constant 1 : index
    %c0_201 = arith.constant 0 : index
    %269 = vector.load %arg19[%c1_200, %c0_201] : memref<2x128xf32, #tpu.memory_space<vmem>>, vector<1x128xf32>
    tpu.vector_store %arg19[%c1_200, %c0_201], %268 {strides = array<i32>} : memref<2x128xf32, #tpu.memory_space<vmem>>, vector<1x128xf32>,
    return
  }
}

</mosaic_0001>

<llo_original>
// kernel: tpu_custom_call.1
$region0: #{tpu_custom_call.1}
  #allocation0 [shape = 'u32[]', space=smem, size = 0x4, offset = 0x4, fixed_abs, tag = 'smem constant byte address 0x4 - core index']
  #allocation1 [shape = 'u32[144,128]{1,0:T(1,128)}', space=vmem, size = 0x12000, scoped, tag = 'internal scratch']
  #allocation2 [shape = 'f32[88,224]{1,0:T(8,128)}', space=vmem, size = 0x16000, scoped, tag = 'scratch operand']
  %s0 = inlined_call_operand.vmem [shape: f32[72,28], index: 0, kind: input, shape index: {}]
  %s1 = inlined_call_operand.hbm [shape: f32[5,28,224], index: 1, kind: input, shape index: {}]
  %s2 = inlined_call_operand.hbm [shape: f32[5,28,224], index: 2, kind: input, shape index: {}]
  %s3 = inlined_call_operand.hbm [shape: f32[1,224], index: 3, kind: input, shape index: {}]
  %s4 = inlined_call_operand.hbm [shape: f32[1,224], index: 4, kind: input, shape index: {}]
  %s5 = inlined_call_operand.hbm [shape: f32[1,224], index: 5, kind: input, shape index: {}]
  %s6 = inlined_call_operand.vmem [shape: f32[64,1], index: 6, kind: input, shape index: {}]
  %s7 = inlined_call_operand.vmem [shape: f32[224,16], index: 7, kind: input, shape index: {}]
  %s8 = inlined_call_operand.hbm [shape: f32[16,224], index: 8, kind: input, shape index: {}]
  %s9 = inlined_call_operand.hbm [shape: f32[5,224,224], index: 9, kind: input, shape index: {}]
  %s10 = inlined_call_operand.hbm [shape: f32[5,224,224], index: 10, kind: input, shape index: {}]
  %s11 = inlined_call_operand.hbm [shape: f32[1,224], index: 11, kind: input, shape index: {}]
  %s12 = inlined_call_operand.hbm [shape: f32[1,224], index: 12, kind: input, shape index: {}]
  %s13 = inlined_call_operand.hbm [shape: f32[1,224], index: 13, kind: input, shape index: {}]
  %s14 = inlined_call_operand.vmem [shape: f32[80,1], index: 14, kind: input, shape index: {}]
  %s15 = inlined_call_operand.vmem [shape: f32[224,32], index: 15, kind: input, shape index: {}]
  %s16 = inlined_call_operand.hbm [shape: f32[32,224], index: 16, kind: input, shape index: {}]
  %s17 = inlined_call_operand.hbm [shape: f32[1568,128], index: 17, kind: input, shape index: {}]
  %s18 = inlined_call_operand.hbm [shape: f32[1,128], index: 18, kind: input, shape index: {}]
  %s19 = inlined_call_operand.hbm [shape: f32[2,128], index: 19, kind: output, shape index: {}]
  %s20 = sld [smem:[#allocation0]]
  $region142: #{tpu_custom_call.1} parent=0
    _
  %s22 = ssub.s32 1, %s20
  %s23 = scalar_select 0, %s22, %s20
  $region1: #{tpu_custom_call.1} parent=0
    #allocation3 [shape = 'u8[163840]{0}', space=vmem, size = 0x28000, scoped, tag = 'input window, operand 1, single buffered']
    #allocation4 [shape = 's32[1]{0}', space=sflag, size = 0x4, scoped, tag = 'scoped memory for tpu_custom_call.1']
    #allocation5 [shape = 's32[1]{0}', space=sflag, size = 0x4, scoped, tag = 'scoped memory for tpu_custom_call.1']
    #allocation6 [shape = 'u8[163840]{0}', space=vmem, size = 0x28000, scoped, tag = 'input window, operand 2, single buffered']
    #allocation7 [shape = 's32[1]{0}', space=sflag, size = 0x4, scoped, tag = 'scoped memory for tpu_custom_call.1']
    #allocation8 [shape = 'u8[1024]{0}', space=vmem, size = 0x400, scoped, tag = 'input window, operand 3, single buffered']
    #allocation9 [shape = 'u8[1024]{0}', space=vmem, size = 0x400, scoped, tag = 'input window, operand 4, single buffered']
    #allocation10 [shape = 's32[1]{0}', space=sflag, size = 0x4, scoped, tag = 'scoped memory for tpu_custom_call.1']
    #allocation11 [shape = 'u8[1024]{0}', space=vmem, size = 0x400, scoped, tag = 'input window, operand 5, single buffered']
    #allocation12 [shape = 'u8[16384]{0}', space=vmem, size = 0x4000, scoped, tag = 'input window, operand 8, single buffered']
    #allocation13 [shape = 's32[1]{0}', space=sflag, size = 0x4, scoped, tag = 'scoped memory for tpu_custom_call.1']
    #allocation14 [shape = 'u8[1146880]{0}', space=vmem, size = 0x118000, scoped, tag = 'input window, operand 9, single buffered']
    #allocation15 [shape = 'u8[1146880]{0}', space=vmem, size = 0x118000, scoped, tag = 'input window, operand 10, single buffered']
    #allocation16 [shape = 's32[1]{0}', space=sflag, size = 0x4, scoped, tag = 'scoped memory for tpu_custom_call.1']
    #allocation17 [shape = 'u8[1024]{0}', space=vmem, size = 0x400, scoped, tag = 'input window, operand 11, single buffered']
    #allocation18 [shape = 'u8[1024]{0}', space=vmem, size = 0x400, scoped, tag = 'input window, operand 12, single buffered']
    #allocation19 [shape = 's32[1]{0}', space=sflag, size = 0x4, scoped, tag = 'scoped memory for tpu_custom_call.1']
    #allocation20 [shape = 'u8[1024]{0}', space=vmem, size = 0x400, scoped, tag = 'input window, operand 13, single buffered']
    #allocation21 [shape = 'u8[32768]{0}', space=vmem, size = 0x8000, scoped, tag = 'input window, operand 16, single buffered']
    #allocation22 [shape = 's32[1]{0}', space=sflag, size = 0x4, scoped, tag = 'scoped memory for tpu_custom_call.1']
    #allocation23 [shape = 'u8[802816]{0}', space=vmem, size = 0xc4000, scoped, tag = 'input window, operand 17, single buffered']
    #allocation24 [shape = 'u8[512]{0}', space=vmem, size = 0x400, scoped, tag = 'input window, operand 18, single buffered']
    #allocation25 [shape = 's32[1]{0}', space=sflag, size = 0x4, scoped, tag = 'scoped memory for tpu_custom_call.1']
    #allocation26 [shape = 'u8[1024]{0}', space=vmem, size = 0x400, scoped, tag = 'output window, operand 0, single buffered']
    %24 = vsyncpa [#allocation4], 0
    %25 = vsyncpa [#allocation7], 0
    %26 = vsyncpa [#allocation10], 0
    %27 = vsyncpa [#allocation13], 0
    %28 = vsyncpa [#allocation16], 0
    %29 = vsyncpa [#allocation19], 0
    %30 = vsyncpa [#allocation22], 0
    %31 = vsyncpa [#allocation25], 0
    %32 = vsyncpa [#allocation5], 0
    // Predicated region
    $region2: #{tpu_custom_call.1} parent=1 // pred_check
      _
    $region3: #{tpu_custom_call.1} parent=1 // pred_check_branch
      %34 = sbr.rel (0) target = $region5
    $region4: #{tpu_custom_call.1} parent=1 // pred_region
      _
    $region5: #{tpu_custom_call.1} parent=1 // pred_fallthru
      _
    // Predicated region
    $region6: #{tpu_custom_call.1} parent=1 // pred_check
      _
    $region7: #{tpu_custom_call.1} parent=1 // pred_check_branch
      %36 = sbr.rel (0) target = $region9
    $region8: #{tpu_custom_call.1} parent=1 // pred_region
      %s38 = ssub.s32 5120, 5120
      %39 = vsyncadd [#allocation4], %s38
      %s40 = sshll.u32 [#allocation3], 4
      %s41 = int_to_ptr.vmem [resolvable:$true] %s40
      %46 = dma.hbm_to_vmem [thread:$0]  %s1, 5120, %s41, [#allocation4], 256, 256, 16
    $region9: #{tpu_custom_call.1} parent=1 // pred_fallthru
      _
    // Predicated region
    $region10: #{tpu_custom_call.1} parent=1 // pred_check
      _
    $region11: #{tpu_custom_call.1} parent=1 // pred_check_branch
      %48 = sbr.rel (0) target = $region13
    $region12: #{tpu_custom_call.1} parent=1 // pred_region
      %s50 = ssub.s32 5120, 5120
      %51 = vsyncadd [#allocation7], %s50
      %s52 = sshll.u32 [#allocation6], 4
      %s53 = int_to_ptr.vmem [resolvable:$true] %s52
      %58 = dma.hbm_to_vmem [thread:$0]  %s2, 5120, %s53, [#allocation7], 256, 256, 16
    $region13: #{tpu_custom_call.1} parent=1 // pred_fallthru
      _
    // Predicated region
    $region14: #{tpu_custom_call.1} parent=1 // pred_check
      _
    $region15: #{tpu_custom_call.1} parent=1 // pred_check_branch
      %60 = sbr.rel (0) target = $region17
    $region16: #{tpu_custom_call.1} parent=1 // pred_region
      %s62 = ssub.s32 32, 32
      %63 = vsyncadd [#allocation7], %s62
      %s65 = sshll.u32 [#allocation8], 4
      %s66 = int_to_ptr.vmem [resolvable:$true] %s65
      %68 = dma.hbm_to_vmem [thread:$0]  %s3, 32, %s66, [#allocation7]
    $region17: #{tpu_custom_call.1} parent=1 // pred_fallthru
      _
    // Predicated region
    $region18: #{tpu_custom_call.1} parent=1 // pred_check
      _
    $region19: #{tpu_custom_call.1} parent=1 // pred_check_branch
      %70 = sbr.rel (0) target = $region21
    $region20: #{tpu_custom_call.1} parent=1 // pred_region
      %s72 = ssub.s32 32, 32
      %73 = vsyncadd [#allocation10], %s72
      %s75 = sshll.u32 [#allocation9], 4
      %s76 = int_to_ptr.vmem [resolvable:$true] %s75
      %78 = dma.hbm_to_vmem [thread:$0]  %s4, 32, %s76, [#allocation10]
    $region21: #{tpu_custom_call.1} parent=1 // pred_fallthru
      _
    // Predicated region
    $region22: #{tpu_custom_call.1} parent=1 // pred_check
      _
    $region23: #{tpu_custom_call.1} parent=1 // pred_check_branch
      %80 = sbr.rel (0) target = $region25
    $region24: #{tpu_custom_call.1} parent=1 // pred_region
      %s82 = ssub.s32 32, 32
      %83 = vsyncadd [#allocation10], %s82
      %s85 = sshll.u32 [#allocation11], 4
      %s86 = int_to_ptr.vmem [resolvable:$true] %s85
      %88 = dma.hbm_to_vmem [thread:$0]  %s5, 32, %s86, [#allocation10]
    $region25: #{tpu_custom_call.1} parent=1 // pred_fallthru
      _
    // Predicated region
    $region26: #{tpu_custom_call.1} parent=1 // pred_check
      _
    $region27: #{tpu_custom_call.1} parent=1 // pred_check_branch
      %90 = sbr.rel (0) target = $region29
    $region28: #{tpu_custom_call.1} parent=1 // pred_region
      _
    $region29: #{tpu_custom_call.1} parent=1 // pred_fallthru
      _
    // Predicated region
    $region30: #{tpu_custom_call.1} parent=1 // pred_check
      _
    $region31: #{tpu_custom_call.1} parent=1 // pred_check_branch
      %92 = sbr.rel (0) target = $region33
    $region32: #{tpu_custom_call.1} parent=1 // pred_region
      _
    $region33: #{tpu_custom_call.1} parent=1 // pred_fallthru
      _
    // Predicated region
    $region34: #{tpu_custom_call.1} parent=1 // pred_check
      _
    $region35: #{tpu_custom_call.1} parent=1 // pred_check_branch
      %94 = sbr.rel (0) target = $region37
    $region36: #{tpu_custom_call.1} parent=1 // pred_region
      %s96 = ssub.s32 512, 512
      %97 = vsyncadd [#allocation13], %s96
      %s98 = sshll.u32 [#allocation12], 4
      %s99 = int_to_ptr.vmem [resolvable:$true] %s98
      %104 = dma.hbm_to_vmem [thread:$0]  %s8, 512, %s99, [#allocation13], 256, 256, 16
    $region37: #{tpu_custom_call.1} parent=1 // pred_fallthru
      _
    // Predicated region
    $region38: #{tpu_custom_call.1} parent=1 // pred_check
      _
    $region39: #{tpu_custom_call.1} parent=1 // pred_check_branch
      %106 = sbr.rel (0) target = $region41
    $region40: #{tpu_custom_call.1} parent=1 // pred_region
      %s108 = ssub.s32 35840, 35840
      %109 = vsyncadd [#allocation13], %s108
      %s110 = sshll.u32 [#allocation14], 4
      %s111 = int_to_ptr.vmem [resolvable:$true] %s110
      %116 = dma.hbm_to_vmem [thread:$0]  %s9, 35840, %s111, [#allocation13], 256, 256, 16
    $region41: #{tpu_custom_call.1} parent=1 // pred_fallthru
      _
    // Predicated region
    $region42: #{tpu_custom_call.1} parent=1 // pred_check
      _
    $region43: #{tpu_custom_call.1} parent=1 // pred_check_branch
      %118 = sbr.rel (0) target = $region45
    $region44: #{tpu_custom_call.1} parent=1 // pred_region
      %s120 = ssub.s32 35840, 35840
      %121 = vsyncadd [#allocation16], %s120
      %s122 = sshll.u32 [#allocation15], 4
      %s123 = int_to_ptr.vmem [resolvable:$true] %s122
      %128 = dma.hbm_to_vmem [thread:$0]  %s10, 35840, %s123, [#allocation16], 256, 256, 16
    $region45: #{tpu_custom_call.1} parent=1 // pred_fallthru
      _
    // Predicated region
    $region46: #{tpu_custom_call.1} parent=1 // pred_check
      _
    $region47: #{tpu_custom_call.1} parent=1 // pred_check_branch
      %130 = sbr.rel (0) target = $region49
    $region48: #{tpu_custom_call.1} parent=1 // pred_region
      %s132 = ssub.s32 32, 32
      %133 = vsyncadd [#allocation16], %s132
      %s135 = sshll.u32 [#allocation17], 4
      %s136 = int_to_ptr.vmem [resolvable:$true] %s135
      %138 = dma.hbm_to_vmem [thread:$0]  %s11, 32, %s136, [#allocation16]
    $region49: #{tpu_custom_call.1} parent=1 // pred_fallthru
      _
    // Predicated region
    $region50: #{tpu_custom_call.1} parent=1 // pred_check
      _
    $region51: #{tpu_custom_call.1} parent=1 // pred_check_branch
      %140 = sbr.rel (0) target = $region53
    $region52: #{tpu_custom_call.1} parent=1 // pred_region
      %s142 = ssub.s32 32, 32
      %143 = vsyncadd [#allocation19], %s142
      %s145 = sshll.u32 [#allocation18], 4
      %s146 = int_to_ptr.vmem [resolvable:$true] %s145
      %148 = dma.hbm_to_vmem [thread:$0]  %s12, 32, %s146, [#allocation19]
    $region53: #{tpu_custom_call.1} parent=1 // pred_fallthru
      _
    // Predicated region
    $region54: #{tpu_custom_call.1} parent=1 // pred_check
      _
    $region55: #{tpu_custom_call.1} parent=1 // pred_check_branch
      %150 = sbr.rel (0) target = $region57
    $region56: #{tpu_custom_call.1} parent=1 // pred_region
      %s152 = ssub.s32 32, 32
      %153 = vsyncadd [#allocation19], %s152
      %s155 = sshll.u32 [#allocation20], 4
      %s156 = int_to_ptr.vmem [resolvable:$true] %s155
      %158 = dma.hbm_to_vmem [thread:$0]  %s13, 32, %s156, [#allocation19]
    $region57: #{tpu_custom_call.1} parent=1 // pred_fallthru
      _
    // Predicated region
    $region58: #{tpu_custom_call.1} parent=1 // pred_check
      _
    $region59: #{tpu_custom_call.1} parent=1 // pred_check_branch
      %160 = sbr.rel (0) target = $region61
    $region60: #{tpu_custom_call.1} parent=1 // pred_region
      _
    $region61: #{tpu_custom_call.1} parent=1 // pred_fallthru
      _
    // Predicated region
    $region62: #{tpu_custom_call.1} parent=1 // pred_check
      _
    $region63: #{tpu_custom_call.1} parent=1 // pred_check_branch
      %162 = sbr.rel (0) target = $region65
    $region64: #{tpu_custom_call.1} parent=1 // pred_region
      _
    $region65: #{tpu_custom_call.1} parent=1 // pred_fallthru
      _
    // Predicated region
    $region66: #{tpu_custom_call.1} parent=1 // pred_check
      _
    $region67: #{tpu_custom_call.1} parent=1 // pred_check_branch
      %164 = sbr.rel (0) target = $region69
    $region68: #{tpu_custom_call.1} parent=1 // pred_region
      %s166 = ssub.s32 1024, 1024
      %167 = vsyncadd [#allocation22], %s166
      %s168 = sshll.u32 [#allocation21], 4
      %s169 = int_to_ptr.vmem [resolvable:$true] %s168
      %174 = dma.hbm_to_vmem [thread:$0]  %s16, 1024, %s169, [#allocation22], 256, 256, 16
    $region69: #{tpu_custom_call.1} parent=1 // pred_fallthru
      _
    // Predicated region
    $region70: #{tpu_custom_call.1} parent=1 // pred_check
      _
    $region71: #{tpu_custom_call.1} parent=1 // pred_check_branch
      %176 = sbr.rel (0) target = $region73
    $region72: #{tpu_custom_call.1} parent=1 // pred_region
      %s178 = ssub.s32 25088, 25088
      %179 = vsyncadd [#allocation22], %s178
      %s180 = sshll.u32 [#allocation23], 4
      %s181 = int_to_ptr.vmem [resolvable:$true] %s180
      %186 = dma.hbm_to_vmem [thread:$0]  %s17, 25088, %s181, [#allocation22], 128, 128, 8
    $region73: #{tpu_custom_call.1} parent=1 // pred_fallthru
      _
    // Predicated region
    $region74: #{tpu_custom_call.1} parent=1 // pred_check
      _
    $region75: #{tpu_custom_call.1} parent=1 // pred_check_branch
      %188 = sbr.rel (0) target = $region77
    $region76: #{tpu_custom_call.1} parent=1 // pred_region
      %s190 = ssub.s32 16, 16
      %191 = vsyncadd [#allocation25], %s190
      %s193 = sshll.u32 [#allocation24], 4
      %s194 = int_to_ptr.vmem [resolvable:$true] %s193
      %196 = dma.hbm_to_vmem [thread:$0]  %s18, 16, %s194, [#allocation25]
    $region77: #{tpu_custom_call.1} parent=1 // pred_fallthru
      _
    // Predicated region
    $region78: #{tpu_custom_call.1} parent=1 // pred_check
      _
    $region79: #{tpu_custom_call.1} parent=1 // pred_check_branch
      %198 = sbr.rel (0) target = $region81
    $region80: #{tpu_custom_call.1} parent=1 // pred_region
      %199 = dma.done [#allocation4], 5120
    $region81: #{tpu_custom_call.1} parent=1 // pred_fallthru
      _
    // Predicated region
    $region82: #{tpu_custom_call.1} parent=1 // pred_check
      _
    $region83: #{tpu_custom_call.1} parent=1 // pred_check_branch
      %201 = sbr.rel (0) target = $region85
    $region84: #{tpu_custom_call.1} parent=1 // pred_region
      %202 = dma.done [#allocation7], 5120
    $region85: #{tpu_custom_call.1} parent=1 // pred_fallthru
      _
    // Predicated region
    $region86: #{tpu_custom_call.1} parent=1 // pred_check
      _
    $region87: #{tpu_custom_call.1} parent=1 // pred_check_branch
      %204 = sbr.rel (0) target = $region89
    $region88: #{tpu_custom_call.1} parent=1 // pred_region
      %205 = dma.done [#allocation7], 32
    $region89: #{tpu_custom_call.1} parent=1 // pred_fallthru
      _
    // Predicated region
    $region90: #{tpu_custom_call.1} parent=1 // pred_check
      _
    $region91: #{tpu_custom_call.1} parent=1 // pred_check_branch
      %207 = sbr.rel (0) target = $region93
    $region92: #{tpu_custom_call.1} parent=1 // pred_region
      %208 = dma.done [#allocation10], 32
    $region93: #{tpu_custom_call.1} parent=1 // pred_fallthru
      _
    // Predicated region
    $region94: #{tpu_custom_call.1} parent=1 // pred_check
      _
    $region95: #{tpu_custom_call.1} parent=1 // pred_check_branch
      %210 = sbr.rel (0) target = $region97
    $region96: #{tpu_custom_call.1} parent=1 // pred_region
      %211 = dma.done [#allocation10], 32
    $region97: #{tpu_custom_call.1} parent=1 // pred_fallthru
      _
    // Predicated region
    $region98: #{tpu_custom_call.1} parent=1 // pred_check
      _
    $region99: #{tpu_custom_call.1} parent=1 // pred_check_branch
      %213 = sbr.rel (0) target = $region101
    $region100: #{tpu_custom_call.1} parent=1 // pred_region
      %214 = dma.done [#allocation13], 512
    $region101: #{tpu_custom_call.1} parent=1 // pred_fallthru
      _
    // Predicated region
    $region102: #{tpu_custom_call.1} parent=1 // pred_check
      _
    $region103: #{tpu_custom_call.1} parent=1 // pred_check_branch
      %216 = sbr.rel (0) target = $region105
    $region104: #{tpu_custom_call.1} parent=1 // pred_region
      %217 = dma.done [#allocation13], 35840
    $region105: #{tpu_custom_call.1} parent=1 // pred_fallthru
      _
    // Predicated region
    $region106: #{tpu_custom_call.1} parent=1 // pred_check
      _
    $region107: #{tpu_custom_call.1} parent=1 // pred_check_branch
      %219 = sbr.rel (0) target = $region109
    $region108: #{tpu_custom_call.1} parent=1 // pred_region
      %220 = dma.done [#allocation16], 35840
    $region109: #{tpu_custom_call.1} parent=1 // pred_fallthru
      _
    // Predicated region
    $region110: #{tpu_custom_call.1} parent=1 // pred_check
      _
    $region111: #{tpu_custom_call.1} parent=1 // pred_check_branch
      %222 = sbr.rel (0) target = $region113
    $region112: #{tpu_custom_call.1} parent=1 // pred_region
      %223 = dma.done [#allocation16], 32
    $region113: #{tpu_custom_call.1} parent=1 // pred_fallthru
      _
    // Predicated region
    $region114: #{tpu_custom_call.1} parent=1 // pred_check
      _
    $region115: #{tpu_custom_call.1} parent=1 // pred_check_branch
      %225 = sbr.rel (0) target = $region117
    $region116: #{tpu_custom_call.1} parent=1 // pred_region
      %226 = dma.done [#allocation19], 32
    $region117: #{tpu_custom_call.1} parent=1 // pred_fallthru
      _
    // Predicated region
    $region118: #{tpu_custom_call.1} parent=1 // pred_check
      _
    $region119: #{tpu_custom_call.1} parent=1 // pred_check_branch
      %228 = sbr.rel (0) target = $region121
    $region120: #{tpu_custom_call.1} parent=1 // pred_region
      %229 = dma.done [#allocation19], 32
    $region121: #{tpu_custom_call.1} parent=1 // pred_fallthru
      _
    // Predicated region
    $region122: #{tpu_custom_call.1} parent=1 // pred_check
      _
    $region123: #{tpu_custom_call.1} parent=1 // pred_check_branch
      %231 = sbr.rel (0) target = $region125
    $region124: #{tpu_custom_call.1} parent=1 // pred_region
      %232 = dma.done [#allocation22], 1024
    $region125: #{tpu_custom_call.1} parent=1 // pred_fallthru
      _
    // Predicated region
    $region126: #{tpu_custom_call.1} parent=1 // pred_check
      _
    $region127: #{tpu_custom_call.1} parent=1 // pred_check_branch
      %234 = sbr.rel (0) target = $region129
    $region128: #{tpu_custom_call.1} parent=1 // pred_region
      %235 = dma.done [#allocation22], 25088
    $region129: #{tpu_custom_call.1} parent=1 // pred_fallthru
      _
    // Predicated region
    $region130: #{tpu_custom_call.1} parent=1 // pred_check
      _
    $region131: #{tpu_custom_call.1} parent=1 // pred_check_branch
      %237 = sbr.rel (0) target = $region133
    $region132: #{tpu_custom_call.1} parent=1 // pred_region
      %238 = dma.done [#allocation25], 16
    $region133: #{tpu_custom_call.1} parent=1 // pred_fallthru
      _
    %v239 = vld [vmem:[#allocation11] sm:$0x3]
    %v240 = vld [vmem:[%s0] sm:$0xff]
    %v241 = vld [vmem:[%s0 + $0x8] sm:$0xff]
    %v242 = vld [vmem:[%s0 + $0x10] sm:$0xff]
    %v243 = vld [vmem:[%s0 + $0x18] sm:$0xff]
    %v244 = vld [vmem:[%s0 + $0x20] sm:$0xff]
    %v245 = vld [vmem:[%s0 + $0x28] sm:$0xff]
    %v246 = vld [vmem:[%s0 + $0x30] sm:$0xff]
    %v247 = vld [vmem:[%s0 + $0x38] sm:$0xff]
    %v248 = vld [vmem:[#allocation3] sm:$0xff]
    %v249 = vld [vmem:[#allocation3 + $0x8] sm:$0xff]
    %v250 = vld [vmem:[#allocation3 + $0x10] sm:$0xff]
    %v251 = vld [vmem:[#allocation3 + $0x18] sm:$0xff]
    %v252 = vld [vmem:[#allocation3 + $0x20] sm:$0xff]
    %v253 = vld [vmem:[#allocation3 + $0x28] sm:$0xff]
    %v254 = vld [vmem:[#allocation3 + $0x30] sm:$0xf]
    %v255 = vld [vmem:[#allocation3 + $0x38] sm:$0xf]
    %vm256 = vcmask 228352
    %v258 = vsel %vm256, %v240, 0
    %v261 = vsel %vm256, %v241, 0
    %v264 = vsel %vm256, %v242, 0
    %v267 = vsel %vm256, %v243, 0
    %v270 = vsel %vm256, %v244, 0
    %v273 = vsel %vm256, %v245, 0
    %v276 = vsel %vm256, %v246, 0
    %v279 = vsel %vm256, %v247, 0
    %vm281 = vcmask 1043456
    %v283 = vsel %vm281, %v254, 0
    %v286 = vsel %vm281, %v255, 0
    %288 = vmatprep.subr.mxu0 %v249
    %289 = vmatpush1.msra.mxu0 %v248
    %290 = vmatprep.subr.mxu0 %v251
    %291 = vmatpush1.msra.mxu0 %v250
    %292 = vmatprep.subr.mxu0 %v253
    %293 = vmatpush1.msra.mxu0 %v252
    %294 = vmatprep.subr.mxu0 %v286
    %295 = vmatpush1.msra.mxu0 %v283
    %296 = vmatprep.subr.mxu0 0.0
    %297 = vmatpush1.msra.mxu0 0.0
    %298 = vmatprep.subr.mxu0 0.0
    %299 = vmatpush1.msra.mxu0 0.0
    %300 = vmatprep.subr.mxu0 0.0
    %301 = vmatpush1.msra.mxu0 0.0
    %302 = vmatprep.subr.mxu0 0.0
    %303 = vmatpush1.msra.mxu0 0.0
    %304 = vmatprep.subr.mxu0 0.0
    %305 = vmatpush1.msra.mxu0 0.0
    %306 = vmatprep.subr.mxu0 0.0
    %307 = vmatpush1.msra.mxu0 0.0
    %308 = vmatprep.subr.mxu0 0.0
    %309 = vmatpush1.msra.mxu0 0.0
    %310 = vmatprep.subr.mxu0 0.0
    %311 = vmatpush1.msra.mxu0 0.0
    %312 = vmatprep.subr.mxu0 0.0
    %313 = vmatpush1.msra.mxu0 0.0
    %314 = vmatprep.subr.mxu0 0.0
    %315 = vmatpush1.msra.mxu0 0.0
    %316 = vmatprep.subr.mxu0 0.0
    %317 = vmatpush1.msra.mxu0 0.0
    %318 = vmatprep.subr.mxu0 0.0
    %319 = vmatpush1.msra.mxu0 0.0
    %320 = vmatprep.subr.mxu0 0.0
    %321 = vmatpush1.msra.mxu0 0.0
    %322 = vmatprep.subr.mxu0 0.0
    %323 = vmatpush1.msra.mxu0 0.0
    %324 = vmatprep.subr.mxu0 0.0
    %325 = vmatpush1.msra.mxu0 0.0
    %326 = vmatprep.subr.mxu0 0.0
    %327 = vmatpush1.msra.mxu0 0.0
    %328 = vmatprep.subr.mxu0 0.0
    %329 = vmatpush1.msra.mxu0 0.0
    %330 = vmatprep.subr.mxu0 0.0
    %331 = vmatpush1.msra.mxu0 0.0
    %332 = vmatprep.subr.mxu0 0.0
    %333 = vmatpush1.msra.mxu0 0.0
    %334 = vmatprep.subr.mxu0 0.0
    %335 = vmatpush1.msra.mxu0 0.0
    %336 = vmatprep.subr.mxu0 0.0
    %337 = vmatpush1.msra.mxu0 0.0
    %338 = vmatprep.subr.mxu0 0.0
    %339 = vmatpush1.msra.mxu0 0.0
    %340 = vmatprep.subr.mxu0 0.0
    %341 = vmatpush1.msra.mxu0 0.0
    %342 = vmatprep.subr.mxu0 0.0
    %343 = vmatpush1.msra.mxu0 0.0
    %344 = vmatprep.subr.mxu0 0.0
    %345 = vmatpush1.msra.mxu0 0.0
    %346 = vmatprep.subr.mxu0 0.0
    %347 = vmatpush1.msra.mxu0 0.0
    %348 = vmatprep.subr.mxu0 0.0
    %349 = vmatpush1.msra.mxu0 0.0
    %350 = vmatprep.subr.mxu0 0.0
    %351 = vmatpush1.msra.mxu0 0.0
    %352 = vmatprep.mubr.f32.mxu0 0.0
    %353 = vmatmul.mubr.f32.gmra.mrb[0].mxu0 %v258
    %v354 = vpop.f32.mrb[0].mxu0
    %v355 = vadd.f32 0.0, %v354
    %v356 = vpop.f32.mrb[0].mxu0
    %v357 = vadd.f32 0.0, %v356
    %358 = vmatprep.mubr.f32.mxu0 0.0
    %359 = vmatmul.mubr.f32.gmra.mrb[0].mxu0 %v261
    %v360 = vpop.f32.mrb[0].mxu0
    %v361 = vadd.f32 0.0, %v360
    %v362 = vpop.f32.mrb[0].mxu0
    %v363 = vadd.f32 0.0, %v362
    %364 = vmatprep.mubr.f32.mxu0 0.0
    %365 = vmatmul.mubr.f32.gmra.mrb[0].mxu0 %v264
    %v366 = vpop.f32.mrb[0].mxu0
    %v367 = vadd.f32 0.0, %v366
    %v368 = vpop.f32.mrb[0].mxu0
    %v369 = vadd.f32 0.0, %v368
    %370 = vmatprep.mubr.f32.mxu0 0.0
    %371 = vmatmul.mubr.f32.gmra.mrb[0].mxu0 %v267
    %v372 = vpop.f32.mrb[0].mxu0
    %v373 = vadd.f32 0.0, %v372
    %v374 = vpop.f32.mrb[0].mxu0
    %v375 = vadd.f32 0.0, %v374
    %376 = vmatprep.mubr.f32.mxu0 0.0
    %377 = vmatmul.mubr.f32.gmra.mrb[0].mxu0 %v270
    %v378 = vpop.f32.mrb[0].mxu0
    %v379 = vadd.f32 0.0, %v378
    %v380 = vpop.f32.mrb[0].mxu0
    %v381 = vadd.f32 0.0, %v380
    %382 = vmatprep.mubr.f32.mxu0 0.0
    %383 = vmatmul.mubr.f32.gmra.mrb[0].mxu0 %v273
    %v384 = vpop.f32.mrb[0].mxu0
    %v385 = vadd.f32 0.0, %v384
    %v386 = vpop.f32.mrb[0].mxu0
    %v387 = vadd.f32 0.0, %v386
    %388 = vmatprep.mubr.f32.mxu0 0.0
    %389 = vmatmul.mubr.f32.gmra.mrb[0].mxu0 %v276
    %v390 = vpop.f32.mrb[0].mxu0
    %v391 = vadd.f32 0.0, %v390
    %v392 = vpop.f32.mrb[0].mxu0
    %v393 = vadd.f32 0.0, %v392
    %394 = vmatprep.mubr.f32.mxu0 0.0
    %395 = vmatmul.mubr.f32.gmra.mrb[0].mxu0 %v279
    %v396 = vpop.f32.mrb[0].mxu0
    %v397 = vadd.f32 0.0, %v396
    %v398 = vpop.f32.mrb[0].mxu0
    %v399 = vadd.f32 0.0, %v398
    %400 = vdwg.mxu0
    %v402 = vlaneseq
    %v403 = vshrl.u32 %v402, 7
    %v404 = vsub.s32 0, %v403
    %v405 = vrot.slane %v239, %v404
    %v406 = vlaneseq
    %v407 = vshrl.u32 %v406, 7
    %v408 = vsub.s32 1, %v407
    %v409 = vrot.slane %v239, %v408
    %v412 = vadd.f32 %v405, %v355
    %v413 = vadd.f32 %v409, %v357
    %v414 = vadd.f32 %v405, %v361
    %v415 = vadd.f32 %v409, %v363
    %v416 = vadd.f32 %v405, %v367
    %v417 = vadd.f32 %v409, %v369
    %v418 = vadd.f32 %v405, %v373
    %v419 = vadd.f32 %v409, %v375
    %v420 = vadd.f32 %v405, %v379
    %v421 = vadd.f32 %v409, %v381
    %v422 = vadd.f32 %v405, %v385
    %v423 = vadd.f32 %v409, %v387
    %v424 = vadd.f32 %v405, %v391
    %v425 = vadd.f32 %v409, %v393
    %v426 = vadd.f32 %v405, %v397
    %v427 = vadd.f32 %v409, %v399
    %v428 = vld [vmem:[#allocation6] sm:$0xff]
    %v429 = vld [vmem:[#allocation6 + $0x8] sm:$0xff]
    %v430 = vld [vmem:[#allocation6 + $0x10] sm:$0xff]
    %v431 = vld [vmem:[#allocation6 + $0x18] sm:$0xff]
    %v432 = vld [vmem:[#allocation6 + $0x20] sm:$0xff]
    %v433 = vld [vmem:[#allocation6 + $0x28] sm:$0xff]
    %v434 = vld [vmem:[#allocation6 + $0x30] sm:$0xf]
    %v435 = vld [vmem:[#allocation6 + $0x38] sm:$0xf]
    %v437 = vsel %vm281, %v434, 0
    %v440 = vsel %vm281, %v435, 0
    %442 = vmatprep.subr.mxu0 %v429
    %443 = vmatpush1.msra.mxu0 %v428
    %444 = vmatprep.subr.mxu0 %v431
    %445 = vmatpush1.msra.mxu0 %v430
    %446 = vmatprep.subr.mxu0 %v433
    %447 = vmatpush1.msra.mxu0 %v432
    %448 = vmatprep.subr.mxu0 %v440
    %449 = vmatpush1.msra.mxu0 %v437
    %450 = vmatprep.subr.mxu0 0.0
    %451 = vmatpush1.msra.mxu0 0.0
    %452 = vmatprep.subr.mxu0 0.0
    %453 = vmatpush1.msra.mxu0 0.0
    %454 = vmatprep.subr.mxu0 0.0
    %455 = vmatpush1.msra.mxu0 0.0
    %456 = vmatprep.subr.mxu0 0.0
    %457 = vmatpush1.msra.mxu0 0.0
    %458 = vmatprep.subr.mxu0 0.0
    %459 = vmatpush1.msra.mxu0 0.0
    %460 = vmatprep.subr.mxu0 0.0
    %461 = vmatpush1.msra.mxu0 0.0
    %462 = vmatprep.subr.mxu0 0.0
    %463 = vmatpush1.msra.mxu0 0.0
    %464 = vmatprep.subr.mxu0 0.0
    %465 = vmatpush1.msra.mxu0 0.0
    %466 = vmatprep.subr.mxu0 0.0
    %467 = vmatpush1.msra.mxu0 0.0
    %468 = vmatprep.subr.mxu0 0.0
    %469 = vmatpush1.msra.mxu0 0.0
    %470 = vmatprep.subr.mxu0 0.0
    %471 = vmatpush1.msra.mxu0 0.0
    %472 = vmatprep.subr.mxu0 0.0
    %473 = vmatpush1.msra.mxu0 0.0
    %474 = vmatprep.subr.mxu0 0.0
    %475 = vmatpush1.msra.mxu0 0.0
    %476 = vmatprep.subr.mxu0 0.0
    %477 = vmatpush1.msra.mxu0 0.0
    %478 = vmatprep.subr.mxu0 0.0
    %479 = vmatpush1.msra.mxu0 0.0
    %480 = vmatprep.subr.mxu0 0.0
    %481 = vmatpush1.msra.mxu0 0.0
    %482 = vmatprep.subr.mxu0 0.0
    %483 = vmatpush1.msra.mxu0 0.0
    %484 = vmatprep.subr.mxu0 0.0
    %485 = vmatpush1.msra.mxu0 0.0
    %486 = vmatprep.subr.mxu0 0.0
    %487 = vmatpush1.msra.mxu0 0.0
    %488 = vmatprep.subr.mxu0 0.0
    %489 = vmatpush1.msra.mxu0 0.0
    %490 = vmatprep.subr.mxu0 0.0
    %491 = vmatpush1.msra.mxu0 0.0
    %492 = vmatprep.subr.mxu0 0.0
    %493 = vmatpush1.msra.mxu0 0.0
    %494 = vmatprep.subr.mxu0 0.0
    %495 = vmatpush1.msra.mxu0 0.0
    %496 = vmatprep.subr.mxu0 0.0
    %497 = vmatpush1.msra.mxu0 0.0
    %498 = vmatprep.subr.mxu0 0.0
    %499 = vmatpush1.msra.mxu0 0.0
    %500 = vmatprep.subr.mxu0 0.0
    %501 = vmatpush1.msra.mxu0 0.0
    %502 = vmatprep.subr.mxu0 0.0
    %503 = vmatpush1.msra.mxu0 0.0
    %504 = vmatprep.subr.mxu0 0.0
    %505 = vmatpush1.msra.mxu0 0.0
    %506 = vmatprep.mubr.f32.mxu0 0.0
    %507 = vmatmul.mubr.f32.gmra.mrb[0].mxu0 %v258
    %v508 = vpop.f32.mrb[0].mxu0
    %v509 = vadd.f32 0.0, %v508
    %v510 = vpop.f32.mrb[0].mxu0
    %v511 = vadd.f32 0.0, %v510
    %512 = vmatprep.mubr.f32.mxu0 0.0
    %513 = vmatmul.mubr.f32.gmra.mrb[0].mxu0 %v261
    %v514 = vpop.f32.mrb[0].mxu0
    %v515 = vadd.f32 0.0, %v514
    %v516 = vpop.f32.mrb[0].mxu0
    %v517 = vadd.f32 0.0, %v516
    %518 = vmatprep.mubr.f32.mxu0 0.0
    %519 = vmatmul.mubr.f32.gmra.mrb[0].mxu0 %v264
    %v520 = vpop.f32.mrb[0].mxu0
    %v521 = vadd.f32 0.0, %v520
    %v522 = vpop.f32.mrb[0].mxu0
    %v523 = vadd.f32 0.0, %v522
    %524 = vmatprep.mubr.f32.mxu0 0.0
    %525 = vmatmul.mubr.f32.gmra.mrb[0].mxu0 %v267
    %v526 = vpop.f32.mrb[0].mxu0
    %v527 = vadd.f32 0.0, %v526
    %v528 = vpop.f32.mrb[0].mxu0
    %v529 = vadd.f32 0.0, %v528
    %530 = vmatprep.mubr.f32.mxu0 0.0
    %531 = vmatmul.mubr.f32.gmra.mrb[0].mxu0 %v270
    %v532 = vpop.f32.mrb[0].mxu0
    %v533 = vadd.f32 0.0, %v532
    %v534 = vpop.f32.mrb[0].mxu0
    %v535 = vadd.f32 0.0, %v534
    %536 = vmatprep.mubr.f32.mxu0 0.0
    %537 = vmatmul.mubr.f32.gmra.mrb[0].mxu0 %v273
    %v538 = vpop.f32.mrb[0].mxu0
    %v539 = vadd.f32 0.0, %v538
    %v540 = vpop.f32.mrb[0].mxu0
    %v541 = vadd.f32 0.0, %v540
    %542 = vmatprep.mubr.f32.mxu0 0.0
    %543 = vmatmul.mubr.f32.gmra.mrb[0].mxu0 %v276
    %v544 = vpop.f32.mrb[0].mxu0
    %v545 = vadd.f32 0.0, %v544
    %v546 = vpop.f32.mrb[0].mxu0
    %v547 = vadd.f32 0.0, %v546
    %548 = vmatprep.mubr.f32.mxu0 0.0
    %549 = vmatmul.mubr.f32.gmra.mrb[0].mxu0 %v279
    %v550 = vpop.f32.mrb[0].mxu0
    %v551 = vadd.f32 0.0, %v550
    %v552 = vpop.f32.mrb[0].mxu0
    %v553 = vadd.f32 0.0, %v552
    %554 = vdwg.mxu0
    %v555 = vadd.f32 %v405, %v509
    %v556 = vadd.f32 %v409, %v511
    %v557 = vadd.f32 %v405, %v515
    %v558 = vadd.f32 %v409, %v517
    %v559 = vadd.f32 %v405, %v521
    %v560 = vadd.f32 %v409, %v523
    %v561 = vadd.f32 %v405, %v527
    %v562 = vadd.f32 %v409, %v529
    %v563 = vadd.f32 %v405, %v533
    %v564 = vadd.f32 %v409, %v535
    %v565 = vadd.f32 %v405, %v539
    %v566 = vadd.f32 %v409, %v541
    %v567 = vadd.f32 %v405, %v545
    %v568 = vadd.f32 %v409, %v547
    %v569 = vadd.f32 %v405, %v551
    %v570 = vadd.f32 %v409, %v553
    %v571 = vld [vmem:[%s0 + $0x1] sm:$0xff]
    %v572 = vld [vmem:[%s0 + $0x9] sm:$0xff]
    %v573 = vld [vmem:[%s0 + $0x11] sm:$0xff]
    %v574 = vld [vmem:[%s0 + $0x19] sm:$0xff]
    %v575 = vld [vmem:[%s0 + $0x21] sm:$0xff]
    %v576 = vld [vmem:[%s0 + $0x29] sm:$0xff]
    %v577 = vld [vmem:[%s0 + $0x31] sm:$0xff]
    %v578 = vld [vmem:[%s0 + $0x39] sm:$0xff]
    %s579 = scalar_lea.vmem [#allocation3], 64
    %v580 = vld [vmem:[%s579] sm:$0xff]
    %v581 = vld [vmem:[%s579 + $0x8] sm:$0xff]
    %v582 = vld [vmem:[%s579 + $0x10] sm:$0xff]
    %v583 = vld [vmem:[%s579 + $0x18] sm:$0xff]
    %v584 = vld [vmem:[%s579 + $0x20] sm:$0xff]
    %v585 = vld [vmem:[%s579 + $0x28] sm:$0xff]
    %v586 = vld [vmem:[%s579 + $0x30] sm:$0xf]
    %v587 = vld [vmem:[%s579 + $0x38] sm:$0xf]
    %v589 = vsel %vm256, %v571, 0
    %v592 = vsel %vm256, %v572, 0
    %v595 = vsel %vm256, %v573, 0
    %v598 = vsel %vm256, %v574, 0
    %v601 = vsel %vm256, %v575, 0
    %v604 = vsel %vm256, %v576, 0
    %v607 = vsel %vm256, %v577, 0
    %v610 = vsel %vm256, %v578, 0
    %v613 = vsel %vm281, %v586, 0
    %v616 = vsel %vm281, %v587, 0
    %618 = vmatprep.subr.mxu0 %v581
    %619 = vmatpush1.msra.mxu0 %v580
    %620 = vmatprep.subr.mxu0 %v583
    %621 = vmatpush1.msra.mxu0 %v582
    %622 = vmatprep.subr.mxu0 %v585
    %623 = vmatpush1.msra.mxu0 %v584
    %624 = vmatprep.subr.mxu0 %v616
    %625 = vmatpush1.msra.mxu0 %v613
    %626 = vmatprep.subr.mxu0 0.0
    %627 = vmatpush1.msra.mxu0 0.0
    %628 = vmatprep.subr.mxu0 0.0
    %629 = vmatpush1.msra.mxu0 0.0
    %630 = vmatprep.subr.mxu0 0.0
    %631 = vmatpush1.msra.mxu0 0.0
    %632 = vmatprep.subr.mxu0 0.0
    %633 = vmatpush1.msra.mxu0 0.0
    %634 = vmatprep.subr.mxu0 0.0
    %635 = vmatpush1.msra.mxu0 0.0
    %636 = vmatprep.subr.mxu0 0.0
    %637 = vmatpush1.msra.mxu0 0.0
    %638 = vmatprep.subr.mxu0 0.0
    %639 = vmatpush1.msra.mxu0 0.0
    %640 = vmatprep.subr.mxu0 0.0
    %641 = vmatpush1.msra.mxu0 0.0
    %642 = vmatprep.subr.mxu0 0.0
    %643 = vmatpush1.msra.mxu0 0.0
    %644 = vmatprep.subr.mxu0 0.0
    %645 = vmatpush1.msra.mxu0 0.0
    %646 = vmatprep.subr.mxu0 0.0
    %647 = vmatpush1.msra.mxu0 0.0
    %648 = vmatprep.subr.mxu0 0.0
    %649 = vmatpush1.msra.mxu0 0.0
    %650 = vmatprep.subr.mxu0 0.0
    %651 = vmatpush1.msra.mxu0 0.0
    %652 = vmatprep.subr.mxu0 0.0
    %653 = vmatpush1.msra.mxu0 0.0
    %654 = vmatprep.subr.mxu0 0.0
    %655 = vmatpush1.msra.mxu0 0.0
    %656 = vmatprep.subr.mxu0 0.0
    %657 = vmatpush1.msra.mxu0 0.0
    %658 = vmatprep.subr.mxu0 0.0
    %659 = vmatpush1.msra.mxu0 0.0
    %660 = vmatprep.subr.mxu0 0.0
    %661 = vmatpush1.msra.mxu0 0.0
    %662 = vmatprep.subr.mxu0 0.0
    %663 = vmatpush1.msra.mxu0 0.0
    %664 = vmatprep.subr.mxu0 0.0
    %665 = vmatpush1.msra.mxu0 0.0
    %666 = vmatprep.subr.mxu0 0.0
    %667 = vmatpush1.msra.mxu0 0.0
    %668 = vmatprep.subr.mxu0 0.0
    %669 = vmatpush1.msra.mxu0 0.0
    %670 = vmatprep.subr.mxu0 0.0
    %671 = vmatpush1.msra.mxu0 0.0
    %672 = vmatprep.subr.mxu0 0.0
    %673 = vmatpush1.msra.mxu0 0.0
    %674 = vmatprep.subr.mxu0 0.0
    %675 = vmatpush1.msra.mxu0 0.0
    %676 = vmatprep.subr.mxu0 0.0
    %677 = vmatpush1.msra.mxu0 0.0
    %678 = vmatprep.subr.mxu0 0.0
    %679 = vmatpush1.msra.mxu0 0.0
    %680 = vmatprep.subr.mxu0 0.0
    %681 = vmatpush1.msra.mxu0 0.0
    %682 = vmatprep.mubr.f32.mxu0 0.0
    %683 = vmatmul.mubr.f32.gmra.mrb[0].mxu0 %v589
    %v684 = vpop.f32.mrb[0].mxu0
    %v685 = vadd.f32 0.0, %v684
    %v686 = vpop.f32.mrb[0].mxu0
    %v687 = vadd.f32 0.0, %v686
    %688 = vmatprep.mubr.f32.mxu0 0.0
    %689 = vmatmul.mubr.f32.gmra.mrb[0].mxu0 %v592
    %v690 = vpop.f32.mrb[0].mxu0
    %v691 = vadd.f32 0.0, %v690
    %v692 = vpop.f32.mrb[0].mxu0
    %v693 = vadd.f32 0.0, %v692
    %694 = vmatprep.mubr.f32.mxu0 0.0
    %695 = vmatmul.mubr.f32.gmra.mrb[0].mxu0 %v595
    %v696 = vpop.f32.mrb[0].mxu0
    %v697 = vadd.f32 0.0, %v696
    %v698 = vpop.f32.mrb[0].mxu0
    %v699 = vadd.f32 0.0, %v698
    %700 = vmatprep.mubr.f32.mxu0 0.0
    %701 = vmatmul.mubr.f32.gmra.mrb[0].mxu0 %v598
    %v702 = vpop.f32.mrb[0].mxu0
    %v703 = vadd.f32 0.0, %v702
    %v704 = vpop.f32.mrb[0].mxu0
    %v705 = vadd.f32 0.0, %v704
    %706 = vmatprep.mubr.f32.mxu0 0.0
    %707 = vmatmul.mubr.f32.gmra.mrb[0].mxu0 %v601
    %v708 = vpop.f32.mrb[0].mxu0
    %v709 = vadd.f32 0.0, %v708
    %v710 = vpop.f32.mrb[0].mxu0
    %v711 = vadd.f32 0.0, %v710
    %712 = vmatprep.mubr.f32.mxu0 0.0
    %713 = vmatmul.mubr.f32.gmra.mrb[0].mxu0 %v604
    %v714 = vpop.f32.mrb[0].mxu0
    %v715 = vadd.f32 0.0, %v714
    %v716 = vpop.f32.mrb[0].mxu0
    %v717 = vadd.f32 0.0, %v716
    %718 = vmatprep.mubr.f32.mxu0 0.0
    %719 = vmatmul.mubr.f32.gmra.mrb[0].mxu0 %v607
    %v720 = vpop.f32.mrb[0].mxu0
    %v721 = vadd.f32 0.0, %v720
    %v722 = vpop.f32.mrb[0].mxu0
    %v723 = vadd.f32 0.0, %v722
    %724 = vmatprep.mubr.f32.mxu0 0.0
    %725 = vmatmul.mubr.f32.gmra.mrb[0].mxu0 %v610
    %v726 = vpop.f32.mrb[0].mxu0
    %v727 = vadd.f32 0.0, %v726
    %v728 = vpop.f32.mrb[0].mxu0
    %v729 = vadd.f32 0.0, %v728
    %730 = vdwg.mxu0
    %v731 = vadd.f32 %v412, %v685
    %v732 = vadd.f32 %v413, %v687
    %v733 = vadd.f32 %v414, %v691
    %v734 = vadd.f32 %v415, %v693
    %v735 = vadd.f32 %v416, %v697
    %v736 = vadd.f32 %v417, %v699
    %v737 = vadd.f32 %v418, %v703
    %v738 = vadd.f32 %v419, %v705
    %v739 = vadd.f32 %v420, %v709
    %v740 = vadd.f32 %v421, %v711
    %v741 = vadd.f32 %v422, %v715
    %v742 = vadd.f32 %v423, %v717
    %v743 = vadd.f32 %v424, %v721
    %v744 = vadd.f32 %v425, %v723
    %v745 = vadd.f32 %v426, %v727
    %v746 = vadd.f32 %v427, %v729
    %s747 = scalar_lea.vmem [#allocation6], 64
    %v748 = vld [vmem:[%s747] sm:$0xff]
    %v749 = vld [vmem:[%s747 + $0x8] sm:$0xff]
    %v750 = vld [vmem:[%s747 + $0x10] sm:$0xff]
    %v751 = vld [vmem:[%s747 + $0x18] sm:$0xff]
    %v752 = vld [vmem:[%s747 + $0x20] sm:$0xff]
    %v753 = vld [vmem:[%s747 + $0x28] sm:$0xff]
    %v754 = vld [vmem:[%s747 + $0x30] sm:$0xf]
    %v755 = vld [vmem:[%s747 + $0x38] sm:$0xf]
    %v757 = vsel %vm281, %v754, 0
    %v760 = vsel %vm281, %v755, 0
    %762 = vmatprep.subr.mxu0 %v749
    %763 = vmatpush1.msra.mxu0 %v748
    %764 = vmatprep.subr.mxu0 %v751
    %765 = vmatpush1.msra.mxu0 %v750
    %766 = vmatprep.subr.mxu0 %v753
    %767 = vmatpush1.msra.mxu0 %v752
    %768 = vmatprep.subr.mxu0 %v760
    %769 = vmatpush1.msra.mxu0 %v757
    %770 = vmatprep.subr.mxu0 0.0
    %771 = vmatpush1.msra.mxu0 0.0
    %772 = vmatprep.subr.mxu0 0.0
    %773 = vmatpush1.msra.mxu0 0.0
    %774 = vmatprep.subr.mxu0 0.0
    %775 = vmatpush1.msra.mxu0 0.0
    %776 = vmatprep.subr.mxu0 0.0
    %777 = vmatpush1.msra.mxu0 0.0
    %778 = vmatprep.subr.mxu0 0.0
    %779 = vmatpush1.msra.mxu0 0.0
    %780 = vmatprep.subr.mxu0 0.0
    %781 = vmatpush1.msra.mxu0 0.0
    %782 = vmatprep.subr.mxu0 0.0
    %783 = vmatpush1.msra.mxu0 0.0
    %784 = vmatprep.subr.mxu0 0.0
    %785 = vmatpush1.msra.mxu0 0.0
    %786 = vmatprep.subr.mxu0 0.0
    %787 = vmatpush1.msra.mxu0 0.0
    %788 = vmatprep.subr.mxu0 0.0
    %789 = vmatpush1.msra.mxu0 0.0
    %790 = vmatprep.subr.mxu0 0.0
    %791 = vmatpush1.msra.mxu0 0.0
    %792 = vmatprep.subr.mxu0 0.0
    %793 = vmatpush1.msra.mxu0 0.0
    %794 = vmatprep.subr.mxu0 0.0
    %795 = vmatpush1.msra.mxu0 0.0
    %796 = vmatprep.subr.mxu0 0.0
    %797 = vmatpush1.msra.mxu0 0.0
    %798 = vmatprep.subr.mxu0 0.0
    %799 = vmatpush1.msra.mxu0 0.0
    %800 = vmatprep.subr.mxu0 0.0
    %801 = vmatpush1.msra.mxu0 0.0
    %802 = vmatprep.subr.mxu0 0.0
    %803 = vmatpush1.msra.mxu0 0.0
    %804 = vmatprep.subr.mxu0 0.0
    %805 = vmatpush1.msra.mxu0 0.0
    %806 = vmatprep.subr.mxu0 0.0
    %807 = vmatpush1.msra.mxu0 0.0
    %808 = vmatprep.subr.mxu0 0.0
    %809 = vmatpush1.msra.mxu0 0.0
    %810 = vmatprep.subr.mxu0 0.0
    %811 = vmatpush1.msra.mxu0 0.0
    %812 = vmatprep.subr.mxu0 0.0
    %813 = vmatpush1.msra.mxu0 0.0
    %814 = vmatprep.subr.mxu0 0.0
    %815 = vmatpush1.msra.mxu0 0.0
    %816 = vmatprep.subr.mxu0 0.0
    %817 = vmatpush1.msra.mxu0 0.0
    %818 = vmatprep.subr.mxu0 0.0
    %819 = vmatpush1.msra.mxu0 0.0
    %820 = vmatprep.subr.mxu0 0.0
    %821 = vmatpush1.msra.mxu0 0.0
    %822 = vmatprep.subr.mxu0 0.0
    %823 = vmatpush1.msra.mxu0 0.0
    %824 = vmatprep.subr.mxu0 0.0
    %825 = vmatpush1.msra.mxu0 0.0
    %826 = vmatprep.mubr.f32.mxu0 0.0
    %827 = vmatmul.mubr.f32.gmra.mrb[0].mxu0 %v589
    %v828 = vpop.f32.mrb[0].mxu0
    %v829 = vadd.f32 0.0, %v828
    %v830 = vpop.f32.mrb[0].mxu0
    %v831 = vadd.f32 0.0, %v830
    %832 = vmatprep.mubr.f32.mxu0 0.0
    %833 = vmatmul.mubr.f32.gmra.mrb[0].mxu0 %v592
    %v834 = vpop.f32.mrb[0].mxu0
    %v835 = vadd.f32 0.0, %v834
    %v836 = vpop.f32.mrb[0].mxu0
    %v837 = vadd.f32 0.0, %v836
    %838 = vmatprep.mubr.f32.mxu0 0.0
    %839 = vmatmul.mubr.f32.gmra.mrb[0].mxu0 %v595
    %v840 = vpop.f32.mrb[0].mxu0
    %v841 = vadd.f32 0.0, %v840
    %v842 = vpop.f32.mrb[0].mxu0
    %v843 = vadd.f32 0.0, %v842
    %844 = vmatprep.mubr.f32.mxu0 0.0
    %845 = vmatmul.mubr.f32.gmra.mrb[0].mxu0 %v598
    %v846 = vpop.f32.mrb[0].mxu0
    %v847 = vadd.f32 0.0, %v846
    %v848 = vpop.f32.mrb[0].mxu0
    %v849 = vadd.f32 0.0, %v848
    %850 = vmatprep.mubr.f32.mxu0 0.0
    %851 = vmatmul.mubr.f32.gmra.mrb[0].mxu0 %v601
    %v852 = vpop.f32.mrb[0].mxu0
    %v853 = vadd.f32 0.0, %v852
    %v854 = vpop.f32.mrb[0].mxu0
    %v855 = vadd.f32 0.0, %v854
    %856 = vmatprep.mubr.f32.mxu0 0.0
    %857 = vmatmul.mubr.f32.gmra.mrb[0].mxu0 %v604
    %v858 = vpop.f32.mrb[0].mxu0
    %v859 = vadd.f32 0.0, %v858
    %v860 = vpop.f32.mrb[0].mxu0
    %v861 = vadd.f32 0.0, %v860
    %862 = vmatprep.mubr.f32.mxu0 0.0
    %863 = vmatmul.mubr.f32.gmra.mrb[0].mxu0 %v607
    %v864 = vpop.f32.mrb[0].mxu0
    %v865 = vadd.f32 0.0, %v864
    %v866 = vpop.f32.mrb[0].mxu0
    %v867 = vadd.f32 0.0, %v866
    %868 = vmatprep.mubr.f32.mxu0 0.0
    %869 = vmatmul.mubr.f32.gmra.mrb[0].mxu0 %v610
    %v870 = vpop.f32.mrb[0].mxu0
    %v871 = vadd.f32 0.0, %v870
    %v872 = vpop.f32.mrb[0].mxu0
    %v873 = vadd.f32 0.0, %v872
    %874 = vdwg.mxu0
    %v875 = vadd.f32 %v555, %v829
    %v876 = vadd.f32 %v556, %v831
    %v877 = vadd.f32 %v557, %v835
    %v878 = vadd.f32 %v558, %v837
    %v879 = vadd.f32 %v559, %v841
    %v880 = vadd.f32 %v560, %v843
    %v881 = vadd.f32 %v561, %v847
    %v882 = vadd.f32 %v562, %v849
    %v883 = vadd.f32 %v563, %v853
    %v884 = vadd.f32 %v564, %v855
    %v885 = vadd.f32 %v565, %v859
    %v886 = vadd.f32 %v566, %v861
    %v887 = vadd.f32 %v567, %v865
    %v888 = vadd.f32 %v568, %v867
    %v889 = vadd.f32 %v569, %v871
    %v890 = vadd.f32 %v570, %v873
    %v891 = vld [vmem:[%s0 + $0x2] sm:$0xff]
    %v892 = vld [vmem:[%s0 + $0xa] sm:$0xff]
    %v893 = vld [vmem:[%s0 + $0x12] sm:$0xff]
    %v894 = vld [vmem:[%s0 + $0x1a] sm:$0xff]
    %v895 = vld [vmem:[%s0 + $0x22] sm:$0xff]
    %v896 = vld [vmem:[%s0 + $0x2a] sm:$0xff]
    %v897 = vld [vmem:[%s0 + $0x32] sm:$0xff]
    %v898 = vld [vmem:[%s0 + $0x3a] sm:$0xff]
    %s899 = scalar_lea.vmem [#allocation3], 128
    %v900 = vld [vmem:[%s899] sm:$0xff]
    %v901 = vld [vmem:[%s899 + $0x8] sm:$0xff]
    %v902 = vld [vmem:[%s899 + $0x10] sm:$0xff]
    %v903 = vld [vmem:[%s899 + $0x18] sm:$0xff]
    %v904 = vld [vmem:[%s899 + $0x20] sm:$0xff]
    %v905 = vld [vmem:[%s899 + $0x28] sm:$0xff]
    %v906 = vld [vmem:[%s899 + $0x30] sm:$0xf]
    %v907 = vld [vmem:[%s899 + $0x38] sm:$0xf]
    %v909 = vsel %vm256, %v891, 0
    %v912 = vsel %vm256, %v892, 0
    %v915 = vsel %vm256, %v893, 0
    %v918 = vsel %vm256, %v894, 0
    %v921 = vsel %vm256, %v895, 0
    %v924 = vsel %vm256, %v896, 0
    %v927 = vsel %vm256, %v897, 0
    %v930 = vsel %vm256, %v898, 0
    %v933 = vsel %vm281, %v906, 0
    %v936 = vsel %vm281, %v907, 0
    %938 = vmatprep.subr.mxu0 %v901
    %939 = vmatpush1.msra.mxu0 %v900
    %940 = vmatprep.subr.mxu0 %v903
    %941 = vmatpush1.msra.mxu0 %v902
    %942 = vmatprep.subr.mxu0 %v905
    %943 = vmatpush1.msra.mxu0 %v904
    %944 = vmatprep.subr.mxu0 %v936
    %945 = vmatpush1.msra.mxu0 %v933
    %946 = vmatprep.subr.mxu0 0.0
    %947 = vmatpush1.msra.mxu0 0.0
    %948 = vmatprep.subr.mxu0 0.0
    %949 = vmatpush1.msra.mxu0 0.0
    %950 = vmatprep.subr.mxu0 0.0
    %951 = vmatpush1.msra.mxu0 0.0
    %952 = vmatprep.subr.mxu0 0.0
    %953 = vmatpush1.msra.mxu0 0.0
    %954 = vmatprep.subr.mxu0 0.0
    %955 = vmatpush1.msra.mxu0 0.0
    %956 = vmatprep.subr.mxu0 0.0
    %957 = vmatpush1.msra.mxu0 0.0
    %958 = vmatprep.subr.mxu0 0.0
    %959 = vmatpush1.msra.mxu0 0.0
    %960 = vmatprep.subr.mxu0 0.0
    %961 = vmatpush1.msra.mxu0 0.0
    %962 = vmatprep.subr.mxu0 0.0
    %963 = vmatpush1.msra.mxu0 0.0
    %964 = vmatprep.subr.mxu0 0.0
    %965 = vmatpush1.msra.mxu0 0.0
    %966 = vmatprep.subr.mxu0 0.0
    %967 = vmatpush1.msra.mxu0 0.0
    %968 = vmatprep.subr.mxu0 0.0
    %969 = vmatpush1.msra.mxu0 0.0
    %970 = vmatprep.subr.mxu0 0.0
    %971 = vmatpush1.msra.mxu0 0.0
    %972 = vmatprep.subr.mxu0 0.0
    %973 = vmatpush1.msra.mxu0 0.0
    %974 = vmatprep.subr.mxu0 0.0
    %975 = vmatpush1.msra.mxu0 0.0
    %976 = vmatprep.subr.mxu0 0.0
    %977 = vmatpush1.msra.mxu0 0.0
    %978 = vmatprep.subr.mxu0 0.0
    %979 = vmatpush1.msra.mxu0 0.0
    %980 = vmatprep.subr.mxu0 0.0
    %981 = vmatpush1.msra.mxu0 0.0
    %982 = vmatprep.subr.mxu0 0.0
    %983 = vmatpush1.msra.mxu0 0.0
    %984 = vmatprep.subr.mxu0 0.0
    %985 = vmatpush1.msra.mxu0 0.0
    %986 = vmatprep.subr.mxu0 0.0
    %987 = vmatpush1.msra.mxu0 0.0
    %988 = vmatprep.subr.mxu0 0.0
    %989 = vmatpush1.msra.mxu0 0.0
    %990 = vmatprep.subr.mxu0 0.0
    %991 = vmatpush1.msra.mxu0 0.0
    %992 = vmatprep.subr.mxu0 0.0
    %993 = vmatpush1.msra.mxu0 0.0
    %994 = vmatprep.subr.mxu0 0.0
    %995 = vmatpush1.msra.mxu0 0.0
    %996 = vmatprep.subr.mxu0 0.0
    %997 = vmatpush1.msra.mxu0 0.0
    %998 = vmatprep.subr.mxu0 0.0
    %999 = vmatpush1.msra.mxu0 0.0
    %1000 = vmatprep.subr.mxu0 0.0
    %1001 = vmatpush1.msra.mxu0 0.0
    %1002 = vmatprep.mubr.f32.mxu0 0.0
    %1003 = vmatmul.mubr.f32.gmra.mrb[0].mxu0 %v909
    %v1004 = vpop.f32.mrb[0].mxu0
    %v1005 = vadd.f32 0.0, %v1004
    %v1006 = vpop.f32.mrb[0].mxu0
    %v1007 = vadd.f32 0.0, %v1006
    %1008 = vmatprep.mubr.f32.mxu0 0.0
    %1009 = vmatmul.mubr.f32.gmra.mrb[0].mxu0 %v912
    %v1010 = vpop.f32.mrb[0].mxu0
    %v1011 = vadd.f32 0.0, %v1010
    %v1012 = vpop.f32.mrb[0].mxu0
    %v1013 = vadd.f32 0.0, %v1012
    %1014 = vmatprep.mubr.f32.mxu0 0.0
    %1015 = vmatmul.mubr.f32.gmra.mrb[0].mxu0 %v915
    %v1016 = vpop.f32.mrb[0].mxu0
    %v1017 = vadd.f32 0.0, %v1016
    %v1018 = vpop.f32.mrb[0].mxu0
    %v1019 = vadd.f32 0.0, %v1018
    %1020 = vmatprep.mubr.f32.mxu0 0.0
    %1021 = vmatmul.mubr.f32.gmra.mrb[0].mxu0 %v918
    %v1022 = vpop.f32.mrb[0].mxu0
    %v1023 = vadd.f32 0.0, %v1022
    %v1024 = vpop.f32.mrb[0].mxu0
    %v1025 = vadd.f32 0.0, %v1024
    %1026 = vmatprep.mubr.f32.mxu0 0.0
    %1027 = vmatmul.mubr.f32.gmra.mrb[0].mxu0 %v921
    %v1028 = vpop.f32.mrb[0].mxu0
    %v1029 = vadd.f32 0.0, %v1028
    %v1030 = vpop.f32.mrb[0].mxu0
    %v1031 = vadd.f32 0.0, %v1030
    %1032 = vmatprep.mubr.f32.mxu0 0.0
    %1033 = vmatmul.mubr.f32.gmra.mrb[0].mxu0 %v924
    %v1034 = vpop.f32.mrb[0].mxu0
    %v1035 = vadd.f32 0.0, %v1034
    %v1036 = vpop.f32.mrb[0].mxu0
    %v1037 = vadd.f32 0.0, %v1036
    %1038 = vmatprep.mubr.f32.mxu0 0.0
    %1039 = vmatmul.mubr.f32.gmra.mrb[0].mxu0 %v927
    %v1040 = vpop.f32.mrb[0].mxu0
    %v1041 = vadd.f32 0.0, %v1040
    %v1042 = vpop.f32.mrb[0].mxu0
    %v1043 = vadd.f32 0.0, %v1042
    %1044 = vmatprep.mubr.f32.mxu0 0.0
    %1045 = vmatmul.mubr.f32.gmra.mrb[0].mxu0 %v930
    %v1046 = vpop.f32.mrb[0].mxu0
    %v1047 = vadd.f32 0.0, %v1046
    %v1048 = vpop.f32.mrb[0].mxu0
    %v1049 = vadd.f32 0.0, %v1048
    %1050 = vdwg.mxu0
    %v1051 = vadd.f32 %v731, %v1005
    %v1052 = vadd.f32 %v732, %v1007
    %v1053 = vadd.f32 %v733, %v1011
    %v1054 = vadd.f32 %v734, %v1013
    %v1055 = vadd.f32 %v735, %v1017
    %v1056 = vadd.f32 %v736, %v1019
    %v1057 = vadd.f32 %v737, %v1023
    %v1058 = vadd.f32 %v738, %v1025
    %v1059 = vadd.f32 %v739, %v1029
    %v1060 = vadd.f32 %v740, %v1031
    %v1061 = vadd.f32 %v741, %v1035
    %v1062 = vadd.f32 %v742, %v1037
    %v1063 = vadd.f32 %v743, %v1041
    %v1064 = vadd.f32 %v744, %v1043
    %v1065 = vadd.f32 %v745, %v1047
    %v1066 = vadd.f32 %v746, %v1049
    %s1067 = scalar_lea.vmem [#allocation6], 128
    %v1068 = vld [vmem:[%s1067] sm:$0xff]
    %v1069 = vld [vmem:[%s1067 + $0x8] sm:$0xff]
    %v1070 = vld [vmem:[%s1067 + $0x10] sm:$0xff]
    %v1071 = vld [vmem:[%s1067 + $0x18] sm:$0xff]
    %v1072 = vld [vmem:[%s1067 + $0x20] sm:$0xff]
    %v1073 = vld [vmem:[%s1067 + $0x28] sm:$0xff]
    %v1074 = vld [vmem:[%s1067 + $0x30] sm:$0xf]
    %v1075 = vld [vmem:[%s1067 + $0x38] sm:$0xf]
    %v1077 = vsel %vm281, %v1074, 0
    %v1080 = vsel %vm281, %v1075, 0
    %1082 = vmatprep.subr.mxu0 %v1069
    %1083 = vmatpush1.msra.mxu0 %v1068
    %1084 = vmatprep.subr.mxu0 %v1071
    %1085 = vmatpush1.msra.mxu0 %v1070
    %1086 = vmatprep.subr.mxu0 %v1073
    %1087 = vmatpush1.msra.mxu0 %v1072
    %1088 = vmatprep.subr.mxu0 %v1080
    %1089 = vmatpush1.msra.mxu0 %v1077
    %1090 = vmatprep.subr.mxu0 0.0
    %1091 = vmatpush1.msra.mxu0 0.0
    %1092 = vmatprep.subr.mxu0 0.0
    %1093 = vmatpush1.msra.mxu0 0.0
    %1094 = vmatprep.subr.mxu0 0.0
    %1095 = vmatpush1.msra.mxu0 0.0
    %1096 = vmatprep.subr.mxu0 0.0
    %1097 = vmatpush1.msra.mxu0 0.0
    %1098 = vmatprep.subr.mxu0 0.0
    %1099 = vmatpush1.msra.mxu0 0.0
    %1100 = vmatprep.subr.mxu0 0.0
    %1101 = vmatpush1.msra.mxu0 0.0
    %1102 = vmatprep.subr.mxu0 0.0
    %1103 = vmatpush1.msra.mxu0 0.0
    %1104 = vmatprep.subr.mxu0 0.0
    %1105 = vmatpush1.msra.mxu0 0.0
    %1106 = vmatprep.subr.mxu0 0.0
    %1107 = vmatpush1.msra.mxu0 0.0
    %1108 = vmatprep.subr.mxu0 0.0
    %1109 = vmatpush1.msra.mxu0 0.0
    %1110 = vmatprep.subr.mxu0 0.0
    %1111 = vmatpush1.msra.mxu0 0.0
    %1112 = vmatprep.subr.mxu0 0.0
    %1113 = vmatpush1.msra.mxu0 0.0
    %1114 = vmatprep.subr.mxu0 0.0
    %1115 = vmatpush1.msra.mxu0 0.0
    %1116 = vmatprep.subr.mxu0 0.0
    %1117 = vmatpush1.msra.mxu0 0.0
    %1118 = vmatprep.subr.mxu0 0.0
    %1119 = vmatpush1.msra.mxu0 0.0
    %1120 = vmatprep.subr.mxu0 0.0
    %1121 = vmatpush1.msra.mxu0 0.0
    %1122 = vmatprep.subr.mxu0 0.0
    %1123 = vmatpush1.msra.mxu0 0.0
    %1124 = vmatprep.subr.mxu0 0.0
    %1125 = vmatpush1.msra.mxu0 0.0
    %1126 = vmatprep.subr.mxu0 0.0
    %1127 = vmatpush1.msra.mxu0 0.0
    %1128 = vmatprep.subr.mxu0 0.0
    %1129 = vmatpush1.msra.mxu0 0.0
    %1130 = vmatprep.subr.mxu0 0.0
    %1131 = vmatpush1.msra.mxu0 0.0
    %1132 = vmatprep.subr.mxu0 0.0
    %1133 = vmatpush1.msra.mxu0 0.0
    %1134 = vmatprep.subr.mxu0 0.0
    %1135 = vmatpush1.msra.mxu0 0.0
    %1136 = vmatprep.subr.mxu0 0.0
    %1137 = vmatpush1.msra.mxu0 0.0
    %1138 = vmatprep.subr.mxu0 0.0
    %1139 = vmatpush1.msra.mxu0 0.0
    %1140 = vmatprep.subr.mxu0 0.0
    %1141 = vmatpush1.msra.mxu0 0.0
    %1142 = vmatprep.subr.mxu0 0.0
    %1143 = vmatpush1.msra.mxu0 0.0
    %1144 = vmatprep.subr.mxu0 0.0
    %1145 = vmatpush1.msra.mxu0 0.0
    %1146 = vmatprep.mubr.f32.mxu0 0.0
    %1147 = vmatmul.mubr.f32.gmra.mrb[0].mxu0 %v909
    %v1148 = vpop.f32.mrb[0].mxu0
    %v1149 = vadd.f32 0.0, %v1148
    %v1150 = vpop.f32.mrb[0].mxu0
    %v1151 = vadd.f32 0.0, %v1150
    %1152 = vmatprep.mubr.f32.mxu0 0.0
    %1153 = vmatmul.mubr.f32.gmra.mrb[0].mxu0 %v912
    %v1154 = vpop.f32.mrb[0].mxu0
    %v1155 = vadd.f32 0.0, %v1154
    %v1156 = vpop.f32.mrb[0].mxu0
    %v1157 = vadd.f32 0.0, %v1156
    %1158 = vmatprep.mubr.f32.mxu0 0.0
    %1159 = vmatmul.mubr.f32.gmra.mrb[0].mxu0 %v915
    %v1160 = vpop.f32.mrb[0].mxu0
    %v1161 = vadd.f32 0.0, %v1160
    %v1162 = vpop.f32.mrb[0].mxu0
    %v1163 = vadd.f32 0.0, %v1162
    %1164 = vmatprep.mubr.f32.mxu0 0.0
    %1165 = vmatmul.mubr.f32.gmra.mrb[0].mxu0 %v918
    %v1166 = vpop.f32.mrb[0].mxu0
    %v1167 = vadd.f32 0.0, %v1166
    %v1168 = vpop.f32.mrb[0].mxu0
    %v1169 = vadd.f32 0.0, %v1168
    %1170 = vmatprep.mubr.f32.mxu0 0.0
    %1171 = vmatmul.mubr.f32.gmra.mrb[0].mxu0 %v921
    %v1172 = vpop.f32.mrb[0].mxu0
    %v1173 = vadd.f32 0.0, %v1172
    %v1174 = vpop.f32.mrb[0].mxu0
    %v1175 = vadd.f32 0.0, %v1174
    %1176 = vmatprep.mubr.f32.mxu0 0.0
    %1177 = vmatmul.mubr.f32.gmra.mrb[0].mxu0 %v924
    %v1178 = vpop.f32.mrb[0].mxu0
    %v1179 = vadd.f32 0.0, %v1178
    %v1180 = vpop.f32.mrb[0].mxu0
    %v1181 = vadd.f32 0.0, %v1180
    %1182 = vmatprep.mubr.f32.mxu0 0.0
    %1183 = vmatmul.mubr.f32.gmra.mrb[0].mxu0 %v927
    %v1184 = vpop.f32.mrb[0].mxu0
    %v1185 = vadd.f32 0.0, %v1184
    %v1186 = vpop.f32.mrb[0].mxu0
    %v1187 = vadd.f32 0.0, %v1186
    %1188 = vmatprep.mubr.f32.mxu0 0.0
    %1189 = vmatmul.mubr.f32.gmra.mrb[0].mxu0 %v930
    %v1190 = vpop.f32.mrb[0].mxu0
    %v1191 = vadd.f32 0.0, %v1190
    %v1192 = vpop.f32.mrb[0].mxu0
    %v1193 = vadd.f32 0.0, %v1192
    %1194 = vdwg.mxu0
    %v1195 = vadd.f32 %v875, %v1149
    %v1196 = vadd.f32 %v876, %v1151
    %v1197 = vadd.f32 %v877, %v1155
    %v1198 = vadd.f32 %v878, %v1157
    %v1199 = vadd.f32 %v879, %v1161
    %v1200 = vadd.f32 %v880, %v1163
    %v1201 = vadd.f32 %v881, %v1167
    %v1202 = vadd.f32 %v882, %v1169
    %v1203 = vadd.f32 %v883, %v1173
    %v1204 = vadd.f32 %v884, %v1175
    %v1205 = vadd.f32 %v885, %v1179
    %v1206 = vadd.f32 %v886, %v1181
    %v1207 = vadd.f32 %v887, %v1185
    %v1208 = vadd.f32 %v888, %v1187
    %v1209 = vadd.f32 %v889, %v1191
    %v1210 = vadd.f32 %v890, %v1193
    %v1211 = vld [vmem:[%s0 + $0x3] sm:$0xff]
    %v1212 = vld [vmem:[%s0 + $0xb] sm:$0xff]
    %v1213 = vld [vmem:[%s0 + $0x13] sm:$0xff]
    %v1214 = vld [vmem:[%s0 + $0x1b] sm:$0xff]
    %v1215 = vld [vmem:[%s0 + $0x23] sm:$0xff]
    %v1216 = vld [vmem:[%s0 + $0x2b] sm:$0xff]
    %v1217 = vld [vmem:[%s0 + $0x33] sm:$0xff]
    %v1218 = vld [vmem:[%s0 + $0x3b] sm:$0xff]
    %s1219 = scalar_lea.vmem [#allocation3], 192
    %v1220 = vld [vmem:[%s1219] sm:$0xff]
    %v1221 = vld [vmem:[%s1219 + $0x8] sm:$0xff]
    %v1222 = vld [vmem:[%s1219 + $0x10] sm:$0xff]
    %v1223 = vld [vmem:[%s1219 + $0x18] sm:$0xff]
    %v1224 = vld [vmem:[%s1219 + $0x20] sm:$0xff]
    %v1225 = vld [vmem:[%s1219 + $0x28] sm:$0xff]
    %v1226 = vld [vmem:[%s1219 + $0x30] sm:$0xf]
    %v1227 = vld [vmem:[%s1219 + $0x38] sm:$0xf]
    %v1229 = vsel %vm256, %v1211, 0
    %v1232 = vsel %vm256, %v1212, 0
    %v1235 = vsel %vm256, %v1213, 0
    %v1238 = vsel %vm256, %v1214, 0
    %v1241 = vsel %vm256, %v1215, 0
    %v1244 = vsel %vm256, %v1216, 0
    %v1247 = vsel %vm256, %v1217, 0
    %v1250 = vsel %vm256, %v1218, 0
    %v1253 = vsel %vm281, %v1226, 0
    %v1256 = vsel %vm281, %v1227, 0
    %1258 = vmatprep.subr.mxu0 %v1221
    %1259 = vmatpush1.msra.mxu0 %v1220
    %1260 = vmatprep.subr.mxu0 %v1223
    %1261 = vmatpush1.msra.mxu0 %v1222
    %1262 = vmatprep.subr.mxu0 %v1225
    %1263 = vmatpush1.msra.mxu0 %v1224
    %1264 = vmatprep.subr.mxu0 %v1256
    %1265 = vmatpush1.msra.mxu0 %v1253
    %1266 = vmatprep.subr.mxu0 0.0
    %1267 = vmatpush1.msra.mxu0 0.0
    %1268 = vmatprep.subr.mxu0 0.0
    %1269 = vmatpush1.msra.mxu0 0.0
    %1270 = vmatprep.subr.mxu0 0.0
    %1271 = vmatpush1.msra.mxu0 0.0
    %1272 = vmatprep.subr.mxu0 0.0
    %1273 = vmatpush1.msra.mxu0 0.0
    %1274 = vmatprep.subr.mxu0 0.0
    %1275 = vmatpush1.msra.mxu0 0.0
    %1276 = vmatprep.subr.mxu0 0.0
    %1277 = vmatpush1.msra.mxu0 0.0
    %1278 = vmatprep.subr.mxu0 0.0
    %1279 = vmatpush1.msra.mxu0 0.0
    %1280 = vmatprep.subr.mxu0 0.0
    %1281 = vmatpush1.msra.mxu0 0.0
    %1282 = vmatprep.subr.mxu0 0.0
    %1283 = vmatpush1.msra.mxu0 0.0
    %1284 = vmatprep.subr.mxu0 0.0
    %1285 = vmatpush1.msra.mxu0 0.0
    %1286 = vmatprep.subr.mxu0 0.0
    %1287 = vmatpush1.msra.mxu0 0.0
    %1288 = vmatprep.subr.mxu0 0.0
    %1289 = vmatpush1.msra.mxu0 0.0
    %1290 = vmatprep.subr.mxu0 0.0
    %1291 = vmatpush1.msra.mxu0 0.0
    %1292 = vmatprep.subr.mxu0 0.0
    %1293 = vmatpush1.msra.mxu0 0.0
    %1294 = vmatprep.subr.mxu0 0.0
    %1295 = vmatpush1.msra.mxu0 0.0
    %1296 = vmatprep.subr.mxu0 0.0
    %1297 = vmatpush1.msra.mxu0 0.0
    %1298 = vmatprep.subr.mxu0 0.0
    %1299 = vmatpush1.msra.mxu0 0.0
    %1300 = vmatprep.subr.mxu0 0.0
    %1301 = vmatpush1.msra.mxu0 0.0
    %1302 = vmatprep.subr.mxu0 0.0
    %1303 = vmatpush1.msra.mxu0 0.0
    %1304 = vmatprep.subr.mxu0 0.0
    %1305 = vmatpush1.msra.mxu0 0.0
    %1306 = vmatprep.subr.mxu0 0.0
    %1307 = vmatpush1.msra.mxu0 0.0
    %1308 = vmatprep.subr.mxu0 0.0
    %1309 = vmatpush1.msra.mxu0 0.0
    %1310 = vmatprep.subr.mxu0 0.0
    %1311 = vmatpush1.msra.mxu0 0.0
    %1312 = vmatprep.subr.mxu0 0.0
    %1313 = vmatpush1.msra.mxu0 0.0
    %1314 = vmatprep.subr.mxu0 0.0
    %1315 = vmatpush1.msra.mxu0 0.0
    %1316 = vmatprep.subr.mxu0 0.0
    %1317 = vmatpush1.msra.mxu0 0.0
    %1318 = vmatprep.subr.mxu0 0.0
    %1319 = vmatpush1.msra.mxu0 0.0
    %1320 = vmatprep.subr.mxu0 0.0
    %1321 = vmatpush1.msra.mxu0 0.0
    %1322 = vmatprep.mubr.f32.mxu0 0.0
    %1323 = vmatmul.mubr.f32.gmra.mrb[0].mxu0 %v1229
    %v1324 = vpop.f32.mrb[0].mxu0
    %v1325 = vadd.f32 0.0, %v1324
    %v1326 = vpop.f32.mrb[0].mxu0
    %v1327 = vadd.f32 0.0, %v1326
    %1328 = vmatprep.mubr.f32.mxu0 0.0
    %1329 = vmatmul.mubr.f32.gmra.mrb[0].mxu0 %v1232
    %v1330 = vpop.f32.mrb[0].mxu0
    %v1331 = vadd.f32 0.0, %v1330
    %v1332 = vpop.f32.mrb[0].mxu0
    %v1333 = vadd.f32 0.0, %v1332
    %1334 = vmatprep.mubr.f32.mxu0 0.0
    %1335 = vmatmul.mubr.f32.gmra.mrb[0].mxu0 %v1235
    %v1336 = vpop.f32.mrb[0].mxu0
    %v1337 = vadd.f32 0.0, %v1336
    %v1338 = vpop.f32.mrb[0].mxu0
    %v1339 = vadd.f32 0.0, %v1338
    %1340 = vmatprep.mubr.f32.mxu0 0.0
    %1341 = vmatmul.mubr.f32.gmra.mrb[0].mxu0 %v1238
    %v1342 = vpop.f32.mrb[0].mxu0
    %v1343 = vadd.f32 0.0, %v1342
    %v1344 = vpop.f32.mrb[0].mxu0
    %v1345 = vadd.f32 0.0, %v1344
    %1346 = vmatprep.mubr.f32.mxu0 0.0
    %1347 = vmatmul.mubr.f32.gmra.mrb[0].mxu0 %v1241
    %v1348 = vpop.f32.mrb[0].mxu0
    %v1349 = vadd.f32 0.0, %v1348
    %v1350 = vpop.f32.mrb[0].mxu0
    %v1351 = vadd.f32 0.0, %v1350
    %1352 = vmatprep.mubr.f32.mxu0 0.0
    %1353 = vmatmul.mubr.f32.gmra.mrb[0].mxu0 %v1244
    %v1354 = vpop.f32.mrb[0].mxu0
    %v1355 = vadd.f32 0.0, %v1354
    %v1356 = vpop.f32.mrb[0].mxu0
    %v1357 = vadd.f32 0.0, %v1356
    %1358 = vmatprep.mubr.f32.mxu0 0.0
    %1359 = vmatmul.mubr.f32.gmra.mrb[0].mxu0 %v1247
    %v1360 = vpop.f32.mrb[0].mxu0
    %v1361 = vadd.f32 0.0, %v1360
    %v1362 = vpop.f32.mrb[0].mxu0
    %v1363 = vadd.f32 0.0, %v1362
    %1364 = vmatprep.mubr.f32.mxu0 0.0
    %1365 = vmatmul.mubr.f32.gmra.mrb[0].mxu0 %v1250
    %v1366 = vpop.f32.mrb[0].mxu0
    %v1367 = vadd.f32 0.0, %v1366
    %v1368 = vpop.f32.mrb[0].mxu0
    %v1369 = vadd.f32 0.0, %v1368
    %1370 = vdwg.mxu0
    %v1371 = vadd.f32 %v1051, %v1325
    %v1372 = vadd.f32 %v1052, %v1327
    %v1373 = vadd.f32 %v1053, %v1331
    %v1374 = vadd.f32 %v1054, %v1333
    %v1375 = vadd.f32 %v1055, %v1337
    %v1376 = vadd.f32 %v1056, %v1339
    %v1377 = vadd.f32 %v1057, %v1343
    %v1378 = vadd.f32 %v1058, %v1345
    %v1379 = vadd.f32 %v1059, %v1349
    %v1380 = vadd.f32 %v1060, %v1351
    %v1381 = vadd.f32 %v1061, %v1355
    %v1382 = vadd.f32 %v1062, %v1357
    %v1383 = vadd.f32 %v1063, %v1361
    %v1384 = vadd.f32 %v1064, %v1363
    %v1385 = vadd.f32 %v1065, %v1367
    %v1386 = vadd.f32 %v1066, %v1369
    %s1387 = scalar_lea.vmem [#allocation6], 192
    %v1388 = vld [vmem:[%s1387] sm:$0xff]
    %v1389 = vld [vmem:[%s1387 + $0x8] sm:$0xff]
    %v1390 = vld [vmem:[%s1387 + $0x10] sm:$0xff]
    %v1391 = vld [vmem:[%s1387 + $0x18] sm:$0xff]
    %v1392 = vld [vmem:[%s1387 + $0x20] sm:$0xff]
    %v1393 = vld [vmem:[%s1387 + $0x28] sm:$0xff]
    %v1394 = vld [vmem:[%s1387 + $0x30] sm:$0xf]
    %v1395 = vld [vmem:[%s1387 + $0x38] sm:$0xf]
    %v1397 = vsel %vm281, %v1394, 0
    %v1400 = vsel %vm281, %v1395, 0
    %1402 = vmatprep.subr.mxu0 %v1389
    %1403 = vmatpush1.msra.mxu0 %v1388
    %1404 = vmatprep.subr.mxu0 %v1391
    %1405 = vmatpush1.msra.mxu0 %v1390
    %1406 = vmatprep.subr.mxu0 %v1393
    %1407 = vmatpush1.msra.mxu0 %v1392
    %1408 = vmatprep.subr.mxu0 %v1400
    %1409 = vmatpush1.msra.mxu0 %v1397
    %1410 = vmatprep.subr.mxu0 0.0
    %1411 = vmatpush1.msra.mxu0 0.0
    %1412 = vmatprep.subr.mxu0 0.0
    %1413 = vmatpush1.msra.mxu0 0.0
    %1414 = vmatprep.subr.mxu0 0.0
    %1415 = vmatpush1.msra.mxu0 0.0
    %1416 = vmatprep.subr.mxu0 0.0
    %1417 = vmatpush1.msra.mxu0 0.0
    %1418 = vmatprep.subr.mxu0 0.0
    %1419 = vmatpush1.msra.mxu0 0.0
    %1420 = vmatprep.subr.mxu0 0.0
    %1421 = vmatpush1.msra.mxu0 0.0
    %1422 = vmatprep.subr.mxu0 0.0
    %1423 = vmatpush1.msra.mxu0 0.0
    %1424 = vmatprep.subr.mxu0 0.0
    %1425 = vmatpush1.msra.mxu0 0.0
    %1426 = vmatprep.subr.mxu0 0.0
    %1427 = vmatpush1.msra.mxu0 0.0
    %1428 = vmatprep.subr.mxu0 0.0
    %1429 = vmatpush1.msra.mxu0 0.0
    %1430 = vmatprep.subr.mxu0 0.0
    %1431 = vmatpush1.msra.mxu0 0.0
    %1432 = vmatprep.subr.mxu0 0.0
    %1433 = vmatpush1.msra.mxu0 0.0
    %1434 = vmatprep.subr.mxu0 0.0
    %1435 = vmatpush1.msra.mxu0 0.0
    %1436 = vmatprep.subr.mxu0 0.0
    %1437 = vmatpush1.msra.mxu0 0.0
    %1438 = vmatprep.subr.mxu0 0.0
    %1439 = vmatpush1.msra.mxu0 0.0
    %1440 = vmatprep.subr.mxu0 0.0
    %1441 = vmatpush1.msra.mxu0 0.0
    %1442 = vmatprep.subr.mxu0 0.0
    %1443 = vmatpush1.msra.mxu0 0.0
    %1444 = vmatprep.subr.mxu0 0.0
    %1445 = vmatpush1.msra.mxu0 0.0
    %1446 = vmatprep.subr.mxu0 0.0
    %1447 = vmatpush1.msra.mxu0 0.0
    %1448 = vmatprep.subr.mxu0 0.0
    %1449 = vmatpush1.msra.mxu0 0.0
    %1450 = vmatprep.subr.mxu0 0.0
    %1451 = vmatpush1.msra.mxu0 0.0
    %1452 = vmatprep.subr.mxu0 0.0
    %1453 = vmatpush1.msra.mxu0 0.0
    %1454 = vmatprep.subr.mxu0 0.0
    %1455 = vmatpush1.msra.mxu0 0.0
    %1456 = vmatprep.subr.mxu0 0.0
    %1457 = vmatpush1.msra.mxu0 0.0
    %1458 = vmatprep.subr.mxu0 0.0
    %1459 = vmatpush1.msra.mxu0 0.0
    %1460 = vmatprep.subr.mxu0 0.0
    %1461 = vmatpush1.msra.mxu0 0.0
    %1462 = vmatprep.subr.mxu0 0.0
    %1463 = vmatpush1.msra.mxu0 0.0
    %1464 = vmatprep.subr.mxu0 0.0
    %1465 = vmatpush1.msra.mxu0 0.0
    %1466 = vmatprep.mubr.f32.mxu0 0.0
    %1467 = vmatmul.mubr.f32.gmra.mrb[0].mxu0 %v1229
    %v1468 = vpop.f32.mrb[0].mxu0
    %v1469 = vadd.f32 0.0, %v1468
    %v1470 = vpop.f32.mrb[0].mxu0
    %v1471 = vadd.f32 0.0, %v1470
    %1472 = vmatprep.mubr.f32.mxu0 0.0
    %1473 = vmatmul.mubr.f32.gmra.mrb[0].mxu0 %v1232
    %v1474 = vpop.f32.mrb[0].mxu0
    %v1475 = vadd.f32 0.0, %v1474
    %v1476 = vpop.f32.mrb[0].mxu0
    %v1477 = vadd.f32 0.0, %v1476
    %1478 = vmatprep.mubr.f32.mxu0 0.0
    %1479 = vmatmul.mubr.f32.gmra.mrb[0].mxu0 %v1235
    %v1480 = vpop.f32.mrb[0].mxu0
    %v1481 = vadd.f32 0.0, %v1480
    %v1482 = vpop.f32.mrb[0].mxu0
    %v1483 = vadd.f32 0.0, %v1482
    %1484 = vmatprep.mubr.f32.mxu0 0.0
    %1485 = vmatmul.mubr.f32.gmra.mrb[0].mxu0 %v1238
    %v1486 = vpop.f32.mrb[0].mxu0
    %v1487 = vadd.f32 0.0, %v1486
    %v1488 = vpop.f32.mrb[0].mxu0
    %v1489 = vadd.f32 0.0, %v1488
    %1490 = vmatprep.mubr.f32.mxu0 0.0
    %1491 = vmatmul.mubr.f32.gmra.mrb[0].mxu0 %v1241
    %v1492 = vpop.f32.mrb[0].mxu0
    %v1493 = vadd.f32 0.0, %v1492
    %v1494 = vpop.f32.mrb[0].mxu0
    %v1495 = vadd.f32 0.0, %v1494
    %1496 = vmatprep.mubr.f32.mxu0 0.0
    %1497 = vmatmul.mubr.f32.gmra.mrb[0].mxu0 %v1244
    %v1498 = vpop.f32.mrb[0].mxu0
    %v1499 = vadd.f32 0.0, %v1498
    %v1500 = vpop.f32.mrb[0].mxu0
    %v1501 = vadd.f32 0.0, %v1500
    %1502 = vmatprep.mubr.f32.mxu0 0.0
    %1503 = vmatmul.mubr.f32.gmra.mrb[0].mxu0 %v1247
    %v1504 = vpop.f32.mrb[0].mxu0
    %v1505 = vadd.f32 0.0, %v1504
    %v1506 = vpop.f32.mrb[0].mxu0
    %v1507 = vadd.f32 0.0, %v1506
    %1508 = vmatprep.mubr.f32.mxu0 0.0
    %1509 = vmatmul.mubr.f32.gmra.mrb[0].mxu0 %v1250
    %v1510 = vpop.f32.mrb[0].mxu0
    %v1511 = vadd.f32 0.0, %v1510
    %v1512 = vpop.f32.mrb[0].mxu0
    %v1513 = vadd.f32 0.0, %v1512
    %1514 = vdwg.mxu0
    %v1515 = vadd.f32 %v1195, %v1469
    %v1516 = vadd.f32 %v1196, %v1471
    %v1517 = vadd.f32 %v1197, %v1475
    %v1518 = vadd.f32 %v1198, %v1477
    %v1519 = vadd.f32 %v1199, %v1481
    %v1520 = vadd.f32 %v1200, %v1483
    %v1521 = vadd.f32 %v1201, %v1487
    %v1522 = vadd.f32 %v1202, %v1489
    %v1523 = vadd.f32 %v1203, %v1493
    %v1524 = vadd.f32 %v1204, %v1495
    %v1525 = vadd.f32 %v1205, %v1499
    %v1526 = vadd.f32 %v1206, %v1501
    %v1527 = vadd.f32 %v1207, %v1505
    %v1528 = vadd.f32 %v1208, %v1507
    %v1529 = vadd.f32 %v1209, %v1511
    %v1530 = vadd.f32 %v1210, %v1513
    %v1531 = vld [vmem:[%s0 + $0x4] sm:$0xff]
    %v1532 = vld [vmem:[%s0 + $0xc] sm:$0xff]
    %v1533 = vld [vmem:[%s0 + $0x14] sm:$0xff]
    %v1534 = vld [vmem:[%s0 + $0x1c] sm:$0xff]
    %v1535 = vld [vmem:[%s0 + $0x24] sm:$0xff]
    %v1536 = vld [vmem:[%s0 + $0x2c] sm:$0xff]
    %v1537 = vld [vmem:[%s0 + $0x34] sm:$0xff]
    %v1538 = vld [vmem:[%s0 + $0x3c] sm:$0xff]
    %s1539 = scalar_lea.vmem [#allocation3], 256
    %v1540 = vld [vmem:[%s1539] sm:$0xff]
    %v1541 = vld [vmem:[%s1539 + $0x8] sm:$0xff]
    %v1542 = vld [vmem:[%s1539 + $0x10] sm:$0xff]
    %v1543 = vld [vmem:[%s1539 + $0x18] sm:$0xff]
    %v1544 = vld [vmem:[%s1539 + $0x20] sm:$0xff]
    %v1545 = vld [vmem:[%s1539 + $0x28] sm:$0xff]
    %v1546 = vld [vmem:[%s1539 + $0x30] sm:$0xf]
    %v1547 = vld [vmem:[%s1539 + $0x38] sm:$0xf]
    %v1549 = vsel %vm256, %v1531, 0
    %v1552 = vsel %vm256, %v1532, 0
    %v1555 = vsel %vm256, %v1533, 0
    %v1558 = vsel %vm256, %v1534, 0
    %v1561 = vsel %vm256, %v1535, 0
    %v1564 = vsel %vm256, %v1536, 0
    %v1567 = vsel %vm256, %v1537, 0
    %v1570 = vsel %vm256, %v1538, 0
    %v1573 = vsel %vm281, %v1546, 0
    %v1576 = vsel %vm281, %v1547, 0
    %1578 = vmatprep.subr.mxu0 %v1541
    %1579 = vmatpush1.msra.mxu0 %v1540
    %1580 = vmatprep.subr.mxu0 %v1543
    %1581 = vmatpush1.msra.mxu0 %v1542
    %1582 = vmatprep.subr.mxu0 %v1545
    %1583 = vmatpush1.msra.mxu0 %v1544
    %1584 = vmatprep.subr.mxu0 %v1576
    %1585 = vmatpush1.msra.mxu0 %v1573
    %1586 = vmatprep.subr.mxu0 0.0
    %1587 = vmatpush1.msra.mxu0 0.0
    %1588 = vmatprep.subr.mxu0 0.0
    %1589 = vmatpush1.msra.mxu0 0.0
    %1590 = vmatprep.subr.mxu0 0.0
    %1591 = vmatpush1.msra.mxu0 0.0
    %1592 = vmatprep.subr.mxu0 0.0
    %1593 = vmatpush1.msra.mxu0 0.0
    %1594 = vmatprep.subr.mxu0 0.0
    %1595 = vmatpush1.msra.mxu0 0.0
    %1596 = vmatprep.subr.mxu0 0.0
    %1597 = vmatpush1.msra.mxu0 0.0
    %1598 = vmatprep.subr.mxu0 0.0
    %1599 = vmatpush1.msra.mxu0 0.0
    %1600 = vmatprep.subr.mxu0 0.0
    %1601 = vmatpush1.msra.mxu0 0.0
    %1602 = vmatprep.subr.mxu0 0.0
    %1603 = vmatpush1.msra.mxu0 0.0
    %1604 = vmatprep.subr.mxu0 0.0
    %1605 = vmatpush1.msra.mxu0 0.0
    %1606 = vmatprep.subr.mxu0 0.0
    %1607 = vmatpush1.msra.mxu0 0.0
    %1608 = vmatprep.subr.mxu0 0.0
    %1609 = vmatpush1.msra.mxu0 0.0
    %1610 = vmatprep.subr.mxu0 0.0
    %1611 = vmatpush1.msra.mxu0 0.0
    %1612 = vmatprep.subr.mxu0 0.0
    %1613 = vmatpush1.msra.mxu0 0.0
    %1614 = vmatprep.subr.mxu0 0.0
    %1615 = vmatpush1.msra.mxu0 0.0
    %1616 = vmatprep.subr.mxu0 0.0
    %1617 = vmatpush1.msra.mxu0 0.0
    %1618 = vmatprep.subr.mxu0 0.0
    %1619 = vmatpush1.msra.mxu0 0.0
    %1620 = vmatprep.subr.mxu0 0.0
    %1621 = vmatpush1.msra.mxu0 0.0
    %1622 = vmatprep.subr.mxu0 0.0
    %1623 = vmatpush1.msra.mxu0 0.0
    %1624 = vmatprep.subr.mxu0 0.0
    %1625 = vmatpush1.msra.mxu0 0.0
    %1626 = vmatprep.subr.mxu0 0.0
    %1627 = vmatpush1.msra.mxu0 0.0
    %1628 = vmatprep.subr.mxu0 0.0
    %1629 = vmatpush1.msra.mxu0 0.0
    %1630 = vmatprep.subr.mxu0 0.0
    %1631 = vmatpush1.msra.mxu0 0.0
    %1632 = vmatprep.subr.mxu0 0.0
    %1633 = vmatpush1.msra.mxu0 0.0
    %1634 = vmatprep.subr.mxu0 0.0
    %1635 = vmatpush1.msra.mxu0 0.0
    %1636 = vmatprep.subr.mxu0 0.0
    %1637 = vmatpush1.msra.mxu0 0.0
    %1638 = vmatprep.subr.mxu0 0.0
    %1639 = vmatpush1.msra.mxu0 0.0
    %1640 = vmatprep.subr.mxu0 0.0
    %1641 = vmatpush1.msra.mxu0 0.0
    %1642 = vmatprep.mubr.f32.mxu0 0.0
    %1643 = vmatmul.mubr.f32.gmra.mrb[0].mxu0 %v1549
    %v1644 = vpop.f32.mrb[0].mxu0
    %v1645 = vadd.f32 0.0, %v1644
    %v1646 = vpop.f32.mrb[0].mxu0
    %v1647 = vadd.f32 0.0, %v1646
    %1648 = vmatprep.mubr.f32.mxu0 0.0
    %1649 = vmatmul.mubr.f32.gmra.mrb[0].mxu0 %v1552
    %v1650 = vpop.f32.mrb[0].mxu0
    %v1651 = vadd.f32 0.0, %v1650
    %v1652 = vpop.f32.mrb[0].mxu0
    %v1653 = vadd.f32 0.0, %v1652
    %1654 = vmatprep.mubr.f32.mxu0 0.0
    %1655 = vmatmul.mubr.f32.gmra.mrb[0].mxu0 %v1555
    %v1656 = vpop.f32.mrb[0].mxu0
    %v1657 = vadd.f32 0.0, %v1656
    %v1658 = vpop.f32.mrb[0].mxu0
    %v1659 = vadd.f32 0.0, %v1658
    %1660 = vmatprep.mubr.f32.mxu0 0.0
    %1661 = vmatmul.mubr.f32.gmra.mrb[0].mxu0 %v1558
    %v1662 = vpop.f32.mrb[0].mxu0
    %v1663 = vadd.f32 0.0, %v1662
    %v1664 = vpop.f32.mrb[0].mxu0
    %v1665 = vadd.f32 0.0, %v1664
    %1666 = vmatprep.mubr.f32.mxu0 0.0
    %1667 = vmatmul.mubr.f32.gmra.mrb[0].mxu0 %v1561
    %v1668 = vpop.f32.mrb[0].mxu0
    %v1669 = vadd.f32 0.0, %v1668
    %v1670 = vpop.f32.mrb[0].mxu0
    %v1671 = vadd.f32 0.0, %v1670
    %1672 = vmatprep.mubr.f32.mxu0 0.0
    %1673 = vmatmul.mubr.f32.gmra.mrb[0].mxu0 %v1564
    %v1674 = vpop.f32.mrb[0].mxu0
    %v1675 = vadd.f32 0.0, %v1674
    %v1676 = vpop.f32.mrb[0].mxu0
    %v1677 = vadd.f32 0.0, %v1676
    %1678 = vmatprep.mubr.f32.mxu0 0.0
    %1679 = vmatmul.mubr.f32.gmra.mrb[0].mxu0 %v1567
    %v1680 = vpop.f32.mrb[0].mxu0
    %v1681 = vadd.f32 0.0, %v1680
    %v1682 = vpop.f32.mrb[0].mxu0
    %v1683 = vadd.f32 0.0, %v1682
    %1684 = vmatprep.mubr.f32.mxu0 0.0
    %1685 = vmatmul.mubr.f32.gmra.mrb[0].mxu0 %v1570
    %v1686 = vpop.f32.mrb[0].mxu0
    %v1687 = vadd.f32 0.0, %v1686
    %v1688 = vpop.f32.mrb[0].mxu0
    %v1689 = vadd.f32 0.0, %v1688
    %1690 = vdwg.mxu0
    %v1691 = vadd.f32 %v1371, %v1645
    %v1692 = vadd.f32 %v1372, %v1647
    %v1693 = vadd.f32 %v1373, %v1651
    %v1694 = vadd.f32 %v1374, %v1653
    %v1695 = vadd.f32 %v1375, %v1657
    %v1696 = vadd.f32 %v1376, %v1659
    %v1697 = vadd.f32 %v1377, %v1663
    %v1698 = vadd.f32 %v1378, %v1665
    %v1699 = vadd.f32 %v1379, %v1669
    %v1700 = vadd.f32 %v1380, %v1671
    %v1701 = vadd.f32 %v1381, %v1675
    %v1702 = vadd.f32 %v1382, %v1677
    %v1703 = vadd.f32 %v1383, %v1681
    %v1704 = vadd.f32 %v1384, %v1683
    %v1705 = vadd.f32 %v1385, %v1687
    %v1706 = vadd.f32 %v1386, %v1689
    %s1707 = scalar_lea.vmem [#allocation6], 256
    %v1708 = vld [vmem:[%s1707] sm:$0xff]
    %v1709 = vld [vmem:[%s1707 + $0x8] sm:$0xff]
    %v1710 = vld [vmem:[%s1707 + $0x10] sm:$0xff]
    %v1711 = vld [vmem:[%s1707 + $0x18] sm:$0xff]
    %v1712 = vld [vmem:[%s1707 + $0x20] sm:$0xff]
    %v1713 = vld [vmem:[%s1707 + $0x28] sm:$0xff]
    %v1714 = vld [vmem:[%s1707 + $0x30] sm:$0xf]
    %v1715 = vld [vmem:[%s1707 + $0x38] sm:$0xf]
    %v1717 = vsel %vm281, %v1714, 0
    %v1720 = vsel %vm281, %v1715, 0
    %1722 = vmatprep.subr.mxu0 %v1709
    %1723 = vmatpush1.msra.mxu0 %v1708
    %1724 = vmatprep.subr.mxu0 %v1711
    %1725 = vmatpush1.msra.mxu0 %v1710
    %1726 = vmatprep.subr.mxu0 %v1713
    %1727 = vmatpush1.msra.mxu0 %v1712
    %1728 = vmatprep.subr.mxu0 %v1720
    %1729 = vmatpush1.msra.mxu0 %v1717
    %1730 = vmatprep.subr.mxu0 0.0
    %1731 = vmatpush1.msra.mxu0 0.0
    %1732 = vmatprep.subr.mxu0 0.0
    %1733 = vmatpush1.msra.mxu0 0.0
    %1734 = vmatprep.subr.mxu0 0.0
    %1735 = vmatpush1.msra.mxu0 0.0
    %1736 = vmatprep.subr.mxu0 0.0
    %1737 = vmatpush1.msra.mxu0 0.0
    %1738 = vmatprep.subr.mxu0 0.0
    %1739 = vmatpush1.msra.mxu0 0.0
    %1740 = vmatprep.subr.mxu0 0.0
    %1741 = vmatpush1.msra.mxu0 0.0
    %1742 = vmatprep.subr.mxu0 0.0
    %1743 = vmatpush1.msra.mxu0 0.0
    %1744 = vmatprep.subr.mxu0 0.0
    %1745 = vmatpush1.msra.mxu0 0.0
    %1746 = vmatprep.subr.mxu0 0.0
    %1747 = vmatpush1.msra.mxu0 0.0
    %1748 = vmatprep.subr.mxu0 0.0
    %1749 = vmatpush1.msra.mxu0 0.0
    %1750 = vmatprep.subr.mxu0 0.0
    %1751 = vmatpush1.msra.mxu0 0.0
    %1752 = vmatprep.subr.mxu0 0.0
    %1753 = vmatpush1.msra.mxu0 0.0
    %1754 = vmatprep.subr.mxu0 0.0
    %1755 = vmatpush1.msra.mxu0 0.0
    %1756 = vmatprep.subr.mxu0 0.0
    %1757 = vmatpush1.msra.mxu0 0.0
    %1758 = vmatprep.subr.mxu0 0.0
    %1759 = vmatpush1.msra.mxu0 0.0
    %1760 = vmatprep.subr.mxu0 0.0
    %1761 = vmatpush1.msra.mxu0 0.0
    %1762 = vmatprep.subr.mxu0 0.0
    %1763 = vmatpush1.msra.mxu0 0.0
    %1764 = vmatprep.subr.mxu0 0.0
    %1765 = vmatpush1.msra.mxu0 0.0
    %1766 = vmatprep.subr.mxu0 0.0
    %1767 = vmatpush1.msra.mxu0 0.0
    %1768 = vmatprep.subr.mxu0 0.0
    %1769 = vmatpush1.msra.mxu0 0.0
    %1770 = vmatprep.subr.mxu0 0.0
    %1771 = vmatpush1.msra.mxu0 0.0
    %1772 = vmatprep.subr.mxu0 0.0
    %1773 = vmatpush1.msra.mxu0 0.0
    %1774 = vmatprep.subr.mxu0 0.0
    %1775 = vmatpush1.msra.mxu0 0.0
    %1776 = vmatprep.subr.mxu0 0.0
    %1777 = vmatpush1.msra.mxu0 0.0
    %1778 = vmatprep.subr.mxu0 0.0
    %1779 = vmatpush1.msra.mxu0 0.0
    %1780 = vmatprep.subr.mxu0 0.0
    %1781 = vmatpush1.msra.mxu0 0.0
    %1782 = vmatprep.subr.mxu0 0.0
    %1783 = vmatpush1.msra.mxu0 0.0
    %1784 = vmatprep.subr.mxu0 0.0
    %1785 = vmatpush1.msra.mxu0 0.0
    %1786 = vmatprep.mubr.f32.mxu0 0.0
    %1787 = vmatmul.mubr.f32.gmra.mrb[0].mxu0 %v1549
    %v1788 = vpop.f32.mrb[0].mxu0
    %v1789 = vadd.f32 0.0, %v1788
    %v1790 = vpop.f32.mrb[0].mxu0
    %v1791 = vadd.f32 0.0, %v1790
    %1792 = vmatprep.mubr.f32.mxu0 0.0
    %1793 = vmatmul.mubr.f32.gmra.mrb[0].mxu0 %v1552
    %v1794 = vpop.f32.mrb[0].mxu0
    %v1795 = vadd.f32 0.0, %v1794
    %v1796 = vpop.f32.mrb[0].mxu0
    %v1797 = vadd.f32 0.0, %v1796
    %1798 = vmatprep.mubr.f32.mxu0 0.0
    %1799 = vmatmul.mubr.f32.gmra.mrb[0].mxu0 %v1555
    %v1800 = vpop.f32.mrb[0].mxu0
    %v1801 = vadd.f32 0.0, %v1800
    %v1802 = vpop.f32.mrb[0].mxu0
    %v1803 = vadd.f32 0.0, %v1802
    %1804 = vmatprep.mubr.f32.mxu0 0.0
    %1805 = vmatmul.mubr.f32.gmra.mrb[0].mxu0 %v1558
    %v1806 = vpop.f32.mrb[0].mxu0
    %v1807 = vadd.f32 0.0, %v1806
    %v1808 = vpop.f32.mrb[0].mxu0
    %v1809 = vadd.f32 0.0, %v1808
    %1810 = vmatprep.mubr.f32.mxu0 0.0
    %1811 = vmatmul.mubr.f32.gmra.mrb[0].mxu0 %v1561
    %v1812 = vpop.f32.mrb[0].mxu0
    %v1813 = vadd.f32 0.0, %v1812
    %v1814 = vpop.f32.mrb[0].mxu0
    %v1815 = vadd.f32 0.0, %v1814
    %1816 = vmatprep.mubr.f32.mxu0 0.0
    %1817 = vmatmul.mubr.f32.gmra.mrb[0].mxu0 %v1564
    %v1818 = vpop.f32.mrb[0].mxu0
    %v1819 = vadd.f32 0.0, %v1818
    %v1820 = vpop.f32.mrb[0].mxu0
    %v1821 = vadd.f32 0.0, %v1820
    %1822 = vmatprep.mubr.f32.mxu0 0.0
    %1823 = vmatmul.mubr.f32.gmra.mrb[0].mxu0 %v1567
    %v1824 = vpop.f32.mrb[0].mxu0
    %v1825 = vadd.f32 0.0, %v1824
    %v1826 = vpop.f32.mrb[0].mxu0
    %v1827 = vadd.f32 0.0, %v1826
    %1828 = vmatprep.mubr.f32.mxu0 0.0
    %1829 = vmatmul.mubr.f32.gmra.mrb[0].mxu0 %v1570
    %v1830 = vpop.f32.mrb[0].mxu0
    %v1831 = vadd.f32 0.0, %v1830
    %v1832 = vpop.f32.mrb[0].mxu0
    %v1833 = vadd.f32 0.0, %v1832
    %1834 = vdwg.mxu0
    %v1835 = vadd.f32 %v1515, %v1789
    %v1836 = vadd.f32 %v1516, %v1791
    %v1837 = vadd.f32 %v1517, %v1795
    %v1838 = vadd.f32 %v1518, %v1797
    %v1839 = vadd.f32 %v1519, %v1801
    %v1840 = vadd.f32 %v1520, %v1803
    %v1841 = vadd.f32 %v1521, %v1807
    %v1842 = vadd.f32 %v1522, %v1809
    %v1843 = vadd.f32 %v1523, %v1813
    %v1844 = vadd.f32 %v1524, %v1815
    %v1845 = vadd.f32 %v1525, %v1819
    %v1846 = vadd.f32 %v1526, %v1821
    %v1847 = vadd.f32 %v1527, %v1825
    %v1848 = vadd.f32 %v1528, %v1827
    %v1849 = vadd.f32 %v1529, %v1831
    %v1850 = vadd.f32 %v1530, %v1833
    %v1851 = vld [vmem:[%s6] sm:$0xff]
    %v1852 = vld [vmem:[%s6 + $0x8] sm:$0xff]
    %v1853 = vld [vmem:[%s6 + $0x10] sm:$0xff]
    %v1854 = vld [vmem:[%s6 + $0x18] sm:$0xff]
    %v1855 = vld [vmem:[%s6 + $0x20] sm:$0xff]
    %v1856 = vld [vmem:[%s6 + $0x28] sm:$0xff]
    %v1857 = vld [vmem:[%s6 + $0x30] sm:$0xff]
    %v1858 = vld [vmem:[%s6 + $0x38] sm:$0xff]
    %v1859 = vadd.f32 %v1691, %v1835
    %v1860 = vadd.f32 %v1692, %v1836
    %v1861 = vadd.f32 %v1693, %v1837
    %v1862 = vadd.f32 %v1694, %v1838
    %v1863 = vadd.f32 %v1695, %v1839
    %v1864 = vadd.f32 %v1696, %v1840
    %v1865 = vadd.f32 %v1697, %v1841
    %v1866 = vadd.f32 %v1698, %v1842
    %v1867 = vadd.f32 %v1699, %v1843
    %v1868 = vadd.f32 %v1700, %v1844
    %v1869 = vadd.f32 %v1701, %v1845
    %v1870 = vadd.f32 %v1702, %v1846
    %v1871 = vadd.f32 %v1703, %v1847
    %v1872 = vadd.f32 %v1704, %v1848
    %v1873 = vadd.f32 %v1705, %v1849
    %v1874 = vadd.f32 %v1706, %v1850
    %1876 = vset.pattern.permute.xlu0 0
    %1877 = vperm.xlu0 %1876, %v1851
    %v1878 = vpop.permute.xlu0 %1877
    %1881 = vset.pattern.permute.xlu0 0
    %1882 = vperm.xlu0 %1881, %v1852
    %v1883 = vpop.permute.xlu0 %1882
    %1886 = vset.pattern.permute.xlu0 0
    %1887 = vperm.xlu0 %1886, %v1853
    %v1888 = vpop.permute.xlu0 %1887
    %1891 = vset.pattern.permute.xlu0 0
    %1892 = vperm.xlu0 %1891, %v1854
    %v1893 = vpop.permute.xlu0 %1892
    %1896 = vset.pattern.permute.xlu0 0
    %1897 = vperm.xlu0 %1896, %v1855
    %v1898 = vpop.permute.xlu0 %1897
    %1901 = vset.pattern.permute.xlu0 0
    %1902 = vperm.xlu0 %1901, %v1856
    %v1903 = vpop.permute.xlu0 %1902
    %1906 = vset.pattern.permute.xlu0 0
    %1907 = vperm.xlu0 %1906, %v1857
    %v1908 = vpop.permute.xlu0 %1907
    %1911 = vset.pattern.permute.xlu0 0
    %1912 = vperm.xlu0 %1911, %v1858
    %v1913 = vpop.permute.xlu0 %1912
    %v1915 = vmul.f32 %v1859, %v1878
    %v1916 = vmul.f32 %v1860, %v1878
    %v1917 = vmul.f32 %v1861, %v1883
    %v1918 = vmul.f32 %v1862, %v1883
    %v1919 = vmul.f32 %v1863, %v1888
    %v1920 = vmul.f32 %v1864, %v1888
    %v1921 = vmul.f32 %v1865, %v1893
    %v1922 = vmul.f32 %v1866, %v1893
    %v1923 = vmul.f32 %v1867, %v1898
    %v1924 = vmul.f32 %v1868, %v1898
    %v1925 = vmul.f32 %v1869, %v1903
    %v1926 = vmul.f32 %v1870, %v1903
    %v1927 = vmul.f32 %v1871, %v1908
    %v1928 = vmul.f32 %v1872, %v1908
    %v1929 = vmul.f32 %v1873, %v1913
    %v1930 = vmul.f32 %v1874, %v1913
    %v1931 = vadd.f32 %v1915, %v1917
    %v1932 = vadd.f32 %v1931, %v1919
    %v1933 = vadd.f32 %v1932, %v1921
    %v1934 = vadd.f32 %v1933, %v1923
    %v1935 = vadd.f32 %v1934, %v1925
    %v1936 = vadd.f32 %v1935, %v1927
    %v1937 = vadd.f32 %v1936, %v1929
    %v1938 = vrot.slane %v1937, 4
    %v1939 = vadd.f32 %v1937, %v1938
    %v1940 = vrot.slane %v1939, 2
    %v1941 = vadd.f32 %v1939, %v1940
    %v1942 = vrot.slane %v1941, 1
    %v1943 = vadd.f32 %v1941, %v1942
    %vm1944 = vcmask 785408
    %v1945 = vsel %vm1944, %v1916, 0.0
    %v1946 = vsel %vm1944, %v1918, 0.0
    %v1947 = vadd.f32 %v1945, %v1946
    %v1948 = vsel %vm1944, %v1920, 0.0
    %v1949 = vadd.f32 %v1947, %v1948
    %v1950 = vsel %vm1944, %v1922, 0.0
    %v1951 = vadd.f32 %v1949, %v1950
    %v1952 = vsel %vm1944, %v1924, 0.0
    %v1953 = vadd.f32 %v1951, %v1952
    %v1954 = vsel %vm1944, %v1926, 0.0
    %v1955 = vadd.f32 %v1953, %v1954
    %v1956 = vsel %vm1944, %v1928, 0.0
    %v1957 = vadd.f32 %v1955, %v1956
    %v1958 = vsel %vm1944, %v1930, 0.0
    %v1959 = vadd.f32 %v1957, %v1958
    %v1960 = vrot.slane %v1959, 4
    %v1961 = vadd.f32 %v1959, %v1960
    %v1962 = vrot.slane %v1961, 2
    %v1963 = vadd.f32 %v1961, %v1962
    %v1964 = vrot.slane %v1963, 1
    %v1965 = vadd.f32 %v1963, %v1964
    %v1966 = vmul.f32 %v1691, %v1691
    %v1967 = vmul.f32 %v1692, %v1692
    %v1968 = vmul.f32 %v1693, %v1693
    %v1969 = vmul.f32 %v1694, %v1694
    %v1970 = vmul.f32 %v1695, %v1695
    %v1971 = vmul.f32 %v1696, %v1696
    %v1972 = vmul.f32 %v1697, %v1697
    %v1973 = vmul.f32 %v1698, %v1698
    %v1974 = vmul.f32 %v1699, %v1699
    %v1975 = vmul.f32 %v1700, %v1700
    %v1976 = vmul.f32 %v1701, %v1701
    %v1977 = vmul.f32 %v1702, %v1702
    %v1978 = vmul.f32 %v1703, %v1703
    %v1979 = vmul.f32 %v1704, %v1704
    %v1980 = vmul.f32 %v1705, %v1705
    %v1981 = vmul.f32 %v1706, %v1706
    %v1982 = vmul.f32 %v1835, %v1835
    %v1983 = vmul.f32 %v1836, %v1836
    %v1984 = vmul.f32 %v1837, %v1837
    %v1985 = vmul.f32 %v1838, %v1838
    %v1986 = vmul.f32 %v1839, %v1839
    %v1987 = vmul.f32 %v1840, %v1840
    %v1988 = vmul.f32 %v1841, %v1841
    %v1989 = vmul.f32 %v1842, %v1842
    %v1990 = vmul.f32 %v1843, %v1843
    %v1991 = vmul.f32 %v1844, %v1844
    %v1992 = vmul.f32 %v1845, %v1845
    %v1993 = vmul.f32 %v1846, %v1846
    %v1994 = vmul.f32 %v1847, %v1847
    %v1995 = vmul.f32 %v1848, %v1848
    %v1996 = vmul.f32 %v1849, %v1849
    %v1997 = vmul.f32 %v1850, %v1850
    %v1998 = vadd.f32 %v1966, %v1982
    %v1999 = vadd.f32 %v1967, %v1983
    %v2000 = vadd.f32 %v1968, %v1984
    %v2001 = vadd.f32 %v1969, %v1985
    %v2002 = vadd.f32 %v1970, %v1986
    %v2003 = vadd.f32 %v1971, %v1987
    %v2004 = vadd.f32 %v1972, %v1988
    %v2005 = vadd.f32 %v1973, %v1989
    %v2006 = vadd.f32 %v1974, %v1990
    %v2007 = vadd.f32 %v1975, %v1991
    %v2008 = vadd.f32 %v1976, %v1992
    %v2009 = vadd.f32 %v1977, %v1993
    %v2010 = vadd.f32 %v1978, %v1994
    %v2011 = vadd.f32 %v1979, %v1995
    %v2012 = vadd.f32 %v1980, %v1996
    %v2013 = vadd.f32 %v1981, %v1997
    %v2014 = vmul.f32 %v1998, %v1878
    %v2015 = vmul.f32 %v1999, %v1878
    %v2016 = vmul.f32 %v2000, %v1883
    %v2017 = vmul.f32 %v2001, %v1883
    %v2018 = vmul.f32 %v2002, %v1888
    %v2019 = vmul.f32 %v2003, %v1888
    %v2020 = vmul.f32 %v2004, %v1893
    %v2021 = vmul.f32 %v2005, %v1893
    %v2022 = vmul.f32 %v2006, %v1898
    %v2023 = vmul.f32 %v2007, %v1898
    %v2024 = vmul.f32 %v2008, %v1903
    %v2025 = vmul.f32 %v2009, %v1903
    %v2026 = vmul.f32 %v2010, %v1908
    %v2027 = vmul.f32 %v2011, %v1908
    %v2028 = vmul.f32 %v2012, %v1913
    %v2029 = vmul.f32 %v2013, %v1913
    %v2030 = vadd.f32 %v2014, %v2016
    %v2031 = vadd.f32 %v2030, %v2018
    %v2032 = vadd.f32 %v2031, %v2020
    %v2033 = vadd.f32 %v2032, %v2022
    %v2034 = vadd.f32 %v2033, %v2024
    %v2035 = vadd.f32 %v2034, %v2026
    %v2036 = vadd.f32 %v2035, %v2028
    %v2037 = vrot.slane %v2036, 4
    %v2038 = vadd.f32 %v2036, %v2037
    %v2039 = vrot.slane %v2038, 2
    %v2040 = vadd.f32 %v2038, %v2039
    %v2041 = vrot.slane %v2040, 1
    %v2042 = vadd.f32 %v2040, %v2041
    %v2043 = vsel %vm1944, %v2015, 0.0
    %v2044 = vsel %vm1944, %v2017, 0.0
    %v2045 = vadd.f32 %v2043, %v2044
    %v2046 = vsel %vm1944, %v2019, 0.0
    %v2047 = vadd.f32 %v2045, %v2046
    %v2048 = vsel %vm1944, %v2021, 0.0
    %v2049 = vadd.f32 %v2047, %v2048
    %v2050 = vsel %vm1944, %v2023, 0.0
    %v2051 = vadd.f32 %v2049, %v2050
    %v2052 = vsel %vm1944, %v2025, 0.0
    %v2053 = vadd.f32 %v2051, %v2052
    %v2054 = vsel %vm1944, %v2027, 0.0
    %v2055 = vadd.f32 %v2053, %v2054
    %v2056 = vsel %vm1944, %v2029, 0.0
    %v2057 = vadd.f32 %v2055, %v2056
    %v2058 = vrot.slane %v2057, 4
    %v2059 = vadd.f32 %v2057, %v2058
    %v2060 = vrot.slane %v2059, 2
    %v2061 = vadd.f32 %v2059, %v2060
    %v2062 = vrot.slane %v2061, 1
    %v2063 = vadd.f32 %v2061, %v2062
    %v2064 = vld [vmem:[%s7] sm:$0xff]
    %v2065 = vld [vmem:[%s7 + $0x8] sm:$0xff]
    %v2066 = vld [vmem:[%s7 + $0x10] sm:$0xff]
    %v2067 = vld [vmem:[%s7 + $0x18] sm:$0xff]
    %v2068 = vld [vmem:[%s7 + $0x20] sm:$0xff]
    %v2069 = vld [vmem:[%s7 + $0x28] sm:$0xff]
    %v2070 = vld [vmem:[%s7 + $0x30] sm:$0xff]
    %v2071 = vld [vmem:[%s7 + $0x38] sm:$0xff]
    %v2072 = vld [vmem:[%s7 + $0x40] sm:$0xff]
    %v2073 = vld [vmem:[%s7 + $0x48] sm:$0xff]
    %v2074 = vld [vmem:[%s7 + $0x50] sm:$0xff]
    %v2075 = vld [vmem:[%s7 + $0x58] sm:$0xff]
    %v2076 = vld [vmem:[%s7 + $0x60] sm:$0xff]
    %v2077 = vld [vmem:[%s7 + $0x68] sm:$0xff]
    %v2078 = vld [vmem:[%s7 + $0x70] sm:$0xff]
    %v2079 = vld [vmem:[%s7 + $0x78] sm:$0xff]
    %v2080 = vld [vmem:[%s7 + $0x80] sm:$0xff]
    %v2081 = vld [vmem:[%s7 + $0x88] sm:$0xff]
    %v2082 = vld [vmem:[%s7 + $0x90] sm:$0xff]
    %v2083 = vld [vmem:[%s7 + $0x98] sm:$0xff]
    %v2084 = vld [vmem:[%s7 + $0xa0] sm:$0xff]
    %v2085 = vld [vmem:[%s7 + $0xa8] sm:$0xff]
    %v2086 = vld [vmem:[%s7 + $0xb0] sm:$0xff]
    %v2087 = vld [vmem:[%s7 + $0xb8] sm:$0xff]
    %v2088 = vld [vmem:[%s7 + $0xc0] sm:$0xff]
    %v2089 = vld [vmem:[%s7 + $0xc8] sm:$0xff]
    %v2090 = vld [vmem:[%s7 + $0xd0] sm:$0xff]
    %v2091 = vld [vmem:[%s7 + $0xd8] sm:$0xff]
    %v2093 = vsel %vm1944, %v1965, 0
    %2095 = vmatprep.subr.mxu0 0.0
    %2096 = vmatpush1.msra.mxu0 %v2064
    %2097 = vmatprep.subr.mxu0 0.0
    %2098 = vmatpush1.msra.mxu0 %v2065
    %2099 = vmatprep.subr.mxu0 0.0
    %2100 = vmatpush1.msra.mxu0 %v2066
    %2101 = vmatprep.subr.mxu0 0.0
    %2102 = vmatpush1.msra.mxu0 %v2067
    %2103 = vmatprep.subr.mxu0 0.0
    %2104 = vmatpush1.msra.mxu0 %v2068
    %2105 = vmatprep.subr.mxu0 0.0
    %2106 = vmatpush1.msra.mxu0 %v2069
    %2107 = vmatprep.subr.mxu0 0.0
    %2108 = vmatpush1.msra.mxu0 %v2070
    %2109 = vmatprep.subr.mxu0 0.0
    %2110 = vmatpush1.msra.mxu0 %v2071
    %2111 = vmatprep.subr.mxu0 0.0
    %2112 = vmatpush1.msra.mxu0 %v2072
    %2113 = vmatprep.subr.mxu0 0.0
    %2114 = vmatpush1.msra.mxu0 %v2073
    %2115 = vmatprep.subr.mxu0 0.0
    %2116 = vmatpush1.msra.mxu0 %v2074
    %2117 = vmatprep.subr.mxu0 0.0
    %2118 = vmatpush1.msra.mxu0 %v2075
    %2119 = vmatprep.subr.mxu0 0.0
    %2120 = vmatpush1.msra.mxu0 %v2076
    %2121 = vmatprep.subr.mxu0 0.0
    %2122 = vmatpush1.msra.mxu0 %v2077
    %2123 = vmatprep.subr.mxu0 0.0
    %2124 = vmatpush1.msra.mxu0 %v2078
    %2125 = vmatprep.subr.mxu0 0.0
    %2126 = vmatpush1.msra.mxu0 %v2079
    %2127 = vmatprep.subr.mxu0 0.0
    %2128 = vmatpush1.msra.mxu0 %v2080
    %2129 = vmatprep.subr.mxu0 0.0
    %2130 = vmatpush1.msra.mxu0 %v2081
    %2131 = vmatprep.subr.mxu0 0.0
    %2132 = vmatpush1.msra.mxu0 %v2082
    %2133 = vmatprep.subr.mxu0 0.0
    %2134 = vmatpush1.msra.mxu0 %v2083
    %2135 = vmatprep.subr.mxu0 0.0
    %2136 = vmatpush1.msra.mxu0 %v2084
    %2137 = vmatprep.subr.mxu0 0.0
    %2138 = vmatpush1.msra.mxu0 %v2085
    %2139 = vmatprep.subr.mxu0 0.0
    %2140 = vmatpush1.msra.mxu0 %v2086
    %2141 = vmatprep.subr.mxu0 0.0
    %2142 = vmatpush1.msra.mxu0 %v2087
    %2143 = vmatprep.subr.mxu0 0.0
    %2144 = vmatpush1.msra.mxu0 %v2088
    %2145 = vmatprep.subr.mxu0 0.0
    %2146 = vmatpush1.msra.mxu0 %v2089
    %2147 = vmatprep.subr.mxu0 0.0
    %2148 = vmatpush1.msra.mxu0 %v2090
    %2149 = vmatprep.subr.mxu0 0.0
    %2150 = vmatpush1.msra.mxu0 %v2091
    %2151 = vmatprep.subr.mxu0 0.0
    %2152 = vmatpush1.msra.mxu0 0.0
    %2153 = vmatprep.subr.mxu0 0.0
    %2154 = vmatpush1.msra.mxu0 0.0
    %2155 = vmatprep.subr.mxu0 0.0
    %2156 = vmatpush1.msra.mxu0 0.0
    %2157 = vmatprep.subr.mxu0 0.0
    %2158 = vmatpush1.msra.mxu0 0.0
    %2159 = vmatprep.mubr.f32.mxu0 %v2093
    %2160 = vmatmul.mubr.f32.gmra.mrb[0].mxu0 %v1943
    %v2161 = vpop.f32.mrb[0].mxu0
    %v2162 = vadd.f32 0.0, %v2161
    %v2163 = vpop.f32.mrb[0].mxu0
    %2164 = vdwg.mxu0
    %v2166 = vsel %vm1944, %v2063, 0
    %2168 = vmatprep.subr.mxu0 0.0
    %2169 = vmatpush1.msra.mxu0 %v2064
    %2170 = vmatprep.subr.mxu0 0.0
    %2171 = vmatpush1.msra.mxu0 %v2065
    %2172 = vmatprep.subr.mxu0 0.0
    %2173 = vmatpush1.msra.mxu0 %v2066
    %2174 = vmatprep.subr.mxu0 0.0
    %2175 = vmatpush1.msra.mxu0 %v2067
    %2176 = vmatprep.subr.mxu0 0.0
    %2177 = vmatpush1.msra.mxu0 %v2068
    %2178 = vmatprep.subr.mxu0 0.0
    %2179 = vmatpush1.msra.mxu0 %v2069
    %2180 = vmatprep.subr.mxu0 0.0
    %2181 = vmatpush1.msra.mxu0 %v2070
    %2182 = vmatprep.subr.mxu0 0.0
    %2183 = vmatpush1.msra.mxu0 %v2071
    %2184 = vmatprep.subr.mxu0 0.0
    %2185 = vmatpush1.msra.mxu0 %v2072
    %2186 = vmatprep.subr.mxu0 0.0
    %2187 = vmatpush1.msra.mxu0 %v2073
    %2188 = vmatprep.subr.mxu0 0.0
    %2189 = vmatpush1.msra.mxu0 %v2074
    %2190 = vmatprep.subr.mxu0 0.0
    %2191 = vmatpush1.msra.mxu0 %v2075
    %2192 = vmatprep.subr.mxu0 0.0
    %2193 = vmatpush1.msra.mxu0 %v2076
    %2194 = vmatprep.subr.mxu0 0.0
    %2195 = vmatpush1.msra.mxu0 %v2077
    %2196 = vmatprep.subr.mxu0 0.0
    %2197 = vmatpush1.msra.mxu0 %v2078
    %2198 = vmatprep.subr.mxu0 0.0
    %2199 = vmatpush1.msra.mxu0 %v2079
    %2200 = vmatprep.subr.mxu0 0.0
    %2201 = vmatpush1.msra.mxu0 %v2080
    %2202 = vmatprep.subr.mxu0 0.0
    %2203 = vmatpush1.msra.mxu0 %v2081
    %2204 = vmatprep.subr.mxu0 0.0
    %2205 = vmatpush1.msra.mxu0 %v2082
    %2206 = vmatprep.subr.mxu0 0.0
    %2207 = vmatpush1.msra.mxu0 %v2083
    %2208 = vmatprep.subr.mxu0 0.0
    %2209 = vmatpush1.msra.mxu0 %v2084
    %2210 = vmatprep.subr.mxu0 0.0
    %2211 = vmatpush1.msra.mxu0 %v2085
    %2212 = vmatprep.subr.mxu0 0.0
    %2213 = vmatpush1.msra.mxu0 %v2086
    %2214 = vmatprep.subr.mxu0 0.0
    %2215 = vmatpush1.msra.mxu0 %v2087
    %2216 = vmatprep.subr.mxu0 0.0
    %2217 = vmatpush1.msra.mxu0 %v2088
    %2218 = vmatprep.subr.mxu0 0.0
    %2219 = vmatpush1.msra.mxu0 %v2089
    %2220 = vmatprep.subr.mxu0 0.0
    %2221 = vmatpush1.msra.mxu0 %v2090
    %2222 = vmatprep.subr.mxu0 0.0
    %2223 = vmatpush1.msra.mxu0 %v2091
    %2224 = vmatprep.subr.mxu0 0.0
    %2225 = vmatpush1.msra.mxu0 0.0
    %2226 = vmatprep.subr.mxu0 0.0
    %2227 = vmatpush1.msra.mxu0 0.0
    %2228 = vmatprep.subr.mxu0 0.0
    %2229 = vmatpush1.msra.mxu0 0.0
    %2230 = vmatprep.subr.mxu0 0.0
    %2231 = vmatpush1.msra.mxu0 0.0
    %2232 = vmatprep.mubr.f32.mxu0 %v2166
    %2233 = vmatmul.mubr.f32.gmra.mrb[0].mxu0 %v2042
    %v2234 = vpop.f32.mrb[0].mxu0
    %v2235 = vadd.f32 0.0, %v2234
    %v2236 = vpop.f32.mrb[0].mxu0
    %2237 = vdwg.mxu0
    %v2238 = vrcp.pop 1568.0
    %v2239 = vmul.f32 %v2162, %v2238
    %v2240 = vmul.f32 %v2235, %v2238
    %v2241 = vmul.f32 %v2239, %v2239
    %v2242 = vsub.f32 %v2240, %v2241
    %v2243 = vmax.f32 %v2242, 0.0
    %v2244 = vadd.f32 %v2243, 1e-05
    %v2245 = vrsqrt.pop %v2244
    %v2246 = vld [vmem:[#allocation12] sm:$0xff]
    %v2247 = vld [vmem:[#allocation12 + $0x8] sm:$0xff]
    %v2248 = vld [vmem:[#allocation12 + $0x10] sm:$0xff]
    %v2249 = vld [vmem:[#allocation12 + $0x18] sm:$0xff]
    %vm2250 = vcmask 130048
    %v2252 = vsel %vm2250, %v2239, 0
    %2254 = vmatprep.subr.mxu0 %v2247
    %2255 = vmatpush1.msra.mxu0 %v2246
    %2256 = vmatprep.subr.mxu0 %v2249
    %2257 = vmatpush1.msra.mxu0 %v2248
    %2258 = vmatprep.subr.mxu0 0.0
    %2259 = vmatpush1.msra.mxu0 0.0
    %2260 = vmatprep.subr.mxu0 0.0
    %2261 = vmatpush1.msra.mxu0 0.0
    %2262 = vmatprep.subr.mxu0 0.0
    %2263 = vmatpush1.msra.mxu0 0.0
    %2264 = vmatprep.subr.mxu0 0.0
    %2265 = vmatpush1.msra.mxu0 0.0
    %2266 = vmatprep.subr.mxu0 0.0
    %2267 = vmatpush1.msra.mxu0 0.0
    %2268 = vmatprep.subr.mxu0 0.0
    %2269 = vmatpush1.msra.mxu0 0.0
    %2270 = vmatprep.subr.mxu0 0.0
    %2271 = vmatpush1.msra.mxu0 0.0
    %2272 = vmatprep.subr.mxu0 0.0
    %2273 = vmatpush1.msra.mxu0 0.0
    %2274 = vmatprep.subr.mxu0 0.0
    %2275 = vmatpush1.msra.mxu0 0.0
    %2276 = vmatprep.subr.mxu0 0.0
    %2277 = vmatpush1.msra.mxu0 0.0
    %2278 = vmatprep.subr.mxu0 0.0
    %2279 = vmatpush1.msra.mxu0 0.0
    %2280 = vmatprep.subr.mxu0 0.0
    %2281 = vmatpush1.msra.mxu0 0.0
    %2282 = vmatprep.subr.mxu0 0.0
    %2283 = vmatpush1.msra.mxu0 0.0
    %2284 = vmatprep.subr.mxu0 0.0
    %2285 = vmatpush1.msra.mxu0 0.0
    %2286 = vmatprep.subr.mxu0 0.0
    %2287 = vmatpush1.msra.mxu0 0.0
    %2288 = vmatprep.subr.mxu0 0.0
    %2289 = vmatpush1.msra.mxu0 0.0
    %2290 = vmatprep.subr.mxu0 0.0
    %2291 = vmatpush1.msra.mxu0 0.0
    %2292 = vmatprep.subr.mxu0 0.0
    %2293 = vmatpush1.msra.mxu0 0.0
    %2294 = vmatprep.subr.mxu0 0.0
    %2295 = vmatpush1.msra.mxu0 0.0
    %2296 = vmatprep.subr.mxu0 0.0
    %2297 = vmatpush1.msra.mxu0 0.0
    %2298 = vmatprep.subr.mxu0 0.0
    %2299 = vmatpush1.msra.mxu0 0.0
    %2300 = vmatprep.subr.mxu0 0.0
    %2301 = vmatpush1.msra.mxu0 0.0
    %2302 = vmatprep.subr.mxu0 0.0
    %2303 = vmatpush1.msra.mxu0 0.0
    %2304 = vmatprep.subr.mxu0 0.0
    %2305 = vmatpush1.msra.mxu0 0.0
    %2306 = vmatprep.subr.mxu0 0.0
    %2307 = vmatpush1.msra.mxu0 0.0
    %2308 = vmatprep.subr.mxu0 0.0
    %2309 = vmatpush1.msra.mxu0 0.0
    %2310 = vmatprep.subr.mxu0 0.0
    %2311 = vmatpush1.msra.mxu0 0.0
    %2312 = vmatprep.subr.mxu0 0.0
    %2313 = vmatpush1.msra.mxu0 0.0
    %2314 = vmatprep.subr.mxu0 0.0
    %2315 = vmatpush1.msra.mxu0 0.0
    %2316 = vmatprep.subr.mxu0 0.0
    %2317 = vmatpush1.msra.mxu0 0.0
    %2318 = vmatprep.mubr.f32.mxu0 0.0
    %2319 = vmatmul.mubr.f32.gmra.mrb[0].mxu0 %v2252
    %v2320 = vpop.f32.mrb[0].mxu0
    %v2321 = vadd.f32 0.0, %v2320
    %v2322 = vpop.f32.mrb[0].mxu0
    %v2323 = vadd.f32 0.0, %v2322
    %2324 = vdwg.mxu0
    %v2326 = vsel %vm2250, %v2245, 0
    %2328 = vmatprep.subr.mxu0 %v2247
    %2329 = vmatpush1.msra.mxu0 %v2246
    %2330 = vmatprep.subr.mxu0 %v2249
    %2331 = vmatpush1.msra.mxu0 %v2248
    %2332 = vmatprep.subr.mxu0 0.0
    %2333 = vmatpush1.msra.mxu0 0.0
    %2334 = vmatprep.subr.mxu0 0.0
    %2335 = vmatpush1.msra.mxu0 0.0
    %2336 = vmatprep.subr.mxu0 0.0
    %2337 = vmatpush1.msra.mxu0 0.0
    %2338 = vmatprep.subr.mxu0 0.0
    %2339 = vmatpush1.msra.mxu0 0.0
    %2340 = vmatprep.subr.mxu0 0.0
    %2341 = vmatpush1.msra.mxu0 0.0
    %2342 = vmatprep.subr.mxu0 0.0
    %2343 = vmatpush1.msra.mxu0 0.0
    %2344 = vmatprep.subr.mxu0 0.0
    %2345 = vmatpush1.msra.mxu0 0.0
    %2346 = vmatprep.subr.mxu0 0.0
    %2347 = vmatpush1.msra.mxu0 0.0
    %2348 = vmatprep.subr.mxu0 0.0
    %2349 = vmatpush1.msra.mxu0 0.0
    %2350 = vmatprep.subr.mxu0 0.0
    %2351 = vmatpush1.msra.mxu0 0.0
    %2352 = vmatprep.subr.mxu0 0.0
    %2353 = vmatpush1.msra.mxu0 0.0
    %2354 = vmatprep.subr.mxu0 0.0
    %2355 = vmatpush1.msra.mxu0 0.0
    %2356 = vmatprep.subr.mxu0 0.0
    %2357 = vmatpush1.msra.mxu0 0.0
    %2358 = vmatprep.subr.mxu0 0.0
    %2359 = vmatpush1.msra.mxu0 0.0
    %2360 = vmatprep.subr.mxu0 0.0
    %2361 = vmatpush1.msra.mxu0 0.0
    %2362 = vmatprep.subr.mxu0 0.0
    %2363 = vmatpush1.msra.mxu0 0.0
    %2364 = vmatprep.subr.mxu0 0.0
    %2365 = vmatpush1.msra.mxu0 0.0
    %2366 = vmatprep.subr.mxu0 0.0
    %2367 = vmatpush1.msra.mxu0 0.0
    %2368 = vmatprep.subr.mxu0 0.0
    %2369 = vmatpush1.msra.mxu0 0.0
    %2370 = vmatprep.subr.mxu0 0.0
    %2371 = vmatpush1.msra.mxu0 0.0
    %2372 = vmatprep.subr.mxu0 0.0
    %2373 = vmatpush1.msra.mxu0 0.0
    %2374 = vmatprep.subr.mxu0 0.0
    %2375 = vmatpush1.msra.mxu0 0.0
    %2376 = vmatprep.subr.mxu0 0.0
    %2377 = vmatpush1.msra.mxu0 0.0
    %2378 = vmatprep.subr.mxu0 0.0
    %2379 = vmatpush1.msra.mxu0 0.0
    %2380 = vmatprep.subr.mxu0 0.0
    %2381 = vmatpush1.msra.mxu0 0.0
    %2382 = vmatprep.subr.mxu0 0.0
    %2383 = vmatpush1.msra.mxu0 0.0
    %2384 = vmatprep.subr.mxu0 0.0
    %2385 = vmatpush1.msra.mxu0 0.0
    %2386 = vmatprep.subr.mxu0 0.0
    %2387 = vmatpush1.msra.mxu0 0.0
    %2388 = vmatprep.subr.mxu0 0.0
    %2389 = vmatpush1.msra.mxu0 0.0
    %2390 = vmatprep.subr.mxu0 0.0
    %2391 = vmatpush1.msra.mxu0 0.0
    %2392 = vmatprep.mubr.f32.mxu0 0.0
    %2393 = vmatmul.mubr.f32.gmra.mrb[0].mxu0 %v2326
    %v2394 = vpop.f32.mrb[0].mxu0
    %v2395 = vadd.f32 0.0, %v2394
    %v2396 = vpop.f32.mrb[0].mxu0
    %v2397 = vadd.f32 0.0, %v2396
    %2398 = vdwg.mxu0
    %v2399 = vld [vmem:[#allocation8] sm:$0x3]
    %v2401 = vlaneseq
    %v2402 = vshrl.u32 %v2401, 7
    %v2403 = vsub.s32 0, %v2402
    %v2404 = vrot.slane %v2399, %v2403
    %v2405 = vlaneseq
    %v2406 = vshrl.u32 %v2405, 7
    %v2407 = vsub.s32 1, %v2406
    %v2408 = vrot.slane %v2399, %v2407
    %v2411 = vmul.f32 %v2395, %v2404
    %v2412 = vmul.f32 %v2397, %v2408
    %v2413 = vld [vmem:[#allocation9] sm:$0x3]
    %v2414 = vmul.f32 %v2321, %v2411
    %v2415 = vmul.f32 %v2323, %v2412
    %v2418 = vcombine.low %v2414, %v2415
    %v2420 = vunpack.c.l.s4 1966171168
    %v2421 = vunpack.c.0.s8 %v2420
    %v2422 = vlaneseq
    %v2423 = vshrl.u32 %v2422, 7
    %v2424 = vsub.s32 %v2421, %v2423
    %v2425 = vrot.slane %v2418, %v2424
    %v2427 = vunpack.c.l.s4 1966171168
    %v2428 = vunpack.c.0.s8 %v2427
    %v2429 = vlaneseq
    %v2430 = vshrl.u32 %v2429, 7
    %v2431 = vsub.s32 %v2428, %v2430
    %v2432 = vrot.slane %v2425, %v2431
    %v2434 = vsub.f32 %v2413, %v2432
    %v2435 = vlaneseq
    %v2436 = vshrl.u32 %v2435, 7
    %v2437 = vsub.s32 0, %v2436
    %v2438 = vrot.slane %v2411, %v2437
    %v2439 = vlaneseq
    %v2440 = vshrl.u32 %v2439, 7
    %v2441 = vsub.s32 0, %v2440
    %v2442 = vrot.slane %v2412, %v2441
    %v2443 = vmul.f32 %v1691, %v2438
    %v2444 = vmul.f32 %v1692, %v2442
    %v2445 = vmul.f32 %v1693, %v2438
    %v2446 = vmul.f32 %v1694, %v2442
    %v2447 = vmul.f32 %v1695, %v2438
    %v2448 = vmul.f32 %v1696, %v2442
    %v2449 = vmul.f32 %v1697, %v2438
    %v2450 = vmul.f32 %v1698, %v2442
    %v2451 = vmul.f32 %v1699, %v2438
    %v2452 = vmul.f32 %v1700, %v2442
    %v2453 = vmul.f32 %v1701, %v2438
    %v2454 = vmul.f32 %v1702, %v2442
    %v2455 = vmul.f32 %v1703, %v2438
    %v2456 = vmul.f32 %v1704, %v2442
    %v2457 = vmul.f32 %v1705, %v2438
    %v2458 = vmul.f32 %v1706, %v2442
    %v2460 = vlaneseq
    %v2461 = vshrl.u32 %v2460, 7
    %v2462 = vsub.s32 0, %v2461
    %v2463 = vrot.slane %v2434, %v2462
    %v2464 = vlaneseq
    %v2465 = vshrl.u32 %v2464, 7
    %v2466 = vsub.s32 1, %v2465
    %v2467 = vrot.slane %v2434, %v2466
    %v2470 = vadd.f32 %v2443, %v2463
    %v2471 = vadd.f32 %v2444, %v2467
    %v2472 = vadd.f32 %v2445, %v2463
    %v2473 = vadd.f32 %v2446, %v2467
    %v2474 = vadd.f32 %v2447, %v2463
    %v2475 = vadd.f32 %v2448, %v2467
    %v2476 = vadd.f32 %v2449, %v2463
    %v2477 = vadd.f32 %v2450, %v2467
    %v2478 = vadd.f32 %v2451, %v2463
    %v2479 = vadd.f32 %v2452, %v2467
    %v2480 = vadd.f32 %v2453, %v2463
    %v2481 = vadd.f32 %v2454, %v2467
    %v2482 = vadd.f32 %v2455, %v2463
    %v2483 = vadd.f32 %v2456, %v2467
    %v2484 = vadd.f32 %v2457, %v2463
    %v2485 = vadd.f32 %v2458, %v2467
    %v2486 = vmax.f32 %v2470, 0.0
    %v2487 = vmax.f32 %v2471, 0.0
    %v2488 = vmax.f32 %v2472, 0.0
    %v2489 = vmax.f32 %v2473, 0.0
    %v2490 = vmax.f32 %v2474, 0.0
    %v2491 = vmax.f32 %v2475, 0.0
    %v2492 = vmax.f32 %v2476, 0.0
    %v2493 = vmax.f32 %v2477, 0.0
    %v2494 = vmax.f32 %v2478, 0.0
    %v2495 = vmax.f32 %v2479, 0.0
    %v2496 = vmax.f32 %v2480, 0.0
    %v2497 = vmax.f32 %v2481, 0.0
    %v2498 = vmax.f32 %v2482, 0.0
    %v2499 = vmax.f32 %v2483, 0.0
    %v2500 = vmax.f32 %v2484, 0.0
    %v2501 = vmax.f32 %v2485, 0.0
    %v2502 = vmul.f32 %v1835, %v2438
    %v2503 = vmul.f32 %v1836, %v2442
    %v2504 = vmul.f32 %v1837, %v2438
    %v2505 = vmul.f32 %v1838, %v2442
    %v2506 = vmul.f32 %v1839, %v2438
    %v2507 = vmul.f32 %v1840, %v2442
    %v2508 = vmul.f32 %v1841, %v2438
    %v2509 = vmul.f32 %v1842, %v2442
    %v2510 = vmul.f32 %v1843, %v2438
    %v2511 = vmul.f32 %v1844, %v2442
    %v2512 = vmul.f32 %v1845, %v2438
    %v2513 = vmul.f32 %v1846, %v2442
    %v2514 = vmul.f32 %v1847, %v2438
    %v2515 = vmul.f32 %v1848, %v2442
    %v2516 = vmul.f32 %v1849, %v2438
    %v2517 = vmul.f32 %v1850, %v2442
    %v2518 = vadd.f32 %v2502, %v2463
    %v2519 = vadd.f32 %v2503, %v2467
    %v2520 = vadd.f32 %v2504, %v2463
    %v2521 = vadd.f32 %v2505, %v2467
    %v2522 = vadd.f32 %v2506, %v2463
    %v2523 = vadd.f32 %v2507, %v2467
    %v2524 = vadd.f32 %v2508, %v2463
    %v2525 = vadd.f32 %v2509, %v2467
    %v2526 = vadd.f32 %v2510, %v2463
    %v2527 = vadd.f32 %v2511, %v2467
    %v2528 = vadd.f32 %v2512, %v2463
    %v2529 = vadd.f32 %v2513, %v2467
    %v2530 = vadd.f32 %v2514, %v2463
    %v2531 = vadd.f32 %v2515, %v2467
    %v2532 = vadd.f32 %v2516, %v2463
    %v2533 = vadd.f32 %v2517, %v2467
    %v2534 = vmax.f32 %v2518, 0.0
    %v2535 = vmax.f32 %v2519, 0.0
    %v2536 = vmax.f32 %v2520, 0.0
    %v2537 = vmax.f32 %v2521, 0.0
    %v2538 = vmax.f32 %v2522, 0.0
    %v2539 = vmax.f32 %v2523, 0.0
    %v2540 = vmax.f32 %v2524, 0.0
    %v2541 = vmax.f32 %v2525, 0.0
    %v2542 = vmax.f32 %v2526, 0.0
    %v2543 = vmax.f32 %v2527, 0.0
    %v2544 = vmax.f32 %v2528, 0.0
    %v2545 = vmax.f32 %v2529, 0.0
    %v2546 = vmax.f32 %v2530, 0.0
    %v2547 = vmax.f32 %v2531, 0.0
    %v2548 = vmax.f32 %v2532, 0.0
    %v2549 = vmax.f32 %v2533, 0.0
    %v2550 = vmax.f32 %v2486, %v2534
    %v2551 = vmax.f32 %v2487, %v2535
    %v2552 = vmax.f32 %v2488, %v2536
    %v2553 = vmax.f32 %v2489, %v2537
    %v2554 = vmax.f32 %v2490, %v2538
    %v2555 = vmax.f32 %v2491, %v2539
    %v2556 = vmax.f32 %v2492, %v2540
    %v2557 = vmax.f32 %v2493, %v2541
    %v2558 = vmax.f32 %v2494, %v2542
    %v2559 = vmax.f32 %v2495, %v2543
    %v2560 = vmax.f32 %v2496, %v2544
    %v2561 = vmax.f32 %v2497, %v2545
    %v2562 = vmax.f32 %v2498, %v2546
    %v2563 = vmax.f32 %v2499, %v2547
    %v2564 = vmax.f32 %v2500, %v2548
    %v2565 = vmax.f32 %v2501, %v2549
    %vm2582 = vcmask 1046528
    %v2583 = vrot.slane %v2550, 1
    %v2584 = vrot.slane %v2552, 1
    %v2585 = vsel %vm2582, %v2583, %v2584
    %v2586 = vrot.slane %v2551, 1
    %v2587 = vrot.slane %v2553, 1
    %v2588 = vsel %vm2582, %v2586, %v2587
    %v2589 = vrot.slane %v2554, 1
    %v2590 = vsel %vm2582, %v2584, %v2589
    %v2591 = vrot.slane %v2555, 1
    %v2592 = vsel %vm2582, %v2587, %v2591
    %v2593 = vrot.slane %v2556, 1
    %v2594 = vsel %vm2582, %v2589, %v2593
    %v2595 = vrot.slane %v2557, 1
    %v2596 = vsel %vm2582, %v2591, %v2595
    %v2597 = vrot.slane %v2558, 1
    %v2598 = vsel %vm2582, %v2593, %v2597
    %v2599 = vrot.slane %v2559, 1
    %v2600 = vsel %vm2582, %v2595, %v2599
    %v2601 = vrot.slane %v2560, 1
    %v2602 = vsel %vm2582, %v2597, %v2601
    %v2603 = vrot.slane %v2561, 1
    %v2604 = vsel %vm2582, %v2599, %v2603
    %v2605 = vrot.slane %v2562, 1
    %v2606 = vsel %vm2582, %v2601, %v2605
    %v2607 = vrot.slane %v2563, 1
    %v2608 = vsel %vm2582, %v2603, %v2607
    %v2609 = vrot.slane %v2564, 1
    %v2610 = vsel %vm2582, %v2605, %v2609
    %v2611 = vrot.slane %v2565, 1
    %v2612 = vsel %vm2582, %v2607, %v2611
    %v2629 = vmax.f32 %v2550, %v2585
    %v2630 = vmax.f32 %v2551, %v2588
    %v2631 = vmax.f32 %v2552, %v2590
    %v2632 = vmax.f32 %v2553, %v2592
    %v2633 = vmax.f32 %v2554, %v2594
    %v2634 = vmax.f32 %v2555, %v2596
    %v2635 = vmax.f32 %v2556, %v2598
    %v2636 = vmax.f32 %v2557, %v2600
    %v2637 = vmax.f32 %v2558, %v2602
    %v2638 = vmax.f32 %v2559, %v2604
    %v2639 = vmax.f32 %v2560, %v2606
    %v2640 = vmax.f32 %v2561, %v2608
    %v2641 = vmax.f32 %v2562, %v2610
    %v2642 = vmax.f32 %v2563, %v2612
    %v2643 = vmax.f32 %v2564, %v2609
    %v2644 = vmax.f32 %v2565, %v2611
    %2645 = vst [vmem:[#allocation2] sm:$0xff] 0.0
    %2646 = vst.msk [vmem:[#allocation2 + $0x8] sm:$0xff] %vm1944, 0.0
    %2647 = vst [vmem:[#allocation2 + $0x10] sm:$0xff] 0.0
    %2648 = vst.msk [vmem:[#allocation2 + $0x18] sm:$0xff] %vm1944, 0.0
    %2649 = vst [vmem:[#allocation2 + $0x20] sm:$0xff] 0.0
    %2650 = vst.msk [vmem:[#allocation2 + $0x28] sm:$0xff] %vm1944, 0.0
    %2651 = vst [vmem:[#allocation2 + $0x30] sm:$0xff] 0.0
    %2652 = vst.msk [vmem:[#allocation2 + $0x38] sm:$0xff] %vm1944, 0.0
    %2653 = vst [vmem:[#allocation2 + $0x40] sm:$0xff] 0.0
    %2654 = vst.msk [vmem:[#allocation2 + $0x48] sm:$0xff] %vm1944, 0.0
    %2655 = vst [vmem:[#allocation2 + $0x50] sm:$0xff] 0.0
    %2656 = vst.msk [vmem:[#allocation2 + $0x58] sm:$0xff] %vm1944, 0.0
    %2657 = vst [vmem:[#allocation2 + $0x60] sm:$0xff] 0.0
    %2658 = vst.msk [vmem:[#allocation2 + $0x68] sm:$0xff] %vm1944, 0.0
    %2659 = vst [vmem:[#allocation2 + $0x70] sm:$0xff] 0.0
    %2660 = vst.msk [vmem:[#allocation2 + $0x78] sm:$0xff] %vm1944, 0.0
    %2661 = vst [vmem:[#allocation2 + $0x80] sm:$0xff] 0.0
    %2662 = vst.msk [vmem:[#allocation2 + $0x88] sm:$0xff] %vm1944, 0.0
    %2663 = vst [vmem:[#allocation2 + $0x90] sm:$0xff] 0.0
    %2664 = vst.msk [vmem:[#allocation2 + $0x98] sm:$0xff] %vm1944, 0.0
    %2665 = vst [vmem:[#allocation2 + $0xa0] sm:$0xff] 0.0
    %2666 = vst.msk [vmem:[#allocation2 + $0xa8] sm:$0xff] %vm1944, 0.0
    %2667 = vst [vmem:[#allocation2 + $0x10] sm:$0xff] %v2629
    %2668 = vst.msk [vmem:[#allocation2 + $0x18] sm:$0xff] %vm1944, %v2630
    %2669 = vst [vmem:[#allocation2 + $0x20] sm:$0xff] %v2631
    %2670 = vst.msk [vmem:[#allocation2 + $0x28] sm:$0xff] %vm1944, %v2632
    %2671 = vst [vmem:[#allocation2 + $0x30] sm:$0xff] %v2633
    %2672 = vst.msk [vmem:[#allocation2 + $0x38] sm:$0xff] %vm1944, %v2634
    %2673 = vst [vmem:[#allocation2 + $0x40] sm:$0xf] %v2635
    %vm2674 = vcmask 781312
    %2675 = vst.msk [vmem:[#allocation2 + $0x48] sm:$0xf] %vm2674, %v2636
    %2676 = vst [vmem:[#allocation2 + $0x60] sm:$0xff] %v2637
    %2677 = vst.msk [vmem:[#allocation2 + $0x68] sm:$0xff] %vm1944, %v2638
    %2678 = vst [vmem:[#allocation2 + $0x70] sm:$0xff] %v2639
    %2679 = vst.msk [vmem:[#allocation2 + $0x78] sm:$0xff] %vm1944, %v2640
    %2680 = vst [vmem:[#allocation2 + $0x80] sm:$0xff] %v2641
    %2681 = vst.msk [vmem:[#allocation2 + $0x88] sm:$0xff] %vm1944, %v2642
    %2682 = vst [vmem:[#allocation2 + $0x90] sm:$0xf] %v2643
    %2683 = vst.msk [vmem:[#allocation2 + $0x98] sm:$0xf] %vm2674, %v2644
    %v2684 = vld [vmem:[#allocation20] sm:$0x3]
    %v2685 = vld [vmem:[#allocation2] sm:$0xff]
    %v2686 = vld [vmem:[#allocation2 + $0x8] sm:$0xff]
    %v2687 = vld [vmem:[#allocation2 + $0x10] sm:$0xff]
    %v2688 = vld [vmem:[#allocation2 + $0x18] sm:$0xff]
    %v2689 = vld [vmem:[#allocation2 + $0x20] sm:$0xff]
    %v2690 = vld [vmem:[#allocation2 + $0x28] sm:$0xff]
    %v2691 = vld [vmem:[#allocation2 + $0x30] sm:$0xff]
    %v2692 = vld [vmem:[#allocation2 + $0x38] sm:$0xff]
    %v2693 = vld [vmem:[#allocation2 + $0x40] sm:$0xff]
    %v2694 = vld [vmem:[#allocation2 + $0x48] sm:$0xff]
    %v2695 = vld [vmem:[#allocation2 + $0x50] sm:$0xff]
    %v2696 = vld [vmem:[#allocation2 + $0x58] sm:$0xff]
    %v2697 = vld [vmem:[#allocation2 + $0x60] sm:$0xff]
    %v2698 = vld [vmem:[#allocation2 + $0x68] sm:$0xff]
    %v2699 = vld [vmem:[#allocation2 + $0x70] sm:$0xff]
    %v2700 = vld [vmem:[#allocation2 + $0x78] sm:$0xff]
    %v2701 = vld [vmem:[#allocation2 + $0x80] sm:$0xff]
    %v2702 = vld [vmem:[#allocation2 + $0x88] sm:$0xff]
    %v2703 = vld [vmem:[#allocation2 + $0x90] sm:$0xff]
    %v2704 = vld [vmem:[#allocation2 + $0x98] sm:$0xff]
    %v2705 = vld [vmem:[#allocation14] sm:$0xff]
    %v2706 = vld [vmem:[#allocation14 + $0x8] sm:$0xff]
    %v2707 = vld [vmem:[#allocation14 + $0x10] sm:$0xff]
    %v2708 = vld [vmem:[#allocation14 + $0x18] sm:$0xff]
    %v2709 = vld [vmem:[#allocation14 + $0x20] sm:$0xff]
    %v2710 = vld [vmem:[#allocation14 + $0x28] sm:$0xff]
    %v2711 = vld [vmem:[#allocation14 + $0x30] sm:$0xff]
    %v2712 = vld [vmem:[#allocation14 + $0x38] sm:$0xff]
    %v2713 = vld [vmem:[#allocation14 + $0x40] sm:$0xff]
    %v2714 = vld [vmem:[#allocation14 + $0x48] sm:$0xff]
    %v2715 = vld [vmem:[#allocation14 + $0x50] sm:$0xff]
    %v2716 = vld [vmem:[#allocation14 + $0x58] sm:$0xff]
    %v2717 = vld [vmem:[#allocation14 + $0x60] sm:$0xff]
    %v2718 = vld [vmem:[#allocation14 + $0x68] sm:$0xff]
    %v2719 = vld [vmem:[#allocation14 + $0x70] sm:$0xff]
    %v2720 = vld [vmem:[#allocation14 + $0x78] sm:$0xff]
    %v2721 = vld [vmem:[#allocation14 + $0x80] sm:$0xff]
    %v2722 = vld [vmem:[#allocation14 + $0x88] sm:$0xff]
    %v2723 = vld [vmem:[#allocation14 + $0x90] sm:$0xff]
    %v2724 = vld [vmem:[#allocation14 + $0x98] sm:$0xff]
    %v2725 = vld [vmem:[#allocation14 + $0xa0] sm:$0xff]
    %v2726 = vld [vmem:[#allocation14 + $0xa8] sm:$0xff]
    %v2727 = vld [vmem:[#allocation14 + $0xb0] sm:$0xff]
    %v2728 = vld [vmem:[#allocation14 + $0xb8] sm:$0xff]
    %v2729 = vld [vmem:[#allocation14 + $0xc0] sm:$0xff]
    %v2730 = vld [vmem:[#allocation14 + $0xc8] sm:$0xff]
    %v2731 = vld [vmem:[#allocation14 + $0xd0] sm:$0xff]
    %v2732 = vld [vmem:[#allocation14 + $0xd8] sm:$0xff]
    %v2733 = vld [vmem:[#allocation14 + $0xe0] sm:$0xff]
    %v2734 = vld [vmem:[#allocation14 + $0xe8] sm:$0xff]
    %v2735 = vld [vmem:[#allocation14 + $0xf0] sm:$0xff]
    %v2736 = vld [vmem:[#allocation14 + $0xf8] sm:$0xff]
    %v2737 = vld [vmem:[#allocation14 + $0x100] sm:$0xff]
    %v2738 = vld [vmem:[#allocation14 + $0x108] sm:$0xff]
    %v2739 = vld [vmem:[#allocation14 + $0x110] sm:$0xff]
    %v2740 = vld [vmem:[#allocation14 + $0x118] sm:$0xff]
    %v2741 = vld [vmem:[#allocation14 + $0x120] sm:$0xff]
    %v2742 = vld [vmem:[#allocation14 + $0x128] sm:$0xff]
    %v2743 = vld [vmem:[#allocation14 + $0x130] sm:$0xff]
    %v2744 = vld [vmem:[#allocation14 + $0x138] sm:$0xff]
    %v2745 = vld [vmem:[#allocation14 + $0x140] sm:$0xff]
    %v2746 = vld [vmem:[#allocation14 + $0x148] sm:$0xff]
    %v2747 = vld [vmem:[#allocation14 + $0x150] sm:$0xff]
    %v2748 = vld [vmem:[#allocation14 + $0x158] sm:$0xff]
    %v2749 = vld [vmem:[#allocation14 + $0x160] sm:$0xff]
    %v2750 = vld [vmem:[#allocation14 + $0x168] sm:$0xff]
    %v2751 = vld [vmem:[#allocation14 + $0x170] sm:$0xff]
    %v2752 = vld [vmem:[#allocation14 + $0x178] sm:$0xff]
    %v2753 = vld [vmem:[#allocation14 + $0x180] sm:$0xff]
    %v2754 = vld [vmem:[#allocation14 + $0x188] sm:$0xff]
    %v2755 = vld [vmem:[#allocation14 + $0x190] sm:$0xff]
    %v2756 = vld [vmem:[#allocation14 + $0x198] sm:$0xff]
    %v2757 = vld [vmem:[#allocation14 + $0x1a0] sm:$0xff]
    %v2758 = vld [vmem:[#allocation14 + $0x1a8] sm:$0xff]
    %v2759 = vld [vmem:[#allocation14 + $0x1b0] sm:$0xff]
    %v2760 = vld [vmem:[#allocation14 + $0x1b8] sm:$0xff]
    %v2762 = vsel %vm1944, %v2686, 0
    %v2765 = vsel %vm1944, %v2688, 0
    %v2768 = vsel %vm1944, %v2690, 0
    %v2771 = vsel %vm1944, %v2692, 0
    %v2774 = vsel %vm1944, %v2694, 0
    %v2777 = vsel %vm1944, %v2696, 0
    %v2780 = vsel %vm1944, %v2698, 0
    %v2783 = vsel %vm1944, %v2700, 0
    %v2786 = vsel %vm1944, %v2702, 0
    %v2789 = vsel %vm1944, %v2704, 0
    %2791 = vmatprep.subr.mxu0 %v2706
    %2792 = vmatpush1.msra.mxu0 %v2705
    %2793 = vmatprep.subr.mxu0 %v2708
    %2794 = vmatpush1.msra.mxu0 %v2707
    %2795 = vmatprep.subr.mxu0 %v2710
    %2796 = vmatpush1.msra.mxu0 %v2709
    %2797 = vmatprep.subr.mxu0 %v2712
    %2798 = vmatpush1.msra.mxu0 %v2711
    %2799 = vmatprep.subr.mxu0 %v2714
    %2800 = vmatpush1.msra.mxu0 %v2713
    %2801 = vmatprep.subr.mxu0 %v2716
    %2802 = vmatpush1.msra.mxu0 %v2715
    %2803 = vmatprep.subr.mxu0 %v2718
    %2804 = vmatpush1.msra.mxu0 %v2717
    %2805 = vmatprep.subr.mxu0 %v2720
    %2806 = vmatpush1.msra.mxu0 %v2719
    %2807 = vmatprep.subr.mxu0 %v2722
    %2808 = vmatpush1.msra.mxu0 %v2721
    %2809 = vmatprep.subr.mxu0 %v2724
    %2810 = vmatpush1.msra.mxu0 %v2723
    %2811 = vmatprep.subr.mxu0 %v2726
    %2812 = vmatpush1.msra.mxu0 %v2725
    %2813 = vmatprep.subr.mxu0 %v2728
    %2814 = vmatpush1.msra.mxu0 %v2727
    %2815 = vmatprep.subr.mxu0 %v2730
    %2816 = vmatpush1.msra.mxu0 %v2729
    %2817 = vmatprep.subr.mxu0 %v2732
    %2818 = vmatpush1.msra.mxu0 %v2731
    %2819 = vmatprep.subr.mxu0 %v2734
    %2820 = vmatpush1.msra.mxu0 %v2733
    %2821 = vmatprep.subr.mxu0 %v2736
    %2822 = vmatpush1.msra.mxu0 %v2735
    %2823 = vmatprep.subr.mxu0 %v2738
    %2824 = vmatpush1.msra.mxu0 %v2737
    %2825 = vmatprep.subr.mxu0 %v2740
    %2826 = vmatpush1.msra.mxu0 %v2739
    %2827 = vmatprep.subr.mxu0 %v2742
    %2828 = vmatpush1.msra.mxu0 %v2741
    %2829 = vmatprep.subr.mxu0 %v2744
    %2830 = vmatpush1.msra.mxu0 %v2743
    %2831 = vmatprep.subr.mxu0 %v2746
    %2832 = vmatpush1.msra.mxu0 %v2745
    %2833 = vmatprep.subr.mxu0 %v2748
    %2834 = vmatpush1.msra.mxu0 %v2747
    %2835 = vmatprep.subr.mxu0 %v2750
    %2836 = vmatpush1.msra.mxu0 %v2749
    %2837 = vmatprep.subr.mxu0 %v2752
    %2838 = vmatpush1.msra.mxu0 %v2751
    %2839 = vmatprep.subr.mxu0 %v2754
    %2840 = vmatpush1.msra.mxu0 %v2753
    %2841 = vmatprep.subr.mxu0 %v2756
    %2842 = vmatpush1.msra.mxu0 %v2755
    %2843 = vmatprep.subr.mxu0 %v2758
    %2844 = vmatpush1.msra.mxu0 %v2757
    %2845 = vmatprep.subr.mxu0 %v2760
    %2846 = vmatpush1.msra.mxu0 %v2759
    %2847 = vmatprep.subr.mxu0 0.0
    %2848 = vmatpush1.msra.mxu0 0.0
    %2849 = vmatprep.subr.mxu0 0.0
    %2850 = vmatpush1.msra.mxu0 0.0
    %2851 = vmatprep.subr.mxu0 0.0
    %2852 = vmatpush1.msra.mxu0 0.0
    %2853 = vmatprep.subr.mxu0 0.0
    %2854 = vmatpush1.msra.mxu0 0.0
    %2855 = vmatprep.mubr.f32.mxu0 %v2762
    %2856 = vmatmul.mubr.f32.gmra.mrb[0].mxu0 %v2685
    %v2857 = vpop.f32.mrb[0].mxu0
    %v2858 = vadd.f32 0.0, %v2857
    %v2859 = vpop.f32.mrb[0].mxu0
    %v2860 = vadd.f32 0.0, %v2859
    %2861 = vmatprep.mubr.f32.mxu0 %v2765
    %2862 = vmatmul.mubr.f32.gmra.mrb[0].mxu0 %v2687
    %v2863 = vpop.f32.mrb[0].mxu0
    %v2864 = vadd.f32 0.0, %v2863
    %v2865 = vpop.f32.mrb[0].mxu0
    %v2866 = vadd.f32 0.0, %v2865
    %2867 = vmatprep.mubr.f32.mxu0 %v2768
    %2868 = vmatmul.mubr.f32.gmra.mrb[0].mxu0 %v2689
    %v2869 = vpop.f32.mrb[0].mxu0
    %v2870 = vadd.f32 0.0, %v2869
    %v2871 = vpop.f32.mrb[0].mxu0
    %v2872 = vadd.f32 0.0, %v2871
    %2873 = vmatprep.mubr.f32.mxu0 %v2771
    %2874 = vmatmul.mubr.f32.gmra.mrb[0].mxu0 %v2691
    %v2875 = vpop.f32.mrb[0].mxu0
    %v2876 = vadd.f32 0.0, %v2875
    %v2877 = vpop.f32.mrb[0].mxu0
    %v2878 = vadd.f32 0.0, %v2877
    %2879 = vmatprep.mubr.f32.mxu0 %v2774
    %2880 = vmatmul.mubr.f32.gmra.mrb[0].mxu0 %v2693
    %v2881 = vpop.f32.mrb[0].mxu0
    %v2882 = vadd.f32 0.0, %v2881
    %v2883 = vpop.f32.mrb[0].mxu0
    %v2884 = vadd.f32 0.0, %v2883
    %2885 = vmatprep.mubr.f32.mxu0 %v2777
    %2886 = vmatmul.mubr.f32.gmra.mrb[0].mxu0 %v2695
    %v2887 = vpop.f32.mrb[0].mxu0
    %v2888 = vadd.f32 0.0, %v2887
    %v2889 = vpop.f32.mrb[0].mxu0
    %v2890 = vadd.f32 0.0, %v2889
    %2891 = vmatprep.mubr.f32.mxu0 %v2780
    %2892 = vmatmul.mubr.f32.gmra.mrb[0].mxu0 %v2697
    %v2893 = vpop.f32.mrb[0].mxu0
    %v2894 = vadd.f32 0.0, %v2893
    %v2895 = vpop.f32.mrb[0].mxu0
    %v2896 = vadd.f32 0.0, %v2895
    %2897 = vmatprep.mubr.f32.mxu0 %v2783
    %2898 = vmatmul.mubr.f32.gmra.mrb[0].mxu0 %v2699
    %v2899 = vpop.f32.mrb[0].mxu0
    %v2900 = vadd.f32 0.0, %v2899
    %v2901 = vpop.f32.mrb[0].mxu0
    %v2902 = vadd.f32 0.0, %v2901
    %2903 = vmatprep.mubr.f32.mxu0 %v2786
    %2904 = vmatmul.mubr.f32.gmra.mrb[0].mxu0 %v2701
    %v2905 = vpop.f32.mrb[0].mxu0
    %v2906 = vadd.f32 0.0, %v2905
    %v2907 = vpop.f32.mrb[0].mxu0
    %v2908 = vadd.f32 0.0, %v2907
    %2909 = vmatprep.mubr.f32.mxu0 %v2789
    %2910 = vmatmul.mubr.f32.gmra.mrb[0].mxu0 %v2703
    %v2911 = vpop.f32.mrb[0].mxu0
    %v2912 = vadd.f32 0.0, %v2911
    %v2913 = vpop.f32.mrb[0].mxu0
    %v2914 = vadd.f32 0.0, %v2913
    %2915 = vdwg.mxu0
    %v2917 = vlaneseq
    %v2918 = vshrl.u32 %v2917, 7
    %v2919 = vsub.s32 0, %v2918
    %v2920 = vrot.slane %v2684, %v2919
    %v2921 = vlaneseq
    %v2922 = vshrl.u32 %v2921, 7
    %v2923 = vsub.s32 1, %v2922
    %v2924 = vrot.slane %v2684, %v2923
    %v2927 = vadd.f32 %v2920, %v2858
    %v2928 = vadd.f32 %v2924, %v2860
    %v2929 = vadd.f32 %v2920, %v2864
    %v2930 = vadd.f32 %v2924, %v2866
    %v2931 = vadd.f32 %v2920, %v2870
    %v2932 = vadd.f32 %v2924, %v2872
    %v2933 = vadd.f32 %v2920, %v2876
    %v2934 = vadd.f32 %v2924, %v2878
    %v2935 = vadd.f32 %v2920, %v2882
    %v2936 = vadd.f32 %v2924, %v2884
    %v2937 = vadd.f32 %v2920, %v2888
    %v2938 = vadd.f32 %v2924, %v2890
    %v2939 = vadd.f32 %v2920, %v2894
    %v2940 = vadd.f32 %v2924, %v2896
    %v2941 = vadd.f32 %v2920, %v2900
    %v2942 = vadd.f32 %v2924, %v2902
    %v2943 = vadd.f32 %v2920, %v2906
    %v2944 = vadd.f32 %v2924, %v2908
    %v2945 = vadd.f32 %v2920, %v2912
    %v2946 = vadd.f32 %v2924, %v2914
    %v2947 = vld [vmem:[#allocation15] sm:$0xff]
    %v2948 = vld [vmem:[#allocation15 + $0x8] sm:$0xff]
    %v2949 = vld [vmem:[#allocation15 + $0x10] sm:$0xff]
    %v2950 = vld [vmem:[#allocation15 + $0x18] sm:$0xff]
    %v2951 = vld [vmem:[#allocation15 + $0x20] sm:$0xff]
    %v2952 = vld [vmem:[#allocation15 + $0x28] sm:$0xff]
    %v2953 = vld [vmem:[#allocation15 + $0x30] sm:$0xff]
    %v2954 = vld [vmem:[#allocation15 + $0x38] sm:$0xff]
    %v2955 = vld [vmem:[#allocation15 + $0x40] sm:$0xff]
    %v2956 = vld [vmem:[#allocation15 + $0x48] sm:$0xff]
    %v2957 = vld [vmem:[#allocation15 + $0x50] sm:$0xff]
    %v2958 = vld [vmem:[#allocation15 + $0x58] sm:$0xff]
    %v2959 = vld [vmem:[#allocation15 + $0x60] sm:$0xff]
    %v2960 = vld [vmem:[#allocation15 + $0x68] sm:$0xff]
    %v2961 = vld [vmem:[#allocation15 + $0x70] sm:$0xff]
    %v2962 = vld [vmem:[#allocation15 + $0x78] sm:$0xff]
    %v2963 = vld [vmem:[#allocation15 + $0x80] sm:$0xff]
    %v2964 = vld [vmem:[#allocation15 + $0x88] sm:$0xff]
    %v2965 = vld [vmem:[#allocation15 + $0x90] sm:$0xff]
    %v2966 = vld [vmem:[#allocation15 + $0x98] sm:$0xff]
    %v2967 = vld [vmem:[#allocation15 + $0xa0] sm:$0xff]
    %v2968 = vld [vmem:[#allocation15 + $0xa8] sm:$0xff]
    %v2969 = vld [vmem:[#allocation15 + $0xb0] sm:$0xff]
    %v2970 = vld [vmem:[#allocation15 + $0xb8] sm:$0xff]
    %v2971 = vld [vmem:[#allocation15 + $0xc0] sm:$0xff]
    %v2972 = vld [vmem:[#allocation15 + $0xc8] sm:$0xff]
    %v2973 = vld [vmem:[#allocation15 + $0xd0] sm:$0xff]
    %v2974 = vld [vmem:[#allocation15 + $0xd8] sm:$0xff]
    %v2975 = vld [vmem:[#allocation15 + $0xe0] sm:$0xff]
    %v2976 = vld [vmem:[#allocation15 + $0xe8] sm:$0xff]
    %v2977 = vld [vmem:[#allocation15 + $0xf0] sm:$0xff]
    %v2978 = vld [vmem:[#allocation15 + $0xf8] sm:$0xff]
    %v2979 = vld [vmem:[#allocation15 + $0x100] sm:$0xff]
    %v2980 = vld [vmem:[#allocation15 + $0x108] sm:$0xff]
    %v2981 = vld [vmem:[#allocation15 + $0x110] sm:$0xff]
    %v2982 = vld [vmem:[#allocation15 + $0x118] sm:$0xff]
    %v2983 = vld [vmem:[#allocation15 + $0x120] sm:$0xff]
    %v2984 = vld [vmem:[#allocation15 + $0x128] sm:$0xff]
    %v2985 = vld [vmem:[#allocation15 + $0x130] sm:$0xff]
    %v2986 = vld [vmem:[#allocation15 + $0x138] sm:$0xff]
    %v2987 = vld [vmem:[#allocation15 + $0x140] sm:$0xff]
    %v2988 = vld [vmem:[#allocation15 + $0x148] sm:$0xff]
    %v2989 = vld [vmem:[#allocation15 + $0x150] sm:$0xff]
    %v2990 = vld [vmem:[#allocation15 + $0x158] sm:$0xff]
    %v2991 = vld [vmem:[#allocation15 + $0x160] sm:$0xff]
    %v2992 = vld [vmem:[#allocation15 + $0x168] sm:$0xff]
    %v2993 = vld [vmem:[#allocation15 + $0x170] sm:$0xff]
    %v2994 = vld [vmem:[#allocation15 + $0x178] sm:$0xff]
    %v2995 = vld [vmem:[#allocation15 + $0x180] sm:$0xff]
    %v2996 = vld [vmem:[#allocation15 + $0x188] sm:$0xff]
    %v2997 = vld [vmem:[#allocation15 + $0x190] sm:$0xff]
    %v2998 = vld [vmem:[#allocation15 + $0x198] sm:$0xff]
    %v2999 = vld [vmem:[#allocation15 + $0x1a0] sm:$0xff]
    %v3000 = vld [vmem:[#allocation15 + $0x1a8] sm:$0xff]
    %v3001 = vld [vmem:[#allocation15 + $0x1b0] sm:$0xff]
    %v3002 = vld [vmem:[#allocation15 + $0x1b8] sm:$0xff]
    %3003 = vmatprep.subr.mxu0 %v2948
    %3004 = vmatpush1.msra.mxu0 %v2947
    %3005 = vmatprep.subr.mxu0 %v2950
    %3006 = vmatpush1.msra.mxu0 %v2949
    %3007 = vmatprep.subr.mxu0 %v2952
    %3008 = vmatpush1.msra.mxu0 %v2951
    %3009 = vmatprep.subr.mxu0 %v2954
    %3010 = vmatpush1.msra.mxu0 %v2953
    %3011 = vmatprep.subr.mxu0 %v2956
    %3012 = vmatpush1.msra.mxu0 %v2955
    %3013 = vmatprep.subr.mxu0 %v2958
    %3014 = vmatpush1.msra.mxu0 %v2957
    %3015 = vmatprep.subr.mxu0 %v2960
    %3016 = vmatpush1.msra.mxu0 %v2959
    %3017 = vmatprep.subr.mxu0 %v2962
    %3018 = vmatpush1.msra.mxu0 %v2961
    %3019 = vmatprep.subr.mxu0 %v2964
    %3020 = vmatpush1.msra.mxu0 %v2963
    %3021 = vmatprep.subr.mxu0 %v2966
    %3022 = vmatpush1.msra.mxu0 %v2965
    %3023 = vmatprep.subr.mxu0 %v2968
    %3024 = vmatpush1.msra.mxu0 %v2967
    %3025 = vmatprep.subr.mxu0 %v2970
    %3026 = vmatpush1.msra.mxu0 %v2969
    %3027 = vmatprep.subr.mxu0 %v2972
    %3028 = vmatpush1.msra.mxu0 %v2971
    %3029 = vmatprep.subr.mxu0 %v2974
    %3030 = vmatpush1.msra.mxu0 %v2973
    %3031 = vmatprep.subr.mxu0 %v2976
    %3032 = vmatpush1.msra.mxu0 %v2975
    %3033 = vmatprep.subr.mxu0 %v2978
    %3034 = vmatpush1.msra.mxu0 %v2977
    %3035 = vmatprep.subr.mxu0 %v2980
    %3036 = vmatpush1.msra.mxu0 %v2979
    %3037 = vmatprep.subr.mxu0 %v2982
    %3038 = vmatpush1.msra.mxu0 %v2981
    %3039 = vmatprep.subr.mxu0 %v2984
    %3040 = vmatpush1.msra.mxu0 %v2983
    %3041 = vmatprep.subr.mxu0 %v2986
    %3042 = vmatpush1.msra.mxu0 %v2985
    %3043 = vmatprep.subr.mxu0 %v2988
    %3044 = vmatpush1.msra.mxu0 %v2987
    %3045 = vmatprep.subr.mxu0 %v2990
    %3046 = vmatpush1.msra.mxu0 %v2989
    %3047 = vmatprep.subr.mxu0 %v2992
    %3048 = vmatpush1.msra.mxu0 %v2991
    %3049 = vmatprep.subr.mxu0 %v2994
    %3050 = vmatpush1.msra.mxu0 %v2993
    %3051 = vmatprep.subr.mxu0 %v2996
    %3052 = vmatpush1.msra.mxu0 %v2995
    %3053 = vmatprep.subr.mxu0 %v2998
    %3054 = vmatpush1.msra.mxu0 %v2997
    %3055 = vmatprep.subr.mxu0 %v3000
    %3056 = vmatpush1.msra.mxu0 %v2999
    %3057 = vmatprep.subr.mxu0 %v3002
    %3058 = vmatpush1.msra.mxu0 %v3001
    %3059 = vmatprep.subr.mxu0 0.0
    %3060 = vmatpush1.msra.mxu0 0.0
    %3061 = vmatprep.subr.mxu0 0.0
    %3062 = vmatpush1.msra.mxu0 0.0
    %3063 = vmatprep.subr.mxu0 0.0
    %3064 = vmatpush1.msra.mxu0 0.0
    %3065 = vmatprep.subr.mxu0 0.0
    %3066 = vmatpush1.msra.mxu0 0.0
    %3067 = vmatprep.mubr.f32.mxu0 %v2762
    %3068 = vmatmul.mubr.f32.gmra.mrb[0].mxu0 %v2685
    %v3069 = vpop.f32.mrb[0].mxu0
    %v3070 = vadd.f32 0.0, %v3069
    %v3071 = vpop.f32.mrb[0].mxu0
    %v3072 = vadd.f32 0.0, %v3071
    %3073 = vmatprep.mubr.f32.mxu0 %v2765
    %3074 = vmatmul.mubr.f32.gmra.mrb[0].mxu0 %v2687
    %v3075 = vpop.f32.mrb[0].mxu0
    %v3076 = vadd.f32 0.0, %v3075
    %v3077 = vpop.f32.mrb[0].mxu0
    %v3078 = vadd.f32 0.0, %v3077
    %3079 = vmatprep.mubr.f32.mxu0 %v2768
    %3080 = vmatmul.mubr.f32.gmra.mrb[0].mxu0 %v2689
    %v3081 = vpop.f32.mrb[0].mxu0
    %v3082 = vadd.f32 0.0, %v3081
    %v3083 = vpop.f32.mrb[0].mxu0
    %v3084 = vadd.f32 0.0, %v3083
    %3085 = vmatprep.mubr.f32.mxu0 %v2771
    %3086 = vmatmul.mubr.f32.gmra.mrb[0].mxu0 %v2691
    %v3087 = vpop.f32.mrb[0].mxu0
    %v3088 = vadd.f32 0.0, %v3087
    %v3089 = vpop.f32.mrb[0].mxu0
    %v3090 = vadd.f32 0.0, %v3089
    %3091 = vmatprep.mubr.f32.mxu0 %v2774
    %3092 = vmatmul.mubr.f32.gmra.mrb[0].mxu0 %v2693
    %v3093 = vpop.f32.mrb[0].mxu0
    %v3094 = vadd.f32 0.0, %v3093
    %v3095 = vpop.f32.mrb[0].mxu0
    %v3096 = vadd.f32 0.0, %v3095
    %3097 = vmatprep.mubr.f32.mxu0 %v2777
    %3098 = vmatmul.mubr.f32.gmra.mrb[0].mxu0 %v2695
    %v3099 = vpop.f32.mrb[0].mxu0
    %v3100 = vadd.f32 0.0, %v3099
    %v3101 = vpop.f32.mrb[0].mxu0
    %v3102 = vadd.f32 0.0, %v3101
    %3103 = vmatprep.mubr.f32.mxu0 %v2780
    %3104 = vmatmul.mubr.f32.gmra.mrb[0].mxu0 %v2697
    %v3105 = vpop.f32.mrb[0].mxu0
    %v3106 = vadd.f32 0.0, %v3105
    %v3107 = vpop.f32.mrb[0].mxu0
    %v3108 = vadd.f32 0.0, %v3107
    %3109 = vmatprep.mubr.f32.mxu0 %v2783
    %3110 = vmatmul.mubr.f32.gmra.mrb[0].mxu0 %v2699
    %v3111 = vpop.f32.mrb[0].mxu0
    %v3112 = vadd.f32 0.0, %v3111
    %v3113 = vpop.f32.mrb[0].mxu0
    %v3114 = vadd.f32 0.0, %v3113
    %3115 = vmatprep.mubr.f32.mxu0 %v2786
    %3116 = vmatmul.mubr.f32.gmra.mrb[0].mxu0 %v2701
    %v3117 = vpop.f32.mrb[0].mxu0
    %v3118 = vadd.f32 0.0, %v3117
    %v3119 = vpop.f32.mrb[0].mxu0
    %v3120 = vadd.f32 0.0, %v3119
    %3121 = vmatprep.mubr.f32.mxu0 %v2789
    %3122 = vmatmul.mubr.f32.gmra.mrb[0].mxu0 %v2703
    %v3123 = vpop.f32.mrb[0].mxu0
    %v3124 = vadd.f32 0.0, %v3123
    %v3125 = vpop.f32.mrb[0].mxu0
    %v3126 = vadd.f32 0.0, %v3125
    %3127 = vdwg.mxu0
    %v3128 = vadd.f32 %v2920, %v3070
    %v3129 = vadd.f32 %v2924, %v3072
    %v3130 = vadd.f32 %v2920, %v3076
    %v3131 = vadd.f32 %v2924, %v3078
    %v3132 = vadd.f32 %v2920, %v3082
    %v3133 = vadd.f32 %v2924, %v3084
    %v3134 = vadd.f32 %v2920, %v3088
    %v3135 = vadd.f32 %v2924, %v3090
    %v3136 = vadd.f32 %v2920, %v3094
    %v3137 = vadd.f32 %v2924, %v3096
    %v3138 = vadd.f32 %v2920, %v3100
    %v3139 = vadd.f32 %v2924, %v3102
    %v3140 = vadd.f32 %v2920, %v3106
    %v3141 = vadd.f32 %v2924, %v3108
    %v3142 = vadd.f32 %v2920, %v3112
    %v3143 = vadd.f32 %v2924, %v3114
    %v3144 = vadd.f32 %v2920, %v3118
    %v3145 = vadd.f32 %v2924, %v3120
    %v3146 = vadd.f32 %v2920, %v3124
    %v3147 = vadd.f32 %v2924, %v3126
    %v3148 = vld [vmem:[#allocation2] sm:$0xfc]
    %v3149 = vld [vmem:[#allocation2 + $0x8] sm:$0xfc]
    %v3150 = vld [vmem:[#allocation2 + $0x10] sm:$0xff]
    %v3151 = vld [vmem:[#allocation2 + $0x18] sm:$0xff]
    %v3152 = vld [vmem:[#allocation2 + $0x20] sm:$0xff]
    %v3153 = vld [vmem:[#allocation2 + $0x28] sm:$0xff]
    %v3154 = vld [vmem:[#allocation2 + $0x30] sm:$0xff]
    %v3155 = vld [vmem:[#allocation2 + $0x38] sm:$0xff]
    %v3156 = vld [vmem:[#allocation2 + $0x40] sm:$0xff]
    %v3157 = vld [vmem:[#allocation2 + $0x48] sm:$0xff]
    %v3158 = vld [vmem:[#allocation2 + $0x50] sm:$0xff]
    %v3159 = vld [vmem:[#allocation2 + $0x58] sm:$0xff]
    %v3160 = vld [vmem:[#allocation2 + $0x60] sm:$0xff]
    %v3161 = vld [vmem:[#allocation2 + $0x68] sm:$0xff]
    %v3162 = vld [vmem:[#allocation2 + $0x70] sm:$0xff]
    %v3163 = vld [vmem:[#allocation2 + $0x78] sm:$0xff]
    %v3164 = vld [vmem:[#allocation2 + $0x80] sm:$0xff]
    %v3165 = vld [vmem:[#allocation2 + $0x88] sm:$0xff]
    %v3166 = vld [vmem:[#allocation2 + $0x90] sm:$0xff]
    %v3167 = vld [vmem:[#allocation2 + $0x98] sm:$0xff]
    %v3168 = vld [vmem:[#allocation2 + $0xa0] sm:$0x3]
    %v3169 = vld [vmem:[#allocation2 + $0xa8] sm:$0x3]
    %s3170 = scalar_lea.vmem [#allocation14], 448
    %v3171 = vld [vmem:[%s3170] sm:$0xff]
    %v3172 = vld [vmem:[%s3170 + $0x8] sm:$0xff]
    %v3173 = vld [vmem:[%s3170 + $0x10] sm:$0xff]
    %v3174 = vld [vmem:[%s3170 + $0x18] sm:$0xff]
    %v3175 = vld [vmem:[%s3170 + $0x20] sm:$0xff]
    %v3176 = vld [vmem:[%s3170 + $0x28] sm:$0xff]
    %v3177 = vld [vmem:[%s3170 + $0x30] sm:$0xff]
    %v3178 = vld [vmem:[%s3170 + $0x38] sm:$0xff]
    %v3179 = vld [vmem:[%s3170 + $0x40] sm:$0xff]
    %v3180 = vld [vmem:[%s3170 + $0x48] sm:$0xff]
    %v3181 = vld [vmem:[%s3170 + $0x50] sm:$0xff]
    %v3182 = vld [vmem:[%s3170 + $0x58] sm:$0xff]
    %v3183 = vld [vmem:[%s3170 + $0x60] sm:$0xff]
    %v3184 = vld [vmem:[%s3170 + $0x68] sm:$0xff]
    %v3185 = vld [vmem:[%s3170 + $0x70] sm:$0xff]
    %v3186 = vld [vmem:[%s3170 + $0x78] sm:$0xff]
    %v3187 = vld [vmem:[%s3170 + $0x80] sm:$0xff]
    %v3188 = vld [vmem:[%s3170 + $0x88] sm:$0xff]
    %v3189 = vld [vmem:[%s3170 + $0x90] sm:$0xff]
    %v3190 = vld [vmem:[%s3170 + $0x98] sm:$0xff]
    %v3191 = vld [vmem:[%s3170 + $0xa0] sm:$0xff]
    %v3192 = vld [vmem:[%s3170 + $0xa8] sm:$0xff]
    %v3193 = vld [vmem:[%s3170 + $0xb0] sm:$0xff]
    %v3194 = vld [vmem:[%s3170 + $0xb8] sm:$0xff]
    %v3195 = vld [vmem:[%s3170 + $0xc0] sm:$0xff]
    %v3196 = vld [vmem:[%s3170 + $0xc8] sm:$0xff]
    %v3197 = vld [vmem:[%s3170 + $0xd0] sm:$0xff]
    %v3198 = vld [vmem:[%s3170 + $0xd8] sm:$0xff]
    %v3199 = vld [vmem:[%s3170 + $0xe0] sm:$0xff]
    %v3200 = vld [vmem:[%s3170 + $0xe8] sm:$0xff]
    %v3201 = vld [vmem:[%s3170 + $0xf0] sm:$0xff]
    %v3202 = vld [vmem:[%s3170 + $0xf8] sm:$0xff]
    %v3203 = vld [vmem:[%s3170 + $0x100] sm:$0xff]
    %v3204 = vld [vmem:[%s3170 + $0x108] sm:$0xff]
    %v3205 = vld [vmem:[%s3170 + $0x110] sm:$0xff]
    %v3206 = vld [vmem:[%s3170 + $0x118] sm:$0xff]
    %v3207 = vld [vmem:[%s3170 + $0x120] sm:$0xff]
    %v3208 = vld [vmem:[%s3170 + $0x128] sm:$0xff]
    %v3209 = vld [vmem:[%s3170 + $0x130] sm:$0xff]
    %v3210 = vld [vmem:[%s3170 + $0x138] sm:$0xff]
    %v3211 = vld [vmem:[%s3170 + $0x140] sm:$0xff]
    %v3212 = vld [vmem:[%s3170 + $0x148] sm:$0xff]
    %v3213 = vld [vmem:[%s3170 + $0x150] sm:$0xff]
    %v3214 = vld [vmem:[%s3170 + $0x158] sm:$0xff]
    %v3215 = vld [vmem:[%s3170 + $0x160] sm:$0xff]
    %v3216 = vld [vmem:[%s3170 + $0x168] sm:$0xff]
    %v3217 = vld [vmem:[%s3170 + $0x170] sm:$0xff]
    %v3218 = vld [vmem:[%s3170 + $0x178] sm:$0xff]
    %v3219 = vld [vmem:[%s3170 + $0x180] sm:$0xff]
    %v3220 = vld [vmem:[%s3170 + $0x188] sm:$0xff]
    %v3221 = vld [vmem:[%s3170 + $0x190] sm:$0xff]
    %v3222 = vld [vmem:[%s3170 + $0x198] sm:$0xff]
    %v3223 = vld [vmem:[%s3170 + $0x1a0] sm:$0xff]
    %v3224 = vld [vmem:[%s3170 + $0x1a8] sm:$0xff]
    %v3225 = vld [vmem:[%s3170 + $0x1b0] sm:$0xff]
    %v3226 = vld [vmem:[%s3170 + $0x1b8] sm:$0xff]
    %vm3249 = vcmask 1045504
    %v3250 = vrot.slane %v3148, 2
    %v3251 = vrot.slane %v3150, 2
    %v3252 = vsel %vm3249, %v3250, %v3251
    %v3253 = vrot.slane %v3149, 2
    %v3254 = vrot.slane %v3151, 2
    %v3255 = vsel %vm3249, %v3253, %v3254
    %v3256 = vrot.slane %v3152, 2
    %v3257 = vsel %vm3249, %v3251, %v3256
    %v3258 = vrot.slane %v3153, 2
    %v3259 = vsel %vm3249, %v3254, %v3258
    %v3260 = vrot.slane %v3154, 2
    %v3261 = vsel %vm3249, %v3256, %v3260
    %v3262 = vrot.slane %v3155, 2
    %v3263 = vsel %vm3249, %v3258, %v3262
    %v3264 = vrot.slane %v3156, 2
    %v3265 = vsel %vm3249, %v3260, %v3264
    %v3266 = vrot.slane %v3157, 2
    %v3267 = vsel %vm3249, %v3262, %v3266
    %v3268 = vrot.slane %v3158, 2
    %v3269 = vsel %vm3249, %v3264, %v3268
    %v3270 = vrot.slane %v3159, 2
    %v3271 = vsel %vm3249, %v3266, %v3270
    %v3272 = vrot.slane %v3160, 2
    %v3273 = vsel %vm3249, %v3268, %v3272
    %v3274 = vrot.slane %v3161, 2
    %v3275 = vsel %vm3249, %v3270, %v3274
    %v3276 = vrot.slane %v3162, 2
    %v3277 = vsel %vm3249, %v3272, %v3276
    %v3278 = vrot.slane %v3163, 2
    %v3279 = vsel %vm3249, %v3274, %v3278
    %v3280 = vrot.slane %v3164, 2
    %v3281 = vsel %vm3249, %v3276, %v3280
    %v3282 = vrot.slane %v3165, 2
    %v3283 = vsel %vm3249, %v3278, %v3282
    %v3284 = vrot.slane %v3166, 2
    %v3285 = vsel %vm3249, %v3280, %v3284
    %v3286 = vrot.slane %v3167, 2
    %v3287 = vsel %vm3249, %v3282, %v3286
    %v3288 = vrot.slane %v3168, 2
    %v3289 = vsel %vm3249, %v3284, %v3288
    %v3290 = vrot.slane %v3169, 2
    %v3291 = vsel %vm3249, %v3286, %v3290
    %v3302 = vsel %vm1944, %v3255, 0
    %v3304 = vsel %vm1944, %v3259, 0
    %v3306 = vsel %vm1944, %v3263, 0
    %v3308 = vsel %vm1944, %v3267, 0
    %v3310 = vsel %vm1944, %v3271, 0
    %v3312 = vsel %vm1944, %v3275, 0
    %v3314 = vsel %vm1944, %v3279, 0
    %v3316 = vsel %vm1944, %v3283, 0
    %v3318 = vsel %vm1944, %v3287, 0
    %v3320 = vsel %vm1944, %v3291, 0
    %3322 = vmatprep.subr.mxu0 %v3172
    %3323 = vmatpush1.msra.mxu0 %v3171
    %3324 = vmatprep.subr.mxu0 %v3174
    %3325 = vmatpush1.msra.mxu0 %v3173
    %3326 = vmatprep.subr.mxu0 %v3176
    %3327 = vmatpush1.msra.mxu0 %v3175
    %3328 = vmatprep.subr.mxu0 %v3178
    %3329 = vmatpush1.msra.mxu0 %v3177
    %3330 = vmatprep.subr.mxu0 %v3180
    %3331 = vmatpush1.msra.mxu0 %v3179
    %3332 = vmatprep.subr.mxu0 %v3182
    %3333 = vmatpush1.msra.mxu0 %v3181
    %3334 = vmatprep.subr.mxu0 %v3184
    %3335 = vmatpush1.msra.mxu0 %v3183
    %3336 = vmatprep.subr.mxu0 %v3186
    %3337 = vmatpush1.msra.mxu0 %v3185
    %3338 = vmatprep.subr.mxu0 %v3188
    %3339 = vmatpush1.msra.mxu0 %v3187
    %3340 = vmatprep.subr.mxu0 %v3190
    %3341 = vmatpush1.msra.mxu0 %v3189
    %3342 = vmatprep.subr.mxu0 %v3192
    %3343 = vmatpush1.msra.mxu0 %v3191
    %3344 = vmatprep.subr.mxu0 %v3194
    %3345 = vmatpush1.msra.mxu0 %v3193
    %3346 = vmatprep.subr.mxu0 %v3196
    %3347 = vmatpush1.msra.mxu0 %v3195
    %3348 = vmatprep.subr.mxu0 %v3198
    %3349 = vmatpush1.msra.mxu0 %v3197
    %3350 = vmatprep.subr.mxu0 %v3200
    %3351 = vmatpush1.msra.mxu0 %v3199
    %3352 = vmatprep.subr.mxu0 %v3202
    %3353 = vmatpush1.msra.mxu0 %v3201
    %3354 = vmatprep.subr.mxu0 %v3204
    %3355 = vmatpush1.msra.mxu0 %v3203
    %3356 = vmatprep.subr.mxu0 %v3206
    %3357 = vmatpush1.msra.mxu0 %v3205
    %3358 = vmatprep.subr.mxu0 %v3208
    %3359 = vmatpush1.msra.mxu0 %v3207
    %3360 = vmatprep.subr.mxu0 %v3210
    %3361 = vmatpush1.msra.mxu0 %v3209
    %3362 = vmatprep.subr.mxu0 %v3212
    %3363 = vmatpush1.msra.mxu0 %v3211
    %3364 = vmatprep.subr.mxu0 %v3214
    %3365 = vmatpush1.msra.mxu0 %v3213
    %3366 = vmatprep.subr.mxu0 %v3216
    %3367 = vmatpush1.msra.mxu0 %v3215
    %3368 = vmatprep.subr.mxu0 %v3218
    %3369 = vmatpush1.msra.mxu0 %v3217
    %3370 = vmatprep.subr.mxu0 %v3220
    %3371 = vmatpush1.msra.mxu0 %v3219
    %3372 = vmatprep.subr.mxu0 %v3222
    %3373 = vmatpush1.msra.mxu0 %v3221
    %3374 = vmatprep.subr.mxu0 %v3224
    %3375 = vmatpush1.msra.mxu0 %v3223
    %3376 = vmatprep.subr.mxu0 %v3226
    %3377 = vmatpush1.msra.mxu0 %v3225
    %3378 = vmatprep.subr.mxu0 0.0
    %3379 = vmatpush1.msra.mxu0 0.0
    %3380 = vmatprep.subr.mxu0 0.0
    %3381 = vmatpush1.msra.mxu0 0.0
    %3382 = vmatprep.subr.mxu0 0.0
    %3383 = vmatpush1.msra.mxu0 0.0
    %3384 = vmatprep.subr.mxu0 0.0
    %3385 = vmatpush1.msra.mxu0 0.0
    %3386 = vmatprep.mubr.f32.mxu0 %v3302
    %3387 = vmatmul.mubr.f32.gmra.mrb[0].mxu0 %v3252
    %v3388 = vpop.f32.mrb[0].mxu0
    %v3389 = vadd.f32 0.0, %v3388
    %v3390 = vpop.f32.mrb[0].mxu0
    %v3391 = vadd.f32 0.0, %v3390
    %3392 = vmatprep.mubr.f32.mxu0 %v3304
    %3393 = vmatmul.mubr.f32.gmra.mrb[0].mxu0 %v3257
    %v3394 = vpop.f32.mrb[0].mxu0
    %v3395 = vadd.f32 0.0, %v3394
    %v3396 = vpop.f32.mrb[0].mxu0
    %v3397 = vadd.f32 0.0, %v3396
    %3398 = vmatprep.mubr.f32.mxu0 %v3306
    %3399 = vmatmul.mubr.f32.gmra.mrb[0].mxu0 %v3261
    %v3400 = vpop.f32.mrb[0].mxu0
    %v3401 = vadd.f32 0.0, %v3400
    %v3402 = vpop.f32.mrb[0].mxu0
    %v3403 = vadd.f32 0.0, %v3402
    %3404 = vmatprep.mubr.f32.mxu0 %v3308
    %3405 = vmatmul.mubr.f32.gmra.mrb[0].mxu0 %v3265
    %v3406 = vpop.f32.mrb[0].mxu0
    %v3407 = vadd.f32 0.0, %v3406
    %v3408 = vpop.f32.mrb[0].mxu0
    %v3409 = vadd.f32 0.0, %v3408
    %3410 = vmatprep.mubr.f32.mxu0 %v3310
    %3411 = vmatmul.mubr.f32.gmra.mrb[0].mxu0 %v3269
    %v3412 = vpop.f32.mrb[0].mxu0
    %v3413 = vadd.f32 0.0, %v3412
    %v3414 = vpop.f32.mrb[0].mxu0
    %v3415 = vadd.f32 0.0, %v3414
    %3416 = vmatprep.mubr.f32.mxu0 %v3312
    %3417 = vmatmul.mubr.f32.gmra.mrb[0].mxu0 %v3273
    %v3418 = vpop.f32.mrb[0].mxu0
    %v3419 = vadd.f32 0.0, %v3418
    %v3420 = vpop.f32.mrb[0].mxu0
    %v3421 = vadd.f32 0.0, %v3420
    %3422 = vmatprep.mubr.f32.mxu0 %v3314
    %3423 = vmatmul.mubr.f32.gmra.mrb[0].mxu0 %v3277
    %v3424 = vpop.f32.mrb[0].mxu0
    %v3425 = vadd.f32 0.0, %v3424
    %v3426 = vpop.f32.mrb[0].mxu0
    %v3427 = vadd.f32 0.0, %v3426
    %3428 = vmatprep.mubr.f32.mxu0 %v3316
    %3429 = vmatmul.mubr.f32.gmra.mrb[0].mxu0 %v3281
    %v3430 = vpop.f32.mrb[0].mxu0
    %v3431 = vadd.f32 0.0, %v3430
    %v3432 = vpop.f32.mrb[0].mxu0
    %v3433 = vadd.f32 0.0, %v3432
    %3434 = vmatprep.mubr.f32.mxu0 %v3318
    %3435 = vmatmul.mubr.f32.gmra.mrb[0].mxu0 %v3285
    %v3436 = vpop.f32.mrb[0].mxu0
    %v3437 = vadd.f32 0.0, %v3436
    %v3438 = vpop.f32.mrb[0].mxu0
    %v3439 = vadd.f32 0.0, %v3438
    %3440 = vmatprep.mubr.f32.mxu0 %v3320
    %3441 = vmatmul.mubr.f32.gmra.mrb[0].mxu0 %v3289
    %v3442 = vpop.f32.mrb[0].mxu0
    %v3443 = vadd.f32 0.0, %v3442
    %v3444 = vpop.f32.mrb[0].mxu0
    %v3445 = vadd.f32 0.0, %v3444
    %3446 = vdwg.mxu0
    %v3447 = vadd.f32 %v2927, %v3389
    %v3448 = vadd.f32 %v2928, %v3391
    %v3449 = vadd.f32 %v2929, %v3395
    %v3450 = vadd.f32 %v2930, %v3397
    %v3451 = vadd.f32 %v2931, %v3401
    %v3452 = vadd.f32 %v2932, %v3403
    %v3453 = vadd.f32 %v2933, %v3407
    %v3454 = vadd.f32 %v2934, %v3409
    %v3455 = vadd.f32 %v2935, %v3413
    %v3456 = vadd.f32 %v2936, %v3415
    %v3457 = vadd.f32 %v2937, %v3419
    %v3458 = vadd.f32 %v2938, %v3421
    %v3459 = vadd.f32 %v2939, %v3425
    %v3460 = vadd.f32 %v2940, %v3427
    %v3461 = vadd.f32 %v2941, %v3431
    %v3462 = vadd.f32 %v2942, %v3433
    %v3463 = vadd.f32 %v2943, %v3437
    %v3464 = vadd.f32 %v2944, %v3439
    %v3465 = vadd.f32 %v2945, %v3443
    %v3466 = vadd.f32 %v2946, %v3445
    %s3467 = scalar_lea.vmem [#allocation15], 448
    %v3468 = vld [vmem:[%s3467] sm:$0xff]
    %v3469 = vld [vmem:[%s3467 + $0x8] sm:$0xff]
    %v3470 = vld [vmem:[%s3467 + $0x10] sm:$0xff]
    %v3471 = vld [vmem:[%s3467 + $0x18] sm:$0xff]
    %v3472 = vld [vmem:[%s3467 + $0x20] sm:$0xff]
    %v3473 = vld [vmem:[%s3467 + $0x28] sm:$0xff]
    %v3474 = vld [vmem:[%s3467 + $0x30] sm:$0xff]
    %v3475 = vld [vmem:[%s3467 + $0x38] sm:$0xff]
    %v3476 = vld [vmem:[%s3467 + $0x40] sm:$0xff]
    %v3477 = vld [vmem:[%s3467 + $0x48] sm:$0xff]
    %v3478 = vld [vmem:[%s3467 + $0x50] sm:$0xff]
    %v3479 = vld [vmem:[%s3467 + $0x58] sm:$0xff]
    %v3480 = vld [vmem:[%s3467 + $0x60] sm:$0xff]
    %v3481 = vld [vmem:[%s3467 + $0x68] sm:$0xff]
    %v3482 = vld [vmem:[%s3467 + $0x70] sm:$0xff]
    %v3483 = vld [vmem:[%s3467 + $0x78] sm:$0xff]
    %v3484 = vld [vmem:[%s3467 + $0x80] sm:$0xff]
    %v3485 = vld [vmem:[%s3467 + $0x88] sm:$0xff]
    %v3486 = vld [vmem:[%s3467 + $0x90] sm:$0xff]
    %v3487 = vld [vmem:[%s3467 + $0x98] sm:$0xff]
    %v3488 = vld [vmem:[%s3467 + $0xa0] sm:$0xff]
    %v3489 = vld [vmem:[%s3467 + $0xa8] sm:$0xff]
    %v3490 = vld [vmem:[%s3467 + $0xb0] sm:$0xff]
    %v3491 = vld [vmem:[%s3467 + $0xb8] sm:$0xff]
    %v3492 = vld [vmem:[%s3467 + $0xc0] sm:$0xff]
    %v3493 = vld [vmem:[%s3467 + $0xc8] sm:$0xff]
    %v3494 = vld [vmem:[%s3467 + $0xd0] sm:$0xff]
    %v3495 = vld [vmem:[%s3467 + $0xd8] sm:$0xff]
    %v3496 = vld [vmem:[%s3467 + $0xe0] sm:$0xff]
    %v3497 = vld [vmem:[%s3467 + $0xe8] sm:$0xff]
    %v3498 = vld [vmem:[%s3467 + $0xf0] sm:$0xff]
    %v3499 = vld [vmem:[%s3467 + $0xf8] sm:$0xff]
    %v3500 = vld [vmem:[%s3467 + $0x100] sm:$0xff]
    %v3501 = vld [vmem:[%s3467 + $0x108] sm:$0xff]
    %v3502 = vld [vmem:[%s3467 + $0x110] sm:$0xff]
    %v3503 = vld [vmem:[%s3467 + $0x118] sm:$0xff]
    %v3504 = vld [vmem:[%s3467 + $0x120] sm:$0xff]
    %v3505 = vld [vmem:[%s3467 + $0x128] sm:$0xff]
    %v3506 = vld [vmem:[%s3467 + $0x130] sm:$0xff]
    %v3507 = vld [vmem:[%s3467 + $0x138] sm:$0xff]
    %v3508 = vld [vmem:[%s3467 + $0x140] sm:$0xff]
    %v3509 = vld [vmem:[%s3467 + $0x148] sm:$0xff]
    %v3510 = vld [vmem:[%s3467 + $0x150] sm:$0xff]
    %v3511 = vld [vmem:[%s3467 + $0x158] sm:$0xff]
    %v3512 = vld [vmem:[%s3467 + $0x160] sm:$0xff]
    %v3513 = vld [vmem:[%s3467 + $0x168] sm:$0xff]
    %v3514 = vld [vmem:[%s3467 + $0x170] sm:$0xff]
    %v3515 = vld [vmem:[%s3467 + $0x178] sm:$0xff]
    %v3516 = vld [vmem:[%s3467 + $0x180] sm:$0xff]
    %v3517 = vld [vmem:[%s3467 + $0x188] sm:$0xff]
    %v3518 = vld [vmem:[%s3467 + $0x190] sm:$0xff]
    %v3519 = vld [vmem:[%s3467 + $0x198] sm:$0xff]
    %v3520 = vld [vmem:[%s3467 + $0x1a0] sm:$0xff]
    %v3521 = vld [vmem:[%s3467 + $0x1a8] sm:$0xff]
    %v3522 = vld [vmem:[%s3467 + $0x1b0] sm:$0xff]
    %v3523 = vld [vmem:[%s3467 + $0x1b8] sm:$0xff]
    %3524 = vmatprep.subr.mxu0 %v3469
    %3525 = vmatpush1.msra.mxu0 %v3468
    %3526 = vmatprep.subr.mxu0 %v3471
    %3527 = vmatpush1.msra.mxu0 %v3470
    %3528 = vmatprep.subr.mxu0 %v3473
    %3529 = vmatpush1.msra.mxu0 %v3472
    %3530 = vmatprep.subr.mxu0 %v3475
    %3531 = vmatpush1.msra.mxu0 %v3474
    %3532 = vmatprep.subr.mxu0 %v3477
    %3533 = vmatpush1.msra.mxu0 %v3476
    %3534 = vmatprep.subr.mxu0 %v3479
    %3535 = vmatpush1.msra.mxu0 %v3478
    %3536 = vmatprep.subr.mxu0 %v3481
    %3537 = vmatpush1.msra.mxu0 %v3480
    %3538 = vmatprep.subr.mxu0 %v3483
    %3539 = vmatpush1.msra.mxu0 %v3482
    %3540 = vmatprep.subr.mxu0 %v3485
    %3541 = vmatpush1.msra.mxu0 %v3484
    %3542 = vmatprep.subr.mxu0 %v3487
    %3543 = vmatpush1.msra.mxu0 %v3486
    %3544 = vmatprep.subr.mxu0 %v3489
    %3545 = vmatpush1.msra.mxu0 %v3488
    %3546 = vmatprep.subr.mxu0 %v3491
    %3547 = vmatpush1.msra.mxu0 %v3490
    %3548 = vmatprep.subr.mxu0 %v3493
    %3549 = vmatpush1.msra.mxu0 %v3492
    %3550 = vmatprep.subr.mxu0 %v3495
    %3551 = vmatpush1.msra.mxu0 %v3494
    %3552 = vmatprep.subr.mxu0 %v3497
    %3553 = vmatpush1.msra.mxu0 %v3496
    %3554 = vmatprep.subr.mxu0 %v3499
    %3555 = vmatpush1.msra.mxu0 %v3498
    %3556 = vmatprep.subr.mxu0 %v3501
    %3557 = vmatpush1.msra.mxu0 %v3500
    %3558 = vmatprep.subr.mxu0 %v3503
    %3559 = vmatpush1.msra.mxu0 %v3502
    %3560 = vmatprep.subr.mxu0 %v3505
    %3561 = vmatpush1.msra.mxu0 %v3504
    %3562 = vmatprep.subr.mxu0 %v3507
    %3563 = vmatpush1.msra.mxu0 %v3506
    %3564 = vmatprep.subr.mxu0 %v3509
    %3565 = vmatpush1.msra.mxu0 %v3508
    %3566 = vmatprep.subr.mxu0 %v3511
    %3567 = vmatpush1.msra.mxu0 %v3510
    %3568 = vmatprep.subr.mxu0 %v3513
    %3569 = vmatpush1.msra.mxu0 %v3512
    %3570 = vmatprep.subr.mxu0 %v3515
    %3571 = vmatpush1.msra.mxu0 %v3514
    %3572 = vmatprep.subr.mxu0 %v3517
    %3573 = vmatpush1.msra.mxu0 %v3516
    %3574 = vmatprep.subr.mxu0 %v3519
    %3575 = vmatpush1.msra.mxu0 %v3518
    %3576 = vmatprep.subr.mxu0 %v3521
    %3577 = vmatpush1.msra.mxu0 %v3520
    %3578 = vmatprep.subr.mxu0 %v3523
    %3579 = vmatpush1.msra.mxu0 %v3522
    %3580 = vmatprep.subr.mxu0 0.0
    %3581 = vmatpush1.msra.mxu0 0.0
    %3582 = vmatprep.subr.mxu0 0.0
    %3583 = vmatpush1.msra.mxu0 0.0
    %3584 = vmatprep.subr.mxu0 0.0
    %3585 = vmatpush1.msra.mxu0 0.0
    %3586 = vmatprep.subr.mxu0 0.0
    %3587 = vmatpush1.msra.mxu0 0.0
    %3588 = vmatprep.mubr.f32.mxu0 %v3302
    %3589 = vmatmul.mubr.f32.gmra.mrb[0].mxu0 %v3252
    %v3590 = vpop.f32.mrb[0].mxu0
    %v3591 = vadd.f32 0.0, %v3590
    %v3592 = vpop.f32.mrb[0].mxu0
    %v3593 = vadd.f32 0.0, %v3592
    %3594 = vmatprep.mubr.f32.mxu0 %v3304
    %3595 = vmatmul.mubr.f32.gmra.mrb[0].mxu0 %v3257
    %v3596 = vpop.f32.mrb[0].mxu0
    %v3597 = vadd.f32 0.0, %v3596
    %v3598 = vpop.f32.mrb[0].mxu0
    %v3599 = vadd.f32 0.0, %v3598
    %3600 = vmatprep.mubr.f32.mxu0 %v3306
    %3601 = vmatmul.mubr.f32.gmra.mrb[0].mxu0 %v3261
    %v3602 = vpop.f32.mrb[0].mxu0
    %v3603 = vadd.f32 0.0, %v3602
    %v3604 = vpop.f32.mrb[0].mxu0
    %v3605 = vadd.f32 0.0, %v3604
    %3606 = vmatprep.mubr.f32.mxu0 %v3308
    %3607 = vmatmul.mubr.f32.gmra.mrb[0].mxu0 %v3265
    %v3608 = vpop.f32.mrb[0].mxu0
    %v3609 = vadd.f32 0.0, %v3608
    %v3610 = vpop.f32.mrb[0].mxu0
    %v3611 = vadd.f32 0.0, %v3610
    %3612 = vmatprep.mubr.f32.mxu0 %v3310
    %3613 = vmatmul.mubr.f32.gmra.mrb[0].mxu0 %v3269
    %v3614 = vpop.f32.mrb[0].mxu0
    %v3615 = vadd.f32 0.0, %v3614
    %v3616 = vpop.f32.mrb[0].mxu0
    %v3617 = vadd.f32 0.0, %v3616
    %3618 = vmatprep.mubr.f32.mxu0 %v3312
    %3619 = vmatmul.mubr.f32.gmra.mrb[0].mxu0 %v3273
    %v3620 = vpop.f32.mrb[0].mxu0
    %v3621 = vadd.f32 0.0, %v3620
    %v3622 = vpop.f32.mrb[0].mxu0
    %v3623 = vadd.f32 0.0, %v3622
    %3624 = vmatprep.mubr.f32.mxu0 %v3314
    %3625 = vmatmul.mubr.f32.gmra.mrb[0].mxu0 %v3277
    %v3626 = vpop.f32.mrb[0].mxu0
    %v3627 = vadd.f32 0.0, %v3626
    %v3628 = vpop.f32.mrb[0].mxu0
    %v3629 = vadd.f32 0.0, %v3628
    %3630 = vmatprep.mubr.f32.mxu0 %v3316
    %3631 = vmatmul.mubr.f32.gmra.mrb[0].mxu0 %v3281
    %v3632 = vpop.f32.mrb[0].mxu0
    %v3633 = vadd.f32 0.0, %v3632
    %v3634 = vpop.f32.mrb[0].mxu0
    %v3635 = vadd.f32 0.0, %v3634
    %3636 = vmatprep.mubr.f32.mxu0 %v3318
    %3637 = vmatmul.mubr.f32.gmra.mrb[0].mxu0 %v3285
    %v3638 = vpop.f32.mrb[0].mxu0
    %v3639 = vadd.f32 0.0, %v3638
    %v3640 = vpop.f32.mrb[0].mxu0
    %v3641 = vadd.f32 0.0, %v3640
    %3642 = vmatprep.mubr.f32.mxu0 %v3320
    %3643 = vmatmul.mubr.f32.gmra.mrb[0].mxu0 %v3289
    %v3644 = vpop.f32.mrb[0].mxu0
    %v3645 = vadd.f32 0.0, %v3644
    %v3646 = vpop.f32.mrb[0].mxu0
    %v3647 = vadd.f32 0.0, %v3646
    %3648 = vdwg.mxu0
    %v3649 = vadd.f32 %v3128, %v3591
    %v3650 = vadd.f32 %v3129, %v3593
    %v3651 = vadd.f32 %v3130, %v3597
    %v3652 = vadd.f32 %v3131, %v3599
    %v3653 = vadd.f32 %v3132, %v3603
    %v3654 = vadd.f32 %v3133, %v3605
    %v3655 = vadd.f32 %v3134, %v3609
    %v3656 = vadd.f32 %v3135, %v3611
    %v3657 = vadd.f32 %v3136, %v3615
    %v3658 = vadd.f32 %v3137, %v3617
    %v3659 = vadd.f32 %v3138, %v3621
    %v3660 = vadd.f32 %v3139, %v3623
    %v3661 = vadd.f32 %v3140, %v3627
    %v3662 = vadd.f32 %v3141, %v3629
    %v3663 = vadd.f32 %v3142, %v3633
    %v3664 = vadd.f32 %v3143, %v3635
    %v3665 = vadd.f32 %v3144, %v3639
    %v3666 = vadd.f32 %v3145, %v3641
    %v3667 = vadd.f32 %v3146, %v3645
    %v3668 = vadd.f32 %v3147, %v3647
    %v3669 = vld [vmem:[#allocation2] sm:$0xf0]
    %v3670 = vld [vmem:[#allocation2 + $0x8] sm:$0xf0]
    %v3671 = vld [vmem:[#allocation2 + $0xa0] sm:$0xf]
    %v3672 = vld [vmem:[#allocation2 + $0xa8] sm:$0xf]
    %s3673 = scalar_lea.vmem [#allocation14], 896
    %v3674 = vld [vmem:[%s3673] sm:$0xff]
    %v3675 = vld [vmem:[%s3673 + $0x8] sm:$0xff]
    %v3676 = vld [vmem:[%s3673 + $0x10] sm:$0xff]
    %v3677 = vld [vmem:[%s3673 + $0x18] sm:$0xff]
    %v3678 = vld [vmem:[%s3673 + $0x20] sm:$0xff]
    %v3679 = vld [vmem:[%s3673 + $0x28] sm:$0xff]
    %v3680 = vld [vmem:[%s3673 + $0x30] sm:$0xff]
    %v3681 = vld [vmem:[%s3673 + $0x38] sm:$0xff]
    %v3682 = vld [vmem:[%s3673 + $0x40] sm:$0xff]
    %v3683 = vld [vmem:[%s3673 + $0x48] sm:$0xff]
    %v3684 = vld [vmem:[%s3673 + $0x50] sm:$0xff]
    %v3685 = vld [vmem:[%s3673 + $0x58] sm:$0xff]
    %v3686 = vld [vmem:[%s3673 + $0x60] sm:$0xff]
    %v3687 = vld [vmem:[%s3673 + $0x68] sm:$0xff]
    %v3688 = vld [vmem:[%s3673 + $0x70] sm:$0xff]
    %v3689 = vld [vmem:[%s3673 + $0x78] sm:$0xff]
    %v3690 = vld [vmem:[%s3673 + $0x80] sm:$0xff]
    %v3691 = vld [vmem:[%s3673 + $0x88] sm:$0xff]
    %v3692 = vld [vmem:[%s3673 + $0x90] sm:$0xff]
    %v3693 = vld [vmem:[%s3673 + $0x98] sm:$0xff]
    %v3694 = vld [vmem:[%s3673 + $0xa0] sm:$0xff]
    %v3695 = vld [vmem:[%s3673 + $0xa8] sm:$0xff]
    %v3696 = vld [vmem:[%s3673 + $0xb0] sm:$0xff]
    %v3697 = vld [vmem:[%s3673 + $0xb8] sm:$0xff]
    %v3698 = vld [vmem:[%s3673 + $0xc0] sm:$0xff]
    %v3699 = vld [vmem:[%s3673 + $0xc8] sm:$0xff]
    %v3700 = vld [vmem:[%s3673 + $0xd0] sm:$0xff]
    %v3701 = vld [vmem:[%s3673 + $0xd8] sm:$0xff]
    %v3702 = vld [vmem:[%s3673 + $0xe0] sm:$0xff]
    %v3703 = vld [vmem:[%s3673 + $0xe8] sm:$0xff]
    %v3704 = vld [vmem:[%s3673 + $0xf0] sm:$0xff]
    %v3705 = vld [vmem:[%s3673 + $0xf8] sm:$0xff]
    %v3706 = vld [vmem:[%s3673 + $0x100] sm:$0xff]
    %v3707 = vld [vmem:[%s3673 + $0x108] sm:$0xff]
    %v3708 = vld [vmem:[%s3673 + $0x110] sm:$0xff]
    %v3709 = vld [vmem:[%s3673 + $0x118] sm:$0xff]
    %v3710 = vld [vmem:[%s3673 + $0x120] sm:$0xff]
    %v3711 = vld [vmem:[%s3673 + $0x128] sm:$0xff]
    %v3712 = vld [vmem:[%s3673 + $0x130] sm:$0xff]
    %v3713 = vld [vmem:[%s3673 + $0x138] sm:$0xff]
    %v3714 = vld [vmem:[%s3673 + $0x140] sm:$0xff]
    %v3715 = vld [vmem:[%s3673 + $0x148] sm:$0xff]
    %v3716 = vld [vmem:[%s3673 + $0x150] sm:$0xff]
    %v3717 = vld [vmem:[%s3673 + $0x158] sm:$0xff]
    %v3718 = vld [vmem:[%s3673 + $0x160] sm:$0xff]
    %v3719 = vld [vmem:[%s3673 + $0x168] sm:$0xff]
    %v3720 = vld [vmem:[%s3673 + $0x170] sm:$0xff]
    %v3721 = vld [vmem:[%s3673 + $0x178] sm:$0xff]
    %v3722 = vld [vmem:[%s3673 + $0x180] sm:$0xff]
    %v3723 = vld [vmem:[%s3673 + $0x188] sm:$0xff]
    %v3724 = vld [vmem:[%s3673 + $0x190] sm:$0xff]
    %v3725 = vld [vmem:[%s3673 + $0x198] sm:$0xff]
    %v3726 = vld [vmem:[%s3673 + $0x1a0] sm:$0xff]
    %v3727 = vld [vmem:[%s3673 + $0x1a8] sm:$0xff]
    %v3728 = vld [vmem:[%s3673 + $0x1b0] sm:$0xff]
    %v3729 = vld [vmem:[%s3673 + $0x1b8] sm:$0xff]
    %v3734 = vrot.slane %v3669, 4
    %v3735 = vrot.slane %v3150, 4
    %v3736 = vsel %vm281, %v3734, %v3735
    %v3737 = vrot.slane %v3670, 4
    %v3738 = vrot.slane %v3151, 4
    %v3739 = vsel %vm281, %v3737, %v3738
    %v3740 = vrot.slane %v3152, 4
    %v3741 = vsel %vm281, %v3735, %v3740
    %v3742 = vrot.slane %v3153, 4
    %v3743 = vsel %vm281, %v3738, %v3742
    %v3744 = vrot.slane %v3154, 4
    %v3745 = vsel %vm281, %v3740, %v3744
    %v3746 = vrot.slane %v3155, 4
    %v3747 = vsel %vm281, %v3742, %v3746
    %v3748 = vrot.slane %v3156, 4
    %v3749 = vsel %vm281, %v3744, %v3748
    %v3750 = vrot.slane %v3157, 4
    %v3751 = vsel %vm281, %v3746, %v3750
    %v3752 = vrot.slane %v3158, 4
    %v3753 = vsel %vm281, %v3748, %v3752
    %v3754 = vrot.slane %v3159, 4
    %v3755 = vsel %vm281, %v3750, %v3754
    %v3756 = vrot.slane %v3160, 4
    %v3757 = vsel %vm281, %v3752, %v3756
    %v3758 = vrot.slane %v3161, 4
    %v3759 = vsel %vm281, %v3754, %v3758
    %v3760 = vrot.slane %v3162, 4
    %v3761 = vsel %vm281, %v3756, %v3760
    %v3762 = vrot.slane %v3163, 4
    %v3763 = vsel %vm281, %v3758, %v3762
    %v3764 = vrot.slane %v3164, 4
    %v3765 = vsel %vm281, %v3760, %v3764
    %v3766 = vrot.slane %v3165, 4
    %v3767 = vsel %vm281, %v3762, %v3766
    %v3768 = vrot.slane %v3166, 4
    %v3769 = vsel %vm281, %v3764, %v3768
    %v3770 = vrot.slane %v3167, 4
    %v3771 = vsel %vm281, %v3766, %v3770
    %v3772 = vrot.slane %v3671, 4
    %v3773 = vsel %vm281, %v3768, %v3772
    %v3774 = vrot.slane %v3672, 4
    %v3775 = vsel %vm281, %v3770, %v3774
    %v3786 = vsel %vm1944, %v3739, 0
    %v3788 = vsel %vm1944, %v3743, 0
    %v3790 = vsel %vm1944, %v3747, 0
    %v3792 = vsel %vm1944, %v3751, 0
    %v3794 = vsel %vm1944, %v3755, 0
    %v3796 = vsel %vm1944, %v3759, 0
    %v3798 = vsel %vm1944, %v3763, 0
    %v3800 = vsel %vm1944, %v3767, 0
    %v3802 = vsel %vm1944, %v3771, 0
    %v3804 = vsel %vm1944, %v3775, 0
    %3806 = vmatprep.subr.mxu0 %v3675
    %3807 = vmatpush1.msra.mxu0 %v3674
    %3808 = vmatprep.subr.mxu0 %v3677
    %3809 = vmatpush1.msra.mxu0 %v3676
    %3810 = vmatprep.subr.mxu0 %v3679
    %3811 = vmatpush1.msra.mxu0 %v3678
    %3812 = vmatprep.subr.mxu0 %v3681
    %3813 = vmatpush1.msra.mxu0 %v3680
    %3814 = vmatprep.subr.mxu0 %v3683
    %3815 = vmatpush1.msra.mxu0 %v3682
    %3816 = vmatprep.subr.mxu0 %v3685
    %3817 = vmatpush1.msra.mxu0 %v3684
    %3818 = vmatprep.subr.mxu0 %v3687
    %3819 = vmatpush1.msra.mxu0 %v3686
    %3820 = vmatprep.subr.mxu0 %v3689
    %3821 = vmatpush1.msra.mxu0 %v3688
    %3822 = vmatprep.subr.mxu0 %v3691
    %3823 = vmatpush1.msra.mxu0 %v3690
    %3824 = vmatprep.subr.mxu0 %v3693
    %3825 = vmatpush1.msra.mxu0 %v3692
    %3826 = vmatprep.subr.mxu0 %v3695
    %3827 = vmatpush1.msra.mxu0 %v3694
    %3828 = vmatprep.subr.mxu0 %v3697
    %3829 = vmatpush1.msra.mxu0 %v3696
    %3830 = vmatprep.subr.mxu0 %v3699
    %3831 = vmatpush1.msra.mxu0 %v3698
    %3832 = vmatprep.subr.mxu0 %v3701
    %3833 = vmatpush1.msra.mxu0 %v3700
    %3834 = vmatprep.subr.mxu0 %v3703
    %3835 = vmatpush1.msra.mxu0 %v3702
    %3836 = vmatprep.subr.mxu0 %v3705
    %3837 = vmatpush1.msra.mxu0 %v3704
    %3838 = vmatprep.subr.mxu0 %v3707
    %3839 = vmatpush1.msra.mxu0 %v3706
    %3840 = vmatprep.subr.mxu0 %v3709
    %3841 = vmatpush1.msra.mxu0 %v3708
    %3842 = vmatprep.subr.mxu0 %v3711
    %3843 = vmatpush1.msra.mxu0 %v3710
    %3844 = vmatprep.subr.mxu0 %v3713
    %3845 = vmatpush1.msra.mxu0 %v3712
    %3846 = vmatprep.subr.mxu0 %v3715
    %3847 = vmatpush1.msra.mxu0 %v3714
    %3848 = vmatprep.subr.mxu0 %v3717
    %3849 = vmatpush1.msra.mxu0 %v3716
    %3850 = vmatprep.subr.mxu0 %v3719
    %3851 = vmatpush1.msra.mxu0 %v3718
    %3852 = vmatprep.subr.mxu0 %v3721
    %3853 = vmatpush1.msra.mxu0 %v3720
    %3854 = vmatprep.subr.mxu0 %v3723
    %3855 = vmatpush1.msra.mxu0 %v3722
    %3856 = vmatprep.subr.mxu0 %v3725
    %3857 = vmatpush1.msra.mxu0 %v3724
    %3858 = vmatprep.subr.mxu0 %v3727
    %3859 = vmatpush1.msra.mxu0 %v3726
    %3860 = vmatprep.subr.mxu0 %v3729
    %3861 = vmatpush1.msra.mxu0 %v3728
    %3862 = vmatprep.subr.mxu0 0.0
    %3863 = vmatpush1.msra.mxu0 0.0
    %3864 = vmatprep.subr.mxu0 0.0
    %3865 = vmatpush1.msra.mxu0 0.0
    %3866 = vmatprep.subr.mxu0 0.0
    %3867 = vmatpush1.msra.mxu0 0.0
    %3868 = vmatprep.subr.mxu0 0.0
    %3869 = vmatpush1.msra.mxu0 0.0
    %3870 = vmatprep.mubr.f32.mxu0 %v3786
    %3871 = vmatmul.mubr.f32.gmra.mrb[0].mxu0 %v3736
    %v3872 = vpop.f32.mrb[0].mxu0
    %v3873 = vadd.f32 0.0, %v3872
    %v3874 = vpop.f32.mrb[0].mxu0
    %v3875 = vadd.f32 0.0, %v3874
    %3876 = vmatprep.mubr.f32.mxu0 %v3788
    %3877 = vmatmul.mubr.f32.gmra.mrb[0].mxu0 %v3741
    %v3878 = vpop.f32.mrb[0].mxu0
    %v3879 = vadd.f32 0.0, %v3878
    %v3880 = vpop.f32.mrb[0].mxu0
    %v3881 = vadd.f32 0.0, %v3880
    %3882 = vmatprep.mubr.f32.mxu0 %v3790
    %3883 = vmatmul.mubr.f32.gmra.mrb[0].mxu0 %v3745
    %v3884 = vpop.f32.mrb[0].mxu0
    %v3885 = vadd.f32 0.0, %v3884
    %v3886 = vpop.f32.mrb[0].mxu0
    %v3887 = vadd.f32 0.0, %v3886
    %3888 = vmatprep.mubr.f32.mxu0 %v3792
    %3889 = vmatmul.mubr.f32.gmra.mrb[0].mxu0 %v3749
    %v3890 = vpop.f32.mrb[0].mxu0
    %v3891 = vadd.f32 0.0, %v3890
    %v3892 = vpop.f32.mrb[0].mxu0
    %v3893 = vadd.f32 0.0, %v3892
    %3894 = vmatprep.mubr.f32.mxu0 %v3794
    %3895 = vmatmul.mubr.f32.gmra.mrb[0].mxu0 %v3753
    %v3896 = vpop.f32.mrb[0].mxu0
    %v3897 = vadd.f32 0.0, %v3896
    %v3898 = vpop.f32.mrb[0].mxu0
    %v3899 = vadd.f32 0.0, %v3898
    %3900 = vmatprep.mubr.f32.mxu0 %v3796
    %3901 = vmatmul.mubr.f32.gmra.mrb[0].mxu0 %v3757
    %v3902 = vpop.f32.mrb[0].mxu0
    %v3903 = vadd.f32 0.0, %v3902
    %v3904 = vpop.f32.mrb[0].mxu0
    %v3905 = vadd.f32 0.0, %v3904
    %3906 = vmatprep.mubr.f32.mxu0 %v3798
    %3907 = vmatmul.mubr.f32.gmra.mrb[0].mxu0 %v3761
    %v3908 = vpop.f32.mrb[0].mxu0
    %v3909 = vadd.f32 0.0, %v3908
    %v3910 = vpop.f32.mrb[0].mxu0
    %v3911 = vadd.f32 0.0, %v3910
    %3912 = vmatprep.mubr.f32.mxu0 %v3800
    %3913 = vmatmul.mubr.f32.gmra.mrb[0].mxu0 %v3765
    %v3914 = vpop.f32.mrb[0].mxu0
    %v3915 = vadd.f32 0.0, %v3914
    %v3916 = vpop.f32.mrb[0].mxu0
    %v3917 = vadd.f32 0.0, %v3916
    %3918 = vmatprep.mubr.f32.mxu0 %v3802
    %3919 = vmatmul.mubr.f32.gmra.mrb[0].mxu0 %v3769
    %v3920 = vpop.f32.mrb[0].mxu0
    %v3921 = vadd.f32 0.0, %v3920
    %v3922 = vpop.f32.mrb[0].mxu0
    %v3923 = vadd.f32 0.0, %v3922
    %3924 = vmatprep.mubr.f32.mxu0 %v3804
    %3925 = vmatmul.mubr.f32.gmra.mrb[0].mxu0 %v3773
    %v3926 = vpop.f32.mrb[0].mxu0
    %v3927 = vadd.f32 0.0, %v3926
    %v3928 = vpop.f32.mrb[0].mxu0
    %v3929 = vadd.f32 0.0, %v3928
    %3930 = vdwg.mxu0
    %v3931 = vadd.f32 %v3447, %v3873
    %v3932 = vadd.f32 %v3448, %v3875
    %v3933 = vadd.f32 %v3449, %v3879
    %v3934 = vadd.f32 %v3450, %v3881
    %v3935 = vadd.f32 %v3451, %v3885
    %v3936 = vadd.f32 %v3452, %v3887
    %v3937 = vadd.f32 %v3453, %v3891
    %v3938 = vadd.f32 %v3454, %v3893
    %v3939 = vadd.f32 %v3455, %v3897
    %v3940 = vadd.f32 %v3456, %v3899
    %v3941 = vadd.f32 %v3457, %v3903
    %v3942 = vadd.f32 %v3458, %v3905
    %v3943 = vadd.f32 %v3459, %v3909
    %v3944 = vadd.f32 %v3460, %v3911
    %v3945 = vadd.f32 %v3461, %v3915
    %v3946 = vadd.f32 %v3462, %v3917
    %v3947 = vadd.f32 %v3463, %v3921
    %v3948 = vadd.f32 %v3464, %v3923
    %v3949 = vadd.f32 %v3465, %v3927
    %v3950 = vadd.f32 %v3466, %v3929
    %s3951 = scalar_lea.vmem [#allocation15], 896
    %v3952 = vld [vmem:[%s3951] sm:$0xff]
    %v3953 = vld [vmem:[%s3951 + $0x8] sm:$0xff]
    %v3954 = vld [vmem:[%s3951 + $0x10] sm:$0xff]
    %v3955 = vld [vmem:[%s3951 + $0x18] sm:$0xff]
    %v3956 = vld [vmem:[%s3951 + $0x20] sm:$0xff]
    %v3957 = vld [vmem:[%s3951 + $0x28] sm:$0xff]
    %v3958 = vld [vmem:[%s3951 + $0x30] sm:$0xff]
    %v3959 = vld [vmem:[%s3951 + $0x38] sm:$0xff]
    %v3960 = vld [vmem:[%s3951 + $0x40] sm:$0xff]
    %v3961 = vld [vmem:[%s3951 + $0x48] sm:$0xff]
    %v3962 = vld [vmem:[%s3951 + $0x50] sm:$0xff]
    %v3963 = vld [vmem:[%s3951 + $0x58] sm:$0xff]
    %v3964 = vld [vmem:[%s3951 + $0x60] sm:$0xff]
    %v3965 = vld [vmem:[%s3951 + $0x68] sm:$0xff]
    %v3966 = vld [vmem:[%s3951 + $0x70] sm:$0xff]
    %v3967 = vld [vmem:[%s3951 + $0x78] sm:$0xff]
    %v3968 = vld [vmem:[%s3951 + $0x80] sm:$0xff]
    %v3969 = vld [vmem:[%s3951 + $0x88] sm:$0xff]
    %v3970 = vld [vmem:[%s3951 + $0x90] sm:$0xff]
    %v3971 = vld [vmem:[%s3951 + $0x98] sm:$0xff]
    %v3972 = vld [vmem:[%s3951 + $0xa0] sm:$0xff]
    %v3973 = vld [vmem:[%s3951 + $0xa8] sm:$0xff]
    %v3974 = vld [vmem:[%s3951 + $0xb0] sm:$0xff]
    %v3975 = vld [vmem:[%s3951 + $0xb8] sm:$0xff]
    %v3976 = vld [vmem:[%s3951 + $0xc0] sm:$0xff]
    %v3977 = vld [vmem:[%s3951 + $0xc8] sm:$0xff]
    %v3978 = vld [vmem:[%s3951 + $0xd0] sm:$0xff]
    %v3979 = vld [vmem:[%s3951 + $0xd8] sm:$0xff]
    %v3980 = vld [vmem:[%s3951 + $0xe0] sm:$0xff]
    %v3981 = vld [vmem:[%s3951 + $0xe8] sm:$0xff]
    %v3982 = vld [vmem:[%s3951 + $0xf0] sm:$0xff]
    %v3983 = vld [vmem:[%s3951 + $0xf8] sm:$0xff]
    %v3984 = vld [vmem:[%s3951 + $0x100] sm:$0xff]
    %v3985 = vld [vmem:[%s3951 + $0x108] sm:$0xff]
    %v3986 = vld [vmem:[%s3951 + $0x110] sm:$0xff]
    %v3987 = vld [vmem:[%s3951 + $0x118] sm:$0xff]
    %v3988 = vld [vmem:[%s3951 + $0x120] sm:$0xff]
    %v3989 = vld [vmem:[%s3951 + $0x128] sm:$0xff]
    %v3990 = vld [vmem:[%s3951 + $0x130] sm:$0xff]
    %v3991 = vld [vmem:[%s3951 + $0x138] sm:$0xff]
    %v3992 = vld [vmem:[%s3951 + $0x140] sm:$0xff]
    %v3993 = vld [vmem:[%s3951 + $0x148] sm:$0xff]
    %v3994 = vld [vmem:[%s3951 + $0x150] sm:$0xff]
    %v3995 = vld [vmem:[%s3951 + $0x158] sm:$0xff]
    %v3996 = vld [vmem:[%s3951 + $0x160] sm:$0xff]
    %v3997 = vld [vmem:[%s3951 + $0x168] sm:$0xff]
    %v3998 = vld [vmem:[%s3951 + $0x170] sm:$0xff]
    %v3999 = vld [vmem:[%s3951 + $0x178] sm:$0xff]
    %v4000 = vld [vmem:[%s3951 + $0x180] sm:$0xff]
    %v4001 = vld [vmem:[%s3951 + $0x188] sm:$0xff]
    %v4002 = vld [vmem:[%s3951 + $0x190] sm:$0xff]
    %v4003 = vld [vmem:[%s3951 + $0x198] sm:$0xff]
    %v4004 = vld [vmem:[%s3951 + $0x1a0] sm:$0xff]
    %v4005 = vld [vmem:[%s3951 + $0x1a8] sm:$0xff]
    %v4006 = vld [vmem:[%s3951 + $0x1b0] sm:$0xff]
    %v4007 = vld [vmem:[%s3951 + $0x1b8] sm:$0xff]
    %4008 = vmatprep.subr.mxu0 %v3953
    %4009 = vmatpush1.msra.mxu0 %v3952
    %4010 = vmatprep.subr.mxu0 %v3955
    %4011 = vmatpush1.msra.mxu0 %v3954
    %4012 = vmatprep.subr.mxu0 %v3957
    %4013 = vmatpush1.msra.mxu0 %v3956
    %4014 = vmatprep.subr.mxu0 %v3959
    %4015 = vmatpush1.msra.mxu0 %v3958
    %4016 = vmatprep.subr.mxu0 %v3961
    %4017 = vmatpush1.msra.mxu0 %v3960
    %4018 = vmatprep.subr.mxu0 %v3963
    %4019 = vmatpush1.msra.mxu0 %v3962
    %4020 = vmatprep.subr.mxu0 %v3965
    %4021 = vmatpush1.msra.mxu0 %v3964
    %4022 = vmatprep.subr.mxu0 %v3967
    %4023 = vmatpush1.msra.mxu0 %v3966
    %4024 = vmatprep.subr.mxu0 %v3969
    %4025 = vmatpush1.msra.mxu0 %v3968
    %4026 = vmatprep.subr.mxu0 %v3971
    %4027 = vmatpush1.msra.mxu0 %v3970
    %4028 = vmatprep.subr.mxu0 %v3973
    %4029 = vmatpush1.msra.mxu0 %v3972
    %4030 = vmatprep.subr.mxu0 %v3975
    %4031 = vmatpush1.msra.mxu0 %v3974
    %4032 = vmatprep.subr.mxu0 %v3977
    %4033 = vmatpush1.msra.mxu0 %v3976
    %4034 = vmatprep.subr.mxu0 %v3979
    %4035 = vmatpush1.msra.mxu0 %v3978
    %4036 = vmatprep.subr.mxu0 %v3981
    %4037 = vmatpush1.msra.mxu0 %v3980
    %4038 = vmatprep.subr.mxu0 %v3983
    %4039 = vmatpush1.msra.mxu0 %v3982
    %4040 = vmatprep.subr.mxu0 %v3985
    %4041 = vmatpush1.msra.mxu0 %v3984
    %4042 = vmatprep.subr.mxu0 %v3987
    %4043 = vmatpush1.msra.mxu0 %v3986
    %4044 = vmatprep.subr.mxu0 %v3989
    %4045 = vmatpush1.msra.mxu0 %v3988
    %4046 = vmatprep.subr.mxu0 %v3991
    %4047 = vmatpush1.msra.mxu0 %v3990
    %4048 = vmatprep.subr.mxu0 %v3993
    %4049 = vmatpush1.msra.mxu0 %v3992
    %4050 = vmatprep.subr.mxu0 %v3995
    %4051 = vmatpush1.msra.mxu0 %v3994
    %4052 = vmatprep.subr.mxu0 %v3997
    %4053 = vmatpush1.msra.mxu0 %v3996
    %4054 = vmatprep.subr.mxu0 %v3999
    %4055 = vmatpush1.msra.mxu0 %v3998
    %4056 = vmatprep.subr.mxu0 %v4001
    %4057 = vmatpush1.msra.mxu0 %v4000
    %4058 = vmatprep.subr.mxu0 %v4003
    %4059 = vmatpush1.msra.mxu0 %v4002
    %4060 = vmatprep.subr.mxu0 %v4005
    %4061 = vmatpush1.msra.mxu0 %v4004
    %4062 = vmatprep.subr.mxu0 %v4007
    %4063 = vmatpush1.msra.mxu0 %v4006
    %4064 = vmatprep.subr.mxu0 0.0
    %4065 = vmatpush1.msra.mxu0 0.0
    %4066 = vmatprep.subr.mxu0 0.0
    %4067 = vmatpush1.msra.mxu0 0.0
    %4068 = vmatprep.subr.mxu0 0.0
    %4069 = vmatpush1.msra.mxu0 0.0
    %4070 = vmatprep.subr.mxu0 0.0
    %4071 = vmatpush1.msra.mxu0 0.0
    %4072 = vmatprep.mubr.f32.mxu0 %v3786
    %4073 = vmatmul.mubr.f32.gmra.mrb[0].mxu0 %v3736
    %v4074 = vpop.f32.mrb[0].mxu0
    %v4075 = vadd.f32 0.0, %v4074
    %v4076 = vpop.f32.mrb[0].mxu0
    %v4077 = vadd.f32 0.0, %v4076
    %4078 = vmatprep.mubr.f32.mxu0 %v3788
    %4079 = vmatmul.mubr.f32.gmra.mrb[0].mxu0 %v3741
    %v4080 = vpop.f32.mrb[0].mxu0
    %v4081 = vadd.f32 0.0, %v4080
    %v4082 = vpop.f32.mrb[0].mxu0
    %v4083 = vadd.f32 0.0, %v4082
    %4084 = vmatprep.mubr.f32.mxu0 %v3790
    %4085 = vmatmul.mubr.f32.gmra.mrb[0].mxu0 %v3745
    %v4086 = vpop.f32.mrb[0].mxu0
    %v4087 = vadd.f32 0.0, %v4086
    %v4088 = vpop.f32.mrb[0].mxu0
    %v4089 = vadd.f32 0.0, %v4088
    %4090 = vmatprep.mubr.f32.mxu0 %v3792
    %4091 = vmatmul.mubr.f32.gmra.mrb[0].mxu0 %v3749
    %v4092 = vpop.f32.mrb[0].mxu0
    %v4093 = vadd.f32 0.0, %v4092
    %v4094 = vpop.f32.mrb[0].mxu0
    %v4095 = vadd.f32 0.0, %v4094
    %4096 = vmatprep.mubr.f32.mxu0 %v3794
    %4097 = vmatmul.mubr.f32.gmra.mrb[0].mxu0 %v3753
    %v4098 = vpop.f32.mrb[0].mxu0
    %v4099 = vadd.f32 0.0, %v4098
    %v4100 = vpop.f32.mrb[0].mxu0
    %v4101 = vadd.f32 0.0, %v4100
    %4102 = vmatprep.mubr.f32.mxu0 %v3796
    %4103 = vmatmul.mubr.f32.gmra.mrb[0].mxu0 %v3757
    %v4104 = vpop.f32.mrb[0].mxu0
    %v4105 = vadd.f32 0.0, %v4104
    %v4106 = vpop.f32.mrb[0].mxu0
    %v4107 = vadd.f32 0.0, %v4106
    %4108 = vmatprep.mubr.f32.mxu0 %v3798
    %4109 = vmatmul.mubr.f32.gmra.mrb[0].mxu0 %v3761
    %v4110 = vpop.f32.mrb[0].mxu0
    %v4111 = vadd.f32 0.0, %v4110
    %v4112 = vpop.f32.mrb[0].mxu0
    %v4113 = vadd.f32 0.0, %v4112
    %4114 = vmatprep.mubr.f32.mxu0 %v3800
    %4115 = vmatmul.mubr.f32.gmra.mrb[0].mxu0 %v3765
    %v4116 = vpop.f32.mrb[0].mxu0
    %v4117 = vadd.f32 0.0, %v4116
    %v4118 = vpop.f32.mrb[0].mxu0
    %v4119 = vadd.f32 0.0, %v4118
    %4120 = vmatprep.mubr.f32.mxu0 %v3802
    %4121 = vmatmul.mubr.f32.gmra.mrb[0].mxu0 %v3769
    %v4122 = vpop.f32.mrb[0].mxu0
    %v4123 = vadd.f32 0.0, %v4122
    %v4124 = vpop.f32.mrb[0].mxu0
    %v4125 = vadd.f32 0.0, %v4124
    %4126 = vmatprep.mubr.f32.mxu0 %v3804
    %4127 = vmatmul.mubr.f32.gmra.mrb[0].mxu0 %v3773
    %v4128 = vpop.f32.mrb[0].mxu0
    %v4129 = vadd.f32 0.0, %v4128
    %v4130 = vpop.f32.mrb[0].mxu0
    %v4131 = vadd.f32 0.0, %v4130
    %4132 = vdwg.mxu0
    %v4133 = vadd.f32 %v3649, %v4075
    %v4134 = vadd.f32 %v3650, %v4077
    %v4135 = vadd.f32 %v3651, %v4081
    %v4136 = vadd.f32 %v3652, %v4083
    %v4137 = vadd.f32 %v3653, %v4087
    %v4138 = vadd.f32 %v3654, %v4089
    %v4139 = vadd.f32 %v3655, %v4093
    %v4140 = vadd.f32 %v3656, %v4095
    %v4141 = vadd.f32 %v3657, %v4099
    %v4142 = vadd.f32 %v3658, %v4101
    %v4143 = vadd.f32 %v3659, %v4105
    %v4144 = vadd.f32 %v3660, %v4107
    %v4145 = vadd.f32 %v3661, %v4111
    %v4146 = vadd.f32 %v3662, %v4113
    %v4147 = vadd.f32 %v3663, %v4117
    %v4148 = vadd.f32 %v3664, %v4119
    %v4149 = vadd.f32 %v3665, %v4123
    %v4150 = vadd.f32 %v3666, %v4125
    %v4151 = vadd.f32 %v3667, %v4129
    %v4152 = vadd.f32 %v3668, %v4131
    %v4153 = vld [vmem:[#allocation2] sm:$0xc0]
    %v4154 = vld [vmem:[#allocation2 + $0x8] sm:$0xc0]
    %v4155 = vld [vmem:[#allocation2 + $0xa0] sm:$0x3f]
    %v4156 = vld [vmem:[#allocation2 + $0xa8] sm:$0x3f]
    %s4157 = scalar_lea.vmem [#allocation14], 1344
    %v4158 = vld [vmem:[%s4157] sm:$0xff]
    %v4159 = vld [vmem:[%s4157 + $0x8] sm:$0xff]
    %v4160 = vld [vmem:[%s4157 + $0x10] sm:$0xff]
    %v4161 = vld [vmem:[%s4157 + $0x18] sm:$0xff]
    %v4162 = vld [vmem:[%s4157 + $0x20] sm:$0xff]
    %v4163 = vld [vmem:[%s4157 + $0x28] sm:$0xff]
    %v4164 = vld [vmem:[%s4157 + $0x30] sm:$0xff]
    %v4165 = vld [vmem:[%s4157 + $0x38] sm:$0xff]
    %v4166 = vld [vmem:[%s4157 + $0x40] sm:$0xff]
    %v4167 = vld [vmem:[%s4157 + $0x48] sm:$0xff]
    %v4168 = vld [vmem:[%s4157 + $0x50] sm:$0xff]
    %v4169 = vld [vmem:[%s4157 + $0x58] sm:$0xff]
    %v4170 = vld [vmem:[%s4157 + $0x60] sm:$0xff]
    %v4171 = vld [vmem:[%s4157 + $0x68] sm:$0xff]
    %v4172 = vld [vmem:[%s4157 + $0x70] sm:$0xff]
    %v4173 = vld [vmem:[%s4157 + $0x78] sm:$0xff]
    %v4174 = vld [vmem:[%s4157 + $0x80] sm:$0xff]
    %v4175 = vld [vmem:[%s4157 + $0x88] sm:$0xff]
    %v4176 = vld [vmem:[%s4157 + $0x90] sm:$0xff]
    %v4177 = vld [vmem:[%s4157 + $0x98] sm:$0xff]
    %v4178 = vld [vmem:[%s4157 + $0xa0] sm:$0xff]
    %v4179 = vld [vmem:[%s4157 + $0xa8] sm:$0xff]
    %v4180 = vld [vmem:[%s4157 + $0xb0] sm:$0xff]
    %v4181 = vld [vmem:[%s4157 + $0xb8] sm:$0xff]
    %v4182 = vld [vmem:[%s4157 + $0xc0] sm:$0xff]
    %v4183 = vld [vmem:[%s4157 + $0xc8] sm:$0xff]
    %v4184 = vld [vmem:[%s4157 + $0xd0] sm:$0xff]
    %v4185 = vld [vmem:[%s4157 + $0xd8] sm:$0xff]
    %v4186 = vld [vmem:[%s4157 + $0xe0] sm:$0xff]
    %v4187 = vld [vmem:[%s4157 + $0xe8] sm:$0xff]
    %v4188 = vld [vmem:[%s4157 + $0xf0] sm:$0xff]
    %v4189 = vld [vmem:[%s4157 + $0xf8] sm:$0xff]
    %v4190 = vld [vmem:[%s4157 + $0x100] sm:$0xff]
    %v4191 = vld [vmem:[%s4157 + $0x108] sm:$0xff]
    %v4192 = vld [vmem:[%s4157 + $0x110] sm:$0xff]
    %v4193 = vld [vmem:[%s4157 + $0x118] sm:$0xff]
    %v4194 = vld [vmem:[%s4157 + $0x120] sm:$0xff]
    %v4195 = vld [vmem:[%s4157 + $0x128] sm:$0xff]
    %v4196 = vld [vmem:[%s4157 + $0x130] sm:$0xff]
    %v4197 = vld [vmem:[%s4157 + $0x138] sm:$0xff]
    %v4198 = vld [vmem:[%s4157 + $0x140] sm:$0xff]
    %v4199 = vld [vmem:[%s4157 + $0x148] sm:$0xff]
    %v4200 = vld [vmem:[%s4157 + $0x150] sm:$0xff]
    %v4201 = vld [vmem:[%s4157 + $0x158] sm:$0xff]
    %v4202 = vld [vmem:[%s4157 + $0x160] sm:$0xff]
    %v4203 = vld [vmem:[%s4157 + $0x168] sm:$0xff]
    %v4204 = vld [vmem:[%s4157 + $0x170] sm:$0xff]
    %v4205 = vld [vmem:[%s4157 + $0x178] sm:$0xff]
    %v4206 = vld [vmem:[%s4157 + $0x180] sm:$0xff]
    %v4207 = vld [vmem:[%s4157 + $0x188] sm:$0xff]
    %v4208 = vld [vmem:[%s4157 + $0x190] sm:$0xff]
    %v4209 = vld [vmem:[%s4157 + $0x198] sm:$0xff]
    %v4210 = vld [vmem:[%s4157 + $0x1a0] sm:$0xff]
    %v4211 = vld [vmem:[%s4157 + $0x1a8] sm:$0xff]
    %v4212 = vld [vmem:[%s4157 + $0x1b0] sm:$0xff]
    %v4213 = vld [vmem:[%s4157 + $0x1b8] sm:$0xff]
    %vm4218 = vcmask 1041408
    %v4219 = vrot.slane %v4153, 6
    %v4220 = vrot.slane %v3150, 6
    %v4221 = vsel %vm4218, %v4219, %v4220
    %v4222 = vrot.slane %v4154, 6
    %v4223 = vrot.slane %v3151, 6
    %v4224 = vsel %vm4218, %v4222, %v4223
    %v4225 = vrot.slane %v3152, 6
    %v4226 = vsel %vm4218, %v4220, %v4225
    %v4227 = vrot.slane %v3153, 6
    %v4228 = vsel %vm4218, %v4223, %v4227
    %v4229 = vrot.slane %v3154, 6
    %v4230 = vsel %vm4218, %v4225, %v4229
    %v4231 = vrot.slane %v3155, 6
    %v4232 = vsel %vm4218, %v4227, %v4231
    %v4233 = vrot.slane %v3156, 6
    %v4234 = vsel %vm4218, %v4229, %v4233
    %v4235 = vrot.slane %v3157, 6
    %v4236 = vsel %vm4218, %v4231, %v4235
    %v4237 = vrot.slane %v3158, 6
    %v4238 = vsel %vm4218, %v4233, %v4237
    %v4239 = vrot.slane %v3159, 6
    %v4240 = vsel %vm4218, %v4235, %v4239
    %v4241 = vrot.slane %v3160, 6
    %v4242 = vsel %vm4218, %v4237, %v4241
    %v4243 = vrot.slane %v3161, 6
    %v4244 = vsel %vm4218, %v4239, %v4243
    %v4245 = vrot.slane %v3162, 6
    %v4246 = vsel %vm4218, %v4241, %v4245
    %v4247 = vrot.slane %v3163, 6
    %v4248 = vsel %vm4218, %v4243, %v4247
    %v4249 = vrot.slane %v3164, 6
    %v4250 = vsel %vm4218, %v4245, %v4249
    %v4251 = vrot.slane %v3165, 6
    %v4252 = vsel %vm4218, %v4247, %v4251
    %v4253 = vrot.slane %v3166, 6
    %v4254 = vsel %vm4218, %v4249, %v4253
    %v4255 = vrot.slane %v3167, 6
    %v4256 = vsel %vm4218, %v4251, %v4255
    %v4257 = vrot.slane %v4155, 6
    %v4258 = vsel %vm4218, %v4253, %v4257
    %v4259 = vrot.slane %v4156, 6
    %v4260 = vsel %vm4218, %v4255, %v4259
    %v4271 = vsel %vm1944, %v4224, 0
    %v4273 = vsel %vm1944, %v4228, 0
    %v4275 = vsel %vm1944, %v4232, 0
    %v4277 = vsel %vm1944, %v4236, 0
    %v4279 = vsel %vm1944, %v4240, 0
    %v4281 = vsel %vm1944, %v4244, 0
    %v4283 = vsel %vm1944, %v4248, 0
    %v4285 = vsel %vm1944, %v4252, 0
    %v4287 = vsel %vm1944, %v4256, 0
    %v4289 = vsel %vm1944, %v4260, 0
    %4291 = vmatprep.subr.mxu0 %v4159
    %4292 = vmatpush1.msra.mxu0 %v4158
    %4293 = vmatprep.subr.mxu0 %v4161
    %4294 = vmatpush1.msra.mxu0 %v4160
    %4295 = vmatprep.subr.mxu0 %v4163
    %4296 = vmatpush1.msra.mxu0 %v4162
    %4297 = vmatprep.subr.mxu0 %v4165
    %4298 = vmatpush1.msra.mxu0 %v4164
    %4299 = vmatprep.subr.mxu0 %v4167
    %4300 = vmatpush1.msra.mxu0 %v4166
    %4301 = vmatprep.subr.mxu0 %v4169
    %4302 = vmatpush1.msra.mxu0 %v4168
    %4303 = vmatprep.subr.mxu0 %v4171
    %4304 = vmatpush1.msra.mxu0 %v4170
    %4305 = vmatprep.subr.mxu0 %v4173
    %4306 = vmatpush1.msra.mxu0 %v4172
    %4307 = vmatprep.subr.mxu0 %v4175
    %4308 = vmatpush1.msra.mxu0 %v4174
    %4309 = vmatprep.subr.mxu0 %v4177
    %4310 = vmatpush1.msra.mxu0 %v4176
    %4311 = vmatprep.subr.mxu0 %v4179
    %4312 = vmatpush1.msra.mxu0 %v4178
    %4313 = vmatprep.subr.mxu0 %v4181
    %4314 = vmatpush1.msra.mxu0 %v4180
    %4315 = vmatprep.subr.mxu0 %v4183
    %4316 = vmatpush1.msra.mxu0 %v4182
    %4317 = vmatprep.subr.mxu0 %v4185
    %4318 = vmatpush1.msra.mxu0 %v4184
    %4319 = vmatprep.subr.mxu0 %v4187
    %4320 = vmatpush1.msra.mxu0 %v4186
    %4321 = vmatprep.subr.mxu0 %v4189
    %4322 = vmatpush1.msra.mxu0 %v4188
    %4323 = vmatprep.subr.mxu0 %v4191
    %4324 = vmatpush1.msra.mxu0 %v4190
    %4325 = vmatprep.subr.mxu0 %v4193
    %4326 = vmatpush1.msra.mxu0 %v4192
    %4327 = vmatprep.subr.mxu0 %v4195
    %4328 = vmatpush1.msra.mxu0 %v4194
    %4329 = vmatprep.subr.mxu0 %v4197
    %4330 = vmatpush1.msra.mxu0 %v4196
    %4331 = vmatprep.subr.mxu0 %v4199
    %4332 = vmatpush1.msra.mxu0 %v4198
    %4333 = vmatprep.subr.mxu0 %v4201
    %4334 = vmatpush1.msra.mxu0 %v4200
    %4335 = vmatprep.subr.mxu0 %v4203
    %4336 = vmatpush1.msra.mxu0 %v4202
    %4337 = vmatprep.subr.mxu0 %v4205
    %4338 = vmatpush1.msra.mxu0 %v4204
    %4339 = vmatprep.subr.mxu0 %v4207
    %4340 = vmatpush1.msra.mxu0 %v4206
    %4341 = vmatprep.subr.mxu0 %v4209
    %4342 = vmatpush1.msra.mxu0 %v4208
    %4343 = vmatprep.subr.mxu0 %v4211
    %4344 = vmatpush1.msra.mxu0 %v4210
    %4345 = vmatprep.subr.mxu0 %v4213
    %4346 = vmatpush1.msra.mxu0 %v4212
    %4347 = vmatprep.subr.mxu0 0.0
    %4348 = vmatpush1.msra.mxu0 0.0
    %4349 = vmatprep.subr.mxu0 0.0
    %4350 = vmatpush1.msra.mxu0 0.0
    %4351 = vmatprep.subr.mxu0 0.0
    %4352 = vmatpush1.msra.mxu0 0.0
    %4353 = vmatprep.subr.mxu0 0.0
    %4354 = vmatpush1.msra.mxu0 0.0
    %4355 = vmatprep.mubr.f32.mxu0 %v4271
    %4356 = vmatmul.mubr.f32.gmra.mrb[0].mxu0 %v4221
    %v4357 = vpop.f32.mrb[0].mxu0
    %v4358 = vadd.f32 0.0, %v4357
    %v4359 = vpop.f32.mrb[0].mxu0
    %v4360 = vadd.f32 0.0, %v4359
    %4361 = vmatprep.mubr.f32.mxu0 %v4273
    %4362 = vmatmul.mubr.f32.gmra.mrb[0].mxu0 %v4226
    %v4363 = vpop.f32.mrb[0].mxu0
    %v4364 = vadd.f32 0.0, %v4363
    %v4365 = vpop.f32.mrb[0].mxu0
    %v4366 = vadd.f32 0.0, %v4365
    %4367 = vmatprep.mubr.f32.mxu0 %v4275
    %4368 = vmatmul.mubr.f32.gmra.mrb[0].mxu0 %v4230
    %v4369 = vpop.f32.mrb[0].mxu0
    %v4370 = vadd.f32 0.0, %v4369
    %v4371 = vpop.f32.mrb[0].mxu0
    %v4372 = vadd.f32 0.0, %v4371
    %4373 = vmatprep.mubr.f32.mxu0 %v4277
    %4374 = vmatmul.mubr.f32.gmra.mrb[0].mxu0 %v4234
    %v4375 = vpop.f32.mrb[0].mxu0
    %v4376 = vadd.f32 0.0, %v4375
    %v4377 = vpop.f32.mrb[0].mxu0
    %v4378 = vadd.f32 0.0, %v4377
    %4379 = vmatprep.mubr.f32.mxu0 %v4279
    %4380 = vmatmul.mubr.f32.gmra.mrb[0].mxu0 %v4238
    %v4381 = vpop.f32.mrb[0].mxu0
    %v4382 = vadd.f32 0.0, %v4381
    %v4383 = vpop.f32.mrb[0].mxu0
    %v4384 = vadd.f32 0.0, %v4383
    %4385 = vmatprep.mubr.f32.mxu0 %v4281
    %4386 = vmatmul.mubr.f32.gmra.mrb[0].mxu0 %v4242
    %v4387 = vpop.f32.mrb[0].mxu0
    %v4388 = vadd.f32 0.0, %v4387
    %v4389 = vpop.f32.mrb[0].mxu0
    %v4390 = vadd.f32 0.0, %v4389
    %4391 = vmatprep.mubr.f32.mxu0 %v4283
    %4392 = vmatmul.mubr.f32.gmra.mrb[0].mxu0 %v4246
    %v4393 = vpop.f32.mrb[0].mxu0
    %v4394 = vadd.f32 0.0, %v4393
    %v4395 = vpop.f32.mrb[0].mxu0
    %v4396 = vadd.f32 0.0, %v4395
    %4397 = vmatprep.mubr.f32.mxu0 %v4285
    %4398 = vmatmul.mubr.f32.gmra.mrb[0].mxu0 %v4250
    %v4399 = vpop.f32.mrb[0].mxu0
    %v4400 = vadd.f32 0.0, %v4399
    %v4401 = vpop.f32.mrb[0].mxu0
    %v4402 = vadd.f32 0.0, %v4401
    %4403 = vmatprep.mubr.f32.mxu0 %v4287
    %4404 = vmatmul.mubr.f32.gmra.mrb[0].mxu0 %v4254
    %v4405 = vpop.f32.mrb[0].mxu0
    %v4406 = vadd.f32 0.0, %v4405
    %v4407 = vpop.f32.mrb[0].mxu0
    %v4408 = vadd.f32 0.0, %v4407
    %4409 = vmatprep.mubr.f32.mxu0 %v4289
    %4410 = vmatmul.mubr.f32.gmra.mrb[0].mxu0 %v4258
    %v4411 = vpop.f32.mrb[0].mxu0
    %v4412 = vadd.f32 0.0, %v4411
    %v4413 = vpop.f32.mrb[0].mxu0
    %v4414 = vadd.f32 0.0, %v4413
    %4415 = vdwg.mxu0
    %v4416 = vadd.f32 %v3931, %v4358
    %v4417 = vadd.f32 %v3932, %v4360
    %v4418 = vadd.f32 %v3933, %v4364
    %v4419 = vadd.f32 %v3934, %v4366
    %v4420 = vadd.f32 %v3935, %v4370
    %v4421 = vadd.f32 %v3936, %v4372
    %v4422 = vadd.f32 %v3937, %v4376
    %v4423 = vadd.f32 %v3938, %v4378
    %v4424 = vadd.f32 %v3939, %v4382
    %v4425 = vadd.f32 %v3940, %v4384
    %v4426 = vadd.f32 %v3941, %v4388
    %v4427 = vadd.f32 %v3942, %v4390
    %v4428 = vadd.f32 %v3943, %v4394
    %v4429 = vadd.f32 %v3944, %v4396
    %v4430 = vadd.f32 %v3945, %v4400
    %v4431 = vadd.f32 %v3946, %v4402
    %v4432 = vadd.f32 %v3947, %v4406
    %v4433 = vadd.f32 %v3948, %v4408
    %v4434 = vadd.f32 %v3949, %v4412
    %v4435 = vadd.f32 %v3950, %v4414
    %s4436 = scalar_lea.vmem [#allocation15], 1344
    %v4437 = vld [vmem:[%s4436] sm:$0xff]
    %v4438 = vld [vmem:[%s4436 + $0x8] sm:$0xff]
    %v4439 = vld [vmem:[%s4436 + $0x10] sm:$0xff]
    %v4440 = vld [vmem:[%s4436 + $0x18] sm:$0xff]
    %v4441 = vld [vmem:[%s4436 + $0x20] sm:$0xff]
    %v4442 = vld [vmem:[%s4436 + $0x28] sm:$0xff]
    %v4443 = vld [vmem:[%s4436 + $0x30] sm:$0xff]
    %v4444 = vld [vmem:[%s4436 + $0x38] sm:$0xff]
    %v4445 = vld [vmem:[%s4436 + $0x40] sm:$0xff]
    %v4446 = vld [vmem:[%s4436 + $0x48] sm:$0xff]
    %v4447 = vld [vmem:[%s4436 + $0x50] sm:$0xff]
    %v4448 = vld [vmem:[%s4436 + $0x58] sm:$0xff]
    %v4449 = vld [vmem:[%s4436 + $0x60] sm:$0xff]
    %v4450 = vld [vmem:[%s4436 + $0x68] sm:$0xff]
    %v4451 = vld [vmem:[%s4436 + $0x70] sm:$0xff]
    %v4452 = vld [vmem:[%s4436 + $0x78] sm:$0xff]
    %v4453 = vld [vmem:[%s4436 + $0x80] sm:$0xff]
    %v4454 = vld [vmem:[%s4436 + $0x88] sm:$0xff]
    %v4455 = vld [vmem:[%s4436 + $0x90] sm:$0xff]
    %v4456 = vld [vmem:[%s4436 + $0x98] sm:$0xff]
    %v4457 = vld [vmem:[%s4436 + $0xa0] sm:$0xff]
    %v4458 = vld [vmem:[%s4436 + $0xa8] sm:$0xff]
    %v4459 = vld [vmem:[%s4436 + $0xb0] sm:$0xff]
    %v4460 = vld [vmem:[%s4436 + $0xb8] sm:$0xff]
    %v4461 = vld [vmem:[%s4436 + $0xc0] sm:$0xff]
    %v4462 = vld [vmem:[%s4436 + $0xc8] sm:$0xff]
    %v4463 = vld [vmem:[%s4436 + $0xd0] sm:$0xff]
    %v4464 = vld [vmem:[%s4436 + $0xd8] sm:$0xff]
    %v4465 = vld [vmem:[%s4436 + $0xe0] sm:$0xff]
    %v4466 = vld [vmem:[%s4436 + $0xe8] sm:$0xff]
    %v4467 = vld [vmem:[%s4436 + $0xf0] sm:$0xff]
    %v4468 = vld [vmem:[%s4436 + $0xf8] sm:$0xff]
    %v4469 = vld [vmem:[%s4436 + $0x100] sm:$0xff]
    %v4470 = vld [vmem:[%s4436 + $0x108] sm:$0xff]
    %v4471 = vld [vmem:[%s4436 + $0x110] sm:$0xff]
    %v4472 = vld [vmem:[%s4436 + $0x118] sm:$0xff]
    %v4473 = vld [vmem:[%s4436 + $0x120] sm:$0xff]
    %v4474 = vld [vmem:[%s4436 + $0x128] sm:$0xff]
    %v4475 = vld [vmem:[%s4436 + $0x130] sm:$0xff]
    %v4476 = vld [vmem:[%s4436 + $0x138] sm:$0xff]
    %v4477 = vld [vmem:[%s4436 + $0x140] sm:$0xff]
    %v4478 = vld [vmem:[%s4436 + $0x148] sm:$0xff]
    %v4479 = vld [vmem:[%s4436 + $0x150] sm:$0xff]
    %v4480 = vld [vmem:[%s4436 + $0x158] sm:$0xff]
    %v4481 = vld [vmem:[%s4436 + $0x160] sm:$0xff]
    %v4482 = vld [vmem:[%s4436 + $0x168] sm:$0xff]
    %v4483 = vld [vmem:[%s4436 + $0x170] sm:$0xff]
    %v4484 = vld [vmem:[%s4436 + $0x178] sm:$0xff]
    %v4485 = vld [vmem:[%s4436 + $0x180] sm:$0xff]
    %v4486 = vld [vmem:[%s4436 + $0x188] sm:$0xff]
    %v4487 = vld [vmem:[%s4436 + $0x190] sm:$0xff]
    %v4488 = vld [vmem:[%s4436 + $0x198] sm:$0xff]
    %v4489 = vld [vmem:[%s4436 + $0x1a0] sm:$0xff]
    %v4490 = vld [vmem:[%s4436 + $0x1a8] sm:$0xff]
    %v4491 = vld [vmem:[%s4436 + $0x1b0] sm:$0xff]
    %v4492 = vld [vmem:[%s4436 + $0x1b8] sm:$0xff]
    %4493 = vmatprep.subr.mxu0 %v4438
    %4494 = vmatpush1.msra.mxu0 %v4437
    %4495 = vmatprep.subr.mxu0 %v4440
    %4496 = vmatpush1.msra.mxu0 %v4439
    %4497 = vmatprep.subr.mxu0 %v4442
    %4498 = vmatpush1.msra.mxu0 %v4441
    %4499 = vmatprep.subr.mxu0 %v4444
    %4500 = vmatpush1.msra.mxu0 %v4443
    %4501 = vmatprep.subr.mxu0 %v4446
    %4502 = vmatpush1.msra.mxu0 %v4445
    %4503 = vmatprep.subr.mxu0 %v4448
    %4504 = vmatpush1.msra.mxu0 %v4447
    %4505 = vmatprep.subr.mxu0 %v4450
    %4506 = vmatpush1.msra.mxu0 %v4449
    %4507 = vmatprep.subr.mxu0 %v4452
    %4508 = vmatpush1.msra.mxu0 %v4451
    %4509 = vmatprep.subr.mxu0 %v4454
    %4510 = vmatpush1.msra.mxu0 %v4453
    %4511 = vmatprep.subr.mxu0 %v4456
    %4512 = vmatpush1.msra.mxu0 %v4455
    %4513 = vmatprep.subr.mxu0 %v4458
    %4514 = vmatpush1.msra.mxu0 %v4457
    %4515 = vmatprep.subr.mxu0 %v4460
    %4516 = vmatpush1.msra.mxu0 %v4459
    %4517 = vmatprep.subr.mxu0 %v4462
    %4518 = vmatpush1.msra.mxu0 %v4461
    %4519 = vmatprep.subr.mxu0 %v4464
    %4520 = vmatpush1.msra.mxu0 %v4463
    %4521 = vmatprep.subr.mxu0 %v4466
    %4522 = vmatpush1.msra.mxu0 %v4465
    %4523 = vmatprep.subr.mxu0 %v4468
    %4524 = vmatpush1.msra.mxu0 %v4467
    %4525 = vmatprep.subr.mxu0 %v4470
    %4526 = vmatpush1.msra.mxu0 %v4469
    %4527 = vmatprep.subr.mxu0 %v4472
    %4528 = vmatpush1.msra.mxu0 %v4471
    %4529 = vmatprep.subr.mxu0 %v4474
    %4530 = vmatpush1.msra.mxu0 %v4473
    %4531 = vmatprep.subr.mxu0 %v4476
    %4532 = vmatpush1.msra.mxu0 %v4475
    %4533 = vmatprep.subr.mxu0 %v4478
    %4534 = vmatpush1.msra.mxu0 %v4477
    %4535 = vmatprep.subr.mxu0 %v4480
    %4536 = vmatpush1.msra.mxu0 %v4479
    %4537 = vmatprep.subr.mxu0 %v4482
    %4538 = vmatpush1.msra.mxu0 %v4481
    %4539 = vmatprep.subr.mxu0 %v4484
    %4540 = vmatpush1.msra.mxu0 %v4483
    %4541 = vmatprep.subr.mxu0 %v4486
    %4542 = vmatpush1.msra.mxu0 %v4485
    %4543 = vmatprep.subr.mxu0 %v4488
    %4544 = vmatpush1.msra.mxu0 %v4487
    %4545 = vmatprep.subr.mxu0 %v4490
    %4546 = vmatpush1.msra.mxu0 %v4489
    %4547 = vmatprep.subr.mxu0 %v4492
    %4548 = vmatpush1.msra.mxu0 %v4491
    %4549 = vmatprep.subr.mxu0 0.0
    %4550 = vmatpush1.msra.mxu0 0.0
    %4551 = vmatprep.subr.mxu0 0.0
    %4552 = vmatpush1.msra.mxu0 0.0
    %4553 = vmatprep.subr.mxu0 0.0
    %4554 = vmatpush1.msra.mxu0 0.0
    %4555 = vmatprep.subr.mxu0 0.0
    %4556 = vmatpush1.msra.mxu0 0.0
    %4557 = vmatprep.mubr.f32.mxu0 %v4271
    %4558 = vmatmul.mubr.f32.gmra.mrb[0].mxu0 %v4221
    %v4559 = vpop.f32.mrb[0].mxu0
    %v4560 = vadd.f32 0.0, %v4559
    %v4561 = vpop.f32.mrb[0].mxu0
    %v4562 = vadd.f32 0.0, %v4561
    %4563 = vmatprep.mubr.f32.mxu0 %v4273
    %4564 = vmatmul.mubr.f32.gmra.mrb[0].mxu0 %v4226
    %v4565 = vpop.f32.mrb[0].mxu0
    %v4566 = vadd.f32 0.0, %v4565
    %v4567 = vpop.f32.mrb[0].mxu0
    %v4568 = vadd.f32 0.0, %v4567
    %4569 = vmatprep.mubr.f32.mxu0 %v4275
    %4570 = vmatmul.mubr.f32.gmra.mrb[0].mxu0 %v4230
    %v4571 = vpop.f32.mrb[0].mxu0
    %v4572 = vadd.f32 0.0, %v4571
    %v4573 = vpop.f32.mrb[0].mxu0
    %v4574 = vadd.f32 0.0, %v4573
    %4575 = vmatprep.mubr.f32.mxu0 %v4277
    %4576 = vmatmul.mubr.f32.gmra.mrb[0].mxu0 %v4234
    %v4577 = vpop.f32.mrb[0].mxu0
    %v4578 = vadd.f32 0.0, %v4577
    %v4579 = vpop.f32.mrb[0].mxu0
    %v4580 = vadd.f32 0.0, %v4579
    %4581 = vmatprep.mubr.f32.mxu0 %v4279
    %4582 = vmatmul.mubr.f32.gmra.mrb[0].mxu0 %v4238
    %v4583 = vpop.f32.mrb[0].mxu0
    %v4584 = vadd.f32 0.0, %v4583
    %v4585 = vpop.f32.mrb[0].mxu0
    %v4586 = vadd.f32 0.0, %v4585
    %4587 = vmatprep.mubr.f32.mxu0 %v4281
    %4588 = vmatmul.mubr.f32.gmra.mrb[0].mxu0 %v4242
    %v4589 = vpop.f32.mrb[0].mxu0
    %v4590 = vadd.f32 0.0, %v4589
    %v4591 = vpop.f32.mrb[0].mxu0
    %v4592 = vadd.f32 0.0, %v4591
    %4593 = vmatprep.mubr.f32.mxu0 %v4283
    %4594 = vmatmul.mubr.f32.gmra.mrb[0].mxu0 %v4246
    %v4595 = vpop.f32.mrb[0].mxu0
    %v4596 = vadd.f32 0.0, %v4595
    %v4597 = vpop.f32.mrb[0].mxu0
    %v4598 = vadd.f32 0.0, %v4597
    %4599 = vmatprep.mubr.f32.mxu0 %v4285
    %4600 = vmatmul.mubr.f32.gmra.mrb[0].mxu0 %v4250
    %v4601 = vpop.f32.mrb[0].mxu0
    %v4602 = vadd.f32 0.0, %v4601
    %v4603 = vpop.f32.mrb[0].mxu0
    %v4604 = vadd.f32 0.0, %v4603
    %4605 = vmatprep.mubr.f32.mxu0 %v4287
    %4606 = vmatmul.mubr.f32.gmra.mrb[0].mxu0 %v4254
    %v4607 = vpop.f32.mrb[0].mxu0
    %v4608 = vadd.f32 0.0, %v4607
    %v4609 = vpop.f32.mrb[0].mxu0
    %v4610 = vadd.f32 0.0, %v4609
    %4611 = vmatprep.mubr.f32.mxu0 %v4289
    %4612 = vmatmul.mubr.f32.gmra.mrb[0].mxu0 %v4258
    %v4613 = vpop.f32.mrb[0].mxu0
    %v4614 = vadd.f32 0.0, %v4613
    %v4615 = vpop.f32.mrb[0].mxu0
    %v4616 = vadd.f32 0.0, %v4615
    %4617 = vdwg.mxu0
    %v4618 = vadd.f32 %v4133, %v4560
    %v4619 = vadd.f32 %v4134, %v4562
    %v4620 = vadd.f32 %v4135, %v4566
    %v4621 = vadd.f32 %v4136, %v4568
    %v4622 = vadd.f32 %v4137, %v4572
    %v4623 = vadd.f32 %v4138, %v4574
    %v4624 = vadd.f32 %v4139, %v4578
    %v4625 = vadd.f32 %v4140, %v4580
    %v4626 = vadd.f32 %v4141, %v4584
    %v4627 = vadd.f32 %v4142, %v4586
    %v4628 = vadd.f32 %v4143, %v4590
    %v4629 = vadd.f32 %v4144, %v4592
    %v4630 = vadd.f32 %v4145, %v4596
    %v4631 = vadd.f32 %v4146, %v4598
    %v4632 = vadd.f32 %v4147, %v4602
    %v4633 = vadd.f32 %v4148, %v4604
    %v4634 = vadd.f32 %v4149, %v4608
    %v4635 = vadd.f32 %v4150, %v4610
    %v4636 = vadd.f32 %v4151, %v4614
    %v4637 = vadd.f32 %v4152, %v4616
    %v4638 = vld [vmem:[#allocation2 + $0xa0] sm:$0xff]
    %v4639 = vld [vmem:[#allocation2 + $0xa8] sm:$0xff]
    %s4640 = scalar_lea.vmem [#allocation14], 1792
    %v4641 = vld [vmem:[%s4640] sm:$0xff]
    %v4642 = vld [vmem:[%s4640 + $0x8] sm:$0xff]
    %v4643 = vld [vmem:[%s4640 + $0x10] sm:$0xff]
    %v4644 = vld [vmem:[%s4640 + $0x18] sm:$0xff]
    %v4645 = vld [vmem:[%s4640 + $0x20] sm:$0xff]
    %v4646 = vld [vmem:[%s4640 + $0x28] sm:$0xff]
    %v4647 = vld [vmem:[%s4640 + $0x30] sm:$0xff]
    %v4648 = vld [vmem:[%s4640 + $0x38] sm:$0xff]
    %v4649 = vld [vmem:[%s4640 + $0x40] sm:$0xff]
    %v4650 = vld [vmem:[%s4640 + $0x48] sm:$0xff]
    %v4651 = vld [vmem:[%s4640 + $0x50] sm:$0xff]
    %v4652 = vld [vmem:[%s4640 + $0x58] sm:$0xff]
    %v4653 = vld [vmem:[%s4640 + $0x60] sm:$0xff]
    %v4654 = vld [vmem:[%s4640 + $0x68] sm:$0xff]
    %v4655 = vld [vmem:[%s4640 + $0x70] sm:$0xff]
    %v4656 = vld [vmem:[%s4640 + $0x78] sm:$0xff]
    %v4657 = vld [vmem:[%s4640 + $0x80] sm:$0xff]
    %v4658 = vld [vmem:[%s4640 + $0x88] sm:$0xff]
    %v4659 = vld [vmem:[%s4640 + $0x90] sm:$0xff]
    %v4660 = vld [vmem:[%s4640 + $0x98] sm:$0xff]
    %v4661 = vld [vmem:[%s4640 + $0xa0] sm:$0xff]
    %v4662 = vld [vmem:[%s4640 + $0xa8] sm:$0xff]
    %v4663 = vld [vmem:[%s4640 + $0xb0] sm:$0xff]
    %v4664 = vld [vmem:[%s4640 + $0xb8] sm:$0xff]
    %v4665 = vld [vmem:[%s4640 + $0xc0] sm:$0xff]
    %v4666 = vld [vmem:[%s4640 + $0xc8] sm:$0xff]
    %v4667 = vld [vmem:[%s4640 + $0xd0] sm:$0xff]
    %v4668 = vld [vmem:[%s4640 + $0xd8] sm:$0xff]
    %v4669 = vld [vmem:[%s4640 + $0xe0] sm:$0xff]
    %v4670 = vld [vmem:[%s4640 + $0xe8] sm:$0xff]
    %v4671 = vld [vmem:[%s4640 + $0xf0] sm:$0xff]
    %v4672 = vld [vmem:[%s4640 + $0xf8] sm:$0xff]
    %v4673 = vld [vmem:[%s4640 + $0x100] sm:$0xff]
    %v4674 = vld [vmem:[%s4640 + $0x108] sm:$0xff]
    %v4675 = vld [vmem:[%s4640 + $0x110] sm:$0xff]
    %v4676 = vld [vmem:[%s4640 + $0x118] sm:$0xff]
    %v4677 = vld [vmem:[%s4640 + $0x120] sm:$0xff]
    %v4678 = vld [vmem:[%s4640 + $0x128] sm:$0xff]
    %v4679 = vld [vmem:[%s4640 + $0x130] sm:$0xff]
    %v4680 = vld [vmem:[%s4640 + $0x138] sm:$0xff]
    %v4681 = vld [vmem:[%s4640 + $0x140] sm:$0xff]
    %v4682 = vld [vmem:[%s4640 + $0x148] sm:$0xff]
    %v4683 = vld [vmem:[%s4640 + $0x150] sm:$0xff]
    %v4684 = vld [vmem:[%s4640 + $0x158] sm:$0xff]
    %v4685 = vld [vmem:[%s4640 + $0x160] sm:$0xff]
    %v4686 = vld [vmem:[%s4640 + $0x168] sm:$0xff]
    %v4687 = vld [vmem:[%s4640 + $0x170] sm:$0xff]
    %v4688 = vld [vmem:[%s4640 + $0x178] sm:$0xff]
    %v4689 = vld [vmem:[%s4640 + $0x180] sm:$0xff]
    %v4690 = vld [vmem:[%s4640 + $0x188] sm:$0xff]
    %v4691 = vld [vmem:[%s4640 + $0x190] sm:$0xff]
    %v4692 = vld [vmem:[%s4640 + $0x198] sm:$0xff]
    %v4693 = vld [vmem:[%s4640 + $0x1a0] sm:$0xff]
    %v4694 = vld [vmem:[%s4640 + $0x1a8] sm:$0xff]
    %v4695 = vld [vmem:[%s4640 + $0x1b0] sm:$0xff]
    %v4696 = vld [vmem:[%s4640 + $0x1b8] sm:$0xff]
    %v4697 = vsel %vm1944, %v3151, 0
    %v4699 = vsel %vm1944, %v3153, 0
    %v4701 = vsel %vm1944, %v3155, 0
    %v4703 = vsel %vm1944, %v3157, 0
    %v4705 = vsel %vm1944, %v3159, 0
    %v4707 = vsel %vm1944, %v3161, 0
    %v4709 = vsel %vm1944, %v3163, 0
    %v4711 = vsel %vm1944, %v3165, 0
    %v4713 = vsel %vm1944, %v3167, 0
    %v4716 = vsel %vm1944, %v4639, 0
    %4718 = vmatprep.subr.mxu0 %v4642
    %4719 = vmatpush1.msra.mxu0 %v4641
    %4720 = vmatprep.subr.mxu0 %v4644
    %4721 = vmatpush1.msra.mxu0 %v4643
    %4722 = vmatprep.subr.mxu0 %v4646
    %4723 = vmatpush1.msra.mxu0 %v4645
    %4724 = vmatprep.subr.mxu0 %v4648
    %4725 = vmatpush1.msra.mxu0 %v4647
    %4726 = vmatprep.subr.mxu0 %v4650
    %4727 = vmatpush1.msra.mxu0 %v4649
    %4728 = vmatprep.subr.mxu0 %v4652
    %4729 = vmatpush1.msra.mxu0 %v4651
    %4730 = vmatprep.subr.mxu0 %v4654
    %4731 = vmatpush1.msra.mxu0 %v4653
    %4732 = vmatprep.subr.mxu0 %v4656
    %4733 = vmatpush1.msra.mxu0 %v4655
    %4734 = vmatprep.subr.mxu0 %v4658
    %4735 = vmatpush1.msra.mxu0 %v4657
    %4736 = vmatprep.subr.mxu0 %v4660
    %4737 = vmatpush1.msra.mxu0 %v4659
    %4738 = vmatprep.subr.mxu0 %v4662
    %4739 = vmatpush1.msra.mxu0 %v4661
    %4740 = vmatprep.subr.mxu0 %v4664
    %4741 = vmatpush1.msra.mxu0 %v4663
    %4742 = vmatprep.subr.mxu0 %v4666
    %4743 = vmatpush1.msra.mxu0 %v4665
    %4744 = vmatprep.subr.mxu0 %v4668
    %4745 = vmatpush1.msra.mxu0 %v4667
    %4746 = vmatprep.subr.mxu0 %v4670
    %4747 = vmatpush1.msra.mxu0 %v4669
    %4748 = vmatprep.subr.mxu0 %v4672
    %4749 = vmatpush1.msra.mxu0 %v4671
    %4750 = vmatprep.subr.mxu0 %v4674
    %4751 = vmatpush1.msra.mxu0 %v4673
    %4752 = vmatprep.subr.mxu0 %v4676
    %4753 = vmatpush1.msra.mxu0 %v4675
    %4754 = vmatprep.subr.mxu0 %v4678
    %4755 = vmatpush1.msra.mxu0 %v4677
    %4756 = vmatprep.subr.mxu0 %v4680
    %4757 = vmatpush1.msra.mxu0 %v4679
    %4758 = vmatprep.subr.mxu0 %v4682
    %4759 = vmatpush1.msra.mxu0 %v4681
    %4760 = vmatprep.subr.mxu0 %v4684
    %4761 = vmatpush1.msra.mxu0 %v4683
    %4762 = vmatprep.subr.mxu0 %v4686
    %4763 = vmatpush1.msra.mxu0 %v4685
    %4764 = vmatprep.subr.mxu0 %v4688
    %4765 = vmatpush1.msra.mxu0 %v4687
    %4766 = vmatprep.subr.mxu0 %v4690
    %4767 = vmatpush1.msra.mxu0 %v4689
    %4768 = vmatprep.subr.mxu0 %v4692
    %4769 = vmatpush1.msra.mxu0 %v4691
    %4770 = vmatprep.subr.mxu0 %v4694
    %4771 = vmatpush1.msra.mxu0 %v4693
    %4772 = vmatprep.subr.mxu0 %v4696
    %4773 = vmatpush1.msra.mxu0 %v4695
    %4774 = vmatprep.subr.mxu0 0.0
    %4775 = vmatpush1.msra.mxu0 0.0
    %4776 = vmatprep.subr.mxu0 0.0
    %4777 = vmatpush1.msra.mxu0 0.0
    %4778 = vmatprep.subr.mxu0 0.0
    %4779 = vmatpush1.msra.mxu0 0.0
    %4780 = vmatprep.subr.mxu0 0.0
    %4781 = vmatpush1.msra.mxu0 0.0
    %4782 = vmatprep.mubr.f32.mxu0 %v4697
    %4783 = vmatmul.mubr.f32.gmra.mrb[0].mxu0 %v3150
    %v4784 = vpop.f32.mrb[0].mxu0
    %v4785 = vadd.f32 0.0, %v4784
    %v4786 = vpop.f32.mrb[0].mxu0
    %v4787 = vadd.f32 0.0, %v4786
    %4788 = vmatprep.mubr.f32.mxu0 %v4699
    %4789 = vmatmul.mubr.f32.gmra.mrb[0].mxu0 %v3152
    %v4790 = vpop.f32.mrb[0].mxu0
    %v4791 = vadd.f32 0.0, %v4790
    %v4792 = vpop.f32.mrb[0].mxu0
    %v4793 = vadd.f32 0.0, %v4792
    %4794 = vmatprep.mubr.f32.mxu0 %v4701
    %4795 = vmatmul.mubr.f32.gmra.mrb[0].mxu0 %v3154
    %v4796 = vpop.f32.mrb[0].mxu0
    %v4797 = vadd.f32 0.0, %v4796
    %v4798 = vpop.f32.mrb[0].mxu0
    %v4799 = vadd.f32 0.0, %v4798
    %4800 = vmatprep.mubr.f32.mxu0 %v4703
    %4801 = vmatmul.mubr.f32.gmra.mrb[0].mxu0 %v3156
    %v4802 = vpop.f32.mrb[0].mxu0
    %v4803 = vadd.f32 0.0, %v4802
    %v4804 = vpop.f32.mrb[0].mxu0
    %v4805 = vadd.f32 0.0, %v4804
    %4806 = vmatprep.mubr.f32.mxu0 %v4705
    %4807 = vmatmul.mubr.f32.gmra.mrb[0].mxu0 %v3158
    %v4808 = vpop.f32.mrb[0].mxu0
    %v4809 = vadd.f32 0.0, %v4808
    %v4810 = vpop.f32.mrb[0].mxu0
    %v4811 = vadd.f32 0.0, %v4810
    %4812 = vmatprep.mubr.f32.mxu0 %v4707
    %4813 = vmatmul.mubr.f32.gmra.mrb[0].mxu0 %v3160
    %v4814 = vpop.f32.mrb[0].mxu0
    %v4815 = vadd.f32 0.0, %v4814
    %v4816 = vpop.f32.mrb[0].mxu0
    %v4817 = vadd.f32 0.0, %v4816
    %4818 = vmatprep.mubr.f32.mxu0 %v4709
    %4819 = vmatmul.mubr.f32.gmra.mrb[0].mxu0 %v3162
    %v4820 = vpop.f32.mrb[0].mxu0
    %v4821 = vadd.f32 0.0, %v4820
    %v4822 = vpop.f32.mrb[0].mxu0
    %v4823 = vadd.f32 0.0, %v4822
    %4824 = vmatprep.mubr.f32.mxu0 %v4711
    %4825 = vmatmul.mubr.f32.gmra.mrb[0].mxu0 %v3164
    %v4826 = vpop.f32.mrb[0].mxu0
    %v4827 = vadd.f32 0.0, %v4826
    %v4828 = vpop.f32.mrb[0].mxu0
    %v4829 = vadd.f32 0.0, %v4828
    %4830 = vmatprep.mubr.f32.mxu0 %v4713
    %4831 = vmatmul.mubr.f32.gmra.mrb[0].mxu0 %v3166
    %v4832 = vpop.f32.mrb[0].mxu0
    %v4833 = vadd.f32 0.0, %v4832
    %v4834 = vpop.f32.mrb[0].mxu0
    %v4835 = vadd.f32 0.0, %v4834
    %4836 = vmatprep.mubr.f32.mxu0 %v4716
    %4837 = vmatmul.mubr.f32.gmra.mrb[0].mxu0 %v4638
    %v4838 = vpop.f32.mrb[0].mxu0
    %v4839 = vadd.f32 0.0, %v4838
    %v4840 = vpop.f32.mrb[0].mxu0
    %v4841 = vadd.f32 0.0, %v4840
    %4842 = vdwg.mxu0
    %v4843 = vadd.f32 %v4416, %v4785
    %v4844 = vadd.f32 %v4417, %v4787
    %v4845 = vadd.f32 %v4418, %v4791
    %v4846 = vadd.f32 %v4419, %v4793
    %v4847 = vadd.f32 %v4420, %v4797
    %v4848 = vadd.f32 %v4421, %v4799
    %v4849 = vadd.f32 %v4422, %v4803
    %v4850 = vadd.f32 %v4423, %v4805
    %v4851 = vadd.f32 %v4424, %v4809
    %v4852 = vadd.f32 %v4425, %v4811
    %v4853 = vadd.f32 %v4426, %v4815
    %v4854 = vadd.f32 %v4427, %v4817
    %v4855 = vadd.f32 %v4428, %v4821
    %v4856 = vadd.f32 %v4429, %v4823
    %v4857 = vadd.f32 %v4430, %v4827
    %v4858 = vadd.f32 %v4431, %v4829
    %v4859 = vadd.f32 %v4432, %v4833
    %v4860 = vadd.f32 %v4433, %v4835
    %v4861 = vadd.f32 %v4434, %v4839
    %v4862 = vadd.f32 %v4435, %v4841
    %s4863 = scalar_lea.vmem [#allocation15], 1792
    %v4864 = vld [vmem:[%s4863] sm:$0xff]
    %v4865 = vld [vmem:[%s4863 + $0x8] sm:$0xff]
    %v4866 = vld [vmem:[%s4863 + $0x10] sm:$0xff]
    %v4867 = vld [vmem:[%s4863 + $0x18] sm:$0xff]
    %v4868 = vld [vmem:[%s4863 + $0x20] sm:$0xff]
    %v4869 = vld [vmem:[%s4863 + $0x28] sm:$0xff]
    %v4870 = vld [vmem:[%s4863 + $0x30] sm:$0xff]
    %v4871 = vld [vmem:[%s4863 + $0x38] sm:$0xff]
    %v4872 = vld [vmem:[%s4863 + $0x40] sm:$0xff]
    %v4873 = vld [vmem:[%s4863 + $0x48] sm:$0xff]
    %v4874 = vld [vmem:[%s4863 + $0x50] sm:$0xff]
    %v4875 = vld [vmem:[%s4863 + $0x58] sm:$0xff]
    %v4876 = vld [vmem:[%s4863 + $0x60] sm:$0xff]
    %v4877 = vld [vmem:[%s4863 + $0x68] sm:$0xff]
    %v4878 = vld [vmem:[%s4863 + $0x70] sm:$0xff]
    %v4879 = vld [vmem:[%s4863 + $0x78] sm:$0xff]
    %v4880 = vld [vmem:[%s4863 + $0x80] sm:$0xff]
    %v4881 = vld [vmem:[%s4863 + $0x88] sm:$0xff]
    %v4882 = vld [vmem:[%s4863 + $0x90] sm:$0xff]
    %v4883 = vld [vmem:[%s4863 + $0x98] sm:$0xff]
    %v4884 = vld [vmem:[%s4863 + $0xa0] sm:$0xff]
    %v4885 = vld [vmem:[%s4863 + $0xa8] sm:$0xff]
    %v4886 = vld [vmem:[%s4863 + $0xb0] sm:$0xff]
    %v4887 = vld [vmem:[%s4863 + $0xb8] sm:$0xff]
    %v4888 = vld [vmem:[%s4863 + $0xc0] sm:$0xff]
    %v4889 = vld [vmem:[%s4863 + $0xc8] sm:$0xff]
    %v4890 = vld [vmem:[%s4863 + $0xd0] sm:$0xff]
    %v4891 = vld [vmem:[%s4863 + $0xd8] sm:$0xff]
    %v4892 = vld [vmem:[%s4863 + $0xe0] sm:$0xff]
    %v4893 = vld [vmem:[%s4863 + $0xe8] sm:$0xff]
    %v4894 = vld [vmem:[%s4863 + $0xf0] sm:$0xff]
    %v4895 = vld [vmem:[%s4863 + $0xf8] sm:$0xff]
    %v4896 = vld [vmem:[%s4863 + $0x100] sm:$0xff]
    %v4897 = vld [vmem:[%s4863 + $0x108] sm:$0xff]
    %v4898 = vld [vmem:[%s4863 + $0x110] sm:$0xff]
    %v4899 = vld [vmem:[%s4863 + $0x118] sm:$0xff]
    %v4900 = vld [vmem:[%s4863 + $0x120] sm:$0xff]
    %v4901 = vld [vmem:[%s4863 + $0x128] sm:$0xff]
    %v4902 = vld [vmem:[%s4863 + $0x130] sm:$0xff]
    %v4903 = vld [vmem:[%s4863 + $0x138] sm:$0xff]
    %v4904 = vld [vmem:[%s4863 + $0x140] sm:$0xff]
    %v4905 = vld [vmem:[%s4863 + $0x148] sm:$0xff]
    %v4906 = vld [vmem:[%s4863 + $0x150] sm:$0xff]
    %v4907 = vld [vmem:[%s4863 + $0x158] sm:$0xff]
    %v4908 = vld [vmem:[%s4863 + $0x160] sm:$0xff]
    %v4909 = vld [vmem:[%s4863 + $0x168] sm:$0xff]
    %v4910 = vld [vmem:[%s4863 + $0x170] sm:$0xff]
    %v4911 = vld [vmem:[%s4863 + $0x178] sm:$0xff]
    %v4912 = vld [vmem:[%s4863 + $0x180] sm:$0xff]
    %v4913 = vld [vmem:[%s4863 + $0x188] sm:$0xff]
    %v4914 = vld [vmem:[%s4863 + $0x190] sm:$0xff]
    %v4915 = vld [vmem:[%s4863 + $0x198] sm:$0xff]
    %v4916 = vld [vmem:[%s4863 + $0x1a0] sm:$0xff]
    %v4917 = vld [vmem:[%s4863 + $0x1a8] sm:$0xff]
    %v4918 = vld [vmem:[%s4863 + $0x1b0] sm:$0xff]
    %v4919 = vld [vmem:[%s4863 + $0x1b8] sm:$0xff]
    %4920 = vmatprep.subr.mxu0 %v4865
    %4921 = vmatpush1.msra.mxu0 %v4864
    %4922 = vmatprep.subr.mxu0 %v4867
    %4923 = vmatpush1.msra.mxu0 %v4866
    %4924 = vmatprep.subr.mxu0 %v4869
    %4925 = vmatpush1.msra.mxu0 %v4868
    %4926 = vmatprep.subr.mxu0 %v4871
    %4927 = vmatpush1.msra.mxu0 %v4870
    %4928 = vmatprep.subr.mxu0 %v4873
    %4929 = vmatpush1.msra.mxu0 %v4872
    %4930 = vmatprep.subr.mxu0 %v4875
    %4931 = vmatpush1.msra.mxu0 %v4874
    %4932 = vmatprep.subr.mxu0 %v4877
    %4933 = vmatpush1.msra.mxu0 %v4876
    %4934 = vmatprep.subr.mxu0 %v4879
    %4935 = vmatpush1.msra.mxu0 %v4878
    %4936 = vmatprep.subr.mxu0 %v4881
    %4937 = vmatpush1.msra.mxu0 %v4880
    %4938 = vmatprep.subr.mxu0 %v4883
    %4939 = vmatpush1.msra.mxu0 %v4882
    %4940 = vmatprep.subr.mxu0 %v4885
    %4941 = vmatpush1.msra.mxu0 %v4884
    %4942 = vmatprep.subr.mxu0 %v4887
    %4943 = vmatpush1.msra.mxu0 %v4886
    %4944 = vmatprep.subr.mxu0 %v4889
    %4945 = vmatpush1.msra.mxu0 %v4888
    %4946 = vmatprep.subr.mxu0 %v4891
    %4947 = vmatpush1.msra.mxu0 %v4890
    %4948 = vmatprep.subr.mxu0 %v4893
    %4949 = vmatpush1.msra.mxu0 %v4892
    %4950 = vmatprep.subr.mxu0 %v4895
    %4951 = vmatpush1.msra.mxu0 %v4894
    %4952 = vmatprep.subr.mxu0 %v4897
    %4953 = vmatpush1.msra.mxu0 %v4896
    %4954 = vmatprep.subr.mxu0 %v4899
    %4955 = vmatpush1.msra.mxu0 %v4898
    %4956 = vmatprep.subr.mxu0 %v4901
    %4957 = vmatpush1.msra.mxu0 %v4900
    %4958 = vmatprep.subr.mxu0 %v4903
    %4959 = vmatpush1.msra.mxu0 %v4902
    %4960 = vmatprep.subr.mxu0 %v4905
    %4961 = vmatpush1.msra.mxu0 %v4904
    %4962 = vmatprep.subr.mxu0 %v4907
    %4963 = vmatpush1.msra.mxu0 %v4906
    %4964 = vmatprep.subr.mxu0 %v4909
    %4965 = vmatpush1.msra.mxu0 %v4908
    %4966 = vmatprep.subr.mxu0 %v4911
    %4967 = vmatpush1.msra.mxu0 %v4910
    %4968 = vmatprep.subr.mxu0 %v4913
    %4969 = vmatpush1.msra.mxu0 %v4912
    %4970 = vmatprep.subr.mxu0 %v4915
    %4971 = vmatpush1.msra.mxu0 %v4914
    %4972 = vmatprep.subr.mxu0 %v4917
    %4973 = vmatpush1.msra.mxu0 %v4916
    %4974 = vmatprep.subr.mxu0 %v4919
    %4975 = vmatpush1.msra.mxu0 %v4918
    %4976 = vmatprep.subr.mxu0 0.0
    %4977 = vmatpush1.msra.mxu0 0.0
    %4978 = vmatprep.subr.mxu0 0.0
    %4979 = vmatpush1.msra.mxu0 0.0
    %4980 = vmatprep.subr.mxu0 0.0
    %4981 = vmatpush1.msra.mxu0 0.0
    %4982 = vmatprep.subr.mxu0 0.0
    %4983 = vmatpush1.msra.mxu0 0.0
    %4984 = vmatprep.mubr.f32.mxu0 %v4697
    %4985 = vmatmul.mubr.f32.gmra.mrb[0].mxu0 %v3150
    %v4986 = vpop.f32.mrb[0].mxu0
    %v4987 = vadd.f32 0.0, %v4986
    %v4988 = vpop.f32.mrb[0].mxu0
    %v4989 = vadd.f32 0.0, %v4988
    %4990 = vmatprep.mubr.f32.mxu0 %v4699
    %4991 = vmatmul.mubr.f32.gmra.mrb[0].mxu0 %v3152
    %v4992 = vpop.f32.mrb[0].mxu0
    %v4993 = vadd.f32 0.0, %v4992
    %v4994 = vpop.f32.mrb[0].mxu0
    %v4995 = vadd.f32 0.0, %v4994
    %4996 = vmatprep.mubr.f32.mxu0 %v4701
    %4997 = vmatmul.mubr.f32.gmra.mrb[0].mxu0 %v3154
    %v4998 = vpop.f32.mrb[0].mxu0
    %v4999 = vadd.f32 0.0, %v4998
    %v5000 = vpop.f32.mrb[0].mxu0
    %v5001 = vadd.f32 0.0, %v5000
    %5002 = vmatprep.mubr.f32.mxu0 %v4703
    %5003 = vmatmul.mubr.f32.gmra.mrb[0].mxu0 %v3156
    %v5004 = vpop.f32.mrb[0].mxu0
    %v5005 = vadd.f32 0.0, %v5004
    %v5006 = vpop.f32.mrb[0].mxu0
    %v5007 = vadd.f32 0.0, %v5006
    %5008 = vmatprep.mubr.f32.mxu0 %v4705
    %5009 = vmatmul.mubr.f32.gmra.mrb[0].mxu0 %v3158
    %v5010 = vpop.f32.mrb[0].mxu0
    %v5011 = vadd.f32 0.0, %v5010
    %v5012 = vpop.f32.mrb[0].mxu0
    %v5013 = vadd.f32 0.0, %v5012
    %5014 = vmatprep.mubr.f32.mxu0 %v4707
    %5015 = vmatmul.mubr.f32.gmra.mrb[0].mxu0 %v3160
    %v5016 = vpop.f32.mrb[0].mxu0
    %v5017 = vadd.f32 0.0, %v5016
    %v5018 = vpop.f32.mrb[0].mxu0
    %v5019 = vadd.f32 0.0, %v5018
    %5020 = vmatprep.mubr.f32.mxu0 %v4709
    %5021 = vmatmul.mubr.f32.gmra.mrb[0].mxu0 %v3162
    %v5022 = vpop.f32.mrb[0].mxu0
    %v5023 = vadd.f32 0.0, %v5022
    %v5024 = vpop.f32.mrb[0].mxu0
    %v5025 = vadd.f32 0.0, %v5024
    %5026 = vmatprep.mubr.f32.mxu0 %v4711
    %5027 = vmatmul.mubr.f32.gmra.mrb[0].mxu0 %v3164
    %v5028 = vpop.f32.mrb[0].mxu0
    %v5029 = vadd.f32 0.0, %v5028
    %v5030 = vpop.f32.mrb[0].mxu0
    %v5031 = vadd.f32 0.0, %v5030
    %5032 = vmatprep.mubr.f32.mxu0 %v4713
    %5033 = vmatmul.mubr.f32.gmra.mrb[0].mxu0 %v3166
    %v5034 = vpop.f32.mrb[0].mxu0
    %v5035 = vadd.f32 0.0, %v5034
    %v5036 = vpop.f32.mrb[0].mxu0
    %v5037 = vadd.f32 0.0, %v5036
    %5038 = vmatprep.mubr.f32.mxu0 %v4716
    %5039 = vmatmul.mubr.f32.gmra.mrb[0].mxu0 %v4638
    %v5040 = vpop.f32.mrb[0].mxu0
    %v5041 = vadd.f32 0.0, %v5040
    %v5042 = vpop.f32.mrb[0].mxu0
    %v5043 = vadd.f32 0.0, %v5042
    %5044 = vdwg.mxu0
    %v5045 = vadd.f32 %v4618, %v4987
    %v5046 = vadd.f32 %v4619, %v4989
    %v5047 = vadd.f32 %v4620, %v4993
    %v5048 = vadd.f32 %v4621, %v4995
    %v5049 = vadd.f32 %v4622, %v4999
    %v5050 = vadd.f32 %v4623, %v5001
    %v5051 = vadd.f32 %v4624, %v5005
    %v5052 = vadd.f32 %v4625, %v5007
    %v5053 = vadd.f32 %v4626, %v5011
    %v5054 = vadd.f32 %v4627, %v5013
    %v5055 = vadd.f32 %v4628, %v5017
    %v5056 = vadd.f32 %v4629, %v5019
    %v5057 = vadd.f32 %v4630, %v5023
    %v5058 = vadd.f32 %v4631, %v5025
    %v5059 = vadd.f32 %v4632, %v5029
    %v5060 = vadd.f32 %v4633, %v5031
    %v5061 = vadd.f32 %v4634, %v5035
    %v5062 = vadd.f32 %v4635, %v5037
    %v5063 = vadd.f32 %v4636, %v5041
    %v5064 = vadd.f32 %v4637, %v5043
    %v5065 = vld [vmem:[%s14] sm:$0xff]
    %v5066 = vld [vmem:[%s14 + $0x8] sm:$0xff]
    %v5067 = vld [vmem:[%s14 + $0x10] sm:$0xff]
    %v5068 = vld [vmem:[%s14 + $0x18] sm:$0xff]
    %v5069 = vld [vmem:[%s14 + $0x20] sm:$0xff]
    %v5070 = vld [vmem:[%s14 + $0x28] sm:$0xff]
    %v5071 = vld [vmem:[%s14 + $0x30] sm:$0xff]
    %v5072 = vld [vmem:[%s14 + $0x38] sm:$0xff]
    %v5073 = vld [vmem:[%s14 + $0x40] sm:$0xff]
    %v5074 = vld [vmem:[%s14 + $0x48] sm:$0xff]
    %v5075 = vadd.f32 %v4843, %v5045
    %v5076 = vadd.f32 %v4844, %v5046
    %v5077 = vadd.f32 %v4845, %v5047
    %v5078 = vadd.f32 %v4846, %v5048
    %v5079 = vadd.f32 %v4847, %v5049
    %v5080 = vadd.f32 %v4848, %v5050
    %v5081 = vadd.f32 %v4849, %v5051
    %v5082 = vadd.f32 %v4850, %v5052
    %v5083 = vadd.f32 %v4851, %v5053
    %v5084 = vadd.f32 %v4852, %v5054
    %v5085 = vadd.f32 %v4853, %v5055
    %v5086 = vadd.f32 %v4854, %v5056
    %v5087 = vadd.f32 %v4855, %v5057
    %v5088 = vadd.f32 %v4856, %v5058
    %v5089 = vadd.f32 %v4857, %v5059
    %v5090 = vadd.f32 %v4858, %v5060
    %v5091 = vadd.f32 %v4859, %v5061
    %v5092 = vadd.f32 %v4860, %v5062
    %v5093 = vadd.f32 %v4861, %v5063
    %v5094 = vadd.f32 %v4862, %v5064
    %5096 = vset.pattern.permute.xlu0 0
    %5097 = vperm.xlu0 %5096, %v5065
    %v5098 = vpop.permute.xlu0 %5097
    %5101 = vset.pattern.permute.xlu0 0
    %5102 = vperm.xlu0 %5101, %v5066
    %v5103 = vpop.permute.xlu0 %5102
    %5106 = vset.pattern.permute.xlu0 0
    %5107 = vperm.xlu0 %5106, %v5067
    %v5108 = vpop.permute.xlu0 %5107
    %5111 = vset.pattern.permute.xlu0 0
    %5112 = vperm.xlu0 %5111, %v5068
    %v5113 = vpop.permute.xlu0 %5112
    %5116 = vset.pattern.permute.xlu0 0
    %5117 = vperm.xlu0 %5116, %v5069
    %v5118 = vpop.permute.xlu0 %5117
    %5121 = vset.pattern.permute.xlu0 0
    %5122 = vperm.xlu0 %5121, %v5070
    %v5123 = vpop.permute.xlu0 %5122
    %5126 = vset.pattern.permute.xlu0 0
    %5127 = vperm.xlu0 %5126, %v5071
    %v5128 = vpop.permute.xlu0 %5127
    %5131 = vset.pattern.permute.xlu0 0
    %5132 = vperm.xlu0 %5131, %v5072
    %v5133 = vpop.permute.xlu0 %5132
    %5136 = vset.pattern.permute.xlu0 0
    %5137 = vperm.xlu0 %5136, %v5073
    %v5138 = vpop.permute.xlu0 %5137
    %5141 = vset.pattern.permute.xlu0 0
    %5142 = vperm.xlu0 %5141, %v5074
    %v5143 = vpop.permute.xlu0 %5142
    %v5145 = vmul.f32 %v5075, %v5098
    %v5146 = vmul.f32 %v5076, %v5098
    %v5147 = vmul.f32 %v5077, %v5103
    %v5148 = vmul.f32 %v5078, %v5103
    %v5149 = vmul.f32 %v5079, %v5108
    %v5150 = vmul.f32 %v5080, %v5108
    %v5151 = vmul.f32 %v5081, %v5113
    %v5152 = vmul.f32 %v5082, %v5113
    %v5153 = vmul.f32 %v5083, %v5118
    %v5154 = vmul.f32 %v5084, %v5118
    %v5155 = vmul.f32 %v5085, %v5123
    %v5156 = vmul.f32 %v5086, %v5123
    %v5157 = vmul.f32 %v5087, %v5128
    %v5158 = vmul.f32 %v5088, %v5128
    %v5159 = vmul.f32 %v5089, %v5133
    %v5160 = vmul.f32 %v5090, %v5133
    %v5161 = vmul.f32 %v5091, %v5138
    %v5162 = vmul.f32 %v5092, %v5138
    %v5163 = vmul.f32 %v5093, %v5143
    %v5164 = vmul.f32 %v5094, %v5143
    %v5165 = vadd.f32 %v5145, %v5147
    %v5166 = vadd.f32 %v5165, %v5149
    %v5167 = vadd.f32 %v5166, %v5151
    %v5168 = vadd.f32 %v5167, %v5153
    %v5169 = vadd.f32 %v5168, %v5155
    %v5170 = vadd.f32 %v5169, %v5157
    %v5171 = vadd.f32 %v5170, %v5159
    %v5172 = vadd.f32 %v5171, %v5161
    %v5173 = vadd.f32 %v5172, %v5163
    %v5174 = vrot.slane %v5173, 4
    %v5175 = vadd.f32 %v5173, %v5174
    %v5176 = vrot.slane %v5175, 2
    %v5177 = vadd.f32 %v5175, %v5176
    %v5178 = vrot.slane %v5177, 1
    %v5179 = vadd.f32 %v5177, %v5178
    %v5180 = vsel %vm1944, %v5146, 0.0
    %v5181 = vsel %vm1944, %v5148, 0.0
    %v5182 = vadd.f32 %v5180, %v5181
    %v5183 = vsel %vm1944, %v5150, 0.0
    %v5184 = vadd.f32 %v5182, %v5183
    %v5185 = vsel %vm1944, %v5152, 0.0
    %v5186 = vadd.f32 %v5184, %v5185
    %v5187 = vsel %vm1944, %v5154, 0.0
    %v5188 = vadd.f32 %v5186, %v5187
    %v5189 = vsel %vm1944, %v5156, 0.0
    %v5190 = vadd.f32 %v5188, %v5189
    %v5191 = vsel %vm1944, %v5158, 0.0
    %v5192 = vadd.f32 %v5190, %v5191
    %v5193 = vsel %vm1944, %v5160, 0.0
    %v5194 = vadd.f32 %v5192, %v5193
    %v5195 = vsel %vm1944, %v5162, 0.0
    %v5196 = vadd.f32 %v5194, %v5195
    %v5197 = vsel %vm1944, %v5164, 0.0
    %v5198 = vadd.f32 %v5196, %v5197
    %v5199 = vrot.slane %v5198, 4
    %v5200 = vadd.f32 %v5198, %v5199
    %v5201 = vrot.slane %v5200, 2
    %v5202 = vadd.f32 %v5200, %v5201
    %v5203 = vrot.slane %v5202, 1
    %v5204 = vadd.f32 %v5202, %v5203
    %v5205 = vmul.f32 %v4843, %v4843
    %v5206 = vmul.f32 %v4844, %v4844
    %v5207 = vmul.f32 %v4845, %v4845
    %v5208 = vmul.f32 %v4846, %v4846
    %v5209 = vmul.f32 %v4847, %v4847
    %v5210 = vmul.f32 %v4848, %v4848
    %v5211 = vmul.f32 %v4849, %v4849
    %v5212 = vmul.f32 %v4850, %v4850
    %v5213 = vmul.f32 %v4851, %v4851
    %v5214 = vmul.f32 %v4852, %v4852
    %v5215 = vmul.f32 %v4853, %v4853
    %v5216 = vmul.f32 %v4854, %v4854
    %v5217 = vmul.f32 %v4855, %v4855
    %v5218 = vmul.f32 %v4856, %v4856
    %v5219 = vmul.f32 %v4857, %v4857
    %v5220 = vmul.f32 %v4858, %v4858
    %v5221 = vmul.f32 %v4859, %v4859
    %v5222 = vmul.f32 %v4860, %v4860
    %v5223 = vmul.f32 %v4861, %v4861
    %v5224 = vmul.f32 %v4862, %v4862
    %v5225 = vmul.f32 %v5045, %v5045
    %v5226 = vmul.f32 %v5046, %v5046
    %v5227 = vmul.f32 %v5047, %v5047
    %v5228 = vmul.f32 %v5048, %v5048
    %v5229 = vmul.f32 %v5049, %v5049
    %v5230 = vmul.f32 %v5050, %v5050
    %v5231 = vmul.f32 %v5051, %v5051
    %v5232 = vmul.f32 %v5052, %v5052
    %v5233 = vmul.f32 %v5053, %v5053
    %v5234 = vmul.f32 %v5054, %v5054
    %v5235 = vmul.f32 %v5055, %v5055
    %v5236 = vmul.f32 %v5056, %v5056
    %v5237 = vmul.f32 %v5057, %v5057
    %v5238 = vmul.f32 %v5058, %v5058
    %v5239 = vmul.f32 %v5059, %v5059
    %v5240 = vmul.f32 %v5060, %v5060
    %v5241 = vmul.f32 %v5061, %v5061
    %v5242 = vmul.f32 %v5062, %v5062
    %v5243 = vmul.f32 %v5063, %v5063
    %v5244 = vmul.f32 %v5064, %v5064
    %v5245 = vadd.f32 %v5205, %v5225
    %v5246 = vadd.f32 %v5206, %v5226
    %v5247 = vadd.f32 %v5207, %v5227
    %v5248 = vadd.f32 %v5208, %v5228
    %v5249 = vadd.f32 %v5209, %v5229
    %v5250 = vadd.f32 %v5210, %v5230
    %v5251 = vadd.f32 %v5211, %v5231
    %v5252 = vadd.f32 %v5212, %v5232
    %v5253 = vadd.f32 %v5213, %v5233
    %v5254 = vadd.f32 %v5214, %v5234
    %v5255 = vadd.f32 %v5215, %v5235
    %v5256 = vadd.f32 %v5216, %v5236
    %v5257 = vadd.f32 %v5217, %v5237
    %v5258 = vadd.f32 %v5218, %v5238
    %v5259 = vadd.f32 %v5219, %v5239
    %v5260 = vadd.f32 %v5220, %v5240
    %v5261 = vadd.f32 %v5221, %v5241
    %v5262 = vadd.f32 %v5222, %v5242
    %v5263 = vadd.f32 %v5223, %v5243
    %v5264 = vadd.f32 %v5224, %v5244
    %v5265 = vmul.f32 %v5245, %v5098
    %v5266 = vmul.f32 %v5246, %v5098
    %v5267 = vmul.f32 %v5247, %v5103
    %v5268 = vmul.f32 %v5248, %v5103
    %v5269 = vmul.f32 %v5249, %v5108
    %v5270 = vmul.f32 %v5250, %v5108
    %v5271 = vmul.f32 %v5251, %v5113
    %v5272 = vmul.f32 %v5252, %v5113
    %v5273 = vmul.f32 %v5253, %v5118
    %v5274 = vmul.f32 %v5254, %v5118
    %v5275 = vmul.f32 %v5255, %v5123
    %v5276 = vmul.f32 %v5256, %v5123
    %v5277 = vmul.f32 %v5257, %v5128
    %v5278 = vmul.f32 %v5258, %v5128
    %v5279 = vmul.f32 %v5259, %v5133
    %v5280 = vmul.f32 %v5260, %v5133
    %v5281 = vmul.f32 %v5261, %v5138
    %v5282 = vmul.f32 %v5262, %v5138
    %v5283 = vmul.f32 %v5263, %v5143
    %v5284 = vmul.f32 %v5264, %v5143
    %v5285 = vadd.f32 %v5265, %v5267
    %v5286 = vadd.f32 %v5285, %v5269
    %v5287 = vadd.f32 %v5286, %v5271
    %v5288 = vadd.f32 %v5287, %v5273
    %v5289 = vadd.f32 %v5288, %v5275
    %v5290 = vadd.f32 %v5289, %v5277
    %v5291 = vadd.f32 %v5290, %v5279
    %v5292 = vadd.f32 %v5291, %v5281
    %v5293 = vadd.f32 %v5292, %v5283
    %v5294 = vrot.slane %v5293, 4
    %v5295 = vadd.f32 %v5293, %v5294
    %v5296 = vrot.slane %v5295, 2
    %v5297 = vadd.f32 %v5295, %v5296
    %v5298 = vrot.slane %v5297, 1
    %v5299 = vadd.f32 %v5297, %v5298
    %v5300 = vsel %vm1944, %v5266, 0.0
    %v5301 = vsel %vm1944, %v5268, 0.0
    %v5302 = vadd.f32 %v5300, %v5301
    %v5303 = vsel %vm1944, %v5270, 0.0
    %v5304 = vadd.f32 %v5302, %v5303
    %v5305 = vsel %vm1944, %v5272, 0.0
    %v5306 = vadd.f32 %v5304, %v5305
    %v5307 = vsel %vm1944, %v5274, 0.0
    %v5308 = vadd.f32 %v5306, %v5307
    %v5309 = vsel %vm1944, %v5276, 0.0
    %v5310 = vadd.f32 %v5308, %v5309
    %v5311 = vsel %vm1944, %v5278, 0.0
    %v5312 = vadd.f32 %v5310, %v5311
    %v5313 = vsel %vm1944, %v5280, 0.0
    %v5314 = vadd.f32 %v5312, %v5313
    %v5315 = vsel %vm1944, %v5282, 0.0
    %v5316 = vadd.f32 %v5314, %v5315
    %v5317 = vsel %vm1944, %v5284, 0.0
    %v5318 = vadd.f32 %v5316, %v5317
    %v5319 = vrot.slane %v5318, 4
    %v5320 = vadd.f32 %v5318, %v5319
    %v5321 = vrot.slane %v5320, 2
    %v5322 = vadd.f32 %v5320, %v5321
    %v5323 = vrot.slane %v5322, 1
    %v5324 = vadd.f32 %v5322, %v5323
    %v5325 = vld [vmem:[%s15] sm:$0xff]
    %v5326 = vld [vmem:[%s15 + $0x8] sm:$0xff]
    %v5327 = vld [vmem:[%s15 + $0x10] sm:$0xff]
    %v5328 = vld [vmem:[%s15 + $0x18] sm:$0xff]
    %v5329 = vld [vmem:[%s15 + $0x20] sm:$0xff]
    %v5330 = vld [vmem:[%s15 + $0x28] sm:$0xff]
    %v5331 = vld [vmem:[%s15 + $0x30] sm:$0xff]
    %v5332 = vld [vmem:[%s15 + $0x38] sm:$0xff]
    %v5333 = vld [vmem:[%s15 + $0x40] sm:$0xff]
    %v5334 = vld [vmem:[%s15 + $0x48] sm:$0xff]
    %v5335 = vld [vmem:[%s15 + $0x50] sm:$0xff]
    %v5336 = vld [vmem:[%s15 + $0x58] sm:$0xff]
    %v5337 = vld [vmem:[%s15 + $0x60] sm:$0xff]
    %v5338 = vld [vmem:[%s15 + $0x68] sm:$0xff]
    %v5339 = vld [vmem:[%s15 + $0x70] sm:$0xff]
    %v5340 = vld [vmem:[%s15 + $0x78] sm:$0xff]
    %v5341 = vld [vmem:[%s15 + $0x80] sm:$0xff]
    %v5342 = vld [vmem:[%s15 + $0x88] sm:$0xff]
    %v5343 = vld [vmem:[%s15 + $0x90] sm:$0xff]
    %v5344 = vld [vmem:[%s15 + $0x98] sm:$0xff]
    %v5345 = vld [vmem:[%s15 + $0xa0] sm:$0xff]
    %v5346 = vld [vmem:[%s15 + $0xa8] sm:$0xff]
    %v5347 = vld [vmem:[%s15 + $0xb0] sm:$0xff]
    %v5348 = vld [vmem:[%s15 + $0xb8] sm:$0xff]
    %v5349 = vld [vmem:[%s15 + $0xc0] sm:$0xff]
    %v5350 = vld [vmem:[%s15 + $0xc8] sm:$0xff]
    %v5351 = vld [vmem:[%s15 + $0xd0] sm:$0xff]
    %v5352 = vld [vmem:[%s15 + $0xd8] sm:$0xff]
    %v5354 = vsel %vm1944, %v5204, 0
    %5356 = vmatprep.subr.mxu0 0.0
    %5357 = vmatpush1.msra.mxu0 %v5325
    %5358 = vmatprep.subr.mxu0 0.0
    %5359 = vmatpush1.msra.mxu0 %v5326
    %5360 = vmatprep.subr.mxu0 0.0
    %5361 = vmatpush1.msra.mxu0 %v5327
    %5362 = vmatprep.subr.mxu0 0.0
    %5363 = vmatpush1.msra.mxu0 %v5328
    %5364 = vmatprep.subr.mxu0 0.0
    %5365 = vmatpush1.msra.mxu0 %v5329
    %5366 = vmatprep.subr.mxu0 0.0
    %5367 = vmatpush1.msra.mxu0 %v5330
    %5368 = vmatprep.subr.mxu0 0.0
    %5369 = vmatpush1.msra.mxu0 %v5331
    %5370 = vmatprep.subr.mxu0 0.0
    %5371 = vmatpush1.msra.mxu0 %v5332
    %5372 = vmatprep.subr.mxu0 0.0
    %5373 = vmatpush1.msra.mxu0 %v5333
    %5374 = vmatprep.subr.mxu0 0.0
    %5375 = vmatpush1.msra.mxu0 %v5334
    %5376 = vmatprep.subr.mxu0 0.0
    %5377 = vmatpush1.msra.mxu0 %v5335
    %5378 = vmatprep.subr.mxu0 0.0
    %5379 = vmatpush1.msra.mxu0 %v5336
    %5380 = vmatprep.subr.mxu0 0.0
    %5381 = vmatpush1.msra.mxu0 %v5337
    %5382 = vmatprep.subr.mxu0 0.0
    %5383 = vmatpush1.msra.mxu0 %v5338
    %5384 = vmatprep.subr.mxu0 0.0
    %5385 = vmatpush1.msra.mxu0 %v5339
    %5386 = vmatprep.subr.mxu0 0.0
    %5387 = vmatpush1.msra.mxu0 %v5340
    %5388 = vmatprep.subr.mxu0 0.0
    %5389 = vmatpush1.msra.mxu0 %v5341
    %5390 = vmatprep.subr.mxu0 0.0
    %5391 = vmatpush1.msra.mxu0 %v5342
    %5392 = vmatprep.subr.mxu0 0.0
    %5393 = vmatpush1.msra.mxu0 %v5343
    %5394 = vmatprep.subr.mxu0 0.0
    %5395 = vmatpush1.msra.mxu0 %v5344
    %5396 = vmatprep.subr.mxu0 0.0
    %5397 = vmatpush1.msra.mxu0 %v5345
    %5398 = vmatprep.subr.mxu0 0.0
    %5399 = vmatpush1.msra.mxu0 %v5346
    %5400 = vmatprep.subr.mxu0 0.0
    %5401 = vmatpush1.msra.mxu0 %v5347
    %5402 = vmatprep.subr.mxu0 0.0
    %5403 = vmatpush1.msra.mxu0 %v5348
    %5404 = vmatprep.subr.mxu0 0.0
    %5405 = vmatpush1.msra.mxu0 %v5349
    %5406 = vmatprep.subr.mxu0 0.0
    %5407 = vmatpush1.msra.mxu0 %v5350
    %5408 = vmatprep.subr.mxu0 0.0
    %5409 = vmatpush1.msra.mxu0 %v5351
    %5410 = vmatprep.subr.mxu0 0.0
    %5411 = vmatpush1.msra.mxu0 %v5352
    %5412 = vmatprep.subr.mxu0 0.0
    %5413 = vmatpush1.msra.mxu0 0.0
    %5414 = vmatprep.subr.mxu0 0.0
    %5415 = vmatpush1.msra.mxu0 0.0
    %5416 = vmatprep.subr.mxu0 0.0
    %5417 = vmatpush1.msra.mxu0 0.0
    %5418 = vmatprep.subr.mxu0 0.0
    %5419 = vmatpush1.msra.mxu0 0.0
    %5420 = vmatprep.mubr.f32.mxu0 %v5354
    %5421 = vmatmul.mubr.f32.gmra.mrb[0].mxu0 %v5179
    %v5422 = vpop.f32.mrb[0].mxu0
    %v5423 = vadd.f32 0.0, %v5422
    %v5424 = vpop.f32.mrb[0].mxu0
    %5425 = vdwg.mxu0
    %v5427 = vsel %vm1944, %v5324, 0
    %5429 = vmatprep.subr.mxu0 0.0
    %5430 = vmatpush1.msra.mxu0 %v5325
    %5431 = vmatprep.subr.mxu0 0.0
    %5432 = vmatpush1.msra.mxu0 %v5326
    %5433 = vmatprep.subr.mxu0 0.0
    %5434 = vmatpush1.msra.mxu0 %v5327
    %5435 = vmatprep.subr.mxu0 0.0
    %5436 = vmatpush1.msra.mxu0 %v5328
    %5437 = vmatprep.subr.mxu0 0.0
    %5438 = vmatpush1.msra.mxu0 %v5329
    %5439 = vmatprep.subr.mxu0 0.0
    %5440 = vmatpush1.msra.mxu0 %v5330
    %5441 = vmatprep.subr.mxu0 0.0
    %5442 = vmatpush1.msra.mxu0 %v5331
    %5443 = vmatprep.subr.mxu0 0.0
    %5444 = vmatpush1.msra.mxu0 %v5332
    %5445 = vmatprep.subr.mxu0 0.0
    %5446 = vmatpush1.msra.mxu0 %v5333
    %5447 = vmatprep.subr.mxu0 0.0
    %5448 = vmatpush1.msra.mxu0 %v5334
    %5449 = vmatprep.subr.mxu0 0.0
    %5450 = vmatpush1.msra.mxu0 %v5335
    %5451 = vmatprep.subr.mxu0 0.0
    %5452 = vmatpush1.msra.mxu0 %v5336
    %5453 = vmatprep.subr.mxu0 0.0
    %5454 = vmatpush1.msra.mxu0 %v5337
    %5455 = vmatprep.subr.mxu0 0.0
    %5456 = vmatpush1.msra.mxu0 %v5338
    %5457 = vmatprep.subr.mxu0 0.0
    %5458 = vmatpush1.msra.mxu0 %v5339
    %5459 = vmatprep.subr.mxu0 0.0
    %5460 = vmatpush1.msra.mxu0 %v5340
    %5461 = vmatprep.subr.mxu0 0.0
    %5462 = vmatpush1.msra.mxu0 %v5341
    %5463 = vmatprep.subr.mxu0 0.0
    %5464 = vmatpush1.msra.mxu0 %v5342
    %5465 = vmatprep.subr.mxu0 0.0
    %5466 = vmatpush1.msra.mxu0 %v5343
    %5467 = vmatprep.subr.mxu0 0.0
    %5468 = vmatpush1.msra.mxu0 %v5344
    %5469 = vmatprep.subr.mxu0 0.0
    %5470 = vmatpush1.msra.mxu0 %v5345
    %5471 = vmatprep.subr.mxu0 0.0
    %5472 = vmatpush1.msra.mxu0 %v5346
    %5473 = vmatprep.subr.mxu0 0.0
    %5474 = vmatpush1.msra.mxu0 %v5347
    %5475 = vmatprep.subr.mxu0 0.0
    %5476 = vmatpush1.msra.mxu0 %v5348
    %5477 = vmatprep.subr.mxu0 0.0
    %5478 = vmatpush1.msra.mxu0 %v5349
    %5479 = vmatprep.subr.mxu0 0.0
    %5480 = vmatpush1.msra.mxu0 %v5350
    %5481 = vmatprep.subr.mxu0 0.0
    %5482 = vmatpush1.msra.mxu0 %v5351
    %5483 = vmatprep.subr.mxu0 0.0
    %5484 = vmatpush1.msra.mxu0 %v5352
    %5485 = vmatprep.subr.mxu0 0.0
    %5486 = vmatpush1.msra.mxu0 0.0
    %5487 = vmatprep.subr.mxu0 0.0
    %5488 = vmatpush1.msra.mxu0 0.0
    %5489 = vmatprep.subr.mxu0 0.0
    %5490 = vmatpush1.msra.mxu0 0.0
    %5491 = vmatprep.subr.mxu0 0.0
    %5492 = vmatpush1.msra.mxu0 0.0
    %5493 = vmatprep.mubr.f32.mxu0 %v5427
    %5494 = vmatmul.mubr.f32.gmra.mrb[0].mxu0 %v5299
    %v5495 = vpop.f32.mrb[0].mxu0
    %v5496 = vadd.f32 0.0, %v5495
    %v5497 = vpop.f32.mrb[0].mxu0
    %5498 = vdwg.mxu0
    %v5499 = vrcp.pop 392.0
    %v5500 = vmul.f32 %v5423, %v5499
    %v5501 = vmul.f32 %v5496, %v5499
    %v5502 = vmul.f32 %v5500, %v5500
    %v5503 = vsub.f32 %v5501, %v5502
    %v5504 = vmax.f32 %v5503, 0.0
    %v5505 = vadd.f32 %v5504, 1e-05
    %v5506 = vrsqrt.pop %v5505
    %v5507 = vld [vmem:[#allocation21] sm:$0xff]
    %v5508 = vld [vmem:[#allocation21 + $0x8] sm:$0xff]
    %v5509 = vld [vmem:[#allocation21 + $0x10] sm:$0xff]
    %v5510 = vld [vmem:[#allocation21 + $0x18] sm:$0xff]
    %v5511 = vld [vmem:[#allocation21 + $0x20] sm:$0xff]
    %v5512 = vld [vmem:[#allocation21 + $0x28] sm:$0xff]
    %v5513 = vld [vmem:[#allocation21 + $0x30] sm:$0xff]
    %v5514 = vld [vmem:[#allocation21 + $0x38] sm:$0xff]
    %vm5515 = vcmask 261120
    %v5517 = vsel %vm5515, %v5500, 0
    %5519 = vmatprep.subr.mxu0 %v5508
    %5520 = vmatpush1.msra.mxu0 %v5507
    %5521 = vmatprep.subr.mxu0 %v5510
    %5522 = vmatpush1.msra.mxu0 %v5509
    %5523 = vmatprep.subr.mxu0 %v5512
    %5524 = vmatpush1.msra.mxu0 %v5511
    %5525 = vmatprep.subr.mxu0 %v5514
    %5526 = vmatpush1.msra.mxu0 %v5513
    %5527 = vmatprep.subr.mxu0 0.0
    %5528 = vmatpush1.msra.mxu0 0.0
    %5529 = vmatprep.subr.mxu0 0.0
    %5530 = vmatpush1.msra.mxu0 0.0
    %5531 = vmatprep.subr.mxu0 0.0
    %5532 = vmatpush1.msra.mxu0 0.0
    %5533 = vmatprep.subr.mxu0 0.0
    %5534 = vmatpush1.msra.mxu0 0.0
    %5535 = vmatprep.subr.mxu0 0.0
    %5536 = vmatpush1.msra.mxu0 0.0
    %5537 = vmatprep.subr.mxu0 0.0
    %5538 = vmatpush1.msra.mxu0 0.0
    %5539 = vmatprep.subr.mxu0 0.0
    %5540 = vmatpush1.msra.mxu0 0.0
    %5541 = vmatprep.subr.mxu0 0.0
    %5542 = vmatpush1.msra.mxu0 0.0
    %5543 = vmatprep.subr.mxu0 0.0
    %5544 = vmatpush1.msra.mxu0 0.0
    %5545 = vmatprep.subr.mxu0 0.0
    %5546 = vmatpush1.msra.mxu0 0.0
    %5547 = vmatprep.subr.mxu0 0.0
    %5548 = vmatpush1.msra.mxu0 0.0
    %5549 = vmatprep.subr.mxu0 0.0
    %5550 = vmatpush1.msra.mxu0 0.0
    %5551 = vmatprep.subr.mxu0 0.0
    %5552 = vmatpush1.msra.mxu0 0.0
    %5553 = vmatprep.subr.mxu0 0.0
    %5554 = vmatpush1.msra.mxu0 0.0
    %5555 = vmatprep.subr.mxu0 0.0
    %5556 = vmatpush1.msra.mxu0 0.0
    %5557 = vmatprep.subr.mxu0 0.0
    %5558 = vmatpush1.msra.mxu0 0.0
    %5559 = vmatprep.subr.mxu0 0.0
    %5560 = vmatpush1.msra.mxu0 0.0
    %5561 = vmatprep.subr.mxu0 0.0
    %5562 = vmatpush1.msra.mxu0 0.0
    %5563 = vmatprep.subr.mxu0 0.0
    %5564 = vmatpush1.msra.mxu0 0.0
    %5565 = vmatprep.subr.mxu0 0.0
    %5566 = vmatpush1.msra.mxu0 0.0
    %5567 = vmatprep.subr.mxu0 0.0
    %5568 = vmatpush1.msra.mxu0 0.0
    %5569 = vmatprep.subr.mxu0 0.0
    %5570 = vmatpush1.msra.mxu0 0.0
    %5571 = vmatprep.subr.mxu0 0.0
    %5572 = vmatpush1.msra.mxu0 0.0
    %5573 = vmatprep.subr.mxu0 0.0
    %5574 = vmatpush1.msra.mxu0 0.0
    %5575 = vmatprep.subr.mxu0 0.0
    %5576 = vmatpush1.msra.mxu0 0.0
    %5577 = vmatprep.subr.mxu0 0.0
    %5578 = vmatpush1.msra.mxu0 0.0
    %5579 = vmatprep.subr.mxu0 0.0
    %5580 = vmatpush1.msra.mxu0 0.0
    %5581 = vmatprep.subr.mxu0 0.0
    %5582 = vmatpush1.msra.mxu0 0.0
    %5583 = vmatprep.mubr.f32.mxu0 0.0
    %5584 = vmatmul.mubr.f32.gmra.mrb[0].mxu0 %v5517
    %v5585 = vpop.f32.mrb[0].mxu0
    %v5586 = vadd.f32 0.0, %v5585
    %v5587 = vpop.f32.mrb[0].mxu0
    %v5588 = vadd.f32 0.0, %v5587
    %5589 = vdwg.mxu0
    %v5591 = vsel %vm5515, %v5506, 0
    %5593 = vmatprep.subr.mxu0 %v5508
    %5594 = vmatpush1.msra.mxu0 %v5507
    %5595 = vmatprep.subr.mxu0 %v5510
    %5596 = vmatpush1.msra.mxu0 %v5509
    %5597 = vmatprep.subr.mxu0 %v5512
    %5598 = vmatpush1.msra.mxu0 %v5511
    %5599 = vmatprep.subr.mxu0 %v5514
    %5600 = vmatpush1.msra.mxu0 %v5513
    %5601 = vmatprep.subr.mxu0 0.0
    %5602 = vmatpush1.msra.mxu0 0.0
    %5603 = vmatprep.subr.mxu0 0.0
    %5604 = vmatpush1.msra.mxu0 0.0
    %5605 = vmatprep.subr.mxu0 0.0
    %5606 = vmatpush1.msra.mxu0 0.0
    %5607 = vmatprep.subr.mxu0 0.0
    %5608 = vmatpush1.msra.mxu0 0.0
    %5609 = vmatprep.subr.mxu0 0.0
    %5610 = vmatpush1.msra.mxu0 0.0
    %5611 = vmatprep.subr.mxu0 0.0
    %5612 = vmatpush1.msra.mxu0 0.0
    %5613 = vmatprep.subr.mxu0 0.0
    %5614 = vmatpush1.msra.mxu0 0.0
    %5615 = vmatprep.subr.mxu0 0.0
    %5616 = vmatpush1.msra.mxu0 0.0
    %5617 = vmatprep.subr.mxu0 0.0
    %5618 = vmatpush1.msra.mxu0 0.0
    %5619 = vmatprep.subr.mxu0 0.0
    %5620 = vmatpush1.msra.mxu0 0.0
    %5621 = vmatprep.subr.mxu0 0.0
    %5622 = vmatpush1.msra.mxu0 0.0
    %5623 = vmatprep.subr.mxu0 0.0
    %5624 = vmatpush1.msra.mxu0 0.0
    %5625 = vmatprep.subr.mxu0 0.0
    %5626 = vmatpush1.msra.mxu0 0.0
    %5627 = vmatprep.subr.mxu0 0.0
    %5628 = vmatpush1.msra.mxu0 0.0
    %5629 = vmatprep.subr.mxu0 0.0
    %5630 = vmatpush1.msra.mxu0 0.0
    %5631 = vmatprep.subr.mxu0 0.0
    %5632 = vmatpush1.msra.mxu0 0.0
    %5633 = vmatprep.subr.mxu0 0.0
    %5634 = vmatpush1.msra.mxu0 0.0
    %5635 = vmatprep.subr.mxu0 0.0
    %5636 = vmatpush1.msra.mxu0 0.0
    %5637 = vmatprep.subr.mxu0 0.0
    %5638 = vmatpush1.msra.mxu0 0.0
    %5639 = vmatprep.subr.mxu0 0.0
    %5640 = vmatpush1.msra.mxu0 0.0
    %5641 = vmatprep.subr.mxu0 0.0
    %5642 = vmatpush1.msra.mxu0 0.0
    %5643 = vmatprep.subr.mxu0 0.0
    %5644 = vmatpush1.msra.mxu0 0.0
    %5645 = vmatprep.subr.mxu0 0.0
    %5646 = vmatpush1.msra.mxu0 0.0
    %5647 = vmatprep.subr.mxu0 0.0
    %5648 = vmatpush1.msra.mxu0 0.0
    %5649 = vmatprep.subr.mxu0 0.0
    %5650 = vmatpush1.msra.mxu0 0.0
    %5651 = vmatprep.subr.mxu0 0.0
    %5652 = vmatpush1.msra.mxu0 0.0
    %5653 = vmatprep.subr.mxu0 0.0
    %5654 = vmatpush1.msra.mxu0 0.0
    %5655 = vmatprep.subr.mxu0 0.0
    %5656 = vmatpush1.msra.mxu0 0.0
    %5657 = vmatprep.mubr.f32.mxu0 0.0
    %5658 = vmatmul.mubr.f32.gmra.mrb[0].mxu0 %v5591
    %v5659 = vpop.f32.mrb[0].mxu0
    %v5660 = vadd.f32 0.0, %v5659
    %v5661 = vpop.f32.mrb[0].mxu0
    %v5662 = vadd.f32 0.0, %v5661
    %5663 = vdwg.mxu0
    %v5664 = vld [vmem:[#allocation17] sm:$0x3]
    %v5666 = vlaneseq
    %v5667 = vshrl.u32 %v5666, 7
    %v5668 = vsub.s32 0, %v5667
    %v5669 = vrot.slane %v5664, %v5668
    %v5670 = vlaneseq
    %v5671 = vshrl.u32 %v5670, 7
    %v5672 = vsub.s32 1, %v5671
    %v5673 = vrot.slane %v5664, %v5672
    %v5676 = vmul.f32 %v5660, %v5669
    %v5677 = vmul.f32 %v5662, %v5673
    %v5678 = vld [vmem:[#allocation18] sm:$0x3]
    %v5679 = vmul.f32 %v5586, %v5676
    %v5680 = vmul.f32 %v5588, %v5677
    %v5683 = vcombine.low %v5679, %v5680
    %v5685 = vunpack.c.l.s4 1966171168
    %v5686 = vunpack.c.0.s8 %v5685
    %v5687 = vlaneseq
    %v5688 = vshrl.u32 %v5687, 7
    %v5689 = vsub.s32 %v5686, %v5688
    %v5690 = vrot.slane %v5683, %v5689
    %v5692 = vunpack.c.l.s4 1966171168
    %v5693 = vunpack.c.0.s8 %v5692
    %v5694 = vlaneseq
    %v5695 = vshrl.u32 %v5694, 7
    %v5696 = vsub.s32 %v5693, %v5695
    %v5697 = vrot.slane %v5690, %v5696
    %v5699 = vsub.f32 %v5678, %v5697
    %v5700 = vlaneseq
    %v5701 = vshrl.u32 %v5700, 7
    %v5702 = vsub.s32 0, %v5701
    %v5703 = vrot.slane %v5676, %v5702
    %v5704 = vlaneseq
    %v5705 = vshrl.u32 %v5704, 7
    %v5706 = vsub.s32 0, %v5705
    %v5707 = vrot.slane %v5677, %v5706
    %v5708 = vmul.f32 %v4843, %v5703
    %v5709 = vmul.f32 %v4844, %v5707
    %v5710 = vmul.f32 %v4845, %v5703
    %v5711 = vmul.f32 %v4846, %v5707
    %v5712 = vmul.f32 %v4847, %v5703
    %v5713 = vmul.f32 %v4848, %v5707
    %v5714 = vmul.f32 %v4849, %v5703
    %v5715 = vmul.f32 %v4850, %v5707
    %v5716 = vmul.f32 %v4851, %v5703
    %v5717 = vmul.f32 %v4852, %v5707
    %v5718 = vmul.f32 %v4853, %v5703
    %v5719 = vmul.f32 %v4854, %v5707
    %v5720 = vmul.f32 %v4855, %v5703
    %v5721 = vmul.f32 %v4856, %v5707
    %v5722 = vmul.f32 %v4857, %v5703
    %v5723 = vmul.f32 %v4858, %v5707
    %v5724 = vmul.f32 %v4859, %v5703
    %v5725 = vmul.f32 %v4860, %v5707
    %v5726 = vmul.f32 %v4861, %v5703
    %v5727 = vmul.f32 %v4862, %v5707
    %v5729 = vlaneseq
    %v5730 = vshrl.u32 %v5729, 7
    %v5731 = vsub.s32 0, %v5730
    %v5732 = vrot.slane %v5699, %v5731
    %v5733 = vlaneseq
    %v5734 = vshrl.u32 %v5733, 7
    %v5735 = vsub.s32 1, %v5734
    %v5736 = vrot.slane %v5699, %v5735
    %v5739 = vadd.f32 %v5708, %v5732
    %v5740 = vadd.f32 %v5709, %v5736
    %v5741 = vadd.f32 %v5710, %v5732
    %v5742 = vadd.f32 %v5711, %v5736
    %v5743 = vadd.f32 %v5712, %v5732
    %v5744 = vadd.f32 %v5713, %v5736
    %v5745 = vadd.f32 %v5714, %v5732
    %v5746 = vadd.f32 %v5715, %v5736
    %v5747 = vadd.f32 %v5716, %v5732
    %v5748 = vadd.f32 %v5717, %v5736
    %v5749 = vadd.f32 %v5718, %v5732
    %v5750 = vadd.f32 %v5719, %v5736
    %v5751 = vadd.f32 %v5720, %v5732
    %v5752 = vadd.f32 %v5721, %v5736
    %v5753 = vadd.f32 %v5722, %v5732
    %v5754 = vadd.f32 %v5723, %v5736
    %v5755 = vadd.f32 %v5724, %v5732
    %v5756 = vadd.f32 %v5725, %v5736
    %v5757 = vadd.f32 %v5726, %v5732
    %v5758 = vadd.f32 %v5727, %v5736
    %v5759 = vmax.f32 %v5739, 0.0
    %v5760 = vmax.f32 %v5740, 0.0
    %v5761 = vmax.f32 %v5741, 0.0
    %v5762 = vmax.f32 %v5742, 0.0
    %v5763 = vmax.f32 %v5743, 0.0
    %v5764 = vmax.f32 %v5744, 0.0
    %v5765 = vmax.f32 %v5745, 0.0
    %v5766 = vmax.f32 %v5746, 0.0
    %v5767 = vmax.f32 %v5747, 0.0
    %v5768 = vmax.f32 %v5748, 0.0
    %v5769 = vmax.f32 %v5749, 0.0
    %v5770 = vmax.f32 %v5750, 0.0
    %v5771 = vmax.f32 %v5751, 0.0
    %v5772 = vmax.f32 %v5752, 0.0
    %v5773 = vmax.f32 %v5753, 0.0
    %v5774 = vmax.f32 %v5754, 0.0
    %v5775 = vmax.f32 %v5755, 0.0
    %v5776 = vmax.f32 %v5756, 0.0
    %v5777 = vmax.f32 %v5757, 0.0
    %v5778 = vmax.f32 %v5758, 0.0
    %v5779 = vmul.f32 %v5045, %v5703
    %v5780 = vmul.f32 %v5046, %v5707
    %v5781 = vmul.f32 %v5047, %v5703
    %v5782 = vmul.f32 %v5048, %v5707
    %v5783 = vmul.f32 %v5049, %v5703
    %v5784 = vmul.f32 %v5050, %v5707
    %v5785 = vmul.f32 %v5051, %v5703
    %v5786 = vmul.f32 %v5052, %v5707
    %v5787 = vmul.f32 %v5053, %v5703
    %v5788 = vmul.f32 %v5054, %v5707
    %v5789 = vmul.f32 %v5055, %v5703
    %v5790 = vmul.f32 %v5056, %v5707
    %v5791 = vmul.f32 %v5057, %v5703
    %v5792 = vmul.f32 %v5058, %v5707
    %v5793 = vmul.f32 %v5059, %v5703
    %v5794 = vmul.f32 %v5060, %v5707
    %v5795 = vmul.f32 %v5061, %v5703
    %v5796 = vmul.f32 %v5062, %v5707
    %v5797 = vmul.f32 %v5063, %v5703
    %v5798 = vmul.f32 %v5064, %v5707
    %v5799 = vadd.f32 %v5779, %v5732
    %v5800 = vadd.f32 %v5780, %v5736
    %v5801 = vadd.f32 %v5781, %v5732
    %v5802 = vadd.f32 %v5782, %v5736
    %v5803 = vadd.f32 %v5783, %v5732
    %v5804 = vadd.f32 %v5784, %v5736
    %v5805 = vadd.f32 %v5785, %v5732
    %v5806 = vadd.f32 %v5786, %v5736
    %v5807 = vadd.f32 %v5787, %v5732
    %v5808 = vadd.f32 %v5788, %v5736
    %v5809 = vadd.f32 %v5789, %v5732
    %v5810 = vadd.f32 %v5790, %v5736
    %v5811 = vadd.f32 %v5791, %v5732
    %v5812 = vadd.f32 %v5792, %v5736
    %v5813 = vadd.f32 %v5793, %v5732
    %v5814 = vadd.f32 %v5794, %v5736
    %v5815 = vadd.f32 %v5795, %v5732
    %v5816 = vadd.f32 %v5796, %v5736
    %v5817 = vadd.f32 %v5797, %v5732
    %v5818 = vadd.f32 %v5798, %v5736
    %v5819 = vmax.f32 %v5799, 0.0
    %v5820 = vmax.f32 %v5800, 0.0
    %v5821 = vmax.f32 %v5801, 0.0
    %v5822 = vmax.f32 %v5802, 0.0
    %v5823 = vmax.f32 %v5803, 0.0
    %v5824 = vmax.f32 %v5804, 0.0
    %v5825 = vmax.f32 %v5805, 0.0
    %v5826 = vmax.f32 %v5806, 0.0
    %v5827 = vmax.f32 %v5807, 0.0
    %v5828 = vmax.f32 %v5808, 0.0
    %v5829 = vmax.f32 %v5809, 0.0
    %v5830 = vmax.f32 %v5810, 0.0
    %v5831 = vmax.f32 %v5811, 0.0
    %v5832 = vmax.f32 %v5812, 0.0
    %v5833 = vmax.f32 %v5813, 0.0
    %v5834 = vmax.f32 %v5814, 0.0
    %v5835 = vmax.f32 %v5815, 0.0
    %v5836 = vmax.f32 %v5816, 0.0
    %v5837 = vmax.f32 %v5817, 0.0
    %v5838 = vmax.f32 %v5818, 0.0
    %v5839 = vmax.f32 %v5759, %v5819
    %v5840 = vmax.f32 %v5760, %v5820
    %v5841 = vmax.f32 %v5761, %v5821
    %v5842 = vmax.f32 %v5762, %v5822
    %v5843 = vmax.f32 %v5763, %v5823
    %v5844 = vmax.f32 %v5764, %v5824
    %v5845 = vmax.f32 %v5765, %v5825
    %v5846 = vmax.f32 %v5766, %v5826
    %v5847 = vmax.f32 %v5767, %v5827
    %v5848 = vmax.f32 %v5768, %v5828
    %v5849 = vmax.f32 %v5769, %v5829
    %v5850 = vmax.f32 %v5770, %v5830
    %v5851 = vmax.f32 %v5771, %v5831
    %v5852 = vmax.f32 %v5772, %v5832
    %v5853 = vmax.f32 %v5773, %v5833
    %v5854 = vmax.f32 %v5774, %v5834
    %v5855 = vmax.f32 %v5775, %v5835
    %v5856 = vmax.f32 %v5776, %v5836
    %v5857 = vmax.f32 %v5777, %v5837
    %v5858 = vmax.f32 %v5778, %v5838
    %v5879 = vrot.slane %v5839, 2
    %v5880 = vrot.slane %v5841, 2
    %v5881 = vsel %vm3249, %v5879, %v5880
    %v5882 = vrot.slane %v5840, 2
    %v5883 = vrot.slane %v5842, 2
    %v5884 = vsel %vm3249, %v5882, %v5883
    %v5885 = vrot.slane %v5843, 2
    %v5886 = vsel %vm3249, %v5880, %v5885
    %v5887 = vrot.slane %v5844, 2
    %v5888 = vsel %vm3249, %v5883, %v5887
    %v5889 = vrot.slane %v5845, 2
    %v5890 = vsel %vm3249, %v5885, %v5889
    %v5891 = vrot.slane %v5846, 2
    %v5892 = vsel %vm3249, %v5887, %v5891
    %v5893 = vrot.slane %v5847, 2
    %v5894 = vsel %vm3249, %v5889, %v5893
    %v5895 = vrot.slane %v5848, 2
    %v5896 = vsel %vm3249, %v5891, %v5895
    %v5897 = vrot.slane %v5849, 2
    %v5898 = vrot.slane %v5851, 2
    %v5899 = vsel %vm3249, %v5897, %v5898
    %v5900 = vrot.slane %v5850, 2
    %v5901 = vrot.slane %v5852, 2
    %v5902 = vsel %vm3249, %v5900, %v5901
    %v5903 = vrot.slane %v5853, 2
    %v5904 = vsel %vm3249, %v5898, %v5903
    %v5905 = vrot.slane %v5854, 2
    %v5906 = vsel %vm3249, %v5901, %v5905
    %v5907 = vrot.slane %v5855, 2
    %v5908 = vsel %vm3249, %v5903, %v5907
    %v5909 = vrot.slane %v5856, 2
    %v5910 = vsel %vm3249, %v5905, %v5909
    %v5911 = vrot.slane %v5857, 2
    %v5912 = vsel %vm3249, %v5907, %v5911
    %v5913 = vrot.slane %v5858, 2
    %v5914 = vsel %vm3249, %v5909, %v5913
    %v5931 = vmax.f32 %v5839, %v5881
    %v5932 = vmax.f32 %v5840, %v5884
    %v5933 = vmax.f32 %v5841, %v5886
    %v5934 = vmax.f32 %v5842, %v5888
    %v5935 = vmax.f32 %v5843, %v5890
    %v5936 = vmax.f32 %v5844, %v5892
    %v5937 = vmax.f32 %v5845, %v5894
    %v5938 = vmax.f32 %v5846, %v5896
    %v5939 = vmax.f32 %v5849, %v5899
    %v5940 = vmax.f32 %v5850, %v5902
    %v5941 = vmax.f32 %v5851, %v5904
    %v5942 = vmax.f32 %v5852, %v5906
    %v5943 = vmax.f32 %v5853, %v5908
    %v5944 = vmax.f32 %v5854, %v5910
    %v5945 = vmax.f32 %v5855, %v5912
    %v5946 = vmax.f32 %v5856, %v5914
    %v5947 = vld [vmem:[#allocation24] sm:$0x1]
    %v5948 = vld [vmem:[#allocation23] sm:$0xff]
    %v5949 = vld [vmem:[#allocation23 + $0x8] sm:$0xff]
    %v5950 = vld [vmem:[#allocation23 + $0x10] sm:$0xff]
    %v5951 = vld [vmem:[#allocation23 + $0x18] sm:$0xff]
    %v5952 = vld [vmem:[#allocation23 + $0x20] sm:$0xff]
    %v5953 = vld [vmem:[#allocation23 + $0x28] sm:$0xff]
    %v5954 = vld [vmem:[#allocation23 + $0x30] sm:$0xff]
    %v5955 = vld [vmem:[#allocation23 + $0x38] sm:$0xff]
    %v5956 = vld [vmem:[#allocation23 + $0x40] sm:$0xff]
    %v5957 = vld [vmem:[#allocation23 + $0x48] sm:$0xff]
    %v5958 = vld [vmem:[#allocation23 + $0x50] sm:$0xff]
    %v5959 = vld [vmem:[#allocation23 + $0x58] sm:$0xff]
    %v5960 = vld [vmem:[#allocation23 + $0x60] sm:$0xff]
    %v5961 = vld [vmem:[#allocation23 + $0x68] sm:$0xff]
    %v5962 = vld [vmem:[#allocation23 + $0x70] sm:$0xff]
    %v5963 = vld [vmem:[#allocation23 + $0x78] sm:$0xff]
    %v5964 = vld [vmem:[#allocation23 + $0x80] sm:$0xff]
    %v5965 = vld [vmem:[#allocation23 + $0x88] sm:$0xff]
    %v5966 = vld [vmem:[#allocation23 + $0x90] sm:$0xff]
    %v5967 = vld [vmem:[#allocation23 + $0x98] sm:$0xff]
    %v5968 = vld [vmem:[#allocation23 + $0xa0] sm:$0xff]
    %v5969 = vld [vmem:[#allocation23 + $0xa8] sm:$0xff]
    %v5970 = vld [vmem:[#allocation23 + $0xb0] sm:$0xff]
    %v5971 = vld [vmem:[#allocation23 + $0xb8] sm:$0xff]
    %v5972 = vld [vmem:[#allocation23 + $0xc0] sm:$0xff]
    %v5973 = vld [vmem:[#allocation23 + $0xc8] sm:$0xff]
    %v5974 = vld [vmem:[#allocation23 + $0xd0] sm:$0xff]
    %v5975 = vld [vmem:[#allocation23 + $0xd8] sm:$0xff]
    %v5978 = vrot.slane %v5931, 4
    %v5979 = vrot.slane %v5932, 4
    %v5981 = vsel %vm1944, %v5979, 0
    %5983 = vmatprep.subr.mxu0 0.0
    %5984 = vmatpush1.msra.mxu0 %v5948
    %5985 = vmatprep.subr.mxu0 0.0
    %5986 = vmatpush1.msra.mxu0 %v5949
    %5987 = vmatprep.subr.mxu0 0.0
    %5988 = vmatpush1.msra.mxu0 %v5950
    %5989 = vmatprep.subr.mxu0 0.0
    %5990 = vmatpush1.msra.mxu0 %v5951
    %5991 = vmatprep.subr.mxu0 0.0
    %5992 = vmatpush1.msra.mxu0 %v5952
    %5993 = vmatprep.subr.mxu0 0.0
    %5994 = vmatpush1.msra.mxu0 %v5953
    %5995 = vmatprep.subr.mxu0 0.0
    %5996 = vmatpush1.msra.mxu0 %v5954
    %5997 = vmatprep.subr.mxu0 0.0
    %5998 = vmatpush1.msra.mxu0 %v5955
    %5999 = vmatprep.subr.mxu0 0.0
    %6000 = vmatpush1.msra.mxu0 %v5956
    %6001 = vmatprep.subr.mxu0 0.0
    %6002 = vmatpush1.msra.mxu0 %v5957
    %6003 = vmatprep.subr.mxu0 0.0
    %6004 = vmatpush1.msra.mxu0 %v5958
    %6005 = vmatprep.subr.mxu0 0.0
    %6006 = vmatpush1.msra.mxu0 %v5959
    %6007 = vmatprep.subr.mxu0 0.0
    %6008 = vmatpush1.msra.mxu0 %v5960
    %6009 = vmatprep.subr.mxu0 0.0
    %6010 = vmatpush1.msra.mxu0 %v5961
    %6011 = vmatprep.subr.mxu0 0.0
    %6012 = vmatpush1.msra.mxu0 %v5962
    %6013 = vmatprep.subr.mxu0 0.0
    %6014 = vmatpush1.msra.mxu0 %v5963
    %6015 = vmatprep.subr.mxu0 0.0
    %6016 = vmatpush1.msra.mxu0 %v5964
    %6017 = vmatprep.subr.mxu0 0.0
    %6018 = vmatpush1.msra.mxu0 %v5965
    %6019 = vmatprep.subr.mxu0 0.0
    %6020 = vmatpush1.msra.mxu0 %v5966
    %6021 = vmatprep.subr.mxu0 0.0
    %6022 = vmatpush1.msra.mxu0 %v5967
    %6023 = vmatprep.subr.mxu0 0.0
    %6024 = vmatpush1.msra.mxu0 %v5968
    %6025 = vmatprep.subr.mxu0 0.0
    %6026 = vmatpush1.msra.mxu0 %v5969
    %6027 = vmatprep.subr.mxu0 0.0
    %6028 = vmatpush1.msra.mxu0 %v5970
    %6029 = vmatprep.subr.mxu0 0.0
    %6030 = vmatpush1.msra.mxu0 %v5971
    %6031 = vmatprep.subr.mxu0 0.0
    %6032 = vmatpush1.msra.mxu0 %v5972
    %6033 = vmatprep.subr.mxu0 0.0
    %6034 = vmatpush1.msra.mxu0 %v5973
    %6035 = vmatprep.subr.mxu0 0.0
    %6036 = vmatpush1.msra.mxu0 %v5974
    %6037 = vmatprep.subr.mxu0 0.0
    %6038 = vmatpush1.msra.mxu0 %v5975
    %6039 = vmatprep.subr.mxu0 0.0
    %6040 = vmatpush1.msra.mxu0 0.0
    %6041 = vmatprep.subr.mxu0 0.0
    %6042 = vmatpush1.msra.mxu0 0.0
    %6043 = vmatprep.subr.mxu0 0.0
    %6044 = vmatpush1.msra.mxu0 0.0
    %6045 = vmatprep.subr.mxu0 0.0
    %6046 = vmatpush1.msra.mxu0 0.0
    %6047 = vmatprep.mubr.f32.mxu0 %v5981
    %6048 = vmatmul.mubr.f32.gmra.mrb[0].mxu0 %v5978
    %v6049 = vpop.f32.mrb[0].mxu0
    %v6050 = vadd.f32 0.0, %v6049
    %v6051 = vpop.f32.mrb[0].mxu0
    %6052 = vdwg.mxu0
    %v6053 = vadd.f32 %v5947, %v6050
    %v6054 = vld [vmem:[#allocation23 + $0xe0] sm:$0xff]
    %v6055 = vld [vmem:[#allocation23 + $0xe8] sm:$0xff]
    %v6056 = vld [vmem:[#allocation23 + $0xf0] sm:$0xff]
    %v6057 = vld [vmem:[#allocation23 + $0xf8] sm:$0xff]
    %v6058 = vld [vmem:[#allocation23 + $0x100] sm:$0xff]
    %v6059 = vld [vmem:[#allocation23 + $0x108] sm:$0xff]
    %v6060 = vld [vmem:[#allocation23 + $0x110] sm:$0xff]
    %v6061 = vld [vmem:[#allocation23 + $0x118] sm:$0xff]
    %v6062 = vld [vmem:[#allocation23 + $0x120] sm:$0xff]
    %v6063 = vld [vmem:[#allocation23 + $0x128] sm:$0xff]
    %v6064 = vld [vmem:[#allocation23 + $0x130] sm:$0xff]
    %v6065 = vld [vmem:[#allocation23 + $0x138] sm:$0xff]
    %v6066 = vld [vmem:[#allocation23 + $0x140] sm:$0xff]
    %v6067 = vld [vmem:[#allocation23 + $0x148] sm:$0xff]
    %v6068 = vld [vmem:[#allocation23 + $0x150] sm:$0xff]
    %v6069 = vld [vmem:[#allocation23 + $0x158] sm:$0xff]
    %v6070 = vld [vmem:[#allocation23 + $0x160] sm:$0xff]
    %v6071 = vld [vmem:[#allocation23 + $0x168] sm:$0xff]
    %v6072 = vld [vmem:[#allocation23 + $0x170] sm:$0xff]
    %v6073 = vld [vmem:[#allocation23 + $0x178] sm:$0xff]
    %v6074 = vld [vmem:[#allocation23 + $0x180] sm:$0xff]
    %v6075 = vld [vmem:[#allocation23 + $0x188] sm:$0xff]
    %v6076 = vld [vmem:[#allocation23 + $0x190] sm:$0xff]
    %v6077 = vld [vmem:[#allocation23 + $0x198] sm:$0xff]
    %v6078 = vld [vmem:[#allocation23 + $0x1a0] sm:$0xff]
    %v6079 = vld [vmem:[#allocation23 + $0x1a8] sm:$0xff]
    %v6080 = vld [vmem:[#allocation23 + $0x1b0] sm:$0xff]
    %v6081 = vld [vmem:[#allocation23 + $0x1b8] sm:$0xff]
    %v6083 = vsel %vm1944, %v5934, 0
    %6085 = vmatprep.subr.mxu0 0.0
    %6086 = vmatpush1.msra.mxu0 %v6054
    %6087 = vmatprep.subr.mxu0 0.0
    %6088 = vmatpush1.msra.mxu0 %v6055
    %6089 = vmatprep.subr.mxu0 0.0
    %6090 = vmatpush1.msra.mxu0 %v6056
    %6091 = vmatprep.subr.mxu0 0.0
    %6092 = vmatpush1.msra.mxu0 %v6057
    %6093 = vmatprep.subr.mxu0 0.0
    %6094 = vmatpush1.msra.mxu0 %v6058
    %6095 = vmatprep.subr.mxu0 0.0
    %6096 = vmatpush1.msra.mxu0 %v6059
    %6097 = vmatprep.subr.mxu0 0.0
    %6098 = vmatpush1.msra.mxu0 %v6060
    %6099 = vmatprep.subr.mxu0 0.0
    %6100 = vmatpush1.msra.mxu0 %v6061
    %6101 = vmatprep.subr.mxu0 0.0
    %6102 = vmatpush1.msra.mxu0 %v6062
    %6103 = vmatprep.subr.mxu0 0.0
    %6104 = vmatpush1.msra.mxu0 %v6063
    %6105 = vmatprep.subr.mxu0 0.0
    %6106 = vmatpush1.msra.mxu0 %v6064
    %6107 = vmatprep.subr.mxu0 0.0
    %6108 = vmatpush1.msra.mxu0 %v6065
    %6109 = vmatprep.subr.mxu0 0.0
    %6110 = vmatpush1.msra.mxu0 %v6066
    %6111 = vmatprep.subr.mxu0 0.0
    %6112 = vmatpush1.msra.mxu0 %v6067
    %6113 = vmatprep.subr.mxu0 0.0
    %6114 = vmatpush1.msra.mxu0 %v6068
    %6115 = vmatprep.subr.mxu0 0.0
    %6116 = vmatpush1.msra.mxu0 %v6069
    %6117 = vmatprep.subr.mxu0 0.0
    %6118 = vmatpush1.msra.mxu0 %v6070
    %6119 = vmatprep.subr.mxu0 0.0
    %6120 = vmatpush1.msra.mxu0 %v6071
    %6121 = vmatprep.subr.mxu0 0.0
    %6122 = vmatpush1.msra.mxu0 %v6072
    %6123 = vmatprep.subr.mxu0 0.0
    %6124 = vmatpush1.msra.mxu0 %v6073
    %6125 = vmatprep.subr.mxu0 0.0
    %6126 = vmatpush1.msra.mxu0 %v6074
    %6127 = vmatprep.subr.mxu0 0.0
    %6128 = vmatpush1.msra.mxu0 %v6075
    %6129 = vmatprep.subr.mxu0 0.0
    %6130 = vmatpush1.msra.mxu0 %v6076
    %6131 = vmatprep.subr.mxu0 0.0
    %6132 = vmatpush1.msra.mxu0 %v6077
    %6133 = vmatprep.subr.mxu0 0.0
    %6134 = vmatpush1.msra.mxu0 %v6078
    %6135 = vmatprep.subr.mxu0 0.0
    %6136 = vmatpush1.msra.mxu0 %v6079
    %6137 = vmatprep.subr.mxu0 0.0
    %6138 = vmatpush1.msra.mxu0 %v6080
    %6139 = vmatprep.subr.mxu0 0.0
    %6140 = vmatpush1.msra.mxu0 %v6081
    %6141 = vmatprep.subr.mxu0 0.0
    %6142 = vmatpush1.msra.mxu0 0.0
    %6143 = vmatprep.subr.mxu0 0.0
    %6144 = vmatpush1.msra.mxu0 0.0
    %6145 = vmatprep.subr.mxu0 0.0
    %6146 = vmatpush1.msra.mxu0 0.0
    %6147 = vmatprep.subr.mxu0 0.0
    %6148 = vmatpush1.msra.mxu0 0.0
    %6149 = vmatprep.mubr.f32.mxu0 %v6083
    %6150 = vmatmul.mubr.f32.gmra.mrb[0].mxu0 %v5933
    %v6151 = vpop.f32.mrb[0].mxu0
    %v6152 = vadd.f32 0.0, %v6151
    %v6153 = vpop.f32.mrb[0].mxu0
    %6154 = vdwg.mxu0
    %v6155 = vadd.f32 %v6053, %v6152
    %v6156 = vld [vmem:[#allocation23 + $0x1c0] sm:$0xff]
    %v6157 = vld [vmem:[#allocation23 + $0x1c8] sm:$0xff]
    %v6158 = vld [vmem:[#allocation23 + $0x1d0] sm:$0xff]
    %v6159 = vld [vmem:[#allocation23 + $0x1d8] sm:$0xff]
    %v6160 = vld [vmem:[#allocation23 + $0x1e0] sm:$0xff]
    %v6161 = vld [vmem:[#allocation23 + $0x1e8] sm:$0xff]
    %v6162 = vld [vmem:[#allocation23 + $0x1f0] sm:$0xff]
    %v6163 = vld [vmem:[#allocation23 + $0x1f8] sm:$0xff]
    %v6164 = vld [vmem:[#allocation23 + $0x200] sm:$0xff]
    %v6165 = vld [vmem:[#allocation23 + $0x208] sm:$0xff]
    %v6166 = vld [vmem:[#allocation23 + $0x210] sm:$0xff]
    %v6167 = vld [vmem:[#allocation23 + $0x218] sm:$0xff]
    %v6168 = vld [vmem:[#allocation23 + $0x220] sm:$0xff]
    %v6169 = vld [vmem:[#allocation23 + $0x228] sm:$0xff]
    %v6170 = vld [vmem:[#allocation23 + $0x230] sm:$0xff]
    %v6171 = vld [vmem:[#allocation23 + $0x238] sm:$0xff]
    %v6172 = vld [vmem:[#allocation23 + $0x240] sm:$0xff]
    %v6173 = vld [vmem:[#allocation23 + $0x248] sm:$0xff]
    %v6174 = vld [vmem:[#allocation23 + $0x250] sm:$0xff]
    %v6175 = vld [vmem:[#allocation23 + $0x258] sm:$0xff]
    %v6176 = vld [vmem:[#allocation23 + $0x260] sm:$0xff]
    %v6177 = vld [vmem:[#allocation23 + $0x268] sm:$0xff]
    %v6178 = vld [vmem:[#allocation23 + $0x270] sm:$0xff]
    %v6179 = vld [vmem:[#allocation23 + $0x278] sm:$0xff]
    %v6180 = vld [vmem:[#allocation23 + $0x280] sm:$0xff]
    %v6181 = vld [vmem:[#allocation23 + $0x288] sm:$0xff]
    %v6182 = vld [vmem:[#allocation23 + $0x290] sm:$0xff]
    %v6183 = vld [vmem:[#allocation23 + $0x298] sm:$0xff]
    %v6185 = vrot.slane %v5933, 4
    %v6186 = vrot.slane %v5934, 4
    %v6188 = vsel %vm1944, %v6186, 0
    %6190 = vmatprep.subr.mxu0 0.0
    %6191 = vmatpush1.msra.mxu0 %v6156
    %6192 = vmatprep.subr.mxu0 0.0
    %6193 = vmatpush1.msra.mxu0 %v6157
    %6194 = vmatprep.subr.mxu0 0.0
    %6195 = vmatpush1.msra.mxu0 %v6158
    %6196 = vmatprep.subr.mxu0 0.0
    %6197 = vmatpush1.msra.mxu0 %v6159
    %6198 = vmatprep.subr.mxu0 0.0
    %6199 = vmatpush1.msra.mxu0 %v6160
    %6200 = vmatprep.subr.mxu0 0.0
    %6201 = vmatpush1.msra.mxu0 %v6161
    %6202 = vmatprep.subr.mxu0 0.0
    %6203 = vmatpush1.msra.mxu0 %v6162
    %6204 = vmatprep.subr.mxu0 0.0
    %6205 = vmatpush1.msra.mxu0 %v6163
    %6206 = vmatprep.subr.mxu0 0.0
    %6207 = vmatpush1.msra.mxu0 %v6164
    %6208 = vmatprep.subr.mxu0 0.0
    %6209 = vmatpush1.msra.mxu0 %v6165
    %6210 = vmatprep.subr.mxu0 0.0
    %6211 = vmatpush1.msra.mxu0 %v6166
    %6212 = vmatprep.subr.mxu0 0.0
    %6213 = vmatpush1.msra.mxu0 %v6167
    %6214 = vmatprep.subr.mxu0 0.0
    %6215 = vmatpush1.msra.mxu0 %v6168
    %6216 = vmatprep.subr.mxu0 0.0
    %6217 = vmatpush1.msra.mxu0 %v6169
    %6218 = vmatprep.subr.mxu0 0.0
    %6219 = vmatpush1.msra.mxu0 %v6170
    %6220 = vmatprep.subr.mxu0 0.0
    %6221 = vmatpush1.msra.mxu0 %v6171
    %6222 = vmatprep.subr.mxu0 0.0
    %6223 = vmatpush1.msra.mxu0 %v6172
    %6224 = vmatprep.subr.mxu0 0.0
    %6225 = vmatpush1.msra.mxu0 %v6173
    %6226 = vmatprep.subr.mxu0 0.0
    %6227 = vmatpush1.msra.mxu0 %v6174
    %6228 = vmatprep.subr.mxu0 0.0
    %6229 = vmatpush1.msra.mxu0 %v6175
    %6230 = vmatprep.subr.mxu0 0.0
    %6231 = vmatpush1.msra.mxu0 %v6176
    %6232 = vmatprep.subr.mxu0 0.0
    %6233 = vmatpush1.msra.mxu0 %v6177
    %6234 = vmatprep.subr.mxu0 0.0
    %6235 = vmatpush1.msra.mxu0 %v6178
    %6236 = vmatprep.subr.mxu0 0.0
    %6237 = vmatpush1.msra.mxu0 %v6179
    %6238 = vmatprep.subr.mxu0 0.0
    %6239 = vmatpush1.msra.mxu0 %v6180
    %6240 = vmatprep.subr.mxu0 0.0
    %6241 = vmatpush1.msra.mxu0 %v6181
    %6242 = vmatprep.subr.mxu0 0.0
    %6243 = vmatpush1.msra.mxu0 %v6182
    %6244 = vmatprep.subr.mxu0 0.0
    %6245 = vmatpush1.msra.mxu0 %v6183
    %6246 = vmatprep.subr.mxu0 0.0
    %6247 = vmatpush1.msra.mxu0 0.0
    %6248 = vmatprep.subr.mxu0 0.0
    %6249 = vmatpush1.msra.mxu0 0.0
    %6250 = vmatprep.subr.mxu0 0.0
    %6251 = vmatpush1.msra.mxu0 0.0
    %6252 = vmatprep.subr.mxu0 0.0
    %6253 = vmatpush1.msra.mxu0 0.0
    %6254 = vmatprep.mubr.f32.mxu0 %v6188
    %6255 = vmatmul.mubr.f32.gmra.mrb[0].mxu0 %v6185
    %v6256 = vpop.f32.mrb[0].mxu0
    %v6257 = vadd.f32 0.0, %v6256
    %v6258 = vpop.f32.mrb[0].mxu0
    %6259 = vdwg.mxu0
    %v6260 = vadd.f32 %v6155, %v6257
    %v6261 = vld [vmem:[#allocation23 + $0x2a0] sm:$0xff]
    %v6262 = vld [vmem:[#allocation23 + $0x2a8] sm:$0xff]
    %v6263 = vld [vmem:[#allocation23 + $0x2b0] sm:$0xff]
    %v6264 = vld [vmem:[#allocation23 + $0x2b8] sm:$0xff]
    %v6265 = vld [vmem:[#allocation23 + $0x2c0] sm:$0xff]
    %v6266 = vld [vmem:[#allocation23 + $0x2c8] sm:$0xff]
    %v6267 = vld [vmem:[#allocation23 + $0x2d0] sm:$0xff]
    %v6268 = vld [vmem:[#allocation23 + $0x2d8] sm:$0xff]
    %v6269 = vld [vmem:[#allocation23 + $0x2e0] sm:$0xff]
    %v6270 = vld [vmem:[#allocation23 + $0x2e8] sm:$0xff]
    %v6271 = vld [vmem:[#allocation23 + $0x2f0] sm:$0xff]
    %v6272 = vld [vmem:[#allocation23 + $0x2f8] sm:$0xff]
    %v6273 = vld [vmem:[#allocation23 + $0x300] sm:$0xff]
    %v6274 = vld [vmem:[#allocation23 + $0x308] sm:$0xff]
    %v6275 = vld [vmem:[#allocation23 + $0x310] sm:$0xff]
    %v6276 = vld [vmem:[#allocation23 + $0x318] sm:$0xff]
    %v6277 = vld [vmem:[#allocation23 + $0x320] sm:$0xff]
    %v6278 = vld [vmem:[#allocation23 + $0x328] sm:$0xff]
    %v6279 = vld [vmem:[#allocation23 + $0x330] sm:$0xff]
    %v6280 = vld [vmem:[#allocation23 + $0x338] sm:$0xff]
    %v6281 = vld [vmem:[#allocation23 + $0x340] sm:$0xff]
    %v6282 = vld [vmem:[#allocation23 + $0x348] sm:$0xff]
    %v6283 = vld [vmem:[#allocation23 + $0x350] sm:$0xff]
    %v6284 = vld [vmem:[#allocation23 + $0x358] sm:$0xff]
    %v6285 = vld [vmem:[#allocation23 + $0x360] sm:$0xff]
    %v6286 = vld [vmem:[#allocation23 + $0x368] sm:$0xff]
    %v6287 = vld [vmem:[#allocation23 + $0x370] sm:$0xff]
    %v6288 = vld [vmem:[#allocation23 + $0x378] sm:$0xff]
    %v6290 = vsel %vm1944, %v5936, 0
    %6292 = vmatprep.subr.mxu0 0.0
    %6293 = vmatpush1.msra.mxu0 %v6261
    %6294 = vmatprep.subr.mxu0 0.0
    %6295 = vmatpush1.msra.mxu0 %v6262
    %6296 = vmatprep.subr.mxu0 0.0
    %6297 = vmatpush1.msra.mxu0 %v6263
    %6298 = vmatprep.subr.mxu0 0.0
    %6299 = vmatpush1.msra.mxu0 %v6264
    %6300 = vmatprep.subr.mxu0 0.0
    %6301 = vmatpush1.msra.mxu0 %v6265
    %6302 = vmatprep.subr.mxu0 0.0
    %6303 = vmatpush1.msra.mxu0 %v6266
    %6304 = vmatprep.subr.mxu0 0.0
    %6305 = vmatpush1.msra.mxu0 %v6267
    %6306 = vmatprep.subr.mxu0 0.0
    %6307 = vmatpush1.msra.mxu0 %v6268
    %6308 = vmatprep.subr.mxu0 0.0
    %6309 = vmatpush1.msra.mxu0 %v6269
    %6310 = vmatprep.subr.mxu0 0.0
    %6311 = vmatpush1.msra.mxu0 %v6270
    %6312 = vmatprep.subr.mxu0 0.0
    %6313 = vmatpush1.msra.mxu0 %v6271
    %6314 = vmatprep.subr.mxu0 0.0
    %6315 = vmatpush1.msra.mxu0 %v6272
    %6316 = vmatprep.subr.mxu0 0.0
    %6317 = vmatpush1.msra.mxu0 %v6273
    %6318 = vmatprep.subr.mxu0 0.0
    %6319 = vmatpush1.msra.mxu0 %v6274
    %6320 = vmatprep.subr.mxu0 0.0
    %6321 = vmatpush1.msra.mxu0 %v6275
    %6322 = vmatprep.subr.mxu0 0.0
    %6323 = vmatpush1.msra.mxu0 %v6276
    %6324 = vmatprep.subr.mxu0 0.0
    %6325 = vmatpush1.msra.mxu0 %v6277
    %6326 = vmatprep.subr.mxu0 0.0
    %6327 = vmatpush1.msra.mxu0 %v6278
    %6328 = vmatprep.subr.mxu0 0.0
    %6329 = vmatpush1.msra.mxu0 %v6279
    %6330 = vmatprep.subr.mxu0 0.0
    %6331 = vmatpush1.msra.mxu0 %v6280
    %6332 = vmatprep.subr.mxu0 0.0
    %6333 = vmatpush1.msra.mxu0 %v6281
    %6334 = vmatprep.subr.mxu0 0.0
    %6335 = vmatpush1.msra.mxu0 %v6282
    %6336 = vmatprep.subr.mxu0 0.0
    %6337 = vmatpush1.msra.mxu0 %v6283
    %6338 = vmatprep.subr.mxu0 0.0
    %6339 = vmatpush1.msra.mxu0 %v6284
    %6340 = vmatprep.subr.mxu0 0.0
    %6341 = vmatpush1.msra.mxu0 %v6285
    %6342 = vmatprep.subr.mxu0 0.0
    %6343 = vmatpush1.msra.mxu0 %v6286
    %6344 = vmatprep.subr.mxu0 0.0
    %6345 = vmatpush1.msra.mxu0 %v6287
    %6346 = vmatprep.subr.mxu0 0.0
    %6347 = vmatpush1.msra.mxu0 %v6288
    %6348 = vmatprep.subr.mxu0 0.0
    %6349 = vmatpush1.msra.mxu0 0.0
    %6350 = vmatprep.subr.mxu0 0.0
    %6351 = vmatpush1.msra.mxu0 0.0
    %6352 = vmatprep.subr.mxu0 0.0
    %6353 = vmatpush1.msra.mxu0 0.0
    %6354 = vmatprep.subr.mxu0 0.0
    %6355 = vmatpush1.msra.mxu0 0.0
    %6356 = vmatprep.mubr.f32.mxu0 %v6290
    %6357 = vmatmul.mubr.f32.gmra.mrb[0].mxu0 %v5935
    %v6358 = vpop.f32.mrb[0].mxu0
    %v6359 = vadd.f32 0.0, %v6358
    %v6360 = vpop.f32.mrb[0].mxu0
    %6361 = vdwg.mxu0
    %v6362 = vadd.f32 %v6260, %v6359
    %v6363 = vld [vmem:[#allocation23 + $0x380] sm:$0xff]
    %v6364 = vld [vmem:[#allocation23 + $0x388] sm:$0xff]
    %v6365 = vld [vmem:[#allocation23 + $0x390] sm:$0xff]
    %v6366 = vld [vmem:[#allocation23 + $0x398] sm:$0xff]
    %v6367 = vld [vmem:[#allocation23 + $0x3a0] sm:$0xff]
    %v6368 = vld [vmem:[#allocation23 + $0x3a8] sm:$0xff]
    %v6369 = vld [vmem:[#allocation23 + $0x3b0] sm:$0xff]
    %v6370 = vld [vmem:[#allocation23 + $0x3b8] sm:$0xff]
    %v6371 = vld [vmem:[#allocation23 + $0x3c0] sm:$0xff]
    %v6372 = vld [vmem:[#allocation23 + $0x3c8] sm:$0xff]
    %v6373 = vld [vmem:[#allocation23 + $0x3d0] sm:$0xff]
    %v6374 = vld [vmem:[#allocation23 + $0x3d8] sm:$0xff]
    %v6375 = vld [vmem:[#allocation23 + $0x3e0] sm:$0xff]
    %v6376 = vld [vmem:[#allocation23 + $0x3e8] sm:$0xff]
    %v6377 = vld [vmem:[#allocation23 + $0x3f0] sm:$0xff]
    %v6378 = vld [vmem:[#allocation23 + $0x3f8] sm:$0xff]
    %v6379 = vld [vmem:[#allocation23 + $0x400] sm:$0xff]
    %v6380 = vld [vmem:[#allocation23 + $0x408] sm:$0xff]
    %v6381 = vld [vmem:[#allocation23 + $0x410] sm:$0xff]
    %v6382 = vld [vmem:[#allocation23 + $0x418] sm:$0xff]
    %v6383 = vld [vmem:[#allocation23 + $0x420] sm:$0xff]
    %v6384 = vld [vmem:[#allocation23 + $0x428] sm:$0xff]
    %v6385 = vld [vmem:[#allocation23 + $0x430] sm:$0xff]
    %v6386 = vld [vmem:[#allocation23 + $0x438] sm:$0xff]
    %v6387 = vld [vmem:[#allocation23 + $0x440] sm:$0xff]
    %v6388 = vld [vmem:[#allocation23 + $0x448] sm:$0xff]
    %v6389 = vld [vmem:[#allocation23 + $0x450] sm:$0xff]
    %v6390 = vld [vmem:[#allocation23 + $0x458] sm:$0xff]
    %v6392 = vrot.slane %v5935, 4
    %v6393 = vrot.slane %v5936, 4
    %v6395 = vsel %vm1944, %v6393, 0
    %6397 = vmatprep.subr.mxu0 0.0
    %6398 = vmatpush1.msra.mxu0 %v6363
    %6399 = vmatprep.subr.mxu0 0.0
    %6400 = vmatpush1.msra.mxu0 %v6364
    %6401 = vmatprep.subr.mxu0 0.0
    %6402 = vmatpush1.msra.mxu0 %v6365
    %6403 = vmatprep.subr.mxu0 0.0
    %6404 = vmatpush1.msra.mxu0 %v6366
    %6405 = vmatprep.subr.mxu0 0.0
    %6406 = vmatpush1.msra.mxu0 %v6367
    %6407 = vmatprep.subr.mxu0 0.0
    %6408 = vmatpush1.msra.mxu0 %v6368
    %6409 = vmatprep.subr.mxu0 0.0
    %6410 = vmatpush1.msra.mxu0 %v6369
    %6411 = vmatprep.subr.mxu0 0.0
    %6412 = vmatpush1.msra.mxu0 %v6370
    %6413 = vmatprep.subr.mxu0 0.0
    %6414 = vmatpush1.msra.mxu0 %v6371
    %6415 = vmatprep.subr.mxu0 0.0
    %6416 = vmatpush1.msra.mxu0 %v6372
    %6417 = vmatprep.subr.mxu0 0.0
    %6418 = vmatpush1.msra.mxu0 %v6373
    %6419 = vmatprep.subr.mxu0 0.0
    %6420 = vmatpush1.msra.mxu0 %v6374
    %6421 = vmatprep.subr.mxu0 0.0
    %6422 = vmatpush1.msra.mxu0 %v6375
    %6423 = vmatprep.subr.mxu0 0.0
    %6424 = vmatpush1.msra.mxu0 %v6376
    %6425 = vmatprep.subr.mxu0 0.0
    %6426 = vmatpush1.msra.mxu0 %v6377
    %6427 = vmatprep.subr.mxu0 0.0
    %6428 = vmatpush1.msra.mxu0 %v6378
    %6429 = vmatprep.subr.mxu0 0.0
    %6430 = vmatpush1.msra.mxu0 %v6379
    %6431 = vmatprep.subr.mxu0 0.0
    %6432 = vmatpush1.msra.mxu0 %v6380
    %6433 = vmatprep.subr.mxu0 0.0
    %6434 = vmatpush1.msra.mxu0 %v6381
    %6435 = vmatprep.subr.mxu0 0.0
    %6436 = vmatpush1.msra.mxu0 %v6382
    %6437 = vmatprep.subr.mxu0 0.0
    %6438 = vmatpush1.msra.mxu0 %v6383
    %6439 = vmatprep.subr.mxu0 0.0
    %6440 = vmatpush1.msra.mxu0 %v6384
    %6441 = vmatprep.subr.mxu0 0.0
    %6442 = vmatpush1.msra.mxu0 %v6385
    %6443 = vmatprep.subr.mxu0 0.0
    %6444 = vmatpush1.msra.mxu0 %v6386
    %6445 = vmatprep.subr.mxu0 0.0
    %6446 = vmatpush1.msra.mxu0 %v6387
    %6447 = vmatprep.subr.mxu0 0.0
    %6448 = vmatpush1.msra.mxu0 %v6388
    %6449 = vmatprep.subr.mxu0 0.0
    %6450 = vmatpush1.msra.mxu0 %v6389
    %6451 = vmatprep.subr.mxu0 0.0
    %6452 = vmatpush1.msra.mxu0 %v6390
    %6453 = vmatprep.subr.mxu0 0.0
    %6454 = vmatpush1.msra.mxu0 0.0
    %6455 = vmatprep.subr.mxu0 0.0
    %6456 = vmatpush1.msra.mxu0 0.0
    %6457 = vmatprep.subr.mxu0 0.0
    %6458 = vmatpush1.msra.mxu0 0.0
    %6459 = vmatprep.subr.mxu0 0.0
    %6460 = vmatpush1.msra.mxu0 0.0
    %6461 = vmatprep.mubr.f32.mxu0 %v6395
    %6462 = vmatmul.mubr.f32.gmra.mrb[0].mxu0 %v6392
    %v6463 = vpop.f32.mrb[0].mxu0
    %v6464 = vadd.f32 0.0, %v6463
    %v6465 = vpop.f32.mrb[0].mxu0
    %6466 = vdwg.mxu0
    %v6467 = vadd.f32 %v6362, %v6464
    %v6468 = vld [vmem:[#allocation23 + $0x460] sm:$0xff]
    %v6469 = vld [vmem:[#allocation23 + $0x468] sm:$0xff]
    %v6470 = vld [vmem:[#allocation23 + $0x470] sm:$0xff]
    %v6471 = vld [vmem:[#allocation23 + $0x478] sm:$0xff]
    %v6472 = vld [vmem:[#allocation23 + $0x480] sm:$0xff]
    %v6473 = vld [vmem:[#allocation23 + $0x488] sm:$0xff]
    %v6474 = vld [vmem:[#allocation23 + $0x490] sm:$0xff]
    %v6475 = vld [vmem:[#allocation23 + $0x498] sm:$0xff]
    %v6476 = vld [vmem:[#allocation23 + $0x4a0] sm:$0xff]
    %v6477 = vld [vmem:[#allocation23 + $0x4a8] sm:$0xff]
    %v6478 = vld [vmem:[#allocation23 + $0x4b0] sm:$0xff]
    %v6479 = vld [vmem:[#allocation23 + $0x4b8] sm:$0xff]
    %v6480 = vld [vmem:[#allocation23 + $0x4c0] sm:$0xff]
    %v6481 = vld [vmem:[#allocation23 + $0x4c8] sm:$0xff]
    %v6482 = vld [vmem:[#allocation23 + $0x4d0] sm:$0xff]
    %v6483 = vld [vmem:[#allocation23 + $0x4d8] sm:$0xff]
    %v6484 = vld [vmem:[#allocation23 + $0x4e0] sm:$0xff]
    %v6485 = vld [vmem:[#allocation23 + $0x4e8] sm:$0xff]
    %v6486 = vld [vmem:[#allocation23 + $0x4f0] sm:$0xff]
    %v6487 = vld [vmem:[#allocation23 + $0x4f8] sm:$0xff]
    %v6488 = vld [vmem:[#allocation23 + $0x500] sm:$0xff]
    %v6489 = vld [vmem:[#allocation23 + $0x508] sm:$0xff]
    %v6490 = vld [vmem:[#allocation23 + $0x510] sm:$0xff]
    %v6491 = vld [vmem:[#allocation23 + $0x518] sm:$0xff]
    %v6492 = vld [vmem:[#allocation23 + $0x520] sm:$0xff]
    %v6493 = vld [vmem:[#allocation23 + $0x528] sm:$0xff]
    %v6494 = vld [vmem:[#allocation23 + $0x530] sm:$0xff]
    %v6495 = vld [vmem:[#allocation23 + $0x538] sm:$0xff]
    %v6497 = vsel %vm1944, %v5938, 0
    %6499 = vmatprep.subr.mxu0 0.0
    %6500 = vmatpush1.msra.mxu0 %v6468
    %6501 = vmatprep.subr.mxu0 0.0
    %6502 = vmatpush1.msra.mxu0 %v6469
    %6503 = vmatprep.subr.mxu0 0.0
    %6504 = vmatpush1.msra.mxu0 %v6470
    %6505 = vmatprep.subr.mxu0 0.0
    %6506 = vmatpush1.msra.mxu0 %v6471
    %6507 = vmatprep.subr.mxu0 0.0
    %6508 = vmatpush1.msra.mxu0 %v6472
    %6509 = vmatprep.subr.mxu0 0.0
    %6510 = vmatpush1.msra.mxu0 %v6473
    %6511 = vmatprep.subr.mxu0 0.0
    %6512 = vmatpush1.msra.mxu0 %v6474
    %6513 = vmatprep.subr.mxu0 0.0
    %6514 = vmatpush1.msra.mxu0 %v6475
    %6515 = vmatprep.subr.mxu0 0.0
    %6516 = vmatpush1.msra.mxu0 %v6476
    %6517 = vmatprep.subr.mxu0 0.0
    %6518 = vmatpush1.msra.mxu0 %v6477
    %6519 = vmatprep.subr.mxu0 0.0
    %6520 = vmatpush1.msra.mxu0 %v6478
    %6521 = vmatprep.subr.mxu0 0.0
    %6522 = vmatpush1.msra.mxu0 %v6479
    %6523 = vmatprep.subr.mxu0 0.0
    %6524 = vmatpush1.msra.mxu0 %v6480
    %6525 = vmatprep.subr.mxu0 0.0
    %6526 = vmatpush1.msra.mxu0 %v6481
    %6527 = vmatprep.subr.mxu0 0.0
    %6528 = vmatpush1.msra.mxu0 %v6482
    %6529 = vmatprep.subr.mxu0 0.0
    %6530 = vmatpush1.msra.mxu0 %v6483
    %6531 = vmatprep.subr.mxu0 0.0
    %6532 = vmatpush1.msra.mxu0 %v6484
    %6533 = vmatprep.subr.mxu0 0.0
    %6534 = vmatpush1.msra.mxu0 %v6485
    %6535 = vmatprep.subr.mxu0 0.0
    %6536 = vmatpush1.msra.mxu0 %v6486
    %6537 = vmatprep.subr.mxu0 0.0
    %6538 = vmatpush1.msra.mxu0 %v6487
    %6539 = vmatprep.subr.mxu0 0.0
    %6540 = vmatpush1.msra.mxu0 %v6488
    %6541 = vmatprep.subr.mxu0 0.0
    %6542 = vmatpush1.msra.mxu0 %v6489
    %6543 = vmatprep.subr.mxu0 0.0
    %6544 = vmatpush1.msra.mxu0 %v6490
    %6545 = vmatprep.subr.mxu0 0.0
    %6546 = vmatpush1.msra.mxu0 %v6491
    %6547 = vmatprep.subr.mxu0 0.0
    %6548 = vmatpush1.msra.mxu0 %v6492
    %6549 = vmatprep.subr.mxu0 0.0
    %6550 = vmatpush1.msra.mxu0 %v6493
    %6551 = vmatprep.subr.mxu0 0.0
    %6552 = vmatpush1.msra.mxu0 %v6494
    %6553 = vmatprep.subr.mxu0 0.0
    %6554 = vmatpush1.msra.mxu0 %v6495
    %6555 = vmatprep.subr.mxu0 0.0
    %6556 = vmatpush1.msra.mxu0 0.0
    %6557 = vmatprep.subr.mxu0 0.0
    %6558 = vmatpush1.msra.mxu0 0.0
    %6559 = vmatprep.subr.mxu0 0.0
    %6560 = vmatpush1.msra.mxu0 0.0
    %6561 = vmatprep.subr.mxu0 0.0
    %6562 = vmatpush1.msra.mxu0 0.0
    %6563 = vmatprep.mubr.f32.mxu0 %v6497
    %6564 = vmatmul.mubr.f32.gmra.mrb[0].mxu0 %v5937
    %v6565 = vpop.f32.mrb[0].mxu0
    %v6566 = vadd.f32 0.0, %v6565
    %v6567 = vpop.f32.mrb[0].mxu0
    %6568 = vdwg.mxu0
    %v6569 = vadd.f32 %v6467, %v6566
    %v6570 = vld [vmem:[#allocation23 + $0x540] sm:$0xff]
    %v6571 = vld [vmem:[#allocation23 + $0x548] sm:$0xff]
    %v6572 = vld [vmem:[#allocation23 + $0x550] sm:$0xff]
    %v6573 = vld [vmem:[#allocation23 + $0x558] sm:$0xff]
    %v6574 = vld [vmem:[#allocation23 + $0x560] sm:$0xff]
    %v6575 = vld [vmem:[#allocation23 + $0x568] sm:$0xff]
    %v6576 = vld [vmem:[#allocation23 + $0x570] sm:$0xff]
    %v6577 = vld [vmem:[#allocation23 + $0x578] sm:$0xff]
    %v6578 = vld [vmem:[#allocation23 + $0x580] sm:$0xff]
    %v6579 = vld [vmem:[#allocation23 + $0x588] sm:$0xff]
    %v6580 = vld [vmem:[#allocation23 + $0x590] sm:$0xff]
    %v6581 = vld [vmem:[#allocation23 + $0x598] sm:$0xff]
    %v6582 = vld [vmem:[#allocation23 + $0x5a0] sm:$0xff]
    %v6583 = vld [vmem:[#allocation23 + $0x5a8] sm:$0xff]
    %v6584 = vld [vmem:[#allocation23 + $0x5b0] sm:$0xff]
    %v6585 = vld [vmem:[#allocation23 + $0x5b8] sm:$0xff]
    %v6586 = vld [vmem:[#allocation23 + $0x5c0] sm:$0xff]
    %v6587 = vld [vmem:[#allocation23 + $0x5c8] sm:$0xff]
    %v6588 = vld [vmem:[#allocation23 + $0x5d0] sm:$0xff]
    %v6589 = vld [vmem:[#allocation23 + $0x5d8] sm:$0xff]
    %v6590 = vld [vmem:[#allocation23 + $0x5e0] sm:$0xff]
    %v6591 = vld [vmem:[#allocation23 + $0x5e8] sm:$0xff]
    %v6592 = vld [vmem:[#allocation23 + $0x5f0] sm:$0xff]
    %v6593 = vld [vmem:[#allocation23 + $0x5f8] sm:$0xff]
    %v6594 = vld [vmem:[#allocation23 + $0x600] sm:$0xff]
    %v6595 = vld [vmem:[#allocation23 + $0x608] sm:$0xff]
    %v6596 = vld [vmem:[#allocation23 + $0x610] sm:$0xff]
    %v6597 = vld [vmem:[#allocation23 + $0x618] sm:$0xff]
    %v6599 = vrot.slane %v5937, 4
    %v6600 = vrot.slane %v5938, 4
    %v6602 = vsel %vm1944, %v6600, 0
    %6604 = vmatprep.subr.mxu0 0.0
    %6605 = vmatpush1.msra.mxu0 %v6570
    %6606 = vmatprep.subr.mxu0 0.0
    %6607 = vmatpush1.msra.mxu0 %v6571
    %6608 = vmatprep.subr.mxu0 0.0
    %6609 = vmatpush1.msra.mxu0 %v6572
    %6610 = vmatprep.subr.mxu0 0.0
    %6611 = vmatpush1.msra.mxu0 %v6573
    %6612 = vmatprep.subr.mxu0 0.0
    %6613 = vmatpush1.msra.mxu0 %v6574
    %6614 = vmatprep.subr.mxu0 0.0
    %6615 = vmatpush1.msra.mxu0 %v6575
    %6616 = vmatprep.subr.mxu0 0.0
    %6617 = vmatpush1.msra.mxu0 %v6576
    %6618 = vmatprep.subr.mxu0 0.0
    %6619 = vmatpush1.msra.mxu0 %v6577
    %6620 = vmatprep.subr.mxu0 0.0
    %6621 = vmatpush1.msra.mxu0 %v6578
    %6622 = vmatprep.subr.mxu0 0.0
    %6623 = vmatpush1.msra.mxu0 %v6579
    %6624 = vmatprep.subr.mxu0 0.0
    %6625 = vmatpush1.msra.mxu0 %v6580
    %6626 = vmatprep.subr.mxu0 0.0
    %6627 = vmatpush1.msra.mxu0 %v6581
    %6628 = vmatprep.subr.mxu0 0.0
    %6629 = vmatpush1.msra.mxu0 %v6582
    %6630 = vmatprep.subr.mxu0 0.0
    %6631 = vmatpush1.msra.mxu0 %v6583
    %6632 = vmatprep.subr.mxu0 0.0
    %6633 = vmatpush1.msra.mxu0 %v6584
    %6634 = vmatprep.subr.mxu0 0.0
    %6635 = vmatpush1.msra.mxu0 %v6585
    %6636 = vmatprep.subr.mxu0 0.0
    %6637 = vmatpush1.msra.mxu0 %v6586
    %6638 = vmatprep.subr.mxu0 0.0
    %6639 = vmatpush1.msra.mxu0 %v6587
    %6640 = vmatprep.subr.mxu0 0.0
    %6641 = vmatpush1.msra.mxu0 %v6588
    %6642 = vmatprep.subr.mxu0 0.0
    %6643 = vmatpush1.msra.mxu0 %v6589
    %6644 = vmatprep.subr.mxu0 0.0
    %6645 = vmatpush1.msra.mxu0 %v6590
    %6646 = vmatprep.subr.mxu0 0.0
    %6647 = vmatpush1.msra.mxu0 %v6591
    %6648 = vmatprep.subr.mxu0 0.0
    %6649 = vmatpush1.msra.mxu0 %v6592
    %6650 = vmatprep.subr.mxu0 0.0
    %6651 = vmatpush1.msra.mxu0 %v6593
    %6652 = vmatprep.subr.mxu0 0.0
    %6653 = vmatpush1.msra.mxu0 %v6594
    %6654 = vmatprep.subr.mxu0 0.0
    %6655 = vmatpush1.msra.mxu0 %v6595
    %6656 = vmatprep.subr.mxu0 0.0
    %6657 = vmatpush1.msra.mxu0 %v6596
    %6658 = vmatprep.subr.mxu0 0.0
    %6659 = vmatpush1.msra.mxu0 %v6597
    %6660 = vmatprep.subr.mxu0 0.0
    %6661 = vmatpush1.msra.mxu0 0.0
    %6662 = vmatprep.subr.mxu0 0.0
    %6663 = vmatpush1.msra.mxu0 0.0
    %6664 = vmatprep.subr.mxu0 0.0
    %6665 = vmatpush1.msra.mxu0 0.0
    %6666 = vmatprep.subr.mxu0 0.0
    %6667 = vmatpush1.msra.mxu0 0.0
    %6668 = vmatprep.mubr.f32.mxu0 %v6602
    %6669 = vmatmul.mubr.f32.gmra.mrb[0].mxu0 %v6599
    %v6670 = vpop.f32.mrb[0].mxu0
    %v6671 = vadd.f32 0.0, %v6670
    %v6672 = vpop.f32.mrb[0].mxu0
    %6673 = vdwg.mxu0
    %v6674 = vadd.f32 %v6569, %v6671
    %6675 = vst [vmem:[#allocation26] sm:$0x1] %v6674
    %v6676 = vld [vmem:[#allocation24] sm:$0x1]
    %v6677 = vld [vmem:[#allocation23] sm:$0xff]
    %v6678 = vld [vmem:[#allocation23 + $0x8] sm:$0xff]
    %v6679 = vld [vmem:[#allocation23 + $0x10] sm:$0xff]
    %v6680 = vld [vmem:[#allocation23 + $0x18] sm:$0xff]
    %v6681 = vld [vmem:[#allocation23 + $0x20] sm:$0xff]
    %v6682 = vld [vmem:[#allocation23 + $0x28] sm:$0xff]
    %v6683 = vld [vmem:[#allocation23 + $0x30] sm:$0xff]
    %v6684 = vld [vmem:[#allocation23 + $0x38] sm:$0xff]
    %v6685 = vld [vmem:[#allocation23 + $0x40] sm:$0xff]
    %v6686 = vld [vmem:[#allocation23 + $0x48] sm:$0xff]
    %v6687 = vld [vmem:[#allocation23 + $0x50] sm:$0xff]
    %v6688 = vld [vmem:[#allocation23 + $0x58] sm:$0xff]
    %v6689 = vld [vmem:[#allocation23 + $0x60] sm:$0xff]
    %v6690 = vld [vmem:[#allocation23 + $0x68] sm:$0xff]
    %v6691 = vld [vmem:[#allocation23 + $0x70] sm:$0xff]
    %v6692 = vld [vmem:[#allocation23 + $0x78] sm:$0xff]
    %v6693 = vld [vmem:[#allocation23 + $0x80] sm:$0xff]
    %v6694 = vld [vmem:[#allocation23 + $0x88] sm:$0xff]
    %v6695 = vld [vmem:[#allocation23 + $0x90] sm:$0xff]
    %v6696 = vld [vmem:[#allocation23 + $0x98] sm:$0xff]
    %v6697 = vld [vmem:[#allocation23 + $0xa0] sm:$0xff]
    %v6698 = vld [vmem:[#allocation23 + $0xa8] sm:$0xff]
    %v6699 = vld [vmem:[#allocation23 + $0xb0] sm:$0xff]
    %v6700 = vld [vmem:[#allocation23 + $0xb8] sm:$0xff]
    %v6701 = vld [vmem:[#allocation23 + $0xc0] sm:$0xff]
    %v6702 = vld [vmem:[#allocation23 + $0xc8] sm:$0xff]
    %v6703 = vld [vmem:[#allocation23 + $0xd0] sm:$0xff]
    %v6704 = vld [vmem:[#allocation23 + $0xd8] sm:$0xff]
    %v6707 = vrot.slane %v5939, 4
    %v6708 = vrot.slane %v5940, 4
    %v6710 = vsel %vm1944, %v6708, 0
    %6712 = vmatprep.subr.mxu0 0.0
    %6713 = vmatpush1.msra.mxu0 %v6677
    %6714 = vmatprep.subr.mxu0 0.0
    %6715 = vmatpush1.msra.mxu0 %v6678
    %6716 = vmatprep.subr.mxu0 0.0
    %6717 = vmatpush1.msra.mxu0 %v6679
    %6718 = vmatprep.subr.mxu0 0.0
    %6719 = vmatpush1.msra.mxu0 %v6680
    %6720 = vmatprep.subr.mxu0 0.0
    %6721 = vmatpush1.msra.mxu0 %v6681
    %6722 = vmatprep.subr.mxu0 0.0
    %6723 = vmatpush1.msra.mxu0 %v6682
    %6724 = vmatprep.subr.mxu0 0.0
    %6725 = vmatpush1.msra.mxu0 %v6683
    %6726 = vmatprep.subr.mxu0 0.0
    %6727 = vmatpush1.msra.mxu0 %v6684
    %6728 = vmatprep.subr.mxu0 0.0
    %6729 = vmatpush1.msra.mxu0 %v6685
    %6730 = vmatprep.subr.mxu0 0.0
    %6731 = vmatpush1.msra.mxu0 %v6686
    %6732 = vmatprep.subr.mxu0 0.0
    %6733 = vmatpush1.msra.mxu0 %v6687
    %6734 = vmatprep.subr.mxu0 0.0
    %6735 = vmatpush1.msra.mxu0 %v6688
    %6736 = vmatprep.subr.mxu0 0.0
    %6737 = vmatpush1.msra.mxu0 %v6689
    %6738 = vmatprep.subr.mxu0 0.0
    %6739 = vmatpush1.msra.mxu0 %v6690
    %6740 = vmatprep.subr.mxu0 0.0
    %6741 = vmatpush1.msra.mxu0 %v6691
    %6742 = vmatprep.subr.mxu0 0.0
    %6743 = vmatpush1.msra.mxu0 %v6692
    %6744 = vmatprep.subr.mxu0 0.0
    %6745 = vmatpush1.msra.mxu0 %v6693
    %6746 = vmatprep.subr.mxu0 0.0
    %6747 = vmatpush1.msra.mxu0 %v6694
    %6748 = vmatprep.subr.mxu0 0.0
    %6749 = vmatpush1.msra.mxu0 %v6695
    %6750 = vmatprep.subr.mxu0 0.0
    %6751 = vmatpush1.msra.mxu0 %v6696
    %6752 = vmatprep.subr.mxu0 0.0
    %6753 = vmatpush1.msra.mxu0 %v6697
    %6754 = vmatprep.subr.mxu0 0.0
    %6755 = vmatpush1.msra.mxu0 %v6698
    %6756 = vmatprep.subr.mxu0 0.0
    %6757 = vmatpush1.msra.mxu0 %v6699
    %6758 = vmatprep.subr.mxu0 0.0
    %6759 = vmatpush1.msra.mxu0 %v6700
    %6760 = vmatprep.subr.mxu0 0.0
    %6761 = vmatpush1.msra.mxu0 %v6701
    %6762 = vmatprep.subr.mxu0 0.0
    %6763 = vmatpush1.msra.mxu0 %v6702
    %6764 = vmatprep.subr.mxu0 0.0
    %6765 = vmatpush1.msra.mxu0 %v6703
    %6766 = vmatprep.subr.mxu0 0.0
    %6767 = vmatpush1.msra.mxu0 %v6704
    %6768 = vmatprep.subr.mxu0 0.0
    %6769 = vmatpush1.msra.mxu0 0.0
    %6770 = vmatprep.subr.mxu0 0.0
    %6771 = vmatpush1.msra.mxu0 0.0
    %6772 = vmatprep.subr.mxu0 0.0
    %6773 = vmatpush1.msra.mxu0 0.0
    %6774 = vmatprep.subr.mxu0 0.0
    %6775 = vmatpush1.msra.mxu0 0.0
    %6776 = vmatprep.mubr.f32.mxu0 %v6710
    %6777 = vmatmul.mubr.f32.gmra.mrb[0].mxu0 %v6707
    %v6778 = vpop.f32.mrb[0].mxu0
    %v6779 = vadd.f32 0.0, %v6778
    %v6780 = vpop.f32.mrb[0].mxu0
    %6781 = vdwg.mxu0
    %v6782 = vadd.f32 %v6676, %v6779
    %v6783 = vld [vmem:[#allocation23 + $0xe0] sm:$0xff]
    %v6784 = vld [vmem:[#allocation23 + $0xe8] sm:$0xff]
    %v6785 = vld [vmem:[#allocation23 + $0xf0] sm:$0xff]
    %v6786 = vld [vmem:[#allocation23 + $0xf8] sm:$0xff]
    %v6787 = vld [vmem:[#allocation23 + $0x100] sm:$0xff]
    %v6788 = vld [vmem:[#allocation23 + $0x108] sm:$0xff]
    %v6789 = vld [vmem:[#allocation23 + $0x110] sm:$0xff]
    %v6790 = vld [vmem:[#allocation23 + $0x118] sm:$0xff]
    %v6791 = vld [vmem:[#allocation23 + $0x120] sm:$0xff]
    %v6792 = vld [vmem:[#allocation23 + $0x128] sm:$0xff]
    %v6793 = vld [vmem:[#allocation23 + $0x130] sm:$0xff]
    %v6794 = vld [vmem:[#allocation23 + $0x138] sm:$0xff]
    %v6795 = vld [vmem:[#allocation23 + $0x140] sm:$0xff]
    %v6796 = vld [vmem:[#allocation23 + $0x148] sm:$0xff]
    %v6797 = vld [vmem:[#allocation23 + $0x150] sm:$0xff]
    %v6798 = vld [vmem:[#allocation23 + $0x158] sm:$0xff]
    %v6799 = vld [vmem:[#allocation23 + $0x160] sm:$0xff]
    %v6800 = vld [vmem:[#allocation23 + $0x168] sm:$0xff]
    %v6801 = vld [vmem:[#allocation23 + $0x170] sm:$0xff]
    %v6802 = vld [vmem:[#allocation23 + $0x178] sm:$0xff]
    %v6803 = vld [vmem:[#allocation23 + $0x180] sm:$0xff]
    %v6804 = vld [vmem:[#allocation23 + $0x188] sm:$0xff]
    %v6805 = vld [vmem:[#allocation23 + $0x190] sm:$0xff]
    %v6806 = vld [vmem:[#allocation23 + $0x198] sm:$0xff]
    %v6807 = vld [vmem:[#allocation23 + $0x1a0] sm:$0xff]
    %v6808 = vld [vmem:[#allocation23 + $0x1a8] sm:$0xff]
    %v6809 = vld [vmem:[#allocation23 + $0x1b0] sm:$0xff]
    %v6810 = vld [vmem:[#allocation23 + $0x1b8] sm:$0xff]
    %v6812 = vsel %vm1944, %v5942, 0
    %6814 = vmatprep.subr.mxu0 0.0
    %6815 = vmatpush1.msra.mxu0 %v6783
    %6816 = vmatprep.subr.mxu0 0.0
    %6817 = vmatpush1.msra.mxu0 %v6784
    %6818 = vmatprep.subr.mxu0 0.0
    %6819 = vmatpush1.msra.mxu0 %v6785
    %6820 = vmatprep.subr.mxu0 0.0
    %6821 = vmatpush1.msra.mxu0 %v6786
    %6822 = vmatprep.subr.mxu0 0.0
    %6823 = vmatpush1.msra.mxu0 %v6787
    %6824 = vmatprep.subr.mxu0 0.0
    %6825 = vmatpush1.msra.mxu0 %v6788
    %6826 = vmatprep.subr.mxu0 0.0
    %6827 = vmatpush1.msra.mxu0 %v6789
    %6828 = vmatprep.subr.mxu0 0.0
    %6829 = vmatpush1.msra.mxu0 %v6790
    %6830 = vmatprep.subr.mxu0 0.0
    %6831 = vmatpush1.msra.mxu0 %v6791
    %6832 = vmatprep.subr.mxu0 0.0
    %6833 = vmatpush1.msra.mxu0 %v6792
    %6834 = vmatprep.subr.mxu0 0.0
    %6835 = vmatpush1.msra.mxu0 %v6793
    %6836 = vmatprep.subr.mxu0 0.0
    %6837 = vmatpush1.msra.mxu0 %v6794
    %6838 = vmatprep.subr.mxu0 0.0
    %6839 = vmatpush1.msra.mxu0 %v6795
    %6840 = vmatprep.subr.mxu0 0.0
    %6841 = vmatpush1.msra.mxu0 %v6796
    %6842 = vmatprep.subr.mxu0 0.0
    %6843 = vmatpush1.msra.mxu0 %v6797
    %6844 = vmatprep.subr.mxu0 0.0
    %6845 = vmatpush1.msra.mxu0 %v6798
    %6846 = vmatprep.subr.mxu0 0.0
    %6847 = vmatpush1.msra.mxu0 %v6799
    %6848 = vmatprep.subr.mxu0 0.0
    %6849 = vmatpush1.msra.mxu0 %v6800
    %6850 = vmatprep.subr.mxu0 0.0
    %6851 = vmatpush1.msra.mxu0 %v6801
    %6852 = vmatprep.subr.mxu0 0.0
    %6853 = vmatpush1.msra.mxu0 %v6802
    %6854 = vmatprep.subr.mxu0 0.0
    %6855 = vmatpush1.msra.mxu0 %v6803
    %6856 = vmatprep.subr.mxu0 0.0
    %6857 = vmatpush1.msra.mxu0 %v6804
    %6858 = vmatprep.subr.mxu0 0.0
    %6859 = vmatpush1.msra.mxu0 %v6805
    %6860 = vmatprep.subr.mxu0 0.0
    %6861 = vmatpush1.msra.mxu0 %v6806
    %6862 = vmatprep.subr.mxu0 0.0
    %6863 = vmatpush1.msra.mxu0 %v6807
    %6864 = vmatprep.subr.mxu0 0.0
    %6865 = vmatpush1.msra.mxu0 %v6808
    %6866 = vmatprep.subr.mxu0 0.0
    %6867 = vmatpush1.msra.mxu0 %v6809
    %6868 = vmatprep.subr.mxu0 0.0
    %6869 = vmatpush1.msra.mxu0 %v6810
    %6870 = vmatprep.subr.mxu0 0.0
    %6871 = vmatpush1.msra.mxu0 0.0
    %6872 = vmatprep.subr.mxu0 0.0
    %6873 = vmatpush1.msra.mxu0 0.0
    %6874 = vmatprep.subr.mxu0 0.0
    %6875 = vmatpush1.msra.mxu0 0.0
    %6876 = vmatprep.subr.mxu0 0.0
    %6877 = vmatpush1.msra.mxu0 0.0
    %6878 = vmatprep.mubr.f32.mxu0 %v6812
    %6879 = vmatmul.mubr.f32.gmra.mrb[0].mxu0 %v5941
    %v6880 = vpop.f32.mrb[0].mxu0
    %v6881 = vadd.f32 0.0, %v6880
    %v6882 = vpop.f32.mrb[0].mxu0
    %6883 = vdwg.mxu0
    %v6884 = vadd.f32 %v6782, %v6881
    %v6885 = vld [vmem:[#allocation23 + $0x1c0] sm:$0xff]
    %v6886 = vld [vmem:[#allocation23 + $0x1c8] sm:$0xff]
    %v6887 = vld [vmem:[#allocation23 + $0x1d0] sm:$0xff]
    %v6888 = vld [vmem:[#allocation23 + $0x1d8] sm:$0xff]
    %v6889 = vld [vmem:[#allocation23 + $0x1e0] sm:$0xff]
    %v6890 = vld [vmem:[#allocation23 + $0x1e8] sm:$0xff]
    %v6891 = vld [vmem:[#allocation23 + $0x1f0] sm:$0xff]
    %v6892 = vld [vmem:[#allocation23 + $0x1f8] sm:$0xff]
    %v6893 = vld [vmem:[#allocation23 + $0x200] sm:$0xff]
    %v6894 = vld [vmem:[#allocation23 + $0x208] sm:$0xff]
    %v6895 = vld [vmem:[#allocation23 + $0x210] sm:$0xff]
    %v6896 = vld [vmem:[#allocation23 + $0x218] sm:$0xff]
    %v6897 = vld [vmem:[#allocation23 + $0x220] sm:$0xff]
    %v6898 = vld [vmem:[#allocation23 + $0x228] sm:$0xff]
    %v6899 = vld [vmem:[#allocation23 + $0x230] sm:$0xff]
    %v6900 = vld [vmem:[#allocation23 + $0x238] sm:$0xff]
    %v6901 = vld [vmem:[#allocation23 + $0x240] sm:$0xff]
    %v6902 = vld [vmem:[#allocation23 + $0x248] sm:$0xff]
    %v6903 = vld [vmem:[#allocation23 + $0x250] sm:$0xff]
    %v6904 = vld [vmem:[#allocation23 + $0x258] sm:$0xff]
    %v6905 = vld [vmem:[#allocation23 + $0x260] sm:$0xff]
    %v6906 = vld [vmem:[#allocation23 + $0x268] sm:$0xff]
    %v6907 = vld [vmem:[#allocation23 + $0x270] sm:$0xff]
    %v6908 = vld [vmem:[#allocation23 + $0x278] sm:$0xff]
    %v6909 = vld [vmem:[#allocation23 + $0x280] sm:$0xff]
    %v6910 = vld [vmem:[#allocation23 + $0x288] sm:$0xff]
    %v6911 = vld [vmem:[#allocation23 + $0x290] sm:$0xff]
    %v6912 = vld [vmem:[#allocation23 + $0x298] sm:$0xff]
    %v6914 = vrot.slane %v5941, 4
    %v6915 = vrot.slane %v5942, 4
    %v6917 = vsel %vm1944, %v6915, 0
    %6919 = vmatprep.subr.mxu0 0.0
    %6920 = vmatpush1.msra.mxu0 %v6885
    %6921 = vmatprep.subr.mxu0 0.0
    %6922 = vmatpush1.msra.mxu0 %v6886
    %6923 = vmatprep.subr.mxu0 0.0
    %6924 = vmatpush1.msra.mxu0 %v6887
    %6925 = vmatprep.subr.mxu0 0.0
    %6926 = vmatpush1.msra.mxu0 %v6888
    %6927 = vmatprep.subr.mxu0 0.0
    %6928 = vmatpush1.msra.mxu0 %v6889
    %6929 = vmatprep.subr.mxu0 0.0
    %6930 = vmatpush1.msra.mxu0 %v6890
    %6931 = vmatprep.subr.mxu0 0.0
    %6932 = vmatpush1.msra.mxu0 %v6891
    %6933 = vmatprep.subr.mxu0 0.0
    %6934 = vmatpush1.msra.mxu0 %v6892
    %6935 = vmatprep.subr.mxu0 0.0
    %6936 = vmatpush1.msra.mxu0 %v6893
    %6937 = vmatprep.subr.mxu0 0.0
    %6938 = vmatpush1.msra.mxu0 %v6894
    %6939 = vmatprep.subr.mxu0 0.0
    %6940 = vmatpush1.msra.mxu0 %v6895
    %6941 = vmatprep.subr.mxu0 0.0
    %6942 = vmatpush1.msra.mxu0 %v6896
    %6943 = vmatprep.subr.mxu0 0.0
    %6944 = vmatpush1.msra.mxu0 %v6897
    %6945 = vmatprep.subr.mxu0 0.0
    %6946 = vmatpush1.msra.mxu0 %v6898
    %6947 = vmatprep.subr.mxu0 0.0
    %6948 = vmatpush1.msra.mxu0 %v6899
    %6949 = vmatprep.subr.mxu0 0.0
    %6950 = vmatpush1.msra.mxu0 %v6900
    %6951 = vmatprep.subr.mxu0 0.0
    %6952 = vmatpush1.msra.mxu0 %v6901
    %6953 = vmatprep.subr.mxu0 0.0
    %6954 = vmatpush1.msra.mxu0 %v6902
    %6955 = vmatprep.subr.mxu0 0.0
    %6956 = vmatpush1.msra.mxu0 %v6903
    %6957 = vmatprep.subr.mxu0 0.0
    %6958 = vmatpush1.msra.mxu0 %v6904
    %6959 = vmatprep.subr.mxu0 0.0
    %6960 = vmatpush1.msra.mxu0 %v6905
    %6961 = vmatprep.subr.mxu0 0.0
    %6962 = vmatpush1.msra.mxu0 %v6906
    %6963 = vmatprep.subr.mxu0 0.0
    %6964 = vmatpush1.msra.mxu0 %v6907
    %6965 = vmatprep.subr.mxu0 0.0
    %6966 = vmatpush1.msra.mxu0 %v6908
    %6967 = vmatprep.subr.mxu0 0.0
    %6968 = vmatpush1.msra.mxu0 %v6909
    %6969 = vmatprep.subr.mxu0 0.0
    %6970 = vmatpush1.msra.mxu0 %v6910
    %6971 = vmatprep.subr.mxu0 0.0
    %6972 = vmatpush1.msra.mxu0 %v6911
    %6973 = vmatprep.subr.mxu0 0.0
    %6974 = vmatpush1.msra.mxu0 %v6912
    %6975 = vmatprep.subr.mxu0 0.0
    %6976 = vmatpush1.msra.mxu0 0.0
    %6977 = vmatprep.subr.mxu0 0.0
    %6978 = vmatpush1.msra.mxu0 0.0
    %6979 = vmatprep.subr.mxu0 0.0
    %6980 = vmatpush1.msra.mxu0 0.0
    %6981 = vmatprep.subr.mxu0 0.0
    %6982 = vmatpush1.msra.mxu0 0.0
    %6983 = vmatprep.mubr.f32.mxu0 %v6917
    %6984 = vmatmul.mubr.f32.gmra.mrb[0].mxu0 %v6914
    %v6985 = vpop.f32.mrb[0].mxu0
    %v6986 = vadd.f32 0.0, %v6985
    %v6987 = vpop.f32.mrb[0].mxu0
    %6988 = vdwg.mxu0
    %v6989 = vadd.f32 %v6884, %v6986
    %v6990 = vld [vmem:[#allocation23 + $0x2a0] sm:$0xff]
    %v6991 = vld [vmem:[#allocation23 + $0x2a8] sm:$0xff]
    %v6992 = vld [vmem:[#allocation23 + $0x2b0] sm:$0xff]
    %v6993 = vld [vmem:[#allocation23 + $0x2b8] sm:$0xff]
    %v6994 = vld [vmem:[#allocation23 + $0x2c0] sm:$0xff]
    %v6995 = vld [vmem:[#allocation23 + $0x2c8] sm:$0xff]
    %v6996 = vld [vmem:[#allocation23 + $0x2d0] sm:$0xff]
    %v6997 = vld [vmem:[#allocation23 + $0x2d8] sm:$0xff]
    %v6998 = vld [vmem:[#allocation23 + $0x2e0] sm:$0xff]
    %v6999 = vld [vmem:[#allocation23 + $0x2e8] sm:$0xff]
    %v7000 = vld [vmem:[#allocation23 + $0x2f0] sm:$0xff]
    %v7001 = vld [vmem:[#allocation23 + $0x2f8] sm:$0xff]
    %v7002 = vld [vmem:[#allocation23 + $0x300] sm:$0xff]
    %v7003 = vld [vmem:[#allocation23 + $0x308] sm:$0xff]
    %v7004 = vld [vmem:[#allocation23 + $0x310] sm:$0xff]
    %v7005 = vld [vmem:[#allocation23 + $0x318] sm:$0xff]
    %v7006 = vld [vmem:[#allocation23 + $0x320] sm:$0xff]
    %v7007 = vld [vmem:[#allocation23 + $0x328] sm:$0xff]
    %v7008 = vld [vmem:[#allocation23 + $0x330] sm:$0xff]
    %v7009 = vld [vmem:[#allocation23 + $0x338] sm:$0xff]
    %v7010 = vld [vmem:[#allocation23 + $0x340] sm:$0xff]
    %v7011 = vld [vmem:[#allocation23 + $0x348] sm:$0xff]
    %v7012 = vld [vmem:[#allocation23 + $0x350] sm:$0xff]
    %v7013 = vld [vmem:[#allocation23 + $0x358] sm:$0xff]
    %v7014 = vld [vmem:[#allocation23 + $0x360] sm:$0xff]
    %v7015 = vld [vmem:[#allocation23 + $0x368] sm:$0xff]
    %v7016 = vld [vmem:[#allocation23 + $0x370] sm:$0xff]
    %v7017 = vld [vmem:[#allocation23 + $0x378] sm:$0xff]
    %v7019 = vsel %vm1944, %v5944, 0
    %7021 = vmatprep.subr.mxu0 0.0
    %7022 = vmatpush1.msra.mxu0 %v6990
    %7023 = vmatprep.subr.mxu0 0.0
    %7024 = vmatpush1.msra.mxu0 %v6991
    %7025 = vmatprep.subr.mxu0 0.0
    %7026 = vmatpush1.msra.mxu0 %v6992
    %7027 = vmatprep.subr.mxu0 0.0
    %7028 = vmatpush1.msra.mxu0 %v6993
    %7029 = vmatprep.subr.mxu0 0.0
    %7030 = vmatpush1.msra.mxu0 %v6994
    %7031 = vmatprep.subr.mxu0 0.0
    %7032 = vmatpush1.msra.mxu0 %v6995
    %7033 = vmatprep.subr.mxu0 0.0
    %7034 = vmatpush1.msra.mxu0 %v6996
    %7035 = vmatprep.subr.mxu0 0.0
    %7036 = vmatpush1.msra.mxu0 %v6997
    %7037 = vmatprep.subr.mxu0 0.0
    %7038 = vmatpush1.msra.mxu0 %v6998
    %7039 = vmatprep.subr.mxu0 0.0
    %7040 = vmatpush1.msra.mxu0 %v6999
    %7041 = vmatprep.subr.mxu0 0.0
    %7042 = vmatpush1.msra.mxu0 %v7000
    %7043 = vmatprep.subr.mxu0 0.0
    %7044 = vmatpush1.msra.mxu0 %v7001
    %7045 = vmatprep.subr.mxu0 0.0
    %7046 = vmatpush1.msra.mxu0 %v7002
    %7047 = vmatprep.subr.mxu0 0.0
    %7048 = vmatpush1.msra.mxu0 %v7003
    %7049 = vmatprep.subr.mxu0 0.0
    %7050 = vmatpush1.msra.mxu0 %v7004
    %7051 = vmatprep.subr.mxu0 0.0
    %7052 = vmatpush1.msra.mxu0 %v7005
    %7053 = vmatprep.subr.mxu0 0.0
    %7054 = vmatpush1.msra.mxu0 %v7006
    %7055 = vmatprep.subr.mxu0 0.0
    %7056 = vmatpush1.msra.mxu0 %v7007
    %7057 = vmatprep.subr.mxu0 0.0
    %7058 = vmatpush1.msra.mxu0 %v7008
    %7059 = vmatprep.subr.mxu0 0.0
    %7060 = vmatpush1.msra.mxu0 %v7009
    %7061 = vmatprep.subr.mxu0 0.0
    %7062 = vmatpush1.msra.mxu0 %v7010
    %7063 = vmatprep.subr.mxu0 0.0
    %7064 = vmatpush1.msra.mxu0 %v7011
    %7065 = vmatprep.subr.mxu0 0.0
    %7066 = vmatpush1.msra.mxu0 %v7012
    %7067 = vmatprep.subr.mxu0 0.0
    %7068 = vmatpush1.msra.mxu0 %v7013
    %7069 = vmatprep.subr.mxu0 0.0
    %7070 = vmatpush1.msra.mxu0 %v7014
    %7071 = vmatprep.subr.mxu0 0.0
    %7072 = vmatpush1.msra.mxu0 %v7015
    %7073 = vmatprep.subr.mxu0 0.0
    %7074 = vmatpush1.msra.mxu0 %v7016
    %7075 = vmatprep.subr.mxu0 0.0
    %7076 = vmatpush1.msra.mxu0 %v7017
    %7077 = vmatprep.subr.mxu0 0.0
    %7078 = vmatpush1.msra.mxu0 0.0
    %7079 = vmatprep.subr.mxu0 0.0
    %7080 = vmatpush1.msra.mxu0 0.0
    %7081 = vmatprep.subr.mxu0 0.0
    %7082 = vmatpush1.msra.mxu0 0.0
    %7083 = vmatprep.subr.mxu0 0.0
    %7084 = vmatpush1.msra.mxu0 0.0
    %7085 = vmatprep.mubr.f32.mxu0 %v7019
    %7086 = vmatmul.mubr.f32.gmra.mrb[0].mxu0 %v5943
    %v7087 = vpop.f32.mrb[0].mxu0
    %v7088 = vadd.f32 0.0, %v7087
    %v7089 = vpop.f32.mrb[0].mxu0
    %7090 = vdwg.mxu0
    %v7091 = vadd.f32 %v6989, %v7088
    %v7092 = vld [vmem:[#allocation23 + $0x380] sm:$0xff]
    %v7093 = vld [vmem:[#allocation23 + $0x388] sm:$0xff]
    %v7094 = vld [vmem:[#allocation23 + $0x390] sm:$0xff]
    %v7095 = vld [vmem:[#allocation23 + $0x398] sm:$0xff]
    %v7096 = vld [vmem:[#allocation23 + $0x3a0] sm:$0xff]
    %v7097 = vld [vmem:[#allocation23 + $0x3a8] sm:$0xff]
    %v7098 = vld [vmem:[#allocation23 + $0x3b0] sm:$0xff]
    %v7099 = vld [vmem:[#allocation23 + $0x3b8] sm:$0xff]
    %v7100 = vld [vmem:[#allocation23 + $0x3c0] sm:$0xff]
    %v7101 = vld [vmem:[#allocation23 + $0x3c8] sm:$0xff]
    %v7102 = vld [vmem:[#allocation23 + $0x3d0] sm:$0xff]
    %v7103 = vld [vmem:[#allocation23 + $0x3d8] sm:$0xff]
    %v7104 = vld [vmem:[#allocation23 + $0x3e0] sm:$0xff]
    %v7105 = vld [vmem:[#allocation23 + $0x3e8] sm:$0xff]
    %v7106 = vld [vmem:[#allocation23 + $0x3f0] sm:$0xff]
    %v7107 = vld [vmem:[#allocation23 + $0x3f8] sm:$0xff]
    %v7108 = vld [vmem:[#allocation23 + $0x400] sm:$0xff]
    %v7109 = vld [vmem:[#allocation23 + $0x408] sm:$0xff]
    %v7110 = vld [vmem:[#allocation23 + $0x410] sm:$0xff]
    %v7111 = vld [vmem:[#allocation23 + $0x418] sm:$0xff]
    %v7112 = vld [vmem:[#allocation23 + $0x420] sm:$0xff]
    %v7113 = vld [vmem:[#allocation23 + $0x428] sm:$0xff]
    %v7114 = vld [vmem:[#allocation23 + $0x430] sm:$0xff]
    %v7115 = vld [vmem:[#allocation23 + $0x438] sm:$0xff]
    %v7116 = vld [vmem:[#allocation23 + $0x440] sm:$0xff]
    %v7117 = vld [vmem:[#allocation23 + $0x448] sm:$0xff]
    %v7118 = vld [vmem:[#allocation23 + $0x450] sm:$0xff]
    %v7119 = vld [vmem:[#allocation23 + $0x458] sm:$0xff]
    %v7121 = vrot.slane %v5943, 4
    %v7122 = vrot.slane %v5944, 4
    %v7124 = vsel %vm1944, %v7122, 0
    %7126 = vmatprep.subr.mxu0 0.0
    %7127 = vmatpush1.msra.mxu0 %v7092
    %7128 = vmatprep.subr.mxu0 0.0
    %7129 = vmatpush1.msra.mxu0 %v7093
    %7130 = vmatprep.subr.mxu0 0.0
    %7131 = vmatpush1.msra.mxu0 %v7094
    %7132 = vmatprep.subr.mxu0 0.0
    %7133 = vmatpush1.msra.mxu0 %v7095
    %7134 = vmatprep.subr.mxu0 0.0
    %7135 = vmatpush1.msra.mxu0 %v7096
    %7136 = vmatprep.subr.mxu0 0.0
    %7137 = vmatpush1.msra.mxu0 %v7097
    %7138 = vmatprep.subr.mxu0 0.0
    %7139 = vmatpush1.msra.mxu0 %v7098
    %7140 = vmatprep.subr.mxu0 0.0
    %7141 = vmatpush1.msra.mxu0 %v7099
    %7142 = vmatprep.subr.mxu0 0.0
    %7143 = vmatpush1.msra.mxu0 %v7100
    %7144 = vmatprep.subr.mxu0 0.0
    %7145 = vmatpush1.msra.mxu0 %v7101
    %7146 = vmatprep.subr.mxu0 0.0
    %7147 = vmatpush1.msra.mxu0 %v7102
    %7148 = vmatprep.subr.mxu0 0.0
    %7149 = vmatpush1.msra.mxu0 %v7103
    %7150 = vmatprep.subr.mxu0 0.0
    %7151 = vmatpush1.msra.mxu0 %v7104
    %7152 = vmatprep.subr.mxu0 0.0
    %7153 = vmatpush1.msra.mxu0 %v7105
    %7154 = vmatprep.subr.mxu0 0.0
    %7155 = vmatpush1.msra.mxu0 %v7106
    %7156 = vmatprep.subr.mxu0 0.0
    %7157 = vmatpush1.msra.mxu0 %v7107
    %7158 = vmatprep.subr.mxu0 0.0
    %7159 = vmatpush1.msra.mxu0 %v7108
    %7160 = vmatprep.subr.mxu0 0.0
    %7161 = vmatpush1.msra.mxu0 %v7109
    %7162 = vmatprep.subr.mxu0 0.0
    %7163 = vmatpush1.msra.mxu0 %v7110
    %7164 = vmatprep.subr.mxu0 0.0
    %7165 = vmatpush1.msra.mxu0 %v7111
    %7166 = vmatprep.subr.mxu0 0.0
    %7167 = vmatpush1.msra.mxu0 %v7112
    %7168 = vmatprep.subr.mxu0 0.0
    %7169 = vmatpush1.msra.mxu0 %v7113
    %7170 = vmatprep.subr.mxu0 0.0
    %7171 = vmatpush1.msra.mxu0 %v7114
    %7172 = vmatprep.subr.mxu0 0.0
    %7173 = vmatpush1.msra.mxu0 %v7115
    %7174 = vmatprep.subr.mxu0 0.0
    %7175 = vmatpush1.msra.mxu0 %v7116
    %7176 = vmatprep.subr.mxu0 0.0
    %7177 = vmatpush1.msra.mxu0 %v7117
    %7178 = vmatprep.subr.mxu0 0.0
    %7179 = vmatpush1.msra.mxu0 %v7118
    %7180 = vmatprep.subr.mxu0 0.0
    %7181 = vmatpush1.msra.mxu0 %v7119
    %7182 = vmatprep.subr.mxu0 0.0
    %7183 = vmatpush1.msra.mxu0 0.0
    %7184 = vmatprep.subr.mxu0 0.0
    %7185 = vmatpush1.msra.mxu0 0.0
    %7186 = vmatprep.subr.mxu0 0.0
    %7187 = vmatpush1.msra.mxu0 0.0
    %7188 = vmatprep.subr.mxu0 0.0
    %7189 = vmatpush1.msra.mxu0 0.0
    %7190 = vmatprep.mubr.f32.mxu0 %v7124
    %7191 = vmatmul.mubr.f32.gmra.mrb[0].mxu0 %v7121
    %v7192 = vpop.f32.mrb[0].mxu0
    %v7193 = vadd.f32 0.0, %v7192
    %v7194 = vpop.f32.mrb[0].mxu0
    %7195 = vdwg.mxu0
    %v7196 = vadd.f32 %v7091, %v7193
    %v7197 = vld [vmem:[#allocation23 + $0x460] sm:$0xff]
    %v7198 = vld [vmem:[#allocation23 + $0x468] sm:$0xff]
    %v7199 = vld [vmem:[#allocation23 + $0x470] sm:$0xff]
    %v7200 = vld [vmem:[#allocation23 + $0x478] sm:$0xff]
    %v7201 = vld [vmem:[#allocation23 + $0x480] sm:$0xff]
    %v7202 = vld [vmem:[#allocation23 + $0x488] sm:$0xff]
    %v7203 = vld [vmem:[#allocation23 + $0x490] sm:$0xff]
    %v7204 = vld [vmem:[#allocation23 + $0x498] sm:$0xff]
    %v7205 = vld [vmem:[#allocation23 + $0x4a0] sm:$0xff]
    %v7206 = vld [vmem:[#allocation23 + $0x4a8] sm:$0xff]
    %v7207 = vld [vmem:[#allocation23 + $0x4b0] sm:$0xff]
    %v7208 = vld [vmem:[#allocation23 + $0x4b8] sm:$0xff]
    %v7209 = vld [vmem:[#allocation23 + $0x4c0] sm:$0xff]
    %v7210 = vld [vmem:[#allocation23 + $0x4c8] sm:$0xff]
    %v7211 = vld [vmem:[#allocation23 + $0x4d0] sm:$0xff]
    %v7212 = vld [vmem:[#allocation23 + $0x4d8] sm:$0xff]
    %v7213 = vld [vmem:[#allocation23 + $0x4e0] sm:$0xff]
    %v7214 = vld [vmem:[#allocation23 + $0x4e8] sm:$0xff]
    %v7215 = vld [vmem:[#allocation23 + $0x4f0] sm:$0xff]
    %v7216 = vld [vmem:[#allocation23 + $0x4f8] sm:$0xff]
    %v7217 = vld [vmem:[#allocation23 + $0x500] sm:$0xff]
    %v7218 = vld [vmem:[#allocation23 + $0x508] sm:$0xff]
    %v7219 = vld [vmem:[#allocation23 + $0x510] sm:$0xff]
    %v7220 = vld [vmem:[#allocation23 + $0x518] sm:$0xff]
    %v7221 = vld [vmem:[#allocation23 + $0x520] sm:$0xff]
    %v7222 = vld [vmem:[#allocation23 + $0x528] sm:$0xff]
    %v7223 = vld [vmem:[#allocation23 + $0x530] sm:$0xff]
    %v7224 = vld [vmem:[#allocation23 + $0x538] sm:$0xff]
    %v7226 = vsel %vm1944, %v5946, 0
    %7228 = vmatprep.subr.mxu0 0.0
    %7229 = vmatpush1.msra.mxu0 %v7197
    %7230 = vmatprep.subr.mxu0 0.0
    %7231 = vmatpush1.msra.mxu0 %v7198
    %7232 = vmatprep.subr.mxu0 0.0
    %7233 = vmatpush1.msra.mxu0 %v7199
    %7234 = vmatprep.subr.mxu0 0.0
    %7235 = vmatpush1.msra.mxu0 %v7200
    %7236 = vmatprep.subr.mxu0 0.0
    %7237 = vmatpush1.msra.mxu0 %v7201
    %7238 = vmatprep.subr.mxu0 0.0
    %7239 = vmatpush1.msra.mxu0 %v7202
    %7240 = vmatprep.subr.mxu0 0.0
    %7241 = vmatpush1.msra.mxu0 %v7203
    %7242 = vmatprep.subr.mxu0 0.0
    %7243 = vmatpush1.msra.mxu0 %v7204
    %7244 = vmatprep.subr.mxu0 0.0
    %7245 = vmatpush1.msra.mxu0 %v7205
    %7246 = vmatprep.subr.mxu0 0.0
    %7247 = vmatpush1.msra.mxu0 %v7206
    %7248 = vmatprep.subr.mxu0 0.0
    %7249 = vmatpush1.msra.mxu0 %v7207
    %7250 = vmatprep.subr.mxu0 0.0
    %7251 = vmatpush1.msra.mxu0 %v7208
    %7252 = vmatprep.subr.mxu0 0.0
    %7253 = vmatpush1.msra.mxu0 %v7209
    %7254 = vmatprep.subr.mxu0 0.0
    %7255 = vmatpush1.msra.mxu0 %v7210
    %7256 = vmatprep.subr.mxu0 0.0
    %7257 = vmatpush1.msra.mxu0 %v7211
    %7258 = vmatprep.subr.mxu0 0.0
    %7259 = vmatpush1.msra.mxu0 %v7212
    %7260 = vmatprep.subr.mxu0 0.0
    %7261 = vmatpush1.msra.mxu0 %v7213
    %7262 = vmatprep.subr.mxu0 0.0
    %7263 = vmatpush1.msra.mxu0 %v7214
    %7264 = vmatprep.subr.mxu0 0.0
    %7265 = vmatpush1.msra.mxu0 %v7215
    %7266 = vmatprep.subr.mxu0 0.0
    %7267 = vmatpush1.msra.mxu0 %v7216
    %7268 = vmatprep.subr.mxu0 0.0
    %7269 = vmatpush1.msra.mxu0 %v7217
    %7270 = vmatprep.subr.mxu0 0.0
    %7271 = vmatpush1.msra.mxu0 %v7218
    %7272 = vmatprep.subr.mxu0 0.0
    %7273 = vmatpush1.msra.mxu0 %v7219
    %7274 = vmatprep.subr.mxu0 0.0
    %7275 = vmatpush1.msra.mxu0 %v7220
    %7276 = vmatprep.subr.mxu0 0.0
    %7277 = vmatpush1.msra.mxu0 %v7221
    %7278 = vmatprep.subr.mxu0 0.0
    %7279 = vmatpush1.msra.mxu0 %v7222
    %7280 = vmatprep.subr.mxu0 0.0
    %7281 = vmatpush1.msra.mxu0 %v7223
    %7282 = vmatprep.subr.mxu0 0.0
    %7283 = vmatpush1.msra.mxu0 %v7224
    %7284 = vmatprep.subr.mxu0 0.0
    %7285 = vmatpush1.msra.mxu0 0.0
    %7286 = vmatprep.subr.mxu0 0.0
    %7287 = vmatpush1.msra.mxu0 0.0
    %7288 = vmatprep.subr.mxu0 0.0
    %7289 = vmatpush1.msra.mxu0 0.0
    %7290 = vmatprep.subr.mxu0 0.0
    %7291 = vmatpush1.msra.mxu0 0.0
    %7292 = vmatprep.mubr.f32.mxu0 %v7226
    %7293 = vmatmul.mubr.f32.gmra.mrb[0].mxu0 %v5945
    %v7294 = vpop.f32.mrb[0].mxu0
    %v7295 = vadd.f32 0.0, %v7294
    %v7296 = vpop.f32.mrb[0].mxu0
    %7297 = vdwg.mxu0
    %v7298 = vadd.f32 %v7196, %v7295
    %v7299 = vld [vmem:[#allocation23 + $0x540] sm:$0xff]
    %v7300 = vld [vmem:[#allocation23 + $0x548] sm:$0xff]
    %v7301 = vld [vmem:[#allocation23 + $0x550] sm:$0xff]
    %v7302 = vld [vmem:[#allocation23 + $0x558] sm:$0xff]
    %v7303 = vld [vmem:[#allocation23 + $0x560] sm:$0xff]
    %v7304 = vld [vmem:[#allocation23 + $0x568] sm:$0xff]
    %v7305 = vld [vmem:[#allocation23 + $0x570] sm:$0xff]
    %v7306 = vld [vmem:[#allocation23 + $0x578] sm:$0xff]
    %v7307 = vld [vmem:[#allocation23 + $0x580] sm:$0xff]
    %v7308 = vld [vmem:[#allocation23 + $0x588] sm:$0xff]
    %v7309 = vld [vmem:[#allocation23 + $0x590] sm:$0xff]
    %v7310 = vld [vmem:[#allocation23 + $0x598] sm:$0xff]
    %v7311 = vld [vmem:[#allocation23 + $0x5a0] sm:$0xff]
    %v7312 = vld [vmem:[#allocation23 + $0x5a8] sm:$0xff]
    %v7313 = vld [vmem:[#allocation23 + $0x5b0] sm:$0xff]
    %v7314 = vld [vmem:[#allocation23 + $0x5b8] sm:$0xff]
    %v7315 = vld [vmem:[#allocation23 + $0x5c0] sm:$0xff]
    %v7316 = vld [vmem:[#allocation23 + $0x5c8] sm:$0xff]
    %v7317 = vld [vmem:[#allocation23 + $0x5d0] sm:$0xff]
    %v7318 = vld [vmem:[#allocation23 + $0x5d8] sm:$0xff]
    %v7319 = vld [vmem:[#allocation23 + $0x5e0] sm:$0xff]
    %v7320 = vld [vmem:[#allocation23 + $0x5e8] sm:$0xff]
    %v7321 = vld [vmem:[#allocation23 + $0x5f0] sm:$0xff]
    %v7322 = vld [vmem:[#allocation23 + $0x5f8] sm:$0xff]
    %v7323 = vld [vmem:[#allocation23 + $0x600] sm:$0xff]
    %v7324 = vld [vmem:[#allocation23 + $0x608] sm:$0xff]
    %v7325 = vld [vmem:[#allocation23 + $0x610] sm:$0xff]
    %v7326 = vld [vmem:[#allocation23 + $0x618] sm:$0xff]
    %v7328 = vrot.slane %v5945, 4
    %v7329 = vrot.slane %v5946, 4
    %v7331 = vsel %vm1944, %v7329, 0
    %7333 = vmatprep.subr.mxu0 0.0
    %7334 = vmatpush1.msra.mxu0 %v7299
    %7335 = vmatprep.subr.mxu0 0.0
    %7336 = vmatpush1.msra.mxu0 %v7300
    %7337 = vmatprep.subr.mxu0 0.0
    %7338 = vmatpush1.msra.mxu0 %v7301
    %7339 = vmatprep.subr.mxu0 0.0
    %7340 = vmatpush1.msra.mxu0 %v7302
    %7341 = vmatprep.subr.mxu0 0.0
    %7342 = vmatpush1.msra.mxu0 %v7303
    %7343 = vmatprep.subr.mxu0 0.0
    %7344 = vmatpush1.msra.mxu0 %v7304
    %7345 = vmatprep.subr.mxu0 0.0
    %7346 = vmatpush1.msra.mxu0 %v7305
    %7347 = vmatprep.subr.mxu0 0.0
    %7348 = vmatpush1.msra.mxu0 %v7306
    %7349 = vmatprep.subr.mxu0 0.0
    %7350 = vmatpush1.msra.mxu0 %v7307
    %7351 = vmatprep.subr.mxu0 0.0
    %7352 = vmatpush1.msra.mxu0 %v7308
    %7353 = vmatprep.subr.mxu0 0.0
    %7354 = vmatpush1.msra.mxu0 %v7309
    %7355 = vmatprep.subr.mxu0 0.0
    %7356 = vmatpush1.msra.mxu0 %v7310
    %7357 = vmatprep.subr.mxu0 0.0
    %7358 = vmatpush1.msra.mxu0 %v7311
    %7359 = vmatprep.subr.mxu0 0.0
    %7360 = vmatpush1.msra.mxu0 %v7312
    %7361 = vmatprep.subr.mxu0 0.0
    %7362 = vmatpush1.msra.mxu0 %v7313
    %7363 = vmatprep.subr.mxu0 0.0
    %7364 = vmatpush1.msra.mxu0 %v7314
    %7365 = vmatprep.subr.mxu0 0.0
    %7366 = vmatpush1.msra.mxu0 %v7315
    %7367 = vmatprep.subr.mxu0 0.0
    %7368 = vmatpush1.msra.mxu0 %v7316
    %7369 = vmatprep.subr.mxu0 0.0
    %7370 = vmatpush1.msra.mxu0 %v7317
    %7371 = vmatprep.subr.mxu0 0.0
    %7372 = vmatpush1.msra.mxu0 %v7318
    %7373 = vmatprep.subr.mxu0 0.0
    %7374 = vmatpush1.msra.mxu0 %v7319
    %7375 = vmatprep.subr.mxu0 0.0
    %7376 = vmatpush1.msra.mxu0 %v7320
    %7377 = vmatprep.subr.mxu0 0.0
    %7378 = vmatpush1.msra.mxu0 %v7321
    %7379 = vmatprep.subr.mxu0 0.0
    %7380 = vmatpush1.msra.mxu0 %v7322
    %7381 = vmatprep.subr.mxu0 0.0
    %7382 = vmatpush1.msra.mxu0 %v7323
    %7383 = vmatprep.subr.mxu0 0.0
    %7384 = vmatpush1.msra.mxu0 %v7324
    %7385 = vmatprep.subr.mxu0 0.0
    %7386 = vmatpush1.msra.mxu0 %v7325
    %7387 = vmatprep.subr.mxu0 0.0
    %7388 = vmatpush1.msra.mxu0 %v7326
    %7389 = vmatprep.subr.mxu0 0.0
    %7390 = vmatpush1.msra.mxu0 0.0
    %7391 = vmatprep.subr.mxu0 0.0
    %7392 = vmatpush1.msra.mxu0 0.0
    %7393 = vmatprep.subr.mxu0 0.0
    %7394 = vmatpush1.msra.mxu0 0.0
    %7395 = vmatprep.subr.mxu0 0.0
    %7396 = vmatpush1.msra.mxu0 0.0
    %7397 = vmatprep.mubr.f32.mxu0 %v7331
    %7398 = vmatmul.mubr.f32.gmra.mrb[0].mxu0 %v7328
    %v7399 = vpop.f32.mrb[0].mxu0
    %v7400 = vadd.f32 0.0, %v7399
    %v7401 = vpop.f32.mrb[0].mxu0
    %7402 = vdwg.mxu0
    %v7403 = vadd.f32 %v7298, %v7400
    %7404 = vst [vmem:[#allocation26 + $0x1] sm:$0x1] %v7403
    // Predicated region
    $region134: #{tpu_custom_call.1} parent=1 // pred_check
      _
    $region135: #{tpu_custom_call.1} parent=1 // pred_check_branch
      %7406 = sbr.rel (0) target = $region137
    $region136: #{tpu_custom_call.1} parent=1 // pred_region
      %s7408 = ssub.s32 32, 32
      %7409 = vsyncadd [#allocation5], %s7408
      %s7411 = sshll.u32 [#allocation26], 4
      %s7412 = int_to_ptr.vmem [resolvable:$true] %s7411
      %7414 = dma.vmem_to_hbm [thread:$0]  %s7412, 32, %s19, [#allocation5]
    $region137: #{tpu_custom_call.1} parent=1 // pred_fallthru
      _
    // Predicated region
    $region138: #{tpu_custom_call.1} parent=1 // pred_check
      _
    $region139: #{tpu_custom_call.1} parent=1 // pred_check_branch
      %7416 = sbr.rel (0) target = $region141
    $region140: #{tpu_custom_call.1} parent=1 // pred_region
      %7417 = dma.done [#allocation5], 32
    $region141: #{tpu_custom_call.1} parent=1 // pred_fallthru
      _
    %7418 = vsyncpa [#allocation4], 1
    %7419 = vsyncpa [#allocation7], 1
    %7420 = vsyncpa [#allocation10], 1
    %7421 = vsyncpa [#allocation13], 1
    %7422 = vsyncpa [#allocation16], 1
    %7423 = vsyncpa [#allocation19], 1
    %7424 = vsyncpa [#allocation22], 1
    %7425 = vsyncpa [#allocation25], 1
    %7426 = vsyncpa [#allocation5], 1

</llo_original>
